<compile_context>
chip_gen: v7x
topology: tpu7x:2x2x1
jax: 0.10.0
libtpu: 0.0.40
codegen_flags: <defaults>
</compile_context>

<pallas_src>
import functools

import jax
import jax.numpy as jnp
from jax import lax
from jax.experimental import pallas as pl
from jax.experimental.pallas import tpu as pltpu

EPS = 1e-5  # PyTorch LayerNorm default

_VMEM_BUDGET = 40 << 20   # stay well under v7x's 64 MiB physical VMEM (default scoped 32 MiB)


def _layernorm(x, gamma, beta):
    # biased variance + eps inside rsqrt, then affine  (matches nn.LayerNorm)
    mean = jnp.mean(x, axis=-1, keepdims=True)
    var = jnp.mean(jnp.square(x - mean), axis=-1, keepdims=True)
    return (x - mean) * lax.rsqrt(var + EPS) * gamma + beta


def _round_up(n, m):
    return -(-n // m) * m


def _vmem_bytes(bt, ts, C, H, N2):
    return (2 * bt * ts * C * 2        # features tile, double-buffered bf16
            + 2 * bt * C * H * 2       # pro_features tile, double-buffered bf16
            + 2 * ts * H * N2 * 2      # weight K-chunk, double-buffered bf16
            + 2 * bt * N2 * 4          # output tile, double-buffered f32
            + bt * N2 * 4              # f32 accumulator scratch
            + bt * ts * H * (4 + 2))   # live stage-1 intermediate (f32 + bf16 copy)


def _pick_tiles(B, S, C, H, N2, batch_block, s_block):
    # --- batch (M) tile: as large as possible, multiple of 8; batch is zero-padded to it ---
    bt = min(_round_up(batch_block, 8), _round_up(B, 8))
    if B >= 128 and _round_up(B, bt) // bt < 2:
        # v7x has 2 TensorCores: keep the "parallel" batch axis >= 2 tiles when batch allows
        bt = _round_up(-(-B // 2), 8)

    # --- S (reduction / K) tile: divisor of S, multiple of 16 for bf16 sublane packing ---
    s_cands = sorted((d for d in range(1, S + 1)
                      if S % d == 0 and (d % 16 == 0 or d == S)), reverse=True)
    ts = s_cands[-1]
    for d in s_cands:
        if (d <= max(s_block, s_cands[-1])
                and 2 * d * H * N2 * 2 <= (16 << 20)          # double-buffered weight chunk
                and _vmem_bytes(bt, d, C, H, N2) <= _VMEM_BUDGET):
            ts = d
            break

    # --- if still over budget, shrink the batch tile ---
    while bt > 8 and _vmem_bytes(bt, ts, C, H, N2) > _VMEM_BUDGET:
        bt = _round_up(bt // 2, 8)
    return bt, ts


def _dynamic_conv_kernel(f_ref, p_ref, g1_ref, b1_ref, w2_ref, bw_ref, g2_ref, b2_ref,
                         o_ref, acc_ref, *, flat_stage2):
    # f_ref : (bt, ts, C) bf16     p_ref : (bt, C, H) bf16     w2_ref: (ts*H, 2H) bf16
    # g1/b1 : (1, H) f32           bw/g2/b2: (1, 2H) f32       o_ref : (bt, 2H) f32
    # acc_ref: (bt, 2H) f32 VMEM scratch, resident across the S-reduction grid axis
    j = pl.program_id(1)

    @pl.when(j == 0)
    def _init():
        acc_ref[...] = jnp.zeros_like(acc_ref)

    # ---- stage 1: batched bmm on the MXU (bf16 in, f32 acc) -> LayerNorm(H) -> ReLU ----
    x = jnp.einsum("bsc,bch->bsh", f_ref[...], p_ref[...],
                   preferred_element_type=jnp.float32)              # (bt, ts, H) f32
    x = jnp.maximum(_layernorm(x, g1_ref[...], b1_ref[...]), 0.0)
    x = x.astype(jnp.bfloat16)                                      # single cast

    bt, ts, h = x.shape
    if flat_stage2:
        # ---- stage 2 partial: ONE contraction with K = ts*H (flatten(1) of this S-chunk) ----
        part = jnp.dot(x.reshape(bt, ts * h), w2_ref[...],
                       preferred_element_type=jnp.float32)          # (bt, 2H) f32
    else:
        # Fallback: same math as sum_s x[:, s, :] @ W[s*H:(s+1)*H, :]  (proven lowering path).
        part = jnp.zeros((bt, acc_ref.shape[-1]), jnp.float32)
        for s in range(ts):
            part = part + jnp.dot(x[:, s, :], w2_ref[pl.ds(s * h, h), :],
                                  preferred_element_type=jnp.float32)
    acc_ref[...] += part

    # ---- finalize: bias -> LayerNorm(2H) -> ReLU ----
    @pl.when(j == pl.num_programs(1) - 1)
    def _finalize():
        y = acc_ref[...] + bw_ref[...]
        y = jnp.maximum(_layernorm(y, g2_ref[...], b2_ref[...]), 0.0)
        o_ref[...] = y.astype(o_ref.dtype)


def dynamic_conv_forward(features, pro_features, params, *, batch_block=128, s_block=128):
    B, S, C = features.shape
    Bq, Cq, H = pro_features.shape
    assert Bq == B and Cq == C
    N2 = 2 * H
    w_t = params["w_t"]
    assert w_t.shape == (S * H, N2), "out_layer expects hidden_dim*hidden_dim inputs"

    bt, ts = _pick_tiles(B, S, C, H, N2, batch_block, s_block)
    Bp = _round_up(B, bt)

    # bf16 matmul operands (f32 accumulation happens on the MXU / in the kernel).
    f = features.astype(jnp.bfloat16)
    p = pro_features.astype(jnp.bfloat16)
    if Bp != B:                                   # pad batch with zeros; padded rows discarded
        f = jnp.pad(f, ((0, Bp - B), (0, 0), (0, 0)))
        p = jnp.pad(p, ((0, Bp - B), (0, 0), (0, 0)))
    # Row s*H + h of the Linear weight is already in torch.flatten(1) order -> keep 2D.
    w2 = w_t.astype(jnp.bfloat16)                 # (S*H, 2H)
    g1 = params["g1"].reshape(1, H).astype(jnp.float32)
    b1 = params["b1"].reshape(1, H).astype(jnp.float32)
    bw = params["bw"].reshape(1, N2).astype(jnp.float32)
    g2 = params["g2"].reshape(1, N2).astype(jnp.float32)
    b2 = params["b2"].reshape(1, N2).astype(jnp.float32)

    grid = (Bp // bt, S // ts)
    n_btiles = grid[0]

    flops = 2 * Bp * S * C * H + 2 * Bp * (S * H) * N2
    bytes_accessed = (f.size * 2 + p.size * 2
                      + w2.size * 2 * n_btiles          # weight re-streamed once per batch tile
                      + Bp * N2 * 4
                      + (g1.size + b1.size + bw.size + g2.size + b2.size) * 4)
    vmem_limit = int(min(56 << 20, max(32 << 20, int(1.4 * _vmem_bytes(bt, ts, C, H, N2)))))

    def build(flat_stage2):
        return pl.pallas_call(
            functools.partial(_dynamic_conv_kernel, flat_stage2=flat_stage2),
            out_shape=jax.ShapeDtypeStruct((Bp, N2), jnp.float32),
            grid_spec=pltpu.PrefetchScalarGridSpec(
                num_scalar_prefetch=0,
                grid=grid,
                in_specs=[
                    pl.BlockSpec((bt, ts, C), lambda i, j: (i, j, 0)),    # features K-chunk
                    pl.BlockSpec((bt, C, H), lambda i, j: (i, 0, 0)),     # pro_features (resident over j)
                    pl.BlockSpec((1, H), lambda i, j: (0, 0)),            # gamma1
                    pl.BlockSpec((1, H), lambda i, j: (0, 0)),            # beta1
                    pl.BlockSpec((ts * H, N2), lambda i, j: (j, 0)),      # weight K-chunk (rows)
                    pl.BlockSpec((1, N2), lambda i, j: (0, 0)),           # linear bias
                    pl.BlockSpec((1, N2), lambda i, j: (0, 0)),           # gamma2
                    pl.BlockSpec((1, N2), lambda i, j: (0, 0)),           # beta2
                ],
                out_specs=pl.BlockSpec((bt, N2), lambda i, j: (i, 0)),
                scratch_shapes=[pltpu.VMEM((bt, N2), jnp.float32)],       # f32 accumulator
            ),
            compiler_params=pltpu.CompilerParams(
                dimension_semantics=("parallel", "arbitrary"),            # batch parallel (v7x 2 TCs)
                vmem_limit_bytes=vmem_limit,
            ),
            cost_estimate=pl.CostEstimate(flops=flops, transcendentals=0,
                                          bytes_accessed=bytes_accessed),
        )(f, p, g1, b1, w2, bw, g2, b2)

    try:
        out = build(flat_stage2=True)     # preferred: one K = ts*H MXU stream per grid step
    except Exception:
        # TODO(synk): remove this fallback once the lane-merging activation reshape is
        # confirmed supported by the installed Mosaic version.
        out = build(flat_stage2=False)
    return out[:B]


def reference_forward(features, pro_features, p):
    # Pure-JAX mirror of the PyTorch forward (same bf16-operand / f32-accumulate recipe).
    f = features.astype(jnp.bfloat16)
    pr = pro_features.astype(jnp.bfloat16)
    x = jnp.einsum("bsc,bch->bsh", f, pr, preferred_element_type=jnp.float32)
    x = jnp.maximum(_layernorm(x, p["g1"], p["b1"]), 0.0)
    x = x.reshape(x.shape[0], -1)                                    # torch.flatten(1)
    y = jnp.dot(x.astype(jnp.bfloat16), p["w_t"].astype(jnp.bfloat16),
                preferred_element_type=jnp.float32) + p["bw"]
    y = jnp.maximum(_layernorm(y, p["g2"], p["b2"]), 0.0)
    return y


if __name__ == "__main__":
    B, H, C = 2, 32, 64
    S = H  # flatten(1) must produce H*H features for out_layer
    key = jax.random.PRNGKey(0)
    kf, kp, kw, kb, kg1, kb1, kg2, kb2 = jax.random.split(key, 8)

    features = jax.random.normal(kf, (B, S, C), jnp.float32)        # (B, H*W, C2)
    pro_features = jax.random.normal(kp, (B, C, H), jnp.float32)    # (B, W*H, C1)

    params = {
        "g1": 1.0 + 0.1 * jax.random.normal(kg1, (H,), jnp.float32),
        "b1": 0.1 * jax.random.normal(kb1, (H,), jnp.float32),
        # out_layer weight stored pre-transposed: (H*H, 2H)  (PyTorch Linear: x @ W.T + b)
        "w_t": jax.random.normal(kw, (S * H, 2 * H), jnp.float32) / jnp.sqrt(float(S * H)),
        "bw": 0.1 * jax.random.normal(kb, (2 * H,), jnp.float32),
        "g2": 1.0 + 0.1 * jax.random.normal(kg2, (2 * H,), jnp.float32),
        "b2": 0.1 * jax.random.normal(kb2, (2 * H,), jnp.float32),
    }

    out = jax.block_until_ready(dynamic_conv_forward(features, pro_features, params))
    ref = reference_forward(features, pro_features, params)
    assert out.shape == (B, 2 * H)
    assert jnp.allclose(out, ref, atol=2e-3, rtol=2e-3), float(jnp.max(jnp.abs(out - ref)))
    print("KERNEL_OK")
</pallas_src>

<mosaic_0001>
module attributes {stable_mosaic.version = 11 : i64} {
  func.func @_dynamic_conv_kernel(%arg0: i32, %arg1: i32, %arg2: memref<8x32x64xbf16, #tpu.memory_space<vmem>>, %arg3: memref<8x64x32xbf16, #tpu.memory_space<vmem>>, %arg4: memref<1x32xf32, #tpu.memory_space<vmem>>, %arg5: memref<1x32xf32, #tpu.memory_space<vmem>>, %arg6: memref<1024x64xbf16, #tpu.memory_space<vmem>>, %arg7: memref<1x64xf32, #tpu.memory_space<vmem>>, %arg8: memref<1x64xf32, #tpu.memory_space<vmem>>, %arg9: memref<1x64xf32, #tpu.memory_space<vmem>>, %arg10: memref<8x64xf32, #tpu.memory_space<vmem>>, %arg11: memref<8x64xf32, #tpu.memory_space<vmem>>) attributes {dimension_semantics = [#tpu.dimension_semantics<parallel>, #tpu.dimension_semantics<arbitrary>], iteration_bounds = array<i64: 1, 1>, scalar_prefetch = 0 : i64, scratch_operands = 1 : i64, tpu.core_type = #tpu.core_type<tc>, window_params = [{transform_indices = @transform_0, window_bounds = array<i64: 8, 32, 64>}, {transform_indices = @transform_1, window_bounds = array<i64: 8, 64, 32>}, {pipeline_mode = #tpu.pipeline_mode<synchronous>, transform_indices = @transform_2, window_bounds = array<i64: 1, 32>}, {pipeline_mode = #tpu.pipeline_mode<synchronous>, transform_indices = @transform_3, window_bounds = array<i64: 1, 32>}, {transform_indices = @transform_4, window_bounds = array<i64: 1024, 64>}, {pipeline_mode = #tpu.pipeline_mode<synchronous>, transform_indices = @transform_5, window_bounds = array<i64: 1, 64>}, {pipeline_mode = #tpu.pipeline_mode<synchronous>, transform_indices = @transform_6, window_bounds = array<i64: 1, 64>}, {pipeline_mode = #tpu.pipeline_mode<synchronous>, transform_indices = @transform_7, window_bounds = array<i64: 1, 64>}, {transform_indices = @transform_8, window_bounds = array<i64: 8, 64>}]} {
    %c0_i32 = arith.constant 0 : i32
    %0 = arith.cmpi eq, %arg1, %c0_i32 : i32
    %1 = arith.extui %0 : i1 to i32
    %c0_i32_0 = arith.constant 0 : i32
    %2 = arith.cmpi ne, %1, %c0_i32_0 : i32
    scf.if %2 {
      %cst_25 = arith.constant 0.000000e+00 : f32
      %44 = vector.broadcast %cst_25 : f32 to vector<8x64xf32>
      %c0_26 = arith.constant 0 : index
      %c0_27 = arith.constant 0 : index
      %45 = vector.load %arg11[%c0_26, %c0_27] : memref<8x64xf32, #tpu.memory_space<vmem>>, vector<8x64xf32>
      tpu.vector_store %arg11[%c0_26, %c0_27], %44 {strides = array<i32>} : memref<8x64xf32, #tpu.memory_space<vmem>>, vector<8x64xf32>,
    } else {
    }
    %c0 = arith.constant 0 : index
    %c0_1 = arith.constant 0 : index
    %c0_2 = arith.constant 0 : index
    %3 = vector.load %arg2[%c0, %c0_1, %c0_2] : memref<8x32x64xbf16, #tpu.memory_space<vmem>>, vector<8x32x64xbf16>
    %c0_3 = arith.constant 0 : index
    %c0_4 = arith.constant 0 : index
    %c0_5 = arith.constant 0 : index
    %4 = vector.load %arg3[%c0_3, %c0_4, %c0_5] : memref<8x64x32xbf16, #tpu.memory_space<vmem>>, vector<8x64x32xbf16>
    "tpu.trace_start"() <{level = 10 : i32, message = "bsc,bch->bsh"}> : () -> ()
    %cst = arith.constant dense<0.000000e+00> : vector<8x32x32xf32>
    %5 = tpu.matmul %3, %4, %cst {dimension_numbers = #tpu.dot_dimension_numbers<[2], [1], [1], [2], [0, 0, 0, 1, 1, 2], [0], [0]>} : vector<8x32x64xbf16>, vector<8x64x32xbf16>, vector<8x32x32xf32> -> vector<8x32x32xf32>
    "tpu.trace_stop"() : () -> ()
    %c0_6 = arith.constant 0 : index
    %c0_7 = arith.constant 0 : index
    %6 = vector.load %arg4[%c0_6, %c0_7] : memref<1x32xf32, #tpu.memory_space<vmem>>, vector<1x32xf32>
    %c0_8 = arith.constant 0 : index
    %c0_9 = arith.constant 0 : index
    %7 = vector.load %arg5[%c0_8, %c0_9] : memref<1x32xf32, #tpu.memory_space<vmem>>, vector<1x32xf32>
    %cst_10 = arith.constant dense<0.000000e+00> : vector<8x32xf32>
    %8 = vector.multi_reduction <add>, %5, %cst_10 [2] : vector<8x32x32xf32> to vector<8x32xf32>
    %9 = vector.shape_cast %8 : vector<8x32xf32> to vector<8x32x1xf32>
    %cst_11 = arith.constant 3.200000e+01 : f32
    %10 = vector.broadcast %cst_11 : f32 to vector<8x32x1xf32>
    %11 = arith.divf %9, %10 : vector<8x32x1xf32>
    %12 = vector.broadcast %11 : vector<8x32x1xf32> to vector<8x32x32xf32>
    %13 = arith.subf %5, %12 : vector<8x32x32xf32>
    %14 = arith.mulf %13, %13 : vector<8x32x32xf32>
    %cst_12 = arith.constant dense<0.000000e+00> : vector<8x32xf32>
    %15 = vector.multi_reduction <add>, %14, %cst_12 [2] : vector<8x32x32xf32> to vector<8x32xf32>
    %16 = vector.shape_cast %15 : vector<8x32xf32> to vector<8x32x1xf32>
    %cst_13 = arith.constant 3.200000e+01 : f32
    %17 = vector.broadcast %cst_13 : f32 to vector<8x32x1xf32>
    %18 = arith.divf %16, %17 : vector<8x32x1xf32>
    %19 = vector.broadcast %11 : vector<8x32x1xf32> to vector<8x32x32xf32>
    %20 = arith.subf %5, %19 : vector<8x32x32xf32>
    %cst_14 = arith.constant 9.99999974E-6 : f32
    %21 = vector.broadcast %cst_14 : f32 to vector<8x32x1xf32>
    %22 = arith.addf %18, %21 : vector<8x32x1xf32>
    %23 = math.rsqrt %22 : vector<8x32x1xf32>
    %24 = vector.broadcast %23 : vector<8x32x1xf32> to vector<8x32x32xf32>
    %25 = arith.mulf %20, %24 : vector<8x32x32xf32>
    %26 = vector.shape_cast %6 : vector<1x32xf32> to vector<1x1x32xf32>
    %27 = vector.broadcast %26 : vector<1x1x32xf32> to vector<8x32x32xf32>
    %28 = arith.mulf %25, %27 : vector<8x32x32xf32>
    %29 = vector.shape_cast %7 : vector<1x32xf32> to vector<1x1x32xf32>
    %30 = vector.broadcast %29 : vector<1x1x32xf32> to vector<8x32x32xf32>
    %31 = arith.addf %28, %30 : vector<8x32x32xf32>
    %cst_15 = arith.constant 0.000000e+00 : f32
    %32 = vector.broadcast %cst_15 : f32 to vector<8x32x32xf32>
    %33 = arith.maximumf %31, %32 : vector<8x32x32xf32>
    %34 = arith.truncf %33 : vector<8x32x32xf32> to vector<8x32x32xbf16>
    %35 = vector.shape_cast %34 : vector<8x32x32xbf16> to vector<8x1024xbf16>
    %c0_16 = arith.constant 0 : index
    %c0_17 = arith.constant 0 : index
    %36 = vector.load %arg6[%c0_16, %c0_17] : memref<1024x64xbf16, #tpu.memory_space<vmem>>, vector<1024x64xbf16>
    %cst_18 = arith.constant dense<0.000000e+00> : vector<8x64xf32>
    %37 = tpu.matmul %35, %36, %cst_18 {dimension_numbers = #tpu.dot_dimension_numbers<[1], [0], [0], [1], [0, 0, 1, 1], [], []>} : vector<8x1024xbf16>, vector<1024x64xbf16>, vector<8x64xf32> -> vector<8x64xf32>
    %c0_19 = arith.constant 0 : index
    %c0_20 = arith.constant 0 : index
    %38 = vector.load %arg11[%c0_19, %c0_20] : memref<8x64xf32, #tpu.memory_space<vmem>>, vector<8x64xf32>
    %39 = arith.addf %38, %37 : vector<8x64xf32>
    %c0_21 = arith.constant 0 : index
    %c0_22 = arith.constant 0 : index
    %40 = vector.load %arg11[%c0_21, %c0_22] : memref<8x64xf32, #tpu.memory_space<vmem>>, vector<8x64xf32>
    tpu.vector_store %arg11[%c0_21, %c0_22], %39 {strides = array<i32>} : memref<8x64xf32, #tpu.memory_space<vmem>>, vector<8x64xf32>,
    %c0_i32_23 = arith.constant 0 : i32
    %41 = arith.cmpi eq, %arg1, %c0_i32_23 : i32
    %42 = arith.extui %41 : i1 to i32
    %c0_i32_24 = arith.constant 0 : i32
    %43 = arith.cmpi ne, %42, %c0_i32_24 : i32
    scf.if %43 {
      %c0_25 = arith.constant 0 : index
      %c0_26 = arith.constant 0 : index
      %44 = vector.load %arg11[%c0_25, %c0_26] : memref<8x64xf32, #tpu.memory_space<vmem>>, vector<8x64xf32>
      %c0_27 = arith.constant 0 : index
      %c0_28 = arith.constant 0 : index
      %45 = vector.load %arg7[%c0_27, %c0_28] : memref<1x64xf32, #tpu.memory_space<vmem>>, vector<1x64xf32>
      %46 = vector.broadcast %45 : vector<1x64xf32> to vector<8x64xf32>
      %47 = arith.addf %44, %46 : vector<8x64xf32>
      %c0_29 = arith.constant 0 : index
      %c0_30 = arith.constant 0 : index
      %48 = vector.load %arg8[%c0_29, %c0_30] : memref<1x64xf32, #tpu.memory_space<vmem>>, vector<1x64xf32>
      %c0_31 = arith.constant 0 : index
      %c0_32 = arith.constant 0 : index
      %49 = vector.load %arg9[%c0_31, %c0_32] : memref<1x64xf32, #tpu.memory_space<vmem>>, vector<1x64xf32>
      %cst_33 = arith.constant dense<0.000000e+00> : vector<8xf32>
      %50 = vector.multi_reduction <add>, %47, %cst_33 [1] : vector<8x64xf32> to vector<8xf32>
      %51 = vector.shape_cast %50 : vector<8xf32> to vector<8x1xf32>
      %cst_34 = arith.constant 6.400000e+01 : f32
      %52 = vector.broadcast %cst_34 : f32 to vector<8x1xf32>
      %53 = arith.divf %51, %52 : vector<8x1xf32>
      %54 = vector.broadcast %53 : vector<8x1xf32> to vector<8x64xf32>
      %55 = arith.subf %47, %54 : vector<8x64xf32>
      %56 = arith.mulf %55, %55 : vector<8x64xf32>
      %cst_35 = arith.constant dense<0.000000e+00> : vector<8xf32>
      %57 = vector.multi_reduction <add>, %56, %cst_35 [1] : vector<8x64xf32> to vector<8xf32>
      %58 = vector.shape_cast %57 : vector<8xf32> to vector<8x1xf32>
      %cst_36 = arith.constant 6.400000e+01 : f32
      %59 = vector.broadcast %cst_36 : f32 to vector<8x1xf32>
      %60 = arith.divf %58, %59 : vector<8x1xf32>
      %61 = vector.broadcast %53 : vector<8x1xf32> to vector<8x64xf32>
      %62 = arith.subf %47, %61 : vector<8x64xf32>
      %cst_37 = arith.constant 9.99999974E-6 : f32
      %63 = vector.broadcast %cst_37 : f32 to vector<8x1xf32>
      %64 = arith.addf %60, %63 : vector<8x1xf32>
      %65 = math.rsqrt %64 : vector<8x1xf32>
      %66 = vector.broadcast %65 : vector<8x1xf32> to vector<8x64xf32>
      %67 = arith.mulf %62, %66 : vector<8x64xf32>
      %68 = vector.broadcast %48 : vector<1x64xf32> to vector<8x64xf32>
      %69 = arith.mulf %67, %68 : vector<8x64xf32>
      %70 = vector.broadcast %49 : vector<1x64xf32> to vector<8x64xf32>
      %71 = arith.addf %69, %70 : vector<8x64xf32>
      %cst_38 = arith.constant 0.000000e+00 : f32
      %72 = vector.broadcast %cst_38 : f32 to vector<8x64xf32>
      %73 = arith.maximumf %71, %72 : vector<8x64xf32>
      %c0_39 = arith.constant 0 : index
      %c0_40 = arith.constant 0 : index
      %74 = vector.load %arg10[%c0_39, %c0_40] : memref<8x64xf32, #tpu.memory_space<vmem>>, vector<8x64xf32>
      tpu.vector_store %arg10[%c0_39, %c0_40], %73 {strides = array<i32>} : memref<8x64xf32, #tpu.memory_space<vmem>>, vector<8x64xf32>,
    } else {
    }
    return
  }
  func.func @transform_0(%arg0: i32, %arg1: i32) -> (i32, i32, i32) {
    %c0_i32 = arith.constant 0 : i32
    %c0_i32_0 = arith.constant 0 : i32
    return %arg0, %arg1, %c0_i32 : i32, i32, i32
  }
  func.func @transform_1(%arg0: i32, %arg1: i32) -> (i32, i32, i32) {
    %c0_i32 = arith.constant 0 : i32
    %c0_i32_0 = arith.constant 0 : i32
    %c0_i32_1 = arith.constant 0 : i32
    return %arg0, %c0_i32, %c0_i32_0 : i32, i32, i32
  }
  func.func @transform_2(%arg0: i32, %arg1: i32) -> (i32, i32) {
    %c0_i32 = arith.constant 0 : i32
    %c0_i32_0 = arith.constant 0 : i32
    %c0_i32_1 = arith.constant 0 : i32
    return %c0_i32, %c0_i32_0 : i32, i32
  }
  func.func @transform_3(%arg0: i32, %arg1: i32) -> (i32, i32) {
    %c0_i32 = arith.constant 0 : i32
    %c0_i32_0 = arith.constant 0 : i32
    %c0_i32_1 = arith.constant 0 : i32
    return %c0_i32, %c0_i32_0 : i32, i32
  }
  func.func @transform_4(%arg0: i32, %arg1: i32) -> (i32, i32) {
    %c0_i32 = arith.constant 0 : i32
    %c0_i32_0 = arith.constant 0 : i32
    return %arg1, %c0_i32 : i32, i32
  }
  func.func @transform_5(%arg0: i32, %arg1: i32) -> (i32, i32) {
    %c0_i32 = arith.constant 0 : i32
    %c0_i32_0 = arith.constant 0 : i32
    %c0_i32_1 = arith.constant 0 : i32
    return %c0_i32, %c0_i32_0 : i32, i32
  }
  func.func @transform_6(%arg0: i32, %arg1: i32) -> (i32, i32) {
    %c0_i32 = arith.constant 0 : i32
    %c0_i32_0 = arith.constant 0 : i32
    %c0_i32_1 = arith.constant 0 : i32
    return %c0_i32, %c0_i32_0 : i32, i32
  }
  func.func @transform_7(%arg0: i32, %arg1: i32) -> (i32, i32) {
    %c0_i32 = arith.constant 0 : i32
    %c0_i32_0 = arith.constant 0 : i32
    %c0_i32_1 = arith.constant 0 : i32
    return %c0_i32, %c0_i32_0 : i32, i32
  }
  func.func @transform_8(%arg0: i32, %arg1: i32) -> (i32, i32) {
    %c0_i32 = arith.constant 0 : i32
    %c0_i32_0 = arith.constant 0 : i32
    return %arg0, %c0_i32 : i32, i32
  }
}

module attributes {stable_mosaic.version = 11 : i64} {
  func.func @_dynamic_conv_kernel(%arg0: i32, %arg1: i32, %arg2: memref<8x32x64xbf16, #tpu.memory_space<vmem>>, %arg3: memref<8x64x32xbf16, #tpu.memory_space<vmem>>, %arg4: memref<1x32xf32, #tpu.memory_space<vmem>>, %arg5: memref<1x32xf32, #tpu.memory_space<vmem>>, %arg6: memref<1024x64xbf16, #tpu.memory_space<vmem>>, %arg7: memref<1x64xf32, #tpu.memory_space<vmem>>, %arg8: memref<1x64xf32, #tpu.memory_space<vmem>>, %arg9: memref<1x64xf32, #tpu.memory_space<vmem>>, %arg10: memref<8x64xf32, #tpu.memory_space<vmem>>, %arg11: memref<8x64xf32, #tpu.memory_space<vmem>>) attributes {dimension_semantics = [#tpu.dimension_semantics<parallel>, #tpu.dimension_semantics<arbitrary>], iteration_bounds = array<i64: 1, 1>, scalar_prefetch = 0 : i64, scratch_operands = 1 : i64, tpu.core_type = #tpu.core_type<tc>, window_params = [{transform_indices = @transform_0, window_bounds = array<i64: 8, 32, 64>}, {transform_indices = @transform_1, window_bounds = array<i64: 8, 64, 32>}, {pipeline_mode = #tpu.pipeline_mode<synchronous>, transform_indices = @transform_2, window_bounds = array<i64: 1, 32>}, {pipeline_mode = #tpu.pipeline_mode<synchronous>, transform_indices = @transform_3, window_bounds = array<i64: 1, 32>}, {transform_indices = @transform_4, window_bounds = array<i64: 1024, 64>}, {pipeline_mode = #tpu.pipeline_mode<synchronous>, transform_indices = @transform_5, window_bounds = array<i64: 1, 64>}, {pipeline_mode = #tpu.pipeline_mode<synchronous>, transform_indices = @transform_6, window_bounds = array<i64: 1, 64>}, {pipeline_mode = #tpu.pipeline_mode<synchronous>, transform_indices = @transform_7, window_bounds = array<i64: 1, 64>}, {transform_indices = @transform_8, window_bounds = array<i64: 8, 64>}]} {
    %c0_i32 = arith.constant 0 : i32
    %0 = arith.cmpi eq, %arg1, %c0_i32 : i32
    %1 = arith.extui %0 : i1 to i32
    %c0_i32_0 = arith.constant 0 : i32
    %2 = arith.cmpi ne, %1, %c0_i32_0 : i32
    scf.if %2 {
      %cst_88 = arith.constant 0.000000e+00 : f32
      %202 = vector.broadcast %cst_88 : f32 to vector<8x64xf32>
      %c0_89 = arith.constant 0 : index
      %c0_90 = arith.constant 0 : index
      %203 = vector.load %arg11[%c0_89, %c0_90] : memref<8x64xf32, #tpu.memory_space<vmem>>, vector<8x64xf32>
      tpu.vector_store %arg11[%c0_89, %c0_90], %202 {strides = array<i32>} : memref<8x64xf32, #tpu.memory_space<vmem>>, vector<8x64xf32>,
    } else {
    }
    %c0 = arith.constant 0 : index
    %c0_1 = arith.constant 0 : index
    %c0_2 = arith.constant 0 : index
    %3 = vector.load %arg2[%c0, %c0_1, %c0_2] : memref<8x32x64xbf16, #tpu.memory_space<vmem>>, vector<8x32x64xbf16>
    %c0_3 = arith.constant 0 : index
    %c0_4 = arith.constant 0 : index
    %c0_5 = arith.constant 0 : index
    %4 = vector.load %arg3[%c0_3, %c0_4, %c0_5] : memref<8x64x32xbf16, #tpu.memory_space<vmem>>, vector<8x64x32xbf16>
    "tpu.trace_start"() <{level = 10 : i32, message = "bsc,bch->bsh"}> : () -> ()
    %cst = arith.constant dense<0.000000e+00> : vector<8x32x32xf32>
    %5 = tpu.matmul %3, %4, %cst {dimension_numbers = #tpu.dot_dimension_numbers<[2], [1], [1], [2], [0, 0, 0, 1, 1, 2], [0], [0]>} : vector<8x32x64xbf16>, vector<8x64x32xbf16>, vector<8x32x32xf32> -> vector<8x32x32xf32>
    "tpu.trace_stop"() : () -> ()
    %c0_6 = arith.constant 0 : index
    %c0_7 = arith.constant 0 : index
    %6 = vector.load %arg4[%c0_6, %c0_7] : memref<1x32xf32, #tpu.memory_space<vmem>>, vector<1x32xf32>
    %c0_8 = arith.constant 0 : index
    %c0_9 = arith.constant 0 : index
    %7 = vector.load %arg5[%c0_8, %c0_9] : memref<1x32xf32, #tpu.memory_space<vmem>>, vector<1x32xf32>
    %cst_10 = arith.constant dense<0.000000e+00> : vector<8x32xf32>
    %8 = vector.multi_reduction <add>, %5, %cst_10 [2] : vector<8x32x32xf32> to vector<8x32xf32>
    %9 = vector.shape_cast %8 : vector<8x32xf32> to vector<8x32x1xf32>
    %cst_11 = arith.constant 3.200000e+01 : f32
    %10 = vector.broadcast %cst_11 : f32 to vector<8x32x1xf32>
    %11 = arith.divf %9, %10 : vector<8x32x1xf32>
    %12 = vector.broadcast %11 : vector<8x32x1xf32> to vector<8x32x32xf32>
    %13 = arith.subf %5, %12 : vector<8x32x32xf32>
    %14 = arith.mulf %13, %13 : vector<8x32x32xf32>
    %cst_12 = arith.constant dense<0.000000e+00> : vector<8x32xf32>
    %15 = vector.multi_reduction <add>, %14, %cst_12 [2] : vector<8x32x32xf32> to vector<8x32xf32>
    %16 = vector.shape_cast %15 : vector<8x32xf32> to vector<8x32x1xf32>
    %cst_13 = arith.constant 3.200000e+01 : f32
    %17 = vector.broadcast %cst_13 : f32 to vector<8x32x1xf32>
    %18 = arith.divf %16, %17 : vector<8x32x1xf32>
    %19 = vector.broadcast %11 : vector<8x32x1xf32> to vector<8x32x32xf32>
    %20 = arith.subf %5, %19 : vector<8x32x32xf32>
    %cst_14 = arith.constant 9.99999974E-6 : f32
    %21 = vector.broadcast %cst_14 : f32 to vector<8x32x1xf32>
    %22 = arith.addf %18, %21 : vector<8x32x1xf32>
    %23 = math.rsqrt %22 : vector<8x32x1xf32>
    %24 = vector.broadcast %23 : vector<8x32x1xf32> to vector<8x32x32xf32>
    %25 = arith.mulf %20, %24 : vector<8x32x32xf32>
    %26 = vector.shape_cast %6 : vector<1x32xf32> to vector<1x1x32xf32>
    %27 = vector.broadcast %26 : vector<1x1x32xf32> to vector<8x32x32xf32>
    %28 = arith.mulf %25, %27 : vector<8x32x32xf32>
    %29 = vector.shape_cast %7 : vector<1x32xf32> to vector<1x1x32xf32>
    %30 = vector.broadcast %29 : vector<1x1x32xf32> to vector<8x32x32xf32>
    %31 = arith.addf %28, %30 : vector<8x32x32xf32>
    %cst_15 = arith.constant 0.000000e+00 : f32
    %32 = vector.broadcast %cst_15 : f32 to vector<8x32x32xf32>
    %33 = arith.maximumf %31, %32 : vector<8x32x32xf32>
    %34 = arith.truncf %33 : vector<8x32x32xf32> to vector<8x32x32xbf16>
    %cst_16 = arith.constant 0.000000e+00 : f32
    %35 = vector.broadcast %cst_16 : f32 to vector<8x64xf32>
    %36 = vector.extract_strided_slice %34 {offsets = [0, 0, 0], sizes = [8, 1, 32], strides = [1, 1, 1]} : vector<8x32x32xbf16> to vector<8x1x32xbf16>
    %37 = vector.shape_cast %36 : vector<8x1x32xbf16> to vector<8x32xbf16>
    %c0_17 = arith.constant 0 : index
    %c0_18 = arith.constant 0 : index
    %38 = vector.load %arg6[%c0_17, %c0_18] : memref<1024x64xbf16, #tpu.memory_space<vmem>>, vector<32x64xbf16>
    %cst_19 = arith.constant dense<0.000000e+00> : vector<8x64xf32>
    %39 = tpu.matmul %37, %38, %cst_19 {dimension_numbers = #tpu.dot_dimension_numbers<[1], [0], [0], [1], [0, 0, 1, 1], [], []>} : vector<8x32xbf16>, vector<32x64xbf16>, vector<8x64xf32> -> vector<8x64xf32>
    %40 = arith.addf %35, %39 : vector<8x64xf32>
    %41 = vector.extract_strided_slice %34 {offsets = [0, 1, 0], sizes = [8, 1, 32], strides = [1, 1, 1]} : vector<8x32x32xbf16> to vector<8x1x32xbf16>
    %42 = vector.shape_cast %41 : vector<8x1x32xbf16> to vector<8x32xbf16>
    %c32 = arith.constant 32 : index
    %c0_20 = arith.constant 0 : index
    %43 = vector.load %arg6[%c32, %c0_20] : memref<1024x64xbf16, #tpu.memory_space<vmem>>, vector<32x64xbf16>
    %cst_21 = arith.constant dense<0.000000e+00> : vector<8x64xf32>
    %44 = tpu.matmul %42, %43, %cst_21 {dimension_numbers = #tpu.dot_dimension_numbers<[1], [0], [0], [1], [0, 0, 1, 1], [], []>} : vector<8x32xbf16>, vector<32x64xbf16>, vector<8x64xf32> -> vector<8x64xf32>
    %45 = arith.addf %40, %44 : vector<8x64xf32>
    %46 = vector.extract_strided_slice %34 {offsets = [0, 2, 0], sizes = [8, 1, 32], strides = [1, 1, 1]} : vector<8x32x32xbf16> to vector<8x1x32xbf16>
    %47 = vector.shape_cast %46 : vector<8x1x32xbf16> to vector<8x32xbf16>
    %c64 = arith.constant 64 : index
    %c0_22 = arith.constant 0 : index
    %48 = vector.load %arg6[%c64, %c0_22] : memref<1024x64xbf16, #tpu.memory_space<vmem>>, vector<32x64xbf16>
    %cst_23 = arith.constant dense<0.000000e+00> : vector<8x64xf32>
    %49 = tpu.matmul %47, %48, %cst_23 {dimension_numbers = #tpu.dot_dimension_numbers<[1], [0], [0], [1], [0, 0, 1, 1], [], []>} : vector<8x32xbf16>, vector<32x64xbf16>, vector<8x64xf32> -> vector<8x64xf32>
    %50 = arith.addf %45, %49 : vector<8x64xf32>
    %51 = vector.extract_strided_slice %34 {offsets = [0, 3, 0], sizes = [8, 1, 32], strides = [1, 1, 1]} : vector<8x32x32xbf16> to vector<8x1x32xbf16>
    %52 = vector.shape_cast %51 : vector<8x1x32xbf16> to vector<8x32xbf16>
    %c96 = arith.constant 96 : index
    %c0_24 = arith.constant 0 : index
    %53 = vector.load %arg6[%c96, %c0_24] : memref<1024x64xbf16, #tpu.memory_space<vmem>>, vector<32x64xbf16>
    %cst_25 = arith.constant dense<0.000000e+00> : vector<8x64xf32>
    %54 = tpu.matmul %52, %53, %cst_25 {dimension_numbers = #tpu.dot_dimension_numbers<[1], [0], [0], [1], [0, 0, 1, 1], [], []>} : vector<8x32xbf16>, vector<32x64xbf16>, vector<8x64xf32> -> vector<8x64xf32>
    %55 = arith.addf %50, %54 : vector<8x64xf32>
    %56 = vector.extract_strided_slice %34 {offsets = [0, 4, 0], sizes = [8, 1, 32], strides = [1, 1, 1]} : vector<8x32x32xbf16> to vector<8x1x32xbf16>
    %57 = vector.shape_cast %56 : vector<8x1x32xbf16> to vector<8x32xbf16>
    %c128 = arith.constant 128 : index
    %c0_26 = arith.constant 0 : index
    %58 = vector.load %arg6[%c128, %c0_26] : memref<1024x64xbf16, #tpu.memory_space<vmem>>, vector<32x64xbf16>
    %cst_27 = arith.constant dense<0.000000e+00> : vector<8x64xf32>
    %59 = tpu.matmul %57, %58, %cst_27 {dimension_numbers = #tpu.dot_dimension_numbers<[1], [0], [0], [1], [0, 0, 1, 1], [], []>} : vector<8x32xbf16>, vector<32x64xbf16>, vector<8x64xf32> -> vector<8x64xf32>
    %60 = arith.addf %55, %59 : vector<8x64xf32>
    %61 = vector.extract_strided_slice %34 {offsets = [0, 5, 0], sizes = [8, 1, 32], strides = [1, 1, 1]} : vector<8x32x32xbf16> to vector<8x1x32xbf16>
    %62 = vector.shape_cast %61 : vector<8x1x32xbf16> to vector<8x32xbf16>
    %c160 = arith.constant 160 : index
    %c0_28 = arith.constant 0 : index
    %63 = vector.load %arg6[%c160, %c0_28] : memref<1024x64xbf16, #tpu.memory_space<vmem>>, vector<32x64xbf16>
    %cst_29 = arith.constant dense<0.000000e+00> : vector<8x64xf32>
    %64 = tpu.matmul %62, %63, %cst_29 {dimension_numbers = #tpu.dot_dimension_numbers<[1], [0], [0], [1], [0, 0, 1, 1], [], []>} : vector<8x32xbf16>, vector<32x64xbf16>, vector<8x64xf32> -> vector<8x64xf32>
    %65 = arith.addf %60, %64 : vector<8x64xf32>
    %66 = vector.extract_strided_slice %34 {offsets = [0, 6, 0], sizes = [8, 1, 32], strides = [1, 1, 1]} : vector<8x32x32xbf16> to vector<8x1x32xbf16>
    %67 = vector.shape_cast %66 : vector<8x1x32xbf16> to vector<8x32xbf16>
    %c192 = arith.constant 192 : index
    %c0_30 = arith.constant 0 : index
    %68 = vector.load %arg6[%c192, %c0_30] : memref<1024x64xbf16, #tpu.memory_space<vmem>>, vector<32x64xbf16>
    %cst_31 = arith.constant dense<0.000000e+00> : vector<8x64xf32>
    %69 = tpu.matmul %67, %68, %cst_31 {dimension_numbers = #tpu.dot_dimension_numbers<[1], [0], [0], [1], [0, 0, 1, 1], [], []>} : vector<8x32xbf16>, vector<32x64xbf16>, vector<8x64xf32> -> vector<8x64xf32>
    %70 = arith.addf %65, %69 : vector<8x64xf32>
    %71 = vector.extract_strided_slice %34 {offsets = [0, 7, 0], sizes = [8, 1, 32], strides = [1, 1, 1]} : vector<8x32x32xbf16> to vector<8x1x32xbf16>
    %72 = vector.shape_cast %71 : vector<8x1x32xbf16> to vector<8x32xbf16>
    %c224 = arith.constant 224 : index
    %c0_32 = arith.constant 0 : index
    %73 = vector.load %arg6[%c224, %c0_32] : memref<1024x64xbf16, #tpu.memory_space<vmem>>, vector<32x64xbf16>
    %cst_33 = arith.constant dense<0.000000e+00> : vector<8x64xf32>
    %74 = tpu.matmul %72, %73, %cst_33 {dimension_numbers = #tpu.dot_dimension_numbers<[1], [0], [0], [1], [0, 0, 1, 1], [], []>} : vector<8x32xbf16>, vector<32x64xbf16>, vector<8x64xf32> -> vector<8x64xf32>
    %75 = arith.addf %70, %74 : vector<8x64xf32>
    %76 = vector.extract_strided_slice %34 {offsets = [0, 8, 0], sizes = [8, 1, 32], strides = [1, 1, 1]} : vector<8x32x32xbf16> to vector<8x1x32xbf16>
    %77 = vector.shape_cast %76 : vector<8x1x32xbf16> to vector<8x32xbf16>
    %c256 = arith.constant 256 : index
    %c0_34 = arith.constant 0 : index
    %78 = vector.load %arg6[%c256, %c0_34] : memref<1024x64xbf16, #tpu.memory_space<vmem>>, vector<32x64xbf16>
    %cst_35 = arith.constant dense<0.000000e+00> : vector<8x64xf32>
    %79 = tpu.matmul %77, %78, %cst_35 {dimension_numbers = #tpu.dot_dimension_numbers<[1], [0], [0], [1], [0, 0, 1, 1], [], []>} : vector<8x32xbf16>, vector<32x64xbf16>, vector<8x64xf32> -> vector<8x64xf32>
    %80 = arith.addf %75, %79 : vector<8x64xf32>
    %81 = vector.extract_strided_slice %34 {offsets = [0, 9, 0], sizes = [8, 1, 32], strides = [1, 1, 1]} : vector<8x32x32xbf16> to vector<8x1x32xbf16>
    %82 = vector.shape_cast %81 : vector<8x1x32xbf16> to vector<8x32xbf16>
    %c288 = arith.constant 288 : index
    %c0_36 = arith.constant 0 : index
    %83 = vector.load %arg6[%c288, %c0_36] : memref<1024x64xbf16, #tpu.memory_space<vmem>>, vector<32x64xbf16>
    %cst_37 = arith.constant dense<0.000000e+00> : vector<8x64xf32>
    %84 = tpu.matmul %82, %83, %cst_37 {dimension_numbers = #tpu.dot_dimension_numbers<[1], [0], [0], [1], [0, 0, 1, 1], [], []>} : vector<8x32xbf16>, vector<32x64xbf16>, vector<8x64xf32> -> vector<8x64xf32>
    %85 = arith.addf %80, %84 : vector<8x64xf32>
    %86 = vector.extract_strided_slice %34 {offsets = [0, 10, 0], sizes = [8, 1, 32], strides = [1, 1, 1]} : vector<8x32x32xbf16> to vector<8x1x32xbf16>
    %87 = vector.shape_cast %86 : vector<8x1x32xbf16> to vector<8x32xbf16>
    %c320 = arith.constant 320 : index
    %c0_38 = arith.constant 0 : index
    %88 = vector.load %arg6[%c320, %c0_38] : memref<1024x64xbf16, #tpu.memory_space<vmem>>, vector<32x64xbf16>
    %cst_39 = arith.constant dense<0.000000e+00> : vector<8x64xf32>
    %89 = tpu.matmul %87, %88, %cst_39 {dimension_numbers = #tpu.dot_dimension_numbers<[1], [0], [0], [1], [0, 0, 1, 1], [], []>} : vector<8x32xbf16>, vector<32x64xbf16>, vector<8x64xf32> -> vector<8x64xf32>
    %90 = arith.addf %85, %89 : vector<8x64xf32>
    %91 = vector.extract_strided_slice %34 {offsets = [0, 11, 0], sizes = [8, 1, 32], strides = [1, 1, 1]} : vector<8x32x32xbf16> to vector<8x1x32xbf16>
    %92 = vector.shape_cast %91 : vector<8x1x32xbf16> to vector<8x32xbf16>
    %c352 = arith.constant 352 : index
    %c0_40 = arith.constant 0 : index
    %93 = vector.load %arg6[%c352, %c0_40] : memref<1024x64xbf16, #tpu.memory_space<vmem>>, vector<32x64xbf16>
    %cst_41 = arith.constant dense<0.000000e+00> : vector<8x64xf32>
    %94 = tpu.matmul %92, %93, %cst_41 {dimension_numbers = #tpu.dot_dimension_numbers<[1], [0], [0], [1], [0, 0, 1, 1], [], []>} : vector<8x32xbf16>, vector<32x64xbf16>, vector<8x64xf32> -> vector<8x64xf32>
    %95 = arith.addf %90, %94 : vector<8x64xf32>
    %96 = vector.extract_strided_slice %34 {offsets = [0, 12, 0], sizes = [8, 1, 32], strides = [1, 1, 1]} : vector<8x32x32xbf16> to vector<8x1x32xbf16>
    %97 = vector.shape_cast %96 : vector<8x1x32xbf16> to vector<8x32xbf16>
    %c384 = arith.constant 384 : index
    %c0_42 = arith.constant 0 : index
    %98 = vector.load %arg6[%c384, %c0_42] : memref<1024x64xbf16, #tpu.memory_space<vmem>>, vector<32x64xbf16>
    %cst_43 = arith.constant dense<0.000000e+00> : vector<8x64xf32>
    %99 = tpu.matmul %97, %98, %cst_43 {dimension_numbers = #tpu.dot_dimension_numbers<[1], [0], [0], [1], [0, 0, 1, 1], [], []>} : vector<8x32xbf16>, vector<32x64xbf16>, vector<8x64xf32> -> vector<8x64xf32>
    %100 = arith.addf %95, %99 : vector<8x64xf32>
    %101 = vector.extract_strided_slice %34 {offsets = [0, 13, 0], sizes = [8, 1, 32], strides = [1, 1, 1]} : vector<8x32x32xbf16> to vector<8x1x32xbf16>
    %102 = vector.shape_cast %101 : vector<8x1x32xbf16> to vector<8x32xbf16>
    %c416 = arith.constant 416 : index
    %c0_44 = arith.constant 0 : index
    %103 = vector.load %arg6[%c416, %c0_44] : memref<1024x64xbf16, #tpu.memory_space<vmem>>, vector<32x64xbf16>
    %cst_45 = arith.constant dense<0.000000e+00> : vector<8x64xf32>
    %104 = tpu.matmul %102, %103, %cst_45 {dimension_numbers = #tpu.dot_dimension_numbers<[1], [0], [0], [1], [0, 0, 1, 1], [], []>} : vector<8x32xbf16>, vector<32x64xbf16>, vector<8x64xf32> -> vector<8x64xf32>
    %105 = arith.addf %100, %104 : vector<8x64xf32>
    %106 = vector.extract_strided_slice %34 {offsets = [0, 14, 0], sizes = [8, 1, 32], strides = [1, 1, 1]} : vector<8x32x32xbf16> to vector<8x1x32xbf16>
    %107 = vector.shape_cast %106 : vector<8x1x32xbf16> to vector<8x32xbf16>
    %c448 = arith.constant 448 : index
    %c0_46 = arith.constant 0 : index
    %108 = vector.load %arg6[%c448, %c0_46] : memref<1024x64xbf16, #tpu.memory_space<vmem>>, vector<32x64xbf16>
    %cst_47 = arith.constant dense<0.000000e+00> : vector<8x64xf32>
    %109 = tpu.matmul %107, %108, %cst_47 {dimension_numbers = #tpu.dot_dimension_numbers<[1], [0], [0], [1], [0, 0, 1, 1], [], []>} : vector<8x32xbf16>, vector<32x64xbf16>, vector<8x64xf32> -> vector<8x64xf32>
    %110 = arith.addf %105, %109 : vector<8x64xf32>
    %111 = vector.extract_strided_slice %34 {offsets = [0, 15, 0], sizes = [8, 1, 32], strides = [1, 1, 1]} : vector<8x32x32xbf16> to vector<8x1x32xbf16>
    %112 = vector.shape_cast %111 : vector<8x1x32xbf16> to vector<8x32xbf16>
    %c480 = arith.constant 480 : index
    %c0_48 = arith.constant 0 : index
    %113 = vector.load %arg6[%c480, %c0_48] : memref<1024x64xbf16, #tpu.memory_space<vmem>>, vector<32x64xbf16>
    %cst_49 = arith.constant dense<0.000000e+00> : vector<8x64xf32>
    %114 = tpu.matmul %112, %113, %cst_49 {dimension_numbers = #tpu.dot_dimension_numbers<[1], [0], [0], [1], [0, 0, 1, 1], [], []>} : vector<8x32xbf16>, vector<32x64xbf16>, vector<8x64xf32> -> vector<8x64xf32>
    %115 = arith.addf %110, %114 : vector<8x64xf32>
    %116 = vector.extract_strided_slice %34 {offsets = [0, 16, 0], sizes = [8, 1, 32], strides = [1, 1, 1]} : vector<8x32x32xbf16> to vector<8x1x32xbf16>
    %117 = vector.shape_cast %116 : vector<8x1x32xbf16> to vector<8x32xbf16>
    %c512 = arith.constant 512 : index
    %c0_50 = arith.constant 0 : index
    %118 = vector.load %arg6[%c512, %c0_50] : memref<1024x64xbf16, #tpu.memory_space<vmem>>, vector<32x64xbf16>
    %cst_51 = arith.constant dense<0.000000e+00> : vector<8x64xf32>
    %119 = tpu.matmul %117, %118, %cst_51 {dimension_numbers = #tpu.dot_dimension_numbers<[1], [0], [0], [1], [0, 0, 1, 1], [], []>} : vector<8x32xbf16>, vector<32x64xbf16>, vector<8x64xf32> -> vector<8x64xf32>
    %120 = arith.addf %115, %119 : vector<8x64xf32>
    %121 = vector.extract_strided_slice %34 {offsets = [0, 17, 0], sizes = [8, 1, 32], strides = [1, 1, 1]} : vector<8x32x32xbf16> to vector<8x1x32xbf16>
    %122 = vector.shape_cast %121 : vector<8x1x32xbf16> to vector<8x32xbf16>
    %c544 = arith.constant 544 : index
    %c0_52 = arith.constant 0 : index
    %123 = vector.load %arg6[%c544, %c0_52] : memref<1024x64xbf16, #tpu.memory_space<vmem>>, vector<32x64xbf16>
    %cst_53 = arith.constant dense<0.000000e+00> : vector<8x64xf32>
    %124 = tpu.matmul %122, %123, %cst_53 {dimension_numbers = #tpu.dot_dimension_numbers<[1], [0], [0], [1], [0, 0, 1, 1], [], []>} : vector<8x32xbf16>, vector<32x64xbf16>, vector<8x64xf32> -> vector<8x64xf32>
    %125 = arith.addf %120, %124 : vector<8x64xf32>
    %126 = vector.extract_strided_slice %34 {offsets = [0, 18, 0], sizes = [8, 1, 32], strides = [1, 1, 1]} : vector<8x32x32xbf16> to vector<8x1x32xbf16>
    %127 = vector.shape_cast %126 : vector<8x1x32xbf16> to vector<8x32xbf16>
    %c576 = arith.constant 576 : index
    %c0_54 = arith.constant 0 : index
    %128 = vector.load %arg6[%c576, %c0_54] : memref<1024x64xbf16, #tpu.memory_space<vmem>>, vector<32x64xbf16>
    %cst_55 = arith.constant dense<0.000000e+00> : vector<8x64xf32>
    %129 = tpu.matmul %127, %128, %cst_55 {dimension_numbers = #tpu.dot_dimension_numbers<[1], [0], [0], [1], [0, 0, 1, 1], [], []>} : vector<8x32xbf16>, vector<32x64xbf16>, vector<8x64xf32> -> vector<8x64xf32>
    %130 = arith.addf %125, %129 : vector<8x64xf32>
    %131 = vector.extract_strided_slice %34 {offsets = [0, 19, 0], sizes = [8, 1, 32], strides = [1, 1, 1]} : vector<8x32x32xbf16> to vector<8x1x32xbf16>
    %132 = vector.shape_cast %131 : vector<8x1x32xbf16> to vector<8x32xbf16>
    %c608 = arith.constant 608 : index
    %c0_56 = arith.constant 0 : index
    %133 = vector.load %arg6[%c608, %c0_56] : memref<1024x64xbf16, #tpu.memory_space<vmem>>, vector<32x64xbf16>
    %cst_57 = arith.constant dense<0.000000e+00> : vector<8x64xf32>
    %134 = tpu.matmul %132, %133, %cst_57 {dimension_numbers = #tpu.dot_dimension_numbers<[1], [0], [0], [1], [0, 0, 1, 1], [], []>} : vector<8x32xbf16>, vector<32x64xbf16>, vector<8x64xf32> -> vector<8x64xf32>
    %135 = arith.addf %130, %134 : vector<8x64xf32>
    %136 = vector.extract_strided_slice %34 {offsets = [0, 20, 0], sizes = [8, 1, 32], strides = [1, 1, 1]} : vector<8x32x32xbf16> to vector<8x1x32xbf16>
    %137 = vector.shape_cast %136 : vector<8x1x32xbf16> to vector<8x32xbf16>
    %c640 = arith.constant 640 : index
    %c0_58 = arith.constant 0 : index
    %138 = vector.load %arg6[%c640, %c0_58] : memref<1024x64xbf16, #tpu.memory_space<vmem>>, vector<32x64xbf16>
    %cst_59 = arith.constant dense<0.000000e+00> : vector<8x64xf32>
    %139 = tpu.matmul %137, %138, %cst_59 {dimension_numbers = #tpu.dot_dimension_numbers<[1], [0], [0], [1], [0, 0, 1, 1], [], []>} : vector<8x32xbf16>, vector<32x64xbf16>, vector<8x64xf32> -> vector<8x64xf32>
    %140 = arith.addf %135, %139 : vector<8x64xf32>
    %141 = vector.extract_strided_slice %34 {offsets = [0, 21, 0], sizes = [8, 1, 32], strides = [1, 1, 1]} : vector<8x32x32xbf16> to vector<8x1x32xbf16>
    %142 = vector.shape_cast %141 : vector<8x1x32xbf16> to vector<8x32xbf16>
    %c672 = arith.constant 672 : index
    %c0_60 = arith.constant 0 : index
    %143 = vector.load %arg6[%c672, %c0_60] : memref<1024x64xbf16, #tpu.memory_space<vmem>>, vector<32x64xbf16>
    %cst_61 = arith.constant dense<0.000000e+00> : vector<8x64xf32>
    %144 = tpu.matmul %142, %143, %cst_61 {dimension_numbers = #tpu.dot_dimension_numbers<[1], [0], [0], [1], [0, 0, 1, 1], [], []>} : vector<8x32xbf16>, vector<32x64xbf16>, vector<8x64xf32> -> vector<8x64xf32>
    %145 = arith.addf %140, %144 : vector<8x64xf32>
    %146 = vector.extract_strided_slice %34 {offsets = [0, 22, 0], sizes = [8, 1, 32], strides = [1, 1, 1]} : vector<8x32x32xbf16> to vector<8x1x32xbf16>
    %147 = vector.shape_cast %146 : vector<8x1x32xbf16> to vector<8x32xbf16>
    %c704 = arith.constant 704 : index
    %c0_62 = arith.constant 0 : index
    %148 = vector.load %arg6[%c704, %c0_62] : memref<1024x64xbf16, #tpu.memory_space<vmem>>, vector<32x64xbf16>
    %cst_63 = arith.constant dense<0.000000e+00> : vector<8x64xf32>
    %149 = tpu.matmul %147, %148, %cst_63 {dimension_numbers = #tpu.dot_dimension_numbers<[1], [0], [0], [1], [0, 0, 1, 1], [], []>} : vector<8x32xbf16>, vector<32x64xbf16>, vector<8x64xf32> -> vector<8x64xf32>
    %150 = arith.addf %145, %149 : vector<8x64xf32>
    %151 = vector.extract_strided_slice %34 {offsets = [0, 23, 0], sizes = [8, 1, 32], strides = [1, 1, 1]} : vector<8x32x32xbf16> to vector<8x1x32xbf16>
    %152 = vector.shape_cast %151 : vector<8x1x32xbf16> to vector<8x32xbf16>
    %c736 = arith.constant 736 : index
    %c0_64 = arith.constant 0 : index
    %153 = vector.load %arg6[%c736, %c0_64] : memref<1024x64xbf16, #tpu.memory_space<vmem>>, vector<32x64xbf16>
    %cst_65 = arith.constant dense<0.000000e+00> : vector<8x64xf32>
    %154 = tpu.matmul %152, %153, %cst_65 {dimension_numbers = #tpu.dot_dimension_numbers<[1], [0], [0], [1], [0, 0, 1, 1], [], []>} : vector<8x32xbf16>, vector<32x64xbf16>, vector<8x64xf32> -> vector<8x64xf32>
    %155 = arith.addf %150, %154 : vector<8x64xf32>
    %156 = vector.extract_strided_slice %34 {offsets = [0, 24, 0], sizes = [8, 1, 32], strides = [1, 1, 1]} : vector<8x32x32xbf16> to vector<8x1x32xbf16>
    %157 = vector.shape_cast %156 : vector<8x1x32xbf16> to vector<8x32xbf16>
    %c768 = arith.constant 768 : index
    %c0_66 = arith.constant 0 : index
    %158 = vector.load %arg6[%c768, %c0_66] : memref<1024x64xbf16, #tpu.memory_space<vmem>>, vector<32x64xbf16>
    %cst_67 = arith.constant dense<0.000000e+00> : vector<8x64xf32>
    %159 = tpu.matmul %157, %158, %cst_67 {dimension_numbers = #tpu.dot_dimension_numbers<[1], [0], [0], [1], [0, 0, 1, 1], [], []>} : vector<8x32xbf16>, vector<32x64xbf16>, vector<8x64xf32> -> vector<8x64xf32>
    %160 = arith.addf %155, %159 : vector<8x64xf32>
    %161 = vector.extract_strided_slice %34 {offsets = [0, 25, 0], sizes = [8, 1, 32], strides = [1, 1, 1]} : vector<8x32x32xbf16> to vector<8x1x32xbf16>
    %162 = vector.shape_cast %161 : vector<8x1x32xbf16> to vector<8x32xbf16>
    %c800 = arith.constant 800 : index
    %c0_68 = arith.constant 0 : index
    %163 = vector.load %arg6[%c800, %c0_68] : memref<1024x64xbf16, #tpu.memory_space<vmem>>, vector<32x64xbf16>
    %cst_69 = arith.constant dense<0.000000e+00> : vector<8x64xf32>
    %164 = tpu.matmul %162, %163, %cst_69 {dimension_numbers = #tpu.dot_dimension_numbers<[1], [0], [0], [1], [0, 0, 1, 1], [], []>} : vector<8x32xbf16>, vector<32x64xbf16>, vector<8x64xf32> -> vector<8x64xf32>
    %165 = arith.addf %160, %164 : vector<8x64xf32>
    %166 = vector.extract_strided_slice %34 {offsets = [0, 26, 0], sizes = [8, 1, 32], strides = [1, 1, 1]} : vector<8x32x32xbf16> to vector<8x1x32xbf16>
    %167 = vector.shape_cast %166 : vector<8x1x32xbf16> to vector<8x32xbf16>
    %c832 = arith.constant 832 : index
    %c0_70 = arith.constant 0 : index
    %168 = vector.load %arg6[%c832, %c0_70] : memref<1024x64xbf16, #tpu.memory_space<vmem>>, vector<32x64xbf16>
    %cst_71 = arith.constant dense<0.000000e+00> : vector<8x64xf32>
    %169 = tpu.matmul %167, %168, %cst_71 {dimension_numbers = #tpu.dot_dimension_numbers<[1], [0], [0], [1], [0, 0, 1, 1], [], []>} : vector<8x32xbf16>, vector<32x64xbf16>, vector<8x64xf32> -> vector<8x64xf32>
    %170 = arith.addf %165, %169 : vector<8x64xf32>
    %171 = vector.extract_strided_slice %34 {offsets = [0, 27, 0], sizes = [8, 1, 32], strides = [1, 1, 1]} : vector<8x32x32xbf16> to vector<8x1x32xbf16>
    %172 = vector.shape_cast %171 : vector<8x1x32xbf16> to vector<8x32xbf16>
    %c864 = arith.constant 864 : index
    %c0_72 = arith.constant 0 : index
    %173 = vector.load %arg6[%c864, %c0_72] : memref<1024x64xbf16, #tpu.memory_space<vmem>>, vector<32x64xbf16>
    %cst_73 = arith.constant dense<0.000000e+00> : vector<8x64xf32>
    %174 = tpu.matmul %172, %173, %cst_73 {dimension_numbers = #tpu.dot_dimension_numbers<[1], [0], [0], [1], [0, 0, 1, 1], [], []>} : vector<8x32xbf16>, vector<32x64xbf16>, vector<8x64xf32> -> vector<8x64xf32>
    %175 = arith.addf %170, %174 : vector<8x64xf32>
    %176 = vector.extract_strided_slice %34 {offsets = [0, 28, 0], sizes = [8, 1, 32], strides = [1, 1, 1]} : vector<8x32x32xbf16> to vector<8x1x32xbf16>
    %177 = vector.shape_cast %176 : vector<8x1x32xbf16> to vector<8x32xbf16>
    %c896 = arith.constant 896 : index
    %c0_74 = arith.constant 0 : index
    %178 = vector.load %arg6[%c896, %c0_74] : memref<1024x64xbf16, #tpu.memory_space<vmem>>, vector<32x64xbf16>
    %cst_75 = arith.constant dense<0.000000e+00> : vector<8x64xf32>
    %179 = tpu.matmul %177, %178, %cst_75 {dimension_numbers = #tpu.dot_dimension_numbers<[1], [0], [0], [1], [0, 0, 1, 1], [], []>} : vector<8x32xbf16>, vector<32x64xbf16>, vector<8x64xf32> -> vector<8x64xf32>
    %180 = arith.addf %175, %179 : vector<8x64xf32>
    %181 = vector.extract_strided_slice %34 {offsets = [0, 29, 0], sizes = [8, 1, 32], strides = [1, 1, 1]} : vector<8x32x32xbf16> to vector<8x1x32xbf16>
    %182 = vector.shape_cast %181 : vector<8x1x32xbf16> to vector<8x32xbf16>
    %c928 = arith.constant 928 : index
    %c0_76 = arith.constant 0 : index
    %183 = vector.load %arg6[%c928, %c0_76] : memref<1024x64xbf16, #tpu.memory_space<vmem>>, vector<32x64xbf16>
    %cst_77 = arith.constant dense<0.000000e+00> : vector<8x64xf32>
    %184 = tpu.matmul %182, %183, %cst_77 {dimension_numbers = #tpu.dot_dimension_numbers<[1], [0], [0], [1], [0, 0, 1, 1], [], []>} : vector<8x32xbf16>, vector<32x64xbf16>, vector<8x64xf32> -> vector<8x64xf32>
    %185 = arith.addf %180, %184 : vector<8x64xf32>
    %186 = vector.extract_strided_slice %34 {offsets = [0, 30, 0], sizes = [8, 1, 32], strides = [1, 1, 1]} : vector<8x32x32xbf16> to vector<8x1x32xbf16>
    %187 = vector.shape_cast %186 : vector<8x1x32xbf16> to vector<8x32xbf16>
    %c960 = arith.constant 960 : index
    %c0_78 = arith.constant 0 : index
    %188 = vector.load %arg6[%c960, %c0_78] : memref<1024x64xbf16, #tpu.memory_space<vmem>>, vector<32x64xbf16>
    %cst_79 = arith.constant dense<0.000000e+00> : vector<8x64xf32>
    %189 = tpu.matmul %187, %188, %cst_79 {dimension_numbers = #tpu.dot_dimension_numbers<[1], [0], [0], [1], [0, 0, 1, 1], [], []>} : vector<8x32xbf16>, vector<32x64xbf16>, vector<8x64xf32> -> vector<8x64xf32>
    %190 = arith.addf %185, %189 : vector<8x64xf32>
    %191 = vector.extract_strided_slice %34 {offsets = [0, 31, 0], sizes = [8, 1, 32], strides = [1, 1, 1]} : vector<8x32x32xbf16> to vector<8x1x32xbf16>
    %192 = vector.shape_cast %191 : vector<8x1x32xbf16> to vector<8x32xbf16>
    %c992 = arith.constant 992 : index
    %c0_80 = arith.constant 0 : index
    %193 = vector.load %arg6[%c992, %c0_80] : memref<1024x64xbf16, #tpu.memory_space<vmem>>, vector<32x64xbf16>
    %cst_81 = arith.constant dense<0.000000e+00> : vector<8x64xf32>
    %194 = tpu.matmul %192, %193, %cst_81 {dimension_numbers = #tpu.dot_dimension_numbers<[1], [0], [0], [1], [0, 0, 1, 1], [], []>} : vector<8x32xbf16>, vector<32x64xbf16>, vector<8x64xf32> -> vector<8x64xf32>
    %195 = arith.addf %190, %194 : vector<8x64xf32>
    %c0_82 = arith.constant 0 : index
    %c0_83 = arith.constant 0 : index
    %196 = vector.load %arg11[%c0_82, %c0_83] : memref<8x64xf32, #tpu.memory_space<vmem>>, vector<8x64xf32>
    %197 = arith.addf %196, %195 : vector<8x64xf32>
    %c0_84 = arith.constant 0 : index
    %c0_85 = arith.constant 0 : index
    %198 = vector.load %arg11[%c0_84, %c0_85] : memref<8x64xf32, #tpu.memory_space<vmem>>, vector<8x64xf32>
    tpu.vector_store %arg11[%c0_84, %c0_85], %197 {strides = array<i32>} : memref<8x64xf32, #tpu.memory_space<vmem>>, vector<8x64xf32>,
    %c0_i32_86 = arith.constant 0 : i32
    %199 = arith.cmpi eq, %arg1, %c0_i32_86 : i32
    %200 = arith.extui %199 : i1 to i32
    %c0_i32_87 = arith.constant 0 : i32
    %201 = arith.cmpi ne, %200, %c0_i32_87 : i32
    scf.if %201 {
      %c0_88 = arith.constant 0 : index
      %c0_89 = arith.constant 0 : index
      %202 = vector.load %arg11[%c0_88, %c0_89] : memref<8x64xf32, #tpu.memory_space<vmem>>, vector<8x64xf32>
      %c0_90 = arith.constant 0 : index
      %c0_91 = arith.constant 0 : index
      %203 = vector.load %arg7[%c0_90, %c0_91] : memref<1x64xf32, #tpu.memory_space<vmem>>, vector<1x64xf32>
      %204 = vector.broadcast %203 : vector<1x64xf32> to vector<8x64xf32>
      %205 = arith.addf %202, %204 : vector<8x64xf32>
      %c0_92 = arith.constant 0 : index
      %c0_93 = arith.constant 0 : index
      %206 = vector.load %arg8[%c0_92, %c0_93] : memref<1x64xf32, #tpu.memory_space<vmem>>, vector<1x64xf32>
      %c0_94 = arith.constant 0 : index
      %c0_95 = arith.constant 0 : index
      %207 = vector.load %arg9[%c0_94, %c0_95] : memref<1x64xf32, #tpu.memory_space<vmem>>, vector<1x64xf32>
      %cst_96 = arith.constant dense<0.000000e+00> : vector<8xf32>
      %208 = vector.multi_reduction <add>, %205, %cst_96 [1] : vector<8x64xf32> to vector<8xf32>
      %209 = vector.shape_cast %208 : vector<8xf32> to vector<8x1xf32>
      %cst_97 = arith.constant 6.400000e+01 : f32
      %210 = vector.broadcast %cst_97 : f32 to vector<8x1xf32>
      %211 = arith.divf %209, %210 : vector<8x1xf32>
      %212 = vector.broadcast %211 : vector<8x1xf32> to vector<8x64xf32>
      %213 = arith.subf %205, %212 : vector<8x64xf32>
      %214 = arith.mulf %213, %213 : vector<8x64xf32>
      %cst_98 = arith.constant dense<0.000000e+00> : vector<8xf32>
      %215 = vector.multi_reduction <add>, %214, %cst_98 [1] : vector<8x64xf32> to vector<8xf32>
      %216 = vector.shape_cast %215 : vector<8xf32> to vector<8x1xf32>
      %cst_99 = arith.constant 6.400000e+01 : f32
      %217 = vector.broadcast %cst_99 : f32 to vector<8x1xf32>
      %218 = arith.divf %216, %217 : vector<8x1xf32>
      %219 = vector.broadcast %211 : vector<8x1xf32> to vector<8x64xf32>
      %220 = arith.subf %205, %219 : vector<8x64xf32>
      %cst_100 = arith.constant 9.99999974E-6 : f32
      %221 = vector.broadcast %cst_100 : f32 to vector<8x1xf32>
      %222 = arith.addf %218, %221 : vector<8x1xf32>
      %223 = math.rsqrt %222 : vector<8x1xf32>
      %224 = vector.broadcast %223 : vector<8x1xf32> to vector<8x64xf32>
      %225 = arith.mulf %220, %224 : vector<8x64xf32>
      %226 = vector.broadcast %206 : vector<1x64xf32> to vector<8x64xf32>
      %227 = arith.mulf %225, %226 : vector<8x64xf32>
      %228 = vector.broadcast %207 : vector<1x64xf32> to vector<8x64xf32>
      %229 = arith.addf %227, %228 : vector<8x64xf32>
      %cst_101 = arith.constant 0.000000e+00 : f32
      %230 = vector.broadcast %cst_101 : f32 to vector<8x64xf32>
      %231 = arith.maximumf %229, %230 : vector<8x64xf32>
      %c0_102 = arith.constant 0 : index
      %c0_103 = arith.constant 0 : index
      %232 = vector.load %arg10[%c0_102, %c0_103] : memref<8x64xf32, #tpu.memory_space<vmem>>, vector<8x64xf32>
      tpu.vector_store %arg10[%c0_102, %c0_103], %231 {strides = array<i32>} : memref<8x64xf32, #tpu.memory_space<vmem>>, vector<8x64xf32>,
    } else {
    }
    return
  }
  func.func @transform_0(%arg0: i32, %arg1: i32) -> (i32, i32, i32) {
    %c0_i32 = arith.constant 0 : i32
    %c0_i32_0 = arith.constant 0 : i32
    return %arg0, %arg1, %c0_i32 : i32, i32, i32
  }
  func.func @transform_1(%arg0: i32, %arg1: i32) -> (i32, i32, i32) {
    %c0_i32 = arith.constant 0 : i32
    %c0_i32_0 = arith.constant 0 : i32
    %c0_i32_1 = arith.constant 0 : i32
    return %arg0, %c0_i32, %c0_i32_0 : i32, i32, i32
  }
  func.func @transform_2(%arg0: i32, %arg1: i32) -> (i32, i32) {
    %c0_i32 = arith.constant 0 : i32
    %c0_i32_0 = arith.constant 0 : i32
    %c0_i32_1 = arith.constant 0 : i32
    return %c0_i32, %c0_i32_0 : i32, i32
  }
  func.func @transform_3(%arg0: i32, %arg1: i32) -> (i32, i32) {
    %c0_i32 = arith.constant 0 : i32
    %c0_i32_0 = arith.constant 0 : i32
    %c0_i32_1 = arith.constant 0 : i32
    return %c0_i32, %c0_i32_0 : i32, i32
  }
  func.func @transform_4(%arg0: i32, %arg1: i32) -> (i32, i32) {
    %c0_i32 = arith.constant 0 : i32
    %c0_i32_0 = arith.constant 0 : i32
    return %arg1, %c0_i32 : i32, i32
  }
  func.func @transform_5(%arg0: i32, %arg1: i32) -> (i32, i32) {
    %c0_i32 = arith.constant 0 : i32
    %c0_i32_0 = arith.constant 0 : i32
    %c0_i32_1 = arith.constant 0 : i32
    return %c0_i32, %c0_i32_0 : i32, i32
  }
  func.func @transform_6(%arg0: i32, %arg1: i32) -> (i32, i32) {
    %c0_i32 = arith.constant 0 : i32
    %c0_i32_0 = arith.constant 0 : i32
    %c0_i32_1 = arith.constant 0 : i32
    return %c0_i32, %c0_i32_0 : i32, i32
  }
  func.func @transform_7(%arg0: i32, %arg1: i32) -> (i32, i32) {
    %c0_i32 = arith.constant 0 : i32
    %c0_i32_0 = arith.constant 0 : i32
    %c0_i32_1 = arith.constant 0 : i32
    return %c0_i32, %c0_i32_0 : i32, i32
  }
  func.func @transform_8(%arg0: i32, %arg1: i32) -> (i32, i32) {
    %c0_i32 = arith.constant 0 : i32
    %c0_i32_0 = arith.constant 0 : i32
    return %arg0, %c0_i32 : i32, i32
  }
}

</mosaic_0001>

<llo_original>
// kernel: tpu_custom_call.1
$region0: #{tpu_custom_call.1}
  #allocation0 [shape = 'u32[]', space=smem, size = 0x4, offset = 0x4, fixed_abs, tag = 'smem constant byte address 0x4 - core index']
  #allocation1 [shape = 'u32[144,128]{1,0:T(1,128)}', space=vmem, size = 0x12000, scoped, tag = 'internal scratch']
  #allocation2 [shape = 'f32[8,64]{1,0:T(8,128)}', space=vmem, size = 0x1000, scoped, tag = 'scratch operand']
  %s0 = inlined_call_operand.vmem [shape: bf16[8,32,64], index: 0, kind: input, shape index: {}]
  %s1 = inlined_call_operand.vmem [shape: bf16[8,64,32], index: 1, kind: input, shape index: {}]
  %s2 = inlined_call_operand.vmem [shape: f32[1,32], index: 2, kind: input, shape index: {}]
  %s3 = inlined_call_operand.vmem [shape: f32[1,32], index: 3, kind: input, shape index: {}]
  %s4 = inlined_call_operand.vmem [shape: bf16[1024,64], index: 4, kind: input, shape index: {}]
  %s5 = inlined_call_operand.vmem [shape: f32[1,64], index: 5, kind: input, shape index: {}]
  %s6 = inlined_call_operand.vmem [shape: f32[1,64], index: 6, kind: input, shape index: {}]
  %s7 = inlined_call_operand.vmem [shape: f32[1,64], index: 7, kind: input, shape index: {}]
  %s8 = inlined_call_operand.hbm [shape: f32[8,64], index: 8, kind: output, shape index: {}]
  %s9 = sld [smem:[#allocation0]]
  $region50: #{tpu_custom_call.1} parent=0
    _
  %s11 = ssub.s32 1, %s9
  %s12 = scalar_select 0, %s11, %s9
  $region1: #{tpu_custom_call.1} parent=0
    #allocation3 [shape = 'u8[4096]{0}', space=vmem, size = 0x1000, scoped, tag = 'output window, operand 0, single buffered']
    #allocation4 [shape = 's32[1]{0}', space=sflag, size = 0x4, scoped, tag = 'scoped memory for tpu_custom_call.1']
    %13 = vsyncpa [#allocation4], 0
    // Predicated region
    $region2: #{tpu_custom_call.1} parent=1 // pred_check
      _
    $region3: #{tpu_custom_call.1} parent=1 // pred_check_branch
      %15 = sbr.rel (0) target = $region5
    $region4: #{tpu_custom_call.1} parent=1 // pred_region
      _
    $region5: #{tpu_custom_call.1} parent=1 // pred_fallthru
      _
    // Predicated region
    $region6: #{tpu_custom_call.1} parent=1 // pred_check
      _
    $region7: #{tpu_custom_call.1} parent=1 // pred_check_branch
      %17 = sbr.rel (0) target = $region9
    $region8: #{tpu_custom_call.1} parent=1 // pred_region
      _
    $region9: #{tpu_custom_call.1} parent=1 // pred_fallthru
      _
    // Predicated region
    $region10: #{tpu_custom_call.1} parent=1 // pred_check
      _
    $region11: #{tpu_custom_call.1} parent=1 // pred_check_branch
      %19 = sbr.rel (0) target = $region13
    $region12: #{tpu_custom_call.1} parent=1 // pred_region
      _
    $region13: #{tpu_custom_call.1} parent=1 // pred_fallthru
      _
    // Predicated region
    $region14: #{tpu_custom_call.1} parent=1 // pred_check
      _
    $region15: #{tpu_custom_call.1} parent=1 // pred_check_branch
      %21 = sbr.rel (0) target = $region17
    $region16: #{tpu_custom_call.1} parent=1 // pred_region
      _
    $region17: #{tpu_custom_call.1} parent=1 // pred_fallthru
      _
    // Predicated region
    $region18: #{tpu_custom_call.1} parent=1 // pred_check
      _
    $region19: #{tpu_custom_call.1} parent=1 // pred_check_branch
      %23 = sbr.rel (0) target = $region21
    $region20: #{tpu_custom_call.1} parent=1 // pred_region
      _
    $region21: #{tpu_custom_call.1} parent=1 // pred_fallthru
      _
    // Predicated region
    $region22: #{tpu_custom_call.1} parent=1 // pred_check
      _
    $region23: #{tpu_custom_call.1} parent=1 // pred_check_branch
      %25 = sbr.rel (0) target = $region25
    $region24: #{tpu_custom_call.1} parent=1 // pred_region
      _
    $region25: #{tpu_custom_call.1} parent=1 // pred_fallthru
      _
    // Predicated region
    $region26: #{tpu_custom_call.1} parent=1 // pred_check
      _
    $region27: #{tpu_custom_call.1} parent=1 // pred_check_branch
      %27 = sbr.rel (0) target = $region29
    $region28: #{tpu_custom_call.1} parent=1 // pred_region
      _
    $region29: #{tpu_custom_call.1} parent=1 // pred_fallthru
      _
    // Predicated region
    $region30: #{tpu_custom_call.1} parent=1 // pred_check
      _
    $region31: #{tpu_custom_call.1} parent=1 // pred_check_branch
      %29 = sbr.rel (0) target = $region33
    $region32: #{tpu_custom_call.1} parent=1 // pred_region
      _
    $region33: #{tpu_custom_call.1} parent=1 // pred_fallthru
      _
    %p31 = scmp.eq.s32.totalorder 0, 0
    // Predicated region
    $region34: #{tpu_custom_call.1} parent=1 // pred_check
      %p32 = pneg %p31
    $region35: #{tpu_custom_call.1} parent=1 // pred_check_branch
      %34 = sbr.rel (%p32) target = $region37
    $region36: #{tpu_custom_call.1} parent=1 // pred_region
      %vm35 = vcmask 523264
      %36 = vst.msk [vmem:[#allocation2] sm:$0xff] %vm35, 0.0
    $region37: #{tpu_custom_call.1} parent=1 // pred_fallthru
      _
    %v37 = vld [vmem:[%s0] sm:$0xf]
    %v38 = vld [vmem:[%s0 + $0x4] sm:$0xf]
    %v39 = vld [vmem:[%s0 + $0x8] sm:$0xf]
    %v40 = vld [vmem:[%s0 + $0xc] sm:$0xf]
    %v41 = vld [vmem:[%s0 + $0x10] sm:$0xf]
    %v42 = vld [vmem:[%s0 + $0x14] sm:$0xf]
    %v43 = vld [vmem:[%s0 + $0x18] sm:$0xf]
    %v44 = vld [vmem:[%s0 + $0x1c] sm:$0xf]
    %v45 = vld [vmem:[%s0 + $0x20] sm:$0xf]
    %v46 = vld [vmem:[%s0 + $0x24] sm:$0xf]
    %v47 = vld [vmem:[%s0 + $0x28] sm:$0xf]
    %v48 = vld [vmem:[%s0 + $0x2c] sm:$0xf]
    %v49 = vld [vmem:[%s0 + $0x30] sm:$0xf]
    %v50 = vld [vmem:[%s0 + $0x34] sm:$0xf]
    %v51 = vld [vmem:[%s0 + $0x38] sm:$0xf]
    %v52 = vld [vmem:[%s0 + $0x3c] sm:$0xf]
    %v53 = vld [vmem:[%s0 + $0x40] sm:$0xf]
    %v54 = vld [vmem:[%s0 + $0x44] sm:$0xf]
    %v55 = vld [vmem:[%s0 + $0x48] sm:$0xf]
    %v56 = vld [vmem:[%s0 + $0x4c] sm:$0xf]
    %v57 = vld [vmem:[%s0 + $0x50] sm:$0xf]
    %v58 = vld [vmem:[%s0 + $0x54] sm:$0xf]
    %v59 = vld [vmem:[%s0 + $0x58] sm:$0xf]
    %v60 = vld [vmem:[%s0 + $0x5c] sm:$0xf]
    %v61 = vld [vmem:[%s0 + $0x60] sm:$0xf]
    %v62 = vld [vmem:[%s0 + $0x64] sm:$0xf]
    %v63 = vld [vmem:[%s0 + $0x68] sm:$0xf]
    %v64 = vld [vmem:[%s0 + $0x6c] sm:$0xf]
    %v65 = vld [vmem:[%s0 + $0x70] sm:$0xf]
    %v66 = vld [vmem:[%s0 + $0x74] sm:$0xf]
    %v67 = vld [vmem:[%s0 + $0x78] sm:$0xf]
    %v68 = vld [vmem:[%s0 + $0x7c] sm:$0xf]
    %v69 = vld [vmem:[%s1] sm:$0xf]
    %v70 = vld [vmem:[%s1 + $0x4] sm:$0xf]
    %v71 = vld [vmem:[%s1 + $0x8] sm:$0xf]
    %v72 = vld [vmem:[%s1 + $0xc] sm:$0xf]
    %v73 = vld [vmem:[%s1 + $0x10] sm:$0xf]
    %v74 = vld [vmem:[%s1 + $0x14] sm:$0xf]
    %v75 = vld [vmem:[%s1 + $0x18] sm:$0xf]
    %v76 = vld [vmem:[%s1 + $0x1c] sm:$0xf]
    %v77 = vld [vmem:[%s1 + $0x20] sm:$0xf]
    %v78 = vld [vmem:[%s1 + $0x24] sm:$0xf]
    %v79 = vld [vmem:[%s1 + $0x28] sm:$0xf]
    %v80 = vld [vmem:[%s1 + $0x2c] sm:$0xf]
    %v81 = vld [vmem:[%s1 + $0x30] sm:$0xf]
    %v82 = vld [vmem:[%s1 + $0x34] sm:$0xf]
    %v83 = vld [vmem:[%s1 + $0x38] sm:$0xf]
    %v84 = vld [vmem:[%s1 + $0x3c] sm:$0xf]
    %v85 = vld [vmem:[%s1 + $0x40] sm:$0xf]
    %v86 = vld [vmem:[%s1 + $0x44] sm:$0xf]
    %v87 = vld [vmem:[%s1 + $0x48] sm:$0xf]
    %v88 = vld [vmem:[%s1 + $0x4c] sm:$0xf]
    %v89 = vld [vmem:[%s1 + $0x50] sm:$0xf]
    %v90 = vld [vmem:[%s1 + $0x54] sm:$0xf]
    %v91 = vld [vmem:[%s1 + $0x58] sm:$0xf]
    %v92 = vld [vmem:[%s1 + $0x5c] sm:$0xf]
    %v93 = vld [vmem:[%s1 + $0x60] sm:$0xf]
    %v94 = vld [vmem:[%s1 + $0x64] sm:$0xf]
    %v95 = vld [vmem:[%s1 + $0x68] sm:$0xf]
    %v96 = vld [vmem:[%s1 + $0x6c] sm:$0xf]
    %v97 = vld [vmem:[%s1 + $0x70] sm:$0xf]
    %v98 = vld [vmem:[%s1 + $0x74] sm:$0xf]
    %v99 = vld [vmem:[%s1 + $0x78] sm:$0xf]
    %v100 = vld [vmem:[%s1 + $0x7c] sm:$0xf]
    %v101 = vld [vmem:[%s1 + $0x80] sm:$0xf]
    %v102 = vld [vmem:[%s1 + $0x84] sm:$0xf]
    %v103 = vld [vmem:[%s1 + $0x88] sm:$0xf]
    %v104 = vld [vmem:[%s1 + $0x8c] sm:$0xf]
    %v105 = vld [vmem:[%s1 + $0x90] sm:$0xf]
    %v106 = vld [vmem:[%s1 + $0x94] sm:$0xf]
    %v107 = vld [vmem:[%s1 + $0x98] sm:$0xf]
    %v108 = vld [vmem:[%s1 + $0x9c] sm:$0xf]
    %v109 = vld [vmem:[%s1 + $0xa0] sm:$0xf]
    %v110 = vld [vmem:[%s1 + $0xa4] sm:$0xf]
    %v111 = vld [vmem:[%s1 + $0xa8] sm:$0xf]
    %v112 = vld [vmem:[%s1 + $0xac] sm:$0xf]
    %v113 = vld [vmem:[%s1 + $0xb0] sm:$0xf]
    %v114 = vld [vmem:[%s1 + $0xb4] sm:$0xf]
    %v115 = vld [vmem:[%s1 + $0xb8] sm:$0xf]
    %v116 = vld [vmem:[%s1 + $0xbc] sm:$0xf]
    %v117 = vld [vmem:[%s1 + $0xc0] sm:$0xf]
    %v118 = vld [vmem:[%s1 + $0xc4] sm:$0xf]
    %v119 = vld [vmem:[%s1 + $0xc8] sm:$0xf]
    %v120 = vld [vmem:[%s1 + $0xcc] sm:$0xf]
    %v121 = vld [vmem:[%s1 + $0xd0] sm:$0xf]
    %v122 = vld [vmem:[%s1 + $0xd4] sm:$0xf]
    %v123 = vld [vmem:[%s1 + $0xd8] sm:$0xf]
    %v124 = vld [vmem:[%s1 + $0xdc] sm:$0xf]
    %v125 = vld [vmem:[%s1 + $0xe0] sm:$0xf]
    %v126 = vld [vmem:[%s1 + $0xe4] sm:$0xf]
    %v127 = vld [vmem:[%s1 + $0xe8] sm:$0xf]
    %v128 = vld [vmem:[%s1 + $0xec] sm:$0xf]
    %v129 = vld [vmem:[%s1 + $0xf0] sm:$0xf]
    %v130 = vld [vmem:[%s1 + $0xf4] sm:$0xf]
    %v131 = vld [vmem:[%s1 + $0xf8] sm:$0xf]
    %v132 = vld [vmem:[%s1 + $0xfc] sm:$0xf]
    %v137 = vunpack.c.l.b16 %v37
    %v138 = vunpack.c.l.b16 %v38
    %v139 = vunpack.c.l.b16 %v39
    %v140 = vunpack.c.l.b16 %v40
    %v141 = vpack.c.b16 %v138, %v137
    %v142 = vpack.c.b16 %v140, %v139
    %v151 = vunpack.c.l.b16 %v69
    %v152 = vunpack.c.l.b16 %v70
    %v153 = vunpack.c.l.b16 %v71
    %v154 = vunpack.c.l.b16 %v72
    %v155 = vunpack.c.l.b16 %v73
    %v156 = vunpack.c.l.b16 %v74
    %v157 = vunpack.c.l.b16 %v75
    %v158 = vunpack.c.l.b16 %v76
    %v159 = vpack.c.b16 %v152, %v151
    %v160 = vpack.c.b16 %v154, %v153
    %v161 = vpack.c.b16 %v156, %v155
    %v162 = vpack.c.b16 %v158, %v157
    %vm167 = vcmask 523264
    %v169 = vsel %vm167, %v141, 0
    %v172 = vsel %vm167, %v142, 0
    %174 = vmatprep.subr.bf16.mxu0 0
    %175 = vmatpush1.bf16.msra.mxu0 %v159
    %176 = vmatprep.subr.bf16.mxu0 0
    %177 = vmatpush1.bf16.msra.mxu0 %v160
    %178 = vmatprep.subr.bf16.mxu0 0
    %179 = vmatpush1.bf16.msra.mxu0 %v161
    %180 = vmatprep.subr.bf16.mxu0 0
    %181 = vmatpush1.bf16.msra.mxu0 %v162
    %182 = vmatprep.subr.bf16.mxu0 0
    %183 = vmatpush1.bf16.msra.mxu0 0
    %184 = vmatprep.subr.bf16.mxu0 0
    %185 = vmatpush1.bf16.msra.mxu0 0
    %186 = vmatprep.subr.bf16.mxu0 0
    %187 = vmatpush1.bf16.msra.mxu0 0
    %188 = vmatprep.subr.bf16.mxu0 0
    %189 = vmatpush1.bf16.msra.mxu0 0
    %190 = vmatprep.subr.bf16.mxu0 0
    %191 = vmatpush1.bf16.msra.mxu0 0
    %192 = vmatprep.subr.bf16.mxu0 0
    %193 = vmatpush1.bf16.msra.mxu0 0
    %194 = vmatprep.subr.bf16.mxu0 0
    %195 = vmatpush1.bf16.msra.mxu0 0
    %196 = vmatprep.subr.bf16.mxu0 0
    %197 = vmatpush1.bf16.msra.mxu0 0
    %198 = vmatprep.subr.bf16.mxu0 0
    %199 = vmatpush1.bf16.msra.mxu0 0
    %200 = vmatprep.subr.bf16.mxu0 0
    %201 = vmatpush1.bf16.msra.mxu0 0
    %202 = vmatprep.subr.bf16.mxu0 0
    %203 = vmatpush1.bf16.msra.mxu0 0
    %204 = vmatprep.subr.bf16.mxu0 0
    %205 = vmatpush1.bf16.msra.mxu0 0
    %206 = vmatprep.mubr.bf16.mxu0 0
    %207 = vmatmul.mubr.bf16.gmra.mrb[0].mxu0 %v169
    %v208 = vpop.f32.mrb[0].mxu0
    %v209 = vadd.f32 0.0, %v208
    %v210 = vpop.f32.mrb[0].mxu0
    %v211 = vpop.f32.mrb[0].mxu0
    %v212 = vadd.f32 0.0, %v211
    %v213 = vpop.f32.mrb[0].mxu0
    %214 = vmatprep.mubr.bf16.mxu0 0
    %215 = vmatmul.mubr.bf16.gmra.mrb[0].mxu0 %v172
    %v216 = vpop.f32.mrb[0].mxu0
    %v217 = vadd.f32 0.0, %v216
    %v218 = vpop.f32.mrb[0].mxu0
    %v219 = vpop.f32.mrb[0].mxu0
    %v220 = vadd.f32 0.0, %v219
    %v221 = vpop.f32.mrb[0].mxu0
    %222 = vdwg.mxu0
    %v227 = vunpack.c.l.b16 %v41
    %v228 = vunpack.c.l.b16 %v42
    %v229 = vunpack.c.l.b16 %v43
    %v230 = vunpack.c.l.b16 %v44
    %v231 = vpack.c.b16 %v228, %v227
    %v232 = vpack.c.b16 %v230, %v229
    %v241 = vunpack.c.l.b16 %v77
    %v242 = vunpack.c.l.b16 %v78
    %v243 = vunpack.c.l.b16 %v79
    %v244 = vunpack.c.l.b16 %v80
    %v245 = vunpack.c.l.b16 %v81
    %v246 = vunpack.c.l.b16 %v82
    %v247 = vunpack.c.l.b16 %v83
    %v248 = vunpack.c.l.b16 %v84
    %v249 = vpack.c.b16 %v242, %v241
    %v250 = vpack.c.b16 %v244, %v243
    %v251 = vpack.c.b16 %v246, %v245
    %v252 = vpack.c.b16 %v248, %v247
    %v258 = vsel %vm167, %v231, 0
    %v261 = vsel %vm167, %v232, 0
    %263 = vmatprep.subr.bf16.mxu0 0
    %264 = vmatpush1.bf16.msra.mxu0 %v249
    %265 = vmatprep.subr.bf16.mxu0 0
    %266 = vmatpush1.bf16.msra.mxu0 %v250
    %267 = vmatprep.subr.bf16.mxu0 0
    %268 = vmatpush1.bf16.msra.mxu0 %v251
    %269 = vmatprep.subr.bf16.mxu0 0
    %270 = vmatpush1.bf16.msra.mxu0 %v252
    %271 = vmatprep.subr.bf16.mxu0 0
    %272 = vmatpush1.bf16.msra.mxu0 0
    %273 = vmatprep.subr.bf16.mxu0 0
    %274 = vmatpush1.bf16.msra.mxu0 0
    %275 = vmatprep.subr.bf16.mxu0 0
    %276 = vmatpush1.bf16.msra.mxu0 0
    %277 = vmatprep.subr.bf16.mxu0 0
    %278 = vmatpush1.bf16.msra.mxu0 0
    %279 = vmatprep.subr.bf16.mxu0 0
    %280 = vmatpush1.bf16.msra.mxu0 0
    %281 = vmatprep.subr.bf16.mxu0 0
    %282 = vmatpush1.bf16.msra.mxu0 0
    %283 = vmatprep.subr.bf16.mxu0 0
    %284 = vmatpush1.bf16.msra.mxu0 0
    %285 = vmatprep.subr.bf16.mxu0 0
    %286 = vmatpush1.bf16.msra.mxu0 0
    %287 = vmatprep.subr.bf16.mxu0 0
    %288 = vmatpush1.bf16.msra.mxu0 0
    %289 = vmatprep.subr.bf16.mxu0 0
    %290 = vmatpush1.bf16.msra.mxu0 0
    %291 = vmatprep.subr.bf16.mxu0 0
    %292 = vmatpush1.bf16.msra.mxu0 0
    %293 = vmatprep.subr.bf16.mxu0 0
    %294 = vmatpush1.bf16.msra.mxu0 0
    %295 = vmatprep.mubr.bf16.mxu0 0
    %296 = vmatmul.mubr.bf16.gmra.mrb[0].mxu0 %v258
    %v297 = vpop.f32.mrb[0].mxu0
    %v298 = vadd.f32 0.0, %v297
    %v299 = vpop.f32.mrb[0].mxu0
    %v300 = vpop.f32.mrb[0].mxu0
    %v301 = vadd.f32 0.0, %v300
    %v302 = vpop.f32.mrb[0].mxu0
    %303 = vmatprep.mubr.bf16.mxu0 0
    %304 = vmatmul.mubr.bf16.gmra.mrb[0].mxu0 %v261
    %v305 = vpop.f32.mrb[0].mxu0
    %v306 = vadd.f32 0.0, %v305
    %v307 = vpop.f32.mrb[0].mxu0
    %v308 = vpop.f32.mrb[0].mxu0
    %v309 = vadd.f32 0.0, %v308
    %v310 = vpop.f32.mrb[0].mxu0
    %311 = vdwg.mxu0
    %v316 = vunpack.c.l.b16 %v45
    %v317 = vunpack.c.l.b16 %v46
    %v318 = vunpack.c.l.b16 %v47
    %v319 = vunpack.c.l.b16 %v48
    %v320 = vpack.c.b16 %v317, %v316
    %v321 = vpack.c.b16 %v319, %v318
    %v330 = vunpack.c.l.b16 %v85
    %v331 = vunpack.c.l.b16 %v86
    %v332 = vunpack.c.l.b16 %v87
    %v333 = vunpack.c.l.b16 %v88
    %v334 = vunpack.c.l.b16 %v89
    %v335 = vunpack.c.l.b16 %v90
    %v336 = vunpack.c.l.b16 %v91
    %v337 = vunpack.c.l.b16 %v92
    %v338 = vpack.c.b16 %v331, %v330
    %v339 = vpack.c.b16 %v333, %v332
    %v340 = vpack.c.b16 %v335, %v334
    %v341 = vpack.c.b16 %v337, %v336
    %v347 = vsel %vm167, %v320, 0
    %v350 = vsel %vm167, %v321, 0
    %352 = vmatprep.subr.bf16.mxu0 0
    %353 = vmatpush1.bf16.msra.mxu0 %v338
    %354 = vmatprep.subr.bf16.mxu0 0
    %355 = vmatpush1.bf16.msra.mxu0 %v339
    %356 = vmatprep.subr.bf16.mxu0 0
    %357 = vmatpush1.bf16.msra.mxu0 %v340
    %358 = vmatprep.subr.bf16.mxu0 0
    %359 = vmatpush1.bf16.msra.mxu0 %v341
    %360 = vmatprep.subr.bf16.mxu0 0
    %361 = vmatpush1.bf16.msra.mxu0 0
    %362 = vmatprep.subr.bf16.mxu0 0
    %363 = vmatpush1.bf16.msra.mxu0 0
    %364 = vmatprep.subr.bf16.mxu0 0
    %365 = vmatpush1.bf16.msra.mxu0 0
    %366 = vmatprep.subr.bf16.mxu0 0
    %367 = vmatpush1.bf16.msra.mxu0 0
    %368 = vmatprep.subr.bf16.mxu0 0
    %369 = vmatpush1.bf16.msra.mxu0 0
    %370 = vmatprep.subr.bf16.mxu0 0
    %371 = vmatpush1.bf16.msra.mxu0 0
    %372 = vmatprep.subr.bf16.mxu0 0
    %373 = vmatpush1.bf16.msra.mxu0 0
    %374 = vmatprep.subr.bf16.mxu0 0
    %375 = vmatpush1.bf16.msra.mxu0 0
    %376 = vmatprep.subr.bf16.mxu0 0
    %377 = vmatpush1.bf16.msra.mxu0 0
    %378 = vmatprep.subr.bf16.mxu0 0
    %379 = vmatpush1.bf16.msra.mxu0 0
    %380 = vmatprep.subr.bf16.mxu0 0
    %381 = vmatpush1.bf16.msra.mxu0 0
    %382 = vmatprep.subr.bf16.mxu0 0
    %383 = vmatpush1.bf16.msra.mxu0 0
    %384 = vmatprep.mubr.bf16.mxu0 0
    %385 = vmatmul.mubr.bf16.gmra.mrb[0].mxu0 %v347
    %v386 = vpop.f32.mrb[0].mxu0
    %v387 = vadd.f32 0.0, %v386
    %v388 = vpop.f32.mrb[0].mxu0
    %v389 = vpop.f32.mrb[0].mxu0
    %v390 = vadd.f32 0.0, %v389
    %v391 = vpop.f32.mrb[0].mxu0
    %392 = vmatprep.mubr.bf16.mxu0 0
    %393 = vmatmul.mubr.bf16.gmra.mrb[0].mxu0 %v350
    %v394 = vpop.f32.mrb[0].mxu0
    %v395 = vadd.f32 0.0, %v394
    %v396 = vpop.f32.mrb[0].mxu0
    %v397 = vpop.f32.mrb[0].mxu0
    %v398 = vadd.f32 0.0, %v397
    %v399 = vpop.f32.mrb[0].mxu0
    %400 = vdwg.mxu0
    %v405 = vunpack.c.l.b16 %v49
    %v406 = vunpack.c.l.b16 %v50
    %v407 = vunpack.c.l.b16 %v51
    %v408 = vunpack.c.l.b16 %v52
    %v409 = vpack.c.b16 %v406, %v405
    %v410 = vpack.c.b16 %v408, %v407
    %v419 = vunpack.c.l.b16 %v93
    %v420 = vunpack.c.l.b16 %v94
    %v421 = vunpack.c.l.b16 %v95
    %v422 = vunpack.c.l.b16 %v96
    %v423 = vunpack.c.l.b16 %v97
    %v424 = vunpack.c.l.b16 %v98
    %v425 = vunpack.c.l.b16 %v99
    %v426 = vunpack.c.l.b16 %v100
    %v427 = vpack.c.b16 %v420, %v419
    %v428 = vpack.c.b16 %v422, %v421
    %v429 = vpack.c.b16 %v424, %v423
    %v430 = vpack.c.b16 %v426, %v425
    %v436 = vsel %vm167, %v409, 0
    %v439 = vsel %vm167, %v410, 0
    %441 = vmatprep.subr.bf16.mxu0 0
    %442 = vmatpush1.bf16.msra.mxu0 %v427
    %443 = vmatprep.subr.bf16.mxu0 0
    %444 = vmatpush1.bf16.msra.mxu0 %v428
    %445 = vmatprep.subr.bf16.mxu0 0
    %446 = vmatpush1.bf16.msra.mxu0 %v429
    %447 = vmatprep.subr.bf16.mxu0 0
    %448 = vmatpush1.bf16.msra.mxu0 %v430
    %449 = vmatprep.subr.bf16.mxu0 0
    %450 = vmatpush1.bf16.msra.mxu0 0
    %451 = vmatprep.subr.bf16.mxu0 0
    %452 = vmatpush1.bf16.msra.mxu0 0
    %453 = vmatprep.subr.bf16.mxu0 0
    %454 = vmatpush1.bf16.msra.mxu0 0
    %455 = vmatprep.subr.bf16.mxu0 0
    %456 = vmatpush1.bf16.msra.mxu0 0
    %457 = vmatprep.subr.bf16.mxu0 0
    %458 = vmatpush1.bf16.msra.mxu0 0
    %459 = vmatprep.subr.bf16.mxu0 0
    %460 = vmatpush1.bf16.msra.mxu0 0
    %461 = vmatprep.subr.bf16.mxu0 0
    %462 = vmatpush1.bf16.msra.mxu0 0
    %463 = vmatprep.subr.bf16.mxu0 0
    %464 = vmatpush1.bf16.msra.mxu0 0
    %465 = vmatprep.subr.bf16.mxu0 0
    %466 = vmatpush1.bf16.msra.mxu0 0
    %467 = vmatprep.subr.bf16.mxu0 0
    %468 = vmatpush1.bf16.msra.mxu0 0
    %469 = vmatprep.subr.bf16.mxu0 0
    %470 = vmatpush1.bf16.msra.mxu0 0
    %471 = vmatprep.subr.bf16.mxu0 0
    %472 = vmatpush1.bf16.msra.mxu0 0
    %473 = vmatprep.mubr.bf16.mxu0 0
    %474 = vmatmul.mubr.bf16.gmra.mrb[0].mxu0 %v436
    %v475 = vpop.f32.mrb[0].mxu0
    %v476 = vadd.f32 0.0, %v475
    %v477 = vpop.f32.mrb[0].mxu0
    %v478 = vpop.f32.mrb[0].mxu0
    %v479 = vadd.f32 0.0, %v478
    %v480 = vpop.f32.mrb[0].mxu0
    %481 = vmatprep.mubr.bf16.mxu0 0
    %482 = vmatmul.mubr.bf16.gmra.mrb[0].mxu0 %v439
    %v483 = vpop.f32.mrb[0].mxu0
    %v484 = vadd.f32 0.0, %v483
    %v485 = vpop.f32.mrb[0].mxu0
    %v486 = vpop.f32.mrb[0].mxu0
    %v487 = vadd.f32 0.0, %v486
    %v488 = vpop.f32.mrb[0].mxu0
    %489 = vdwg.mxu0
    %v494 = vunpack.c.l.b16 %v53
    %v495 = vunpack.c.l.b16 %v54
    %v496 = vunpack.c.l.b16 %v55
    %v497 = vunpack.c.l.b16 %v56
    %v498 = vpack.c.b16 %v495, %v494
    %v499 = vpack.c.b16 %v497, %v496
    %v508 = vunpack.c.l.b16 %v101
    %v509 = vunpack.c.l.b16 %v102
    %v510 = vunpack.c.l.b16 %v103
    %v511 = vunpack.c.l.b16 %v104
    %v512 = vunpack.c.l.b16 %v105
    %v513 = vunpack.c.l.b16 %v106
    %v514 = vunpack.c.l.b16 %v107
    %v515 = vunpack.c.l.b16 %v108
    %v516 = vpack.c.b16 %v509, %v508
    %v517 = vpack.c.b16 %v511, %v510
    %v518 = vpack.c.b16 %v513, %v512
    %v519 = vpack.c.b16 %v515, %v514
    %v525 = vsel %vm167, %v498, 0
    %v528 = vsel %vm167, %v499, 0
    %530 = vmatprep.subr.bf16.mxu0 0
    %531 = vmatpush1.bf16.msra.mxu0 %v516
    %532 = vmatprep.subr.bf16.mxu0 0
    %533 = vmatpush1.bf16.msra.mxu0 %v517
    %534 = vmatprep.subr.bf16.mxu0 0
    %535 = vmatpush1.bf16.msra.mxu0 %v518
    %536 = vmatprep.subr.bf16.mxu0 0
    %537 = vmatpush1.bf16.msra.mxu0 %v519
    %538 = vmatprep.subr.bf16.mxu0 0
    %539 = vmatpush1.bf16.msra.mxu0 0
    %540 = vmatprep.subr.bf16.mxu0 0
    %541 = vmatpush1.bf16.msra.mxu0 0
    %542 = vmatprep.subr.bf16.mxu0 0
    %543 = vmatpush1.bf16.msra.mxu0 0
    %544 = vmatprep.subr.bf16.mxu0 0
    %545 = vmatpush1.bf16.msra.mxu0 0
    %546 = vmatprep.subr.bf16.mxu0 0
    %547 = vmatpush1.bf16.msra.mxu0 0
    %548 = vmatprep.subr.bf16.mxu0 0
    %549 = vmatpush1.bf16.msra.mxu0 0
    %550 = vmatprep.subr.bf16.mxu0 0
    %551 = vmatpush1.bf16.msra.mxu0 0
    %552 = vmatprep.subr.bf16.mxu0 0
    %553 = vmatpush1.bf16.msra.mxu0 0
    %554 = vmatprep.subr.bf16.mxu0 0
    %555 = vmatpush1.bf16.msra.mxu0 0
    %556 = vmatprep.subr.bf16.mxu0 0
    %557 = vmatpush1.bf16.msra.mxu0 0
    %558 = vmatprep.subr.bf16.mxu0 0
    %559 = vmatpush1.bf16.msra.mxu0 0
    %560 = vmatprep.subr.bf16.mxu0 0
    %561 = vmatpush1.bf16.msra.mxu0 0
    %562 = vmatprep.mubr.bf16.mxu0 0
    %563 = vmatmul.mubr.bf16.gmra.mrb[0].mxu0 %v525
    %v564 = vpop.f32.mrb[0].mxu0
    %v565 = vadd.f32 0.0, %v564
    %v566 = vpop.f32.mrb[0].mxu0
    %v567 = vpop.f32.mrb[0].mxu0
    %v568 = vadd.f32 0.0, %v567
    %v569 = vpop.f32.mrb[0].mxu0
    %570 = vmatprep.mubr.bf16.mxu0 0
    %571 = vmatmul.mubr.bf16.gmra.mrb[0].mxu0 %v528
    %v572 = vpop.f32.mrb[0].mxu0
    %v573 = vadd.f32 0.0, %v572
    %v574 = vpop.f32.mrb[0].mxu0
    %v575 = vpop.f32.mrb[0].mxu0
    %v576 = vadd.f32 0.0, %v575
    %v577 = vpop.f32.mrb[0].mxu0
    %578 = vdwg.mxu0
    %v583 = vunpack.c.l.b16 %v57
    %v584 = vunpack.c.l.b16 %v58
    %v585 = vunpack.c.l.b16 %v59
    %v586 = vunpack.c.l.b16 %v60
    %v587 = vpack.c.b16 %v584, %v583
    %v588 = vpack.c.b16 %v586, %v585
    %v597 = vunpack.c.l.b16 %v109
    %v598 = vunpack.c.l.b16 %v110
    %v599 = vunpack.c.l.b16 %v111
    %v600 = vunpack.c.l.b16 %v112
    %v601 = vunpack.c.l.b16 %v113
    %v602 = vunpack.c.l.b16 %v114
    %v603 = vunpack.c.l.b16 %v115
    %v604 = vunpack.c.l.b16 %v116
    %v605 = vpack.c.b16 %v598, %v597
    %v606 = vpack.c.b16 %v600, %v599
    %v607 = vpack.c.b16 %v602, %v601
    %v608 = vpack.c.b16 %v604, %v603
    %v614 = vsel %vm167, %v587, 0
    %v617 = vsel %vm167, %v588, 0
    %619 = vmatprep.subr.bf16.mxu0 0
    %620 = vmatpush1.bf16.msra.mxu0 %v605
    %621 = vmatprep.subr.bf16.mxu0 0
    %622 = vmatpush1.bf16.msra.mxu0 %v606
    %623 = vmatprep.subr.bf16.mxu0 0
    %624 = vmatpush1.bf16.msra.mxu0 %v607
    %625 = vmatprep.subr.bf16.mxu0 0
    %626 = vmatpush1.bf16.msra.mxu0 %v608
    %627 = vmatprep.subr.bf16.mxu0 0
    %628 = vmatpush1.bf16.msra.mxu0 0
    %629 = vmatprep.subr.bf16.mxu0 0
    %630 = vmatpush1.bf16.msra.mxu0 0
    %631 = vmatprep.subr.bf16.mxu0 0
    %632 = vmatpush1.bf16.msra.mxu0 0
    %633 = vmatprep.subr.bf16.mxu0 0
    %634 = vmatpush1.bf16.msra.mxu0 0
    %635 = vmatprep.subr.bf16.mxu0 0
    %636 = vmatpush1.bf16.msra.mxu0 0
    %637 = vmatprep.subr.bf16.mxu0 0
    %638 = vmatpush1.bf16.msra.mxu0 0
    %639 = vmatprep.subr.bf16.mxu0 0
    %640 = vmatpush1.bf16.msra.mxu0 0
    %641 = vmatprep.subr.bf16.mxu0 0
    %642 = vmatpush1.bf16.msra.mxu0 0
    %643 = vmatprep.subr.bf16.mxu0 0
    %644 = vmatpush1.bf16.msra.mxu0 0
    %645 = vmatprep.subr.bf16.mxu0 0
    %646 = vmatpush1.bf16.msra.mxu0 0
    %647 = vmatprep.subr.bf16.mxu0 0
    %648 = vmatpush1.bf16.msra.mxu0 0
    %649 = vmatprep.subr.bf16.mxu0 0
    %650 = vmatpush1.bf16.msra.mxu0 0
    %651 = vmatprep.mubr.bf16.mxu0 0
    %652 = vmatmul.mubr.bf16.gmra.mrb[0].mxu0 %v614
    %v653 = vpop.f32.mrb[0].mxu0
    %v654 = vadd.f32 0.0, %v653
    %v655 = vpop.f32.mrb[0].mxu0
    %v656 = vpop.f32.mrb[0].mxu0
    %v657 = vadd.f32 0.0, %v656
    %v658 = vpop.f32.mrb[0].mxu0
    %659 = vmatprep.mubr.bf16.mxu0 0
    %660 = vmatmul.mubr.bf16.gmra.mrb[0].mxu0 %v617
    %v661 = vpop.f32.mrb[0].mxu0
    %v662 = vadd.f32 0.0, %v661
    %v663 = vpop.f32.mrb[0].mxu0
    %v664 = vpop.f32.mrb[0].mxu0
    %v665 = vadd.f32 0.0, %v664
    %v666 = vpop.f32.mrb[0].mxu0
    %667 = vdwg.mxu0
    %v672 = vunpack.c.l.b16 %v61
    %v673 = vunpack.c.l.b16 %v62
    %v674 = vunpack.c.l.b16 %v63
    %v675 = vunpack.c.l.b16 %v64
    %v676 = vpack.c.b16 %v673, %v672
    %v677 = vpack.c.b16 %v675, %v674
    %v686 = vunpack.c.l.b16 %v117
    %v687 = vunpack.c.l.b16 %v118
    %v688 = vunpack.c.l.b16 %v119
    %v689 = vunpack.c.l.b16 %v120
    %v690 = vunpack.c.l.b16 %v121
    %v691 = vunpack.c.l.b16 %v122
    %v692 = vunpack.c.l.b16 %v123
    %v693 = vunpack.c.l.b16 %v124
    %v694 = vpack.c.b16 %v687, %v686
    %v695 = vpack.c.b16 %v689, %v688
    %v696 = vpack.c.b16 %v691, %v690
    %v697 = vpack.c.b16 %v693, %v692
    %v703 = vsel %vm167, %v676, 0
    %v706 = vsel %vm167, %v677, 0
    %708 = vmatprep.subr.bf16.mxu0 0
    %709 = vmatpush1.bf16.msra.mxu0 %v694
    %710 = vmatprep.subr.bf16.mxu0 0
    %711 = vmatpush1.bf16.msra.mxu0 %v695
    %712 = vmatprep.subr.bf16.mxu0 0
    %713 = vmatpush1.bf16.msra.mxu0 %v696
    %714 = vmatprep.subr.bf16.mxu0 0
    %715 = vmatpush1.bf16.msra.mxu0 %v697
    %716 = vmatprep.subr.bf16.mxu0 0
    %717 = vmatpush1.bf16.msra.mxu0 0
    %718 = vmatprep.subr.bf16.mxu0 0
    %719 = vmatpush1.bf16.msra.mxu0 0
    %720 = vmatprep.subr.bf16.mxu0 0
    %721 = vmatpush1.bf16.msra.mxu0 0
    %722 = vmatprep.subr.bf16.mxu0 0
    %723 = vmatpush1.bf16.msra.mxu0 0
    %724 = vmatprep.subr.bf16.mxu0 0
    %725 = vmatpush1.bf16.msra.mxu0 0
    %726 = vmatprep.subr.bf16.mxu0 0
    %727 = vmatpush1.bf16.msra.mxu0 0
    %728 = vmatprep.subr.bf16.mxu0 0
    %729 = vmatpush1.bf16.msra.mxu0 0
    %730 = vmatprep.subr.bf16.mxu0 0
    %731 = vmatpush1.bf16.msra.mxu0 0
    %732 = vmatprep.subr.bf16.mxu0 0
    %733 = vmatpush1.bf16.msra.mxu0 0
    %734 = vmatprep.subr.bf16.mxu0 0
    %735 = vmatpush1.bf16.msra.mxu0 0
    %736 = vmatprep.subr.bf16.mxu0 0
    %737 = vmatpush1.bf16.msra.mxu0 0
    %738 = vmatprep.subr.bf16.mxu0 0
    %739 = vmatpush1.bf16.msra.mxu0 0
    %740 = vmatprep.mubr.bf16.mxu0 0
    %741 = vmatmul.mubr.bf16.gmra.mrb[0].mxu0 %v703
    %v742 = vpop.f32.mrb[0].mxu0
    %v743 = vadd.f32 0.0, %v742
    %v744 = vpop.f32.mrb[0].mxu0
    %v745 = vpop.f32.mrb[0].mxu0
    %v746 = vadd.f32 0.0, %v745
    %v747 = vpop.f32.mrb[0].mxu0
    %748 = vmatprep.mubr.bf16.mxu0 0
    %749 = vmatmul.mubr.bf16.gmra.mrb[0].mxu0 %v706
    %v750 = vpop.f32.mrb[0].mxu0
    %v751 = vadd.f32 0.0, %v750
    %v752 = vpop.f32.mrb[0].mxu0
    %v753 = vpop.f32.mrb[0].mxu0
    %v754 = vadd.f32 0.0, %v753
    %v755 = vpop.f32.mrb[0].mxu0
    %756 = vdwg.mxu0
    %v761 = vunpack.c.l.b16 %v65
    %v762 = vunpack.c.l.b16 %v66
    %v763 = vunpack.c.l.b16 %v67
    %v764 = vunpack.c.l.b16 %v68
    %v765 = vpack.c.b16 %v762, %v761
    %v766 = vpack.c.b16 %v764, %v763
    %v775 = vunpack.c.l.b16 %v125
    %v776 = vunpack.c.l.b16 %v126
    %v777 = vunpack.c.l.b16 %v127
    %v778 = vunpack.c.l.b16 %v128
    %v779 = vunpack.c.l.b16 %v129
    %v780 = vunpack.c.l.b16 %v130
    %v781 = vunpack.c.l.b16 %v131
    %v782 = vunpack.c.l.b16 %v132
    %v783 = vpack.c.b16 %v776, %v775
    %v784 = vpack.c.b16 %v778, %v777
    %v785 = vpack.c.b16 %v780, %v779
    %v786 = vpack.c.b16 %v782, %v781
    %v792 = vsel %vm167, %v765, 0
    %v795 = vsel %vm167, %v766, 0
    %797 = vmatprep.subr.bf16.mxu0 0
    %798 = vmatpush1.bf16.msra.mxu0 %v783
    %799 = vmatprep.subr.bf16.mxu0 0
    %800 = vmatpush1.bf16.msra.mxu0 %v784
    %801 = vmatprep.subr.bf16.mxu0 0
    %802 = vmatpush1.bf16.msra.mxu0 %v785
    %803 = vmatprep.subr.bf16.mxu0 0
    %804 = vmatpush1.bf16.msra.mxu0 %v786
    %805 = vmatprep.subr.bf16.mxu0 0
    %806 = vmatpush1.bf16.msra.mxu0 0
    %807 = vmatprep.subr.bf16.mxu0 0
    %808 = vmatpush1.bf16.msra.mxu0 0
    %809 = vmatprep.subr.bf16.mxu0 0
    %810 = vmatpush1.bf16.msra.mxu0 0
    %811 = vmatprep.subr.bf16.mxu0 0
    %812 = vmatpush1.bf16.msra.mxu0 0
    %813 = vmatprep.subr.bf16.mxu0 0
    %814 = vmatpush1.bf16.msra.mxu0 0
    %815 = vmatprep.subr.bf16.mxu0 0
    %816 = vmatpush1.bf16.msra.mxu0 0
    %817 = vmatprep.subr.bf16.mxu0 0
    %818 = vmatpush1.bf16.msra.mxu0 0
    %819 = vmatprep.subr.bf16.mxu0 0
    %820 = vmatpush1.bf16.msra.mxu0 0
    %821 = vmatprep.subr.bf16.mxu0 0
    %822 = vmatpush1.bf16.msra.mxu0 0
    %823 = vmatprep.subr.bf16.mxu0 0
    %824 = vmatpush1.bf16.msra.mxu0 0
    %825 = vmatprep.subr.bf16.mxu0 0
    %826 = vmatpush1.bf16.msra.mxu0 0
    %827 = vmatprep.subr.bf16.mxu0 0
    %828 = vmatpush1.bf16.msra.mxu0 0
    %829 = vmatprep.mubr.bf16.mxu0 0
    %830 = vmatmul.mubr.bf16.gmra.mrb[0].mxu0 %v792
    %v831 = vpop.f32.mrb[0].mxu0
    %v832 = vadd.f32 0.0, %v831
    %v833 = vpop.f32.mrb[0].mxu0
    %v834 = vpop.f32.mrb[0].mxu0
    %v835 = vadd.f32 0.0, %v834
    %v836 = vpop.f32.mrb[0].mxu0
    %837 = vmatprep.mubr.bf16.mxu0 0
    %838 = vmatmul.mubr.bf16.gmra.mrb[0].mxu0 %v795
    %v839 = vpop.f32.mrb[0].mxu0
    %v840 = vadd.f32 0.0, %v839
    %v841 = vpop.f32.mrb[0].mxu0
    %v842 = vpop.f32.mrb[0].mxu0
    %v843 = vadd.f32 0.0, %v842
    %v844 = vpop.f32.mrb[0].mxu0
    %845 = vdwg.mxu0
    %v846 = vld [vmem:[%s2] sm:$0x1]
    %v847 = vld [vmem:[%s3] sm:$0x1]
    %vm848 = vcmask 261120
    %v849 = vsel %vm848, %v209, 0.0
    %850 = vadd.xlane.f32.xlu0 %v849
    %v851 = vpop.xlane.xlu0 %850
    %v852 = vsel %vm848, %v212, 0.0
    %853 = vadd.xlane.f32.xlu0 %v852
    %v854 = vpop.xlane.xlu0 %853
    %v855 = vsel %vm848, %v217, 0.0
    %856 = vadd.xlane.f32.xlu0 %v855
    %v857 = vpop.xlane.xlu0 %856
    %v858 = vsel %vm848, %v220, 0.0
    %859 = vadd.xlane.f32.xlu0 %v858
    %v860 = vpop.xlane.xlu0 %859
    %v861 = vsel %vm848, %v298, 0.0
    %862 = vadd.xlane.f32.xlu0 %v861
    %v863 = vpop.xlane.xlu0 %862
    %v864 = vsel %vm848, %v301, 0.0
    %865 = vadd.xlane.f32.xlu0 %v864
    %v866 = vpop.xlane.xlu0 %865
    %v867 = vsel %vm848, %v306, 0.0
    %868 = vadd.xlane.f32.xlu0 %v867
    %v869 = vpop.xlane.xlu0 %868
    %v870 = vsel %vm848, %v309, 0.0
    %871 = vadd.xlane.f32.xlu0 %v870
    %v872 = vpop.xlane.xlu0 %871
    %v873 = vsel %vm848, %v387, 0.0
    %874 = vadd.xlane.f32.xlu0 %v873
    %v875 = vpop.xlane.xlu0 %874
    %v876 = vsel %vm848, %v390, 0.0
    %877 = vadd.xlane.f32.xlu0 %v876
    %v878 = vpop.xlane.xlu0 %877
    %v879 = vsel %vm848, %v395, 0.0
    %880 = vadd.xlane.f32.xlu0 %v879
    %v881 = vpop.xlane.xlu0 %880
    %v882 = vsel %vm848, %v398, 0.0
    %883 = vadd.xlane.f32.xlu0 %v882
    %v884 = vpop.xlane.xlu0 %883
    %v885 = vsel %vm848, %v476, 0.0
    %886 = vadd.xlane.f32.xlu0 %v885
    %v887 = vpop.xlane.xlu0 %886
    %v888 = vsel %vm848, %v479, 0.0
    %889 = vadd.xlane.f32.xlu0 %v888
    %v890 = vpop.xlane.xlu0 %889
    %v891 = vsel %vm848, %v484, 0.0
    %892 = vadd.xlane.f32.xlu0 %v891
    %v893 = vpop.xlane.xlu0 %892
    %v894 = vsel %vm848, %v487, 0.0
    %895 = vadd.xlane.f32.xlu0 %v894
    %v896 = vpop.xlane.xlu0 %895
    %v897 = vsel %vm848, %v565, 0.0
    %898 = vadd.xlane.f32.xlu0 %v897
    %v899 = vpop.xlane.xlu0 %898
    %v900 = vsel %vm848, %v568, 0.0
    %901 = vadd.xlane.f32.xlu0 %v900
    %v902 = vpop.xlane.xlu0 %901
    %v903 = vsel %vm848, %v573, 0.0
    %904 = vadd.xlane.f32.xlu0 %v903
    %v905 = vpop.xlane.xlu0 %904
    %v906 = vsel %vm848, %v576, 0.0
    %907 = vadd.xlane.f32.xlu0 %v906
    %v908 = vpop.xlane.xlu0 %907
    %v909 = vsel %vm848, %v654, 0.0
    %910 = vadd.xlane.f32.xlu0 %v909
    %v911 = vpop.xlane.xlu0 %910
    %v912 = vsel %vm848, %v657, 0.0
    %913 = vadd.xlane.f32.xlu0 %v912
    %v914 = vpop.xlane.xlu0 %913
    %v915 = vsel %vm848, %v662, 0.0
    %916 = vadd.xlane.f32.xlu0 %v915
    %v917 = vpop.xlane.xlu0 %916
    %v918 = vsel %vm848, %v665, 0.0
    %919 = vadd.xlane.f32.xlu0 %v918
    %v920 = vpop.xlane.xlu0 %919
    %v921 = vsel %vm848, %v743, 0.0
    %922 = vadd.xlane.f32.xlu0 %v921
    %v923 = vpop.xlane.xlu0 %922
    %v924 = vsel %vm848, %v746, 0.0
    %925 = vadd.xlane.f32.xlu0 %v924
    %v926 = vpop.xlane.xlu0 %925
    %v927 = vsel %vm848, %v751, 0.0
    %928 = vadd.xlane.f32.xlu0 %v927
    %v929 = vpop.xlane.xlu0 %928
    %v930 = vsel %vm848, %v754, 0.0
    %931 = vadd.xlane.f32.xlu0 %v930
    %v932 = vpop.xlane.xlu0 %931
    %v933 = vsel %vm848, %v832, 0.0
    %934 = vadd.xlane.f32.xlu0 %v933
    %v935 = vpop.xlane.xlu0 %934
    %v936 = vsel %vm848, %v835, 0.0
    %937 = vadd.xlane.f32.xlu0 %v936
    %v938 = vpop.xlane.xlu0 %937
    %v939 = vsel %vm848, %v840, 0.0
    %940 = vadd.xlane.f32.xlu0 %v939
    %v941 = vpop.xlane.xlu0 %940
    %v942 = vsel %vm848, %v843, 0.0
    %943 = vadd.xlane.f32.xlu0 %v942
    %v944 = vpop.xlane.xlu0 %943
    %v945 = vrcp.pop 32.0
    %v946 = vmul.f32 %v851, %v945
    %v947 = vmul.f32 %v854, %v945
    %v948 = vmul.f32 %v857, %v945
    %v949 = vmul.f32 %v860, %v945
    %v950 = vmul.f32 %v863, %v945
    %v951 = vmul.f32 %v866, %v945
    %v952 = vmul.f32 %v869, %v945
    %v953 = vmul.f32 %v872, %v945
    %v954 = vmul.f32 %v875, %v945
    %v955 = vmul.f32 %v878, %v945
    %v956 = vmul.f32 %v881, %v945
    %v957 = vmul.f32 %v884, %v945
    %v958 = vmul.f32 %v887, %v945
    %v959 = vmul.f32 %v890, %v945
    %v960 = vmul.f32 %v893, %v945
    %v961 = vmul.f32 %v896, %v945
    %v962 = vmul.f32 %v899, %v945
    %v963 = vmul.f32 %v902, %v945
    %v964 = vmul.f32 %v905, %v945
    %v965 = vmul.f32 %v908, %v945
    %v966 = vmul.f32 %v911, %v945
    %v967 = vmul.f32 %v914, %v945
    %v968 = vmul.f32 %v917, %v945
    %v969 = vmul.f32 %v920, %v945
    %v970 = vmul.f32 %v923, %v945
    %v971 = vmul.f32 %v926, %v945
    %v972 = vmul.f32 %v929, %v945
    %v973 = vmul.f32 %v932, %v945
    %v974 = vmul.f32 %v935, %v945
    %v975 = vmul.f32 %v938, %v945
    %v976 = vmul.f32 %v941, %v945
    %v977 = vmul.f32 %v944, %v945
    %v978 = vsub.f32 %v209, %v946
    %v979 = vsub.f32 %v212, %v947
    %v980 = vsub.f32 %v217, %v948
    %v981 = vsub.f32 %v220, %v949
    %v982 = vsub.f32 %v298, %v950
    %v983 = vsub.f32 %v301, %v951
    %v984 = vsub.f32 %v306, %v952
    %v985 = vsub.f32 %v309, %v953
    %v986 = vsub.f32 %v387, %v954
    %v987 = vsub.f32 %v390, %v955
    %v988 = vsub.f32 %v395, %v956
    %v989 = vsub.f32 %v398, %v957
    %v990 = vsub.f32 %v476, %v958
    %v991 = vsub.f32 %v479, %v959
    %v992 = vsub.f32 %v484, %v960
    %v993 = vsub.f32 %v487, %v961
    %v994 = vsub.f32 %v565, %v962
    %v995 = vsub.f32 %v568, %v963
    %v996 = vsub.f32 %v573, %v964
    %v997 = vsub.f32 %v576, %v965
    %v998 = vsub.f32 %v654, %v966
    %v999 = vsub.f32 %v657, %v967
    %v1000 = vsub.f32 %v662, %v968
    %v1001 = vsub.f32 %v665, %v969
    %v1002 = vsub.f32 %v743, %v970
    %v1003 = vsub.f32 %v746, %v971
    %v1004 = vsub.f32 %v751, %v972
    %v1005 = vsub.f32 %v754, %v973
    %v1006 = vsub.f32 %v832, %v974
    %v1007 = vsub.f32 %v835, %v975
    %v1008 = vsub.f32 %v840, %v976
    %v1009 = vsub.f32 %v843, %v977
    %v1010 = vmul.f32 %v978, %v978
    %v1011 = vmul.f32 %v979, %v979
    %v1012 = vmul.f32 %v980, %v980
    %v1013 = vmul.f32 %v981, %v981
    %v1014 = vmul.f32 %v982, %v982
    %v1015 = vmul.f32 %v983, %v983
    %v1016 = vmul.f32 %v984, %v984
    %v1017 = vmul.f32 %v985, %v985
    %v1018 = vmul.f32 %v986, %v986
    %v1019 = vmul.f32 %v987, %v987
    %v1020 = vmul.f32 %v988, %v988
    %v1021 = vmul.f32 %v989, %v989
    %v1022 = vmul.f32 %v990, %v990
    %v1023 = vmul.f32 %v991, %v991
    %v1024 = vmul.f32 %v992, %v992
    %v1025 = vmul.f32 %v993, %v993
    %v1026 = vmul.f32 %v994, %v994
    %v1027 = vmul.f32 %v995, %v995
    %v1028 = vmul.f32 %v996, %v996
    %v1029 = vmul.f32 %v997, %v997
    %v1030 = vmul.f32 %v998, %v998
    %v1031 = vmul.f32 %v999, %v999
    %v1032 = vmul.f32 %v1000, %v1000
    %v1033 = vmul.f32 %v1001, %v1001
    %v1034 = vmul.f32 %v1002, %v1002
    %v1035 = vmul.f32 %v1003, %v1003
    %v1036 = vmul.f32 %v1004, %v1004
    %v1037 = vmul.f32 %v1005, %v1005
    %v1038 = vmul.f32 %v1006, %v1006
    %v1039 = vmul.f32 %v1007, %v1007
    %v1040 = vmul.f32 %v1008, %v1008
    %v1041 = vmul.f32 %v1009, %v1009
    %v1042 = vsel %vm848, %v1010, 0.0
    %1043 = vadd.xlane.f32.xlu0 %v1042
    %v1044 = vpop.xlane.xlu0 %1043
    %v1045 = vsel %vm848, %v1011, 0.0
    %1046 = vadd.xlane.f32.xlu0 %v1045
    %v1047 = vpop.xlane.xlu0 %1046
    %v1048 = vsel %vm848, %v1012, 0.0
    %1049 = vadd.xlane.f32.xlu0 %v1048
    %v1050 = vpop.xlane.xlu0 %1049
    %v1051 = vsel %vm848, %v1013, 0.0
    %1052 = vadd.xlane.f32.xlu0 %v1051
    %v1053 = vpop.xlane.xlu0 %1052
    %v1054 = vsel %vm848, %v1014, 0.0
    %1055 = vadd.xlane.f32.xlu0 %v1054
    %v1056 = vpop.xlane.xlu0 %1055
    %v1057 = vsel %vm848, %v1015, 0.0
    %1058 = vadd.xlane.f32.xlu0 %v1057
    %v1059 = vpop.xlane.xlu0 %1058
    %v1060 = vsel %vm848, %v1016, 0.0
    %1061 = vadd.xlane.f32.xlu0 %v1060
    %v1062 = vpop.xlane.xlu0 %1061
    %v1063 = vsel %vm848, %v1017, 0.0
    %1064 = vadd.xlane.f32.xlu0 %v1063
    %v1065 = vpop.xlane.xlu0 %1064
    %v1066 = vsel %vm848, %v1018, 0.0
    %1067 = vadd.xlane.f32.xlu0 %v1066
    %v1068 = vpop.xlane.xlu0 %1067
    %v1069 = vsel %vm848, %v1019, 0.0
    %1070 = vadd.xlane.f32.xlu0 %v1069
    %v1071 = vpop.xlane.xlu0 %1070
    %v1072 = vsel %vm848, %v1020, 0.0
    %1073 = vadd.xlane.f32.xlu0 %v1072
    %v1074 = vpop.xlane.xlu0 %1073
    %v1075 = vsel %vm848, %v1021, 0.0
    %1076 = vadd.xlane.f32.xlu0 %v1075
    %v1077 = vpop.xlane.xlu0 %1076
    %v1078 = vsel %vm848, %v1022, 0.0
    %1079 = vadd.xlane.f32.xlu0 %v1078
    %v1080 = vpop.xlane.xlu0 %1079
    %v1081 = vsel %vm848, %v1023, 0.0
    %1082 = vadd.xlane.f32.xlu0 %v1081
    %v1083 = vpop.xlane.xlu0 %1082
    %v1084 = vsel %vm848, %v1024, 0.0
    %1085 = vadd.xlane.f32.xlu0 %v1084
    %v1086 = vpop.xlane.xlu0 %1085
    %v1087 = vsel %vm848, %v1025, 0.0
    %1088 = vadd.xlane.f32.xlu0 %v1087
    %v1089 = vpop.xlane.xlu0 %1088
    %v1090 = vsel %vm848, %v1026, 0.0
    %1091 = vadd.xlane.f32.xlu0 %v1090
    %v1092 = vpop.xlane.xlu0 %1091
    %v1093 = vsel %vm848, %v1027, 0.0
    %1094 = vadd.xlane.f32.xlu0 %v1093
    %v1095 = vpop.xlane.xlu0 %1094
    %v1096 = vsel %vm848, %v1028, 0.0
    %1097 = vadd.xlane.f32.xlu0 %v1096
    %v1098 = vpop.xlane.xlu0 %1097
    %v1099 = vsel %vm848, %v1029, 0.0
    %1100 = vadd.xlane.f32.xlu0 %v1099
    %v1101 = vpop.xlane.xlu0 %1100
    %v1102 = vsel %vm848, %v1030, 0.0
    %1103 = vadd.xlane.f32.xlu0 %v1102
    %v1104 = vpop.xlane.xlu0 %1103
    %v1105 = vsel %vm848, %v1031, 0.0
    %1106 = vadd.xlane.f32.xlu0 %v1105
    %v1107 = vpop.xlane.xlu0 %1106
    %v1108 = vsel %vm848, %v1032, 0.0
    %1109 = vadd.xlane.f32.xlu0 %v1108
    %v1110 = vpop.xlane.xlu0 %1109
    %v1111 = vsel %vm848, %v1033, 0.0
    %1112 = vadd.xlane.f32.xlu0 %v1111
    %v1113 = vpop.xlane.xlu0 %1112
    %v1114 = vsel %vm848, %v1034, 0.0
    %1115 = vadd.xlane.f32.xlu0 %v1114
    %v1116 = vpop.xlane.xlu0 %1115
    %v1117 = vsel %vm848, %v1035, 0.0
    %1118 = vadd.xlane.f32.xlu0 %v1117
    %v1119 = vpop.xlane.xlu0 %1118
    %v1120 = vsel %vm848, %v1036, 0.0
    %1121 = vadd.xlane.f32.xlu0 %v1120
    %v1122 = vpop.xlane.xlu0 %1121
    %v1123 = vsel %vm848, %v1037, 0.0
    %1124 = vadd.xlane.f32.xlu0 %v1123
    %v1125 = vpop.xlane.xlu0 %1124
    %v1126 = vsel %vm848, %v1038, 0.0
    %1127 = vadd.xlane.f32.xlu0 %v1126
    %v1128 = vpop.xlane.xlu0 %1127
    %v1129 = vsel %vm848, %v1039, 0.0
    %1130 = vadd.xlane.f32.xlu0 %v1129
    %v1131 = vpop.xlane.xlu0 %1130
    %v1132 = vsel %vm848, %v1040, 0.0
    %1133 = vadd.xlane.f32.xlu0 %v1132
    %v1134 = vpop.xlane.xlu0 %1133
    %v1135 = vsel %vm848, %v1041, 0.0
    %1136 = vadd.xlane.f32.xlu0 %v1135
    %v1137 = vpop.xlane.xlu0 %1136
    %v1138 = vmul.f32 %v1044, %v945
    %v1139 = vmul.f32 %v1047, %v945
    %v1140 = vmul.f32 %v1050, %v945
    %v1141 = vmul.f32 %v1053, %v945
    %v1142 = vmul.f32 %v1056, %v945
    %v1143 = vmul.f32 %v1059, %v945
    %v1144 = vmul.f32 %v1062, %v945
    %v1145 = vmul.f32 %v1065, %v945
    %v1146 = vmul.f32 %v1068, %v945
    %v1147 = vmul.f32 %v1071, %v945
    %v1148 = vmul.f32 %v1074, %v945
    %v1149 = vmul.f32 %v1077, %v945
    %v1150 = vmul.f32 %v1080, %v945
    %v1151 = vmul.f32 %v1083, %v945
    %v1152 = vmul.f32 %v1086, %v945
    %v1153 = vmul.f32 %v1089, %v945
    %v1154 = vmul.f32 %v1092, %v945
    %v1155 = vmul.f32 %v1095, %v945
    %v1156 = vmul.f32 %v1098, %v945
    %v1157 = vmul.f32 %v1101, %v945
    %v1158 = vmul.f32 %v1104, %v945
    %v1159 = vmul.f32 %v1107, %v945
    %v1160 = vmul.f32 %v1110, %v945
    %v1161 = vmul.f32 %v1113, %v945
    %v1162 = vmul.f32 %v1116, %v945
    %v1163 = vmul.f32 %v1119, %v945
    %v1164 = vmul.f32 %v1122, %v945
    %v1165 = vmul.f32 %v1125, %v945
    %v1166 = vmul.f32 %v1128, %v945
    %v1167 = vmul.f32 %v1131, %v945
    %v1168 = vmul.f32 %v1134, %v945
    %v1169 = vmul.f32 %v1137, %v945
    %v1170 = vadd.f32 %v1138, 1e-05
    %v1171 = vadd.f32 %v1139, 1e-05
    %v1172 = vadd.f32 %v1140, 1e-05
    %v1173 = vadd.f32 %v1141, 1e-05
    %v1174 = vadd.f32 %v1142, 1e-05
    %v1175 = vadd.f32 %v1143, 1e-05
    %v1176 = vadd.f32 %v1144, 1e-05
    %v1177 = vadd.f32 %v1145, 1e-05
    %v1178 = vadd.f32 %v1146, 1e-05
    %v1179 = vadd.f32 %v1147, 1e-05
    %v1180 = vadd.f32 %v1148, 1e-05
    %v1181 = vadd.f32 %v1149, 1e-05
    %v1182 = vadd.f32 %v1150, 1e-05
    %v1183 = vadd.f32 %v1151, 1e-05
    %v1184 = vadd.f32 %v1152, 1e-05
    %v1185 = vadd.f32 %v1153, 1e-05
    %v1186 = vadd.f32 %v1154, 1e-05
    %v1187 = vadd.f32 %v1155, 1e-05
    %v1188 = vadd.f32 %v1156, 1e-05
    %v1189 = vadd.f32 %v1157, 1e-05
    %v1190 = vadd.f32 %v1158, 1e-05
    %v1191 = vadd.f32 %v1159, 1e-05
    %v1192 = vadd.f32 %v1160, 1e-05
    %v1193 = vadd.f32 %v1161, 1e-05
    %v1194 = vadd.f32 %v1162, 1e-05
    %v1195 = vadd.f32 %v1163, 1e-05
    %v1196 = vadd.f32 %v1164, 1e-05
    %v1197 = vadd.f32 %v1165, 1e-05
    %v1198 = vadd.f32 %v1166, 1e-05
    %v1199 = vadd.f32 %v1167, 1e-05
    %v1200 = vadd.f32 %v1168, 1e-05
    %v1201 = vadd.f32 %v1169, 1e-05
    %v1202 = vrsqrt.pop %v1170
    %v1203 = vrsqrt.pop %v1171
    %v1204 = vrsqrt.pop %v1172
    %v1205 = vrsqrt.pop %v1173
    %v1206 = vrsqrt.pop %v1174
    %v1207 = vrsqrt.pop %v1175
    %v1208 = vrsqrt.pop %v1176
    %v1209 = vrsqrt.pop %v1177
    %v1210 = vrsqrt.pop %v1178
    %v1211 = vrsqrt.pop %v1179
    %v1212 = vrsqrt.pop %v1180
    %v1213 = vrsqrt.pop %v1181
    %v1214 = vrsqrt.pop %v1182
    %v1215 = vrsqrt.pop %v1183
    %v1216 = vrsqrt.pop %v1184
    %v1217 = vrsqrt.pop %v1185
    %v1218 = vrsqrt.pop %v1186
    %v1219 = vrsqrt.pop %v1187
    %v1220 = vrsqrt.pop %v1188
    %v1221 = vrsqrt.pop %v1189
    %v1222 = vrsqrt.pop %v1190
    %v1223 = vrsqrt.pop %v1191
    %v1224 = vrsqrt.pop %v1192
    %v1225 = vrsqrt.pop %v1193
    %v1226 = vrsqrt.pop %v1194
    %v1227 = vrsqrt.pop %v1195
    %v1228 = vrsqrt.pop %v1196
    %v1229 = vrsqrt.pop %v1197
    %v1230 = vrsqrt.pop %v1198
    %v1231 = vrsqrt.pop %v1199
    %v1232 = vrsqrt.pop %v1200
    %v1233 = vrsqrt.pop %v1201
    %v1234 = vmul.f32 %v978, %v1202
    %v1235 = vmul.f32 %v979, %v1203
    %v1236 = vmul.f32 %v980, %v1204
    %v1237 = vmul.f32 %v981, %v1205
    %v1238 = vmul.f32 %v982, %v1206
    %v1239 = vmul.f32 %v983, %v1207
    %v1240 = vmul.f32 %v984, %v1208
    %v1241 = vmul.f32 %v985, %v1209
    %v1242 = vmul.f32 %v986, %v1210
    %v1243 = vmul.f32 %v987, %v1211
    %v1244 = vmul.f32 %v988, %v1212
    %v1245 = vmul.f32 %v989, %v1213
    %v1246 = vmul.f32 %v990, %v1214
    %v1247 = vmul.f32 %v991, %v1215
    %v1248 = vmul.f32 %v992, %v1216
    %v1249 = vmul.f32 %v993, %v1217
    %v1250 = vmul.f32 %v994, %v1218
    %v1251 = vmul.f32 %v995, %v1219
    %v1252 = vmul.f32 %v996, %v1220
    %v1253 = vmul.f32 %v997, %v1221
    %v1254 = vmul.f32 %v998, %v1222
    %v1255 = vmul.f32 %v999, %v1223
    %v1256 = vmul.f32 %v1000, %v1224
    %v1257 = vmul.f32 %v1001, %v1225
    %v1258 = vmul.f32 %v1002, %v1226
    %v1259 = vmul.f32 %v1003, %v1227
    %v1260 = vmul.f32 %v1004, %v1228
    %v1261 = vmul.f32 %v1005, %v1229
    %v1262 = vmul.f32 %v1006, %v1230
    %v1263 = vmul.f32 %v1007, %v1231
    %v1264 = vmul.f32 %v1008, %v1232
    %v1265 = vmul.f32 %v1009, %v1233
    %v1267 = vlaneseq
    %v1268 = vshrl.u32 %v1267, 7
    %v1269 = vsub.s32 0, %v1268
    %v1270 = vrot.slane %v846, %v1269
    %v1272 = vmul.f32 %v1234, %v1270
    %v1273 = vmul.f32 %v1235, %v1270
    %v1274 = vmul.f32 %v1236, %v1270
    %v1275 = vmul.f32 %v1237, %v1270
    %v1276 = vmul.f32 %v1238, %v1270
    %v1277 = vmul.f32 %v1239, %v1270
    %v1278 = vmul.f32 %v1240, %v1270
    %v1279 = vmul.f32 %v1241, %v1270
    %v1280 = vmul.f32 %v1242, %v1270
    %v1281 = vmul.f32 %v1243, %v1270
    %v1282 = vmul.f32 %v1244, %v1270
    %v1283 = vmul.f32 %v1245, %v1270
    %v1284 = vmul.f32 %v1246, %v1270
    %v1285 = vmul.f32 %v1247, %v1270
    %v1286 = vmul.f32 %v1248, %v1270
    %v1287 = vmul.f32 %v1249, %v1270
    %v1288 = vmul.f32 %v1250, %v1270
    %v1289 = vmul.f32 %v1251, %v1270
    %v1290 = vmul.f32 %v1252, %v1270
    %v1291 = vmul.f32 %v1253, %v1270
    %v1292 = vmul.f32 %v1254, %v1270
    %v1293 = vmul.f32 %v1255, %v1270
    %v1294 = vmul.f32 %v1256, %v1270
    %v1295 = vmul.f32 %v1257, %v1270
    %v1296 = vmul.f32 %v1258, %v1270
    %v1297 = vmul.f32 %v1259, %v1270
    %v1298 = vmul.f32 %v1260, %v1270
    %v1299 = vmul.f32 %v1261, %v1270
    %v1300 = vmul.f32 %v1262, %v1270
    %v1301 = vmul.f32 %v1263, %v1270
    %v1302 = vmul.f32 %v1264, %v1270
    %v1303 = vmul.f32 %v1265, %v1270
    %v1305 = vlaneseq
    %v1306 = vshrl.u32 %v1305, 7
    %v1307 = vsub.s32 0, %v1306
    %v1308 = vrot.slane %v847, %v1307
    %v1310 = vadd.f32 %v1272, %v1308
    %v1311 = vadd.f32 %v1273, %v1308
    %v1312 = vadd.f32 %v1274, %v1308
    %v1313 = vadd.f32 %v1275, %v1308
    %v1314 = vadd.f32 %v1276, %v1308
    %v1315 = vadd.f32 %v1277, %v1308
    %v1316 = vadd.f32 %v1278, %v1308
    %v1317 = vadd.f32 %v1279, %v1308
    %v1318 = vadd.f32 %v1280, %v1308
    %v1319 = vadd.f32 %v1281, %v1308
    %v1320 = vadd.f32 %v1282, %v1308
    %v1321 = vadd.f32 %v1283, %v1308
    %v1322 = vadd.f32 %v1284, %v1308
    %v1323 = vadd.f32 %v1285, %v1308
    %v1324 = vadd.f32 %v1286, %v1308
    %v1325 = vadd.f32 %v1287, %v1308
    %v1326 = vadd.f32 %v1288, %v1308
    %v1327 = vadd.f32 %v1289, %v1308
    %v1328 = vadd.f32 %v1290, %v1308
    %v1329 = vadd.f32 %v1291, %v1308
    %v1330 = vadd.f32 %v1292, %v1308
    %v1331 = vadd.f32 %v1293, %v1308
    %v1332 = vadd.f32 %v1294, %v1308
    %v1333 = vadd.f32 %v1295, %v1308
    %v1334 = vadd.f32 %v1296, %v1308
    %v1335 = vadd.f32 %v1297, %v1308
    %v1336 = vadd.f32 %v1298, %v1308
    %v1337 = vadd.f32 %v1299, %v1308
    %v1338 = vadd.f32 %v1300, %v1308
    %v1339 = vadd.f32 %v1301, %v1308
    %v1340 = vadd.f32 %v1302, %v1308
    %v1341 = vadd.f32 %v1303, %v1308
    %v1342 = vmax.f32 %v1310, 0.0
    %v1343 = vmax.f32 %v1311, 0.0
    %v1344 = vmax.f32 %v1312, 0.0
    %v1345 = vmax.f32 %v1313, 0.0
    %v1346 = vmax.f32 %v1314, 0.0
    %v1347 = vmax.f32 %v1315, 0.0
    %v1348 = vmax.f32 %v1316, 0.0
    %v1349 = vmax.f32 %v1317, 0.0
    %v1350 = vmax.f32 %v1318, 0.0
    %v1351 = vmax.f32 %v1319, 0.0
    %v1352 = vmax.f32 %v1320, 0.0
    %v1353 = vmax.f32 %v1321, 0.0
    %v1354 = vmax.f32 %v1322, 0.0
    %v1355 = vmax.f32 %v1323, 0.0
    %v1356 = vmax.f32 %v1324, 0.0
    %v1357 = vmax.f32 %v1325, 0.0
    %v1358 = vmax.f32 %v1326, 0.0
    %v1359 = vmax.f32 %v1327, 0.0
    %v1360 = vmax.f32 %v1328, 0.0
    %v1361 = vmax.f32 %v1329, 0.0
    %v1362 = vmax.f32 %v1330, 0.0
    %v1363 = vmax.f32 %v1331, 0.0
    %v1364 = vmax.f32 %v1332, 0.0
    %v1365 = vmax.f32 %v1333, 0.0
    %v1366 = vmax.f32 %v1334, 0.0
    %v1367 = vmax.f32 %v1335, 0.0
    %v1368 = vmax.f32 %v1336, 0.0
    %v1369 = vmax.f32 %v1337, 0.0
    %v1370 = vmax.f32 %v1338, 0.0
    %v1371 = vmax.f32 %v1339, 0.0
    %v1372 = vmax.f32 %v1340, 0.0
    %v1373 = vmax.f32 %v1341, 0.0
    %v1374 = vpack.c.bf16 %v1343, %v1342
    %v1375 = vpack.c.bf16 %v1345, %v1344
    %v1376 = vpack.c.bf16 %v1347, %v1346
    %v1377 = vpack.c.bf16 %v1349, %v1348
    %v1378 = vpack.c.bf16 %v1351, %v1350
    %v1379 = vpack.c.bf16 %v1353, %v1352
    %v1380 = vpack.c.bf16 %v1355, %v1354
    %v1381 = vpack.c.bf16 %v1357, %v1356
    %v1382 = vpack.c.bf16 %v1359, %v1358
    %v1383 = vpack.c.bf16 %v1361, %v1360
    %v1384 = vpack.c.bf16 %v1363, %v1362
    %v1385 = vpack.c.bf16 %v1365, %v1364
    %v1386 = vpack.c.bf16 %v1367, %v1366
    %v1387 = vpack.c.bf16 %v1369, %v1368
    %v1388 = vpack.c.bf16 %v1371, %v1370
    %v1389 = vpack.c.bf16 %v1373, %v1372
    %v1392 = vpack.i.b16 %v1376, %v1374
    %v1394 = vshrl.u32 %v1374, 16
    %v1395 = vshrl.u32 %v1376, 16
    %v1396 = vpack.i.b16 %v1395, %v1394
    %v1400 = vpack.i.b16 %v1380, %v1378
    %v1402 = vshrl.u32 %v1378, 16
    %v1403 = vshrl.u32 %v1380, 16
    %v1404 = vpack.i.b16 %v1403, %v1402
    %v1408 = vpack.i.b16 %v1384, %v1382
    %v1410 = vshrl.u32 %v1382, 16
    %v1411 = vshrl.u32 %v1384, 16
    %v1412 = vpack.i.b16 %v1411, %v1410
    %v1416 = vpack.i.b16 %v1388, %v1386
    %v1418 = vshrl.u32 %v1386, 16
    %v1419 = vshrl.u32 %v1388, 16
    %v1420 = vpack.i.b16 %v1419, %v1418
    %v1424 = vpack.i.b16 %v1377, %v1375
    %v1426 = vshrl.u32 %v1375, 16
    %v1427 = vshrl.u32 %v1377, 16
    %v1428 = vpack.i.b16 %v1427, %v1426
    %v1432 = vpack.i.b16 %v1381, %v1379
    %v1434 = vshrl.u32 %v1379, 16
    %v1435 = vshrl.u32 %v1381, 16
    %v1436 = vpack.i.b16 %v1435, %v1434
    %v1440 = vpack.i.b16 %v1385, %v1383
    %v1442 = vshrl.u32 %v1383, 16
    %v1443 = vshrl.u32 %v1385, 16
    %v1444 = vpack.i.b16 %v1443, %v1442
    %v1448 = vpack.i.b16 %v1389, %v1387
    %v1450 = vshrl.u32 %v1387, 16
    %v1451 = vshrl.u32 %v1389, 16
    %v1452 = vpack.i.b16 %v1451, %v1450
    %v1454 = vcombine.low %v1392, %v1408
    %v1455 = vcombine.high %v1392, %v1408
    %v1457 = vunpack.c.l.s4 1983009808
    %v1458 = vunpack.c.0.s8 %v1457
    %v1459 = vlaneseq
    %v1460 = vshrl.u32 %v1459, 7
    %v1461 = vsub.s32 %v1458, %v1460
    %v1462 = vrot.slane %v1454, %v1461
    %v1464 = vunpack.c.l.s4 1983009808
    %v1465 = vunpack.c.0.s8 %v1464
    %v1466 = vlaneseq
    %v1467 = vshrl.u32 %v1466, 7
    %v1468 = vsub.s32 %v1465, %v1467
    %v1469 = vrot.slane %v1455, %v1468
    %v1470 = vcombine.low %v1400, %v1416
    %v1471 = vcombine.high %v1400, %v1416
    %v1473 = vunpack.c.l.s4 1983009808
    %v1474 = vunpack.c.0.s8 %v1473
    %v1475 = vlaneseq
    %v1476 = vshrl.u32 %v1475, 7
    %v1477 = vsub.s32 %v1474, %v1476
    %v1478 = vrot.slane %v1470, %v1477
    %v1480 = vunpack.c.l.s4 1983009808
    %v1481 = vunpack.c.0.s8 %v1480
    %v1482 = vlaneseq
    %v1483 = vshrl.u32 %v1482, 7
    %v1484 = vsub.s32 %v1481, %v1483
    %v1485 = vrot.slane %v1471, %v1484
    %v1486 = vcombine.low %v1462, %v1478
    %v1487 = vcombine.high %v1462, %v1478
    %v1489 = vunpack.c.l.s4 1934713408
    %v1490 = vunpack.c.0.s8 %v1489
    %v1491 = vlaneseq
    %v1492 = vshrl.u32 %v1491, 7
    %v1493 = vsub.s32 %v1490, %v1492
    %v1494 = vrot.slane %v1486, %v1493
    %v1496 = vunpack.c.l.s4 1934713408
    %v1497 = vunpack.c.0.s8 %v1496
    %v1498 = vlaneseq
    %v1499 = vshrl.u32 %v1498, 7
    %v1500 = vsub.s32 %v1497, %v1499
    %v1501 = vrot.slane %v1487, %v1500
    %v1502 = vcombine.low %v1469, %v1485
    %v1503 = vcombine.high %v1469, %v1485
    %v1505 = vunpack.c.l.s4 1934713408
    %v1506 = vunpack.c.0.s8 %v1505
    %v1507 = vlaneseq
    %v1508 = vshrl.u32 %v1507, 7
    %v1509 = vsub.s32 %v1506, %v1508
    %v1510 = vrot.slane %v1502, %v1509
    %v1512 = vunpack.c.l.s4 1934713408
    %v1513 = vunpack.c.0.s8 %v1512
    %v1514 = vlaneseq
    %v1515 = vshrl.u32 %v1514, 7
    %v1516 = vsub.s32 %v1513, %v1515
    %v1517 = vrot.slane %v1503, %v1516
    %v1518 = vcombine.high %v1494, 0
    %v1519 = vcombine.high %v1501, 0
    %v1520 = vcombine.high %v1510, 0
    %v1521 = vcombine.high %v1517, 0
    %v1522 = vcombine.low %v1396, %v1412
    %v1523 = vcombine.high %v1396, %v1412
    %v1525 = vunpack.c.l.s4 1983009808
    %v1526 = vunpack.c.0.s8 %v1525
    %v1527 = vlaneseq
    %v1528 = vshrl.u32 %v1527, 7
    %v1529 = vsub.s32 %v1526, %v1528
    %v1530 = vrot.slane %v1522, %v1529
    %v1532 = vunpack.c.l.s4 1983009808
    %v1533 = vunpack.c.0.s8 %v1532
    %v1534 = vlaneseq
    %v1535 = vshrl.u32 %v1534, 7
    %v1536 = vsub.s32 %v1533, %v1535
    %v1537 = vrot.slane %v1523, %v1536
    %v1538 = vcombine.low %v1404, %v1420
    %v1539 = vcombine.high %v1404, %v1420
    %v1541 = vunpack.c.l.s4 1983009808
    %v1542 = vunpack.c.0.s8 %v1541
    %v1543 = vlaneseq
    %v1544 = vshrl.u32 %v1543, 7
    %v1545 = vsub.s32 %v1542, %v1544
    %v1546 = vrot.slane %v1538, %v1545
    %v1548 = vunpack.c.l.s4 1983009808
    %v1549 = vunpack.c.0.s8 %v1548
    %v1550 = vlaneseq
    %v1551 = vshrl.u32 %v1550, 7
    %v1552 = vsub.s32 %v1549, %v1551
    %v1553 = vrot.slane %v1539, %v1552
    %v1554 = vcombine.low %v1530, %v1546
    %v1555 = vcombine.high %v1530, %v1546
    %v1557 = vunpack.c.l.s4 1934713408
    %v1558 = vunpack.c.0.s8 %v1557
    %v1559 = vlaneseq
    %v1560 = vshrl.u32 %v1559, 7
    %v1561 = vsub.s32 %v1558, %v1560
    %v1562 = vrot.slane %v1554, %v1561
    %v1564 = vunpack.c.l.s4 1934713408
    %v1565 = vunpack.c.0.s8 %v1564
    %v1566 = vlaneseq
    %v1567 = vshrl.u32 %v1566, 7
    %v1568 = vsub.s32 %v1565, %v1567
    %v1569 = vrot.slane %v1555, %v1568
    %v1570 = vcombine.low %v1537, %v1553
    %v1571 = vcombine.high %v1537, %v1553
    %v1573 = vunpack.c.l.s4 1934713408
    %v1574 = vunpack.c.0.s8 %v1573
    %v1575 = vlaneseq
    %v1576 = vshrl.u32 %v1575, 7
    %v1577 = vsub.s32 %v1574, %v1576
    %v1578 = vrot.slane %v1570, %v1577
    %v1580 = vunpack.c.l.s4 1934713408
    %v1581 = vunpack.c.0.s8 %v1580
    %v1582 = vlaneseq
    %v1583 = vshrl.u32 %v1582, 7
    %v1584 = vsub.s32 %v1581, %v1583
    %v1585 = vrot.slane %v1571, %v1584
    %v1586 = vcombine.high %v1562, 0
    %v1587 = vcombine.high %v1569, 0
    %v1588 = vcombine.high %v1578, 0
    %v1589 = vcombine.high %v1585, 0
    %v1590 = vcombine.low %v1424, %v1440
    %v1591 = vcombine.high %v1424, %v1440
    %v1593 = vunpack.c.l.s4 1983009808
    %v1594 = vunpack.c.0.s8 %v1593
    %v1595 = vlaneseq
    %v1596 = vshrl.u32 %v1595, 7
    %v1597 = vsub.s32 %v1594, %v1596
    %v1598 = vrot.slane %v1590, %v1597
    %v1600 = vunpack.c.l.s4 1983009808
    %v1601 = vunpack.c.0.s8 %v1600
    %v1602 = vlaneseq
    %v1603 = vshrl.u32 %v1602, 7
    %v1604 = vsub.s32 %v1601, %v1603
    %v1605 = vrot.slane %v1591, %v1604
    %v1606 = vcombine.low %v1432, %v1448
    %v1607 = vcombine.high %v1432, %v1448
    %v1609 = vunpack.c.l.s4 1983009808
    %v1610 = vunpack.c.0.s8 %v1609
    %v1611 = vlaneseq
    %v1612 = vshrl.u32 %v1611, 7
    %v1613 = vsub.s32 %v1610, %v1612
    %v1614 = vrot.slane %v1606, %v1613
    %v1616 = vunpack.c.l.s4 1983009808
    %v1617 = vunpack.c.0.s8 %v1616
    %v1618 = vlaneseq
    %v1619 = vshrl.u32 %v1618, 7
    %v1620 = vsub.s32 %v1617, %v1619
    %v1621 = vrot.slane %v1607, %v1620
    %v1622 = vcombine.low %v1598, %v1614
    %v1623 = vcombine.high %v1598, %v1614
    %v1625 = vunpack.c.l.s4 1934713408
    %v1626 = vunpack.c.0.s8 %v1625
    %v1627 = vlaneseq
    %v1628 = vshrl.u32 %v1627, 7
    %v1629 = vsub.s32 %v1626, %v1628
    %v1630 = vrot.slane %v1622, %v1629
    %v1632 = vunpack.c.l.s4 1934713408
    %v1633 = vunpack.c.0.s8 %v1632
    %v1634 = vlaneseq
    %v1635 = vshrl.u32 %v1634, 7
    %v1636 = vsub.s32 %v1633, %v1635
    %v1637 = vrot.slane %v1623, %v1636
    %v1638 = vcombine.low %v1605, %v1621
    %v1639 = vcombine.high %v1605, %v1621
    %v1641 = vunpack.c.l.s4 1934713408
    %v1642 = vunpack.c.0.s8 %v1641
    %v1643 = vlaneseq
    %v1644 = vshrl.u32 %v1643, 7
    %v1645 = vsub.s32 %v1642, %v1644
    %v1646 = vrot.slane %v1638, %v1645
    %v1648 = vunpack.c.l.s4 1934713408
    %v1649 = vunpack.c.0.s8 %v1648
    %v1650 = vlaneseq
    %v1651 = vshrl.u32 %v1650, 7
    %v1652 = vsub.s32 %v1649, %v1651
    %v1653 = vrot.slane %v1639, %v1652
    %v1654 = vcombine.high %v1630, 0
    %v1655 = vcombine.high %v1637, 0
    %v1656 = vcombine.high %v1646, 0
    %v1657 = vcombine.high %v1653, 0
    %v1658 = vcombine.low %v1428, %v1444
    %v1659 = vcombine.high %v1428, %v1444
    %v1661 = vunpack.c.l.s4 1983009808
    %v1662 = vunpack.c.0.s8 %v1661
    %v1663 = vlaneseq
    %v1664 = vshrl.u32 %v1663, 7
    %v1665 = vsub.s32 %v1662, %v1664
    %v1666 = vrot.slane %v1658, %v1665
    %v1668 = vunpack.c.l.s4 1983009808
    %v1669 = vunpack.c.0.s8 %v1668
    %v1670 = vlaneseq
    %v1671 = vshrl.u32 %v1670, 7
    %v1672 = vsub.s32 %v1669, %v1671
    %v1673 = vrot.slane %v1659, %v1672
    %v1674 = vcombine.low %v1436, %v1452
    %v1675 = vcombine.high %v1436, %v1452
    %v1677 = vunpack.c.l.s4 1983009808
    %v1678 = vunpack.c.0.s8 %v1677
    %v1679 = vlaneseq
    %v1680 = vshrl.u32 %v1679, 7
    %v1681 = vsub.s32 %v1678, %v1680
    %v1682 = vrot.slane %v1674, %v1681
    %v1684 = vunpack.c.l.s4 1983009808
    %v1685 = vunpack.c.0.s8 %v1684
    %v1686 = vlaneseq
    %v1687 = vshrl.u32 %v1686, 7
    %v1688 = vsub.s32 %v1685, %v1687
    %v1689 = vrot.slane %v1675, %v1688
    %v1690 = vcombine.low %v1666, %v1682
    %v1691 = vcombine.high %v1666, %v1682
    %v1693 = vunpack.c.l.s4 1934713408
    %v1694 = vunpack.c.0.s8 %v1693
    %v1695 = vlaneseq
    %v1696 = vshrl.u32 %v1695, 7
    %v1697 = vsub.s32 %v1694, %v1696
    %v1698 = vrot.slane %v1690, %v1697
    %v1700 = vunpack.c.l.s4 1934713408
    %v1701 = vunpack.c.0.s8 %v1700
    %v1702 = vlaneseq
    %v1703 = vshrl.u32 %v1702, 7
    %v1704 = vsub.s32 %v1701, %v1703
    %v1705 = vrot.slane %v1691, %v1704
    %v1706 = vcombine.low %v1673, %v1689
    %v1707 = vcombine.high %v1673, %v1689
    %v1709 = vunpack.c.l.s4 1934713408
    %v1710 = vunpack.c.0.s8 %v1709
    %v1711 = vlaneseq
    %v1712 = vshrl.u32 %v1711, 7
    %v1713 = vsub.s32 %v1710, %v1712
    %v1714 = vrot.slane %v1706, %v1713
    %v1716 = vunpack.c.l.s4 1934713408
    %v1717 = vunpack.c.0.s8 %v1716
    %v1718 = vlaneseq
    %v1719 = vshrl.u32 %v1718, 7
    %v1720 = vsub.s32 %v1717, %v1719
    %v1721 = vrot.slane %v1707, %v1720
    %v1722 = vcombine.high %v1698, 0
    %v1723 = vcombine.high %v1705, 0
    %v1724 = vcombine.high %v1714, 0
    %v1725 = vcombine.high %v1721, 0
    %1727 = vrot.lane.b32.xlu0 %v1562, 32
    %v1728 = vpop.permute.xlu0 %1727
    %1730 = vrot.lane.b32.xlu0 %v1518, 64
    %v1731 = vpop.permute.xlu0 %1730
    %1733 = vrot.lane.b32.xlu0 %v1586, 96
    %v1734 = vpop.permute.xlu0 %1733
    %1736 = vrot.lane.b32.xlu0 %v1569, 32
    %v1737 = vpop.permute.xlu0 %1736
    %1739 = vrot.lane.b32.xlu0 %v1519, 64
    %v1740 = vpop.permute.xlu0 %1739
    %1742 = vrot.lane.b32.xlu0 %v1587, 96
    %v1743 = vpop.permute.xlu0 %1742
    %1745 = vrot.lane.b32.xlu0 %v1578, 32
    %v1746 = vpop.permute.xlu0 %1745
    %1748 = vrot.lane.b32.xlu0 %v1520, 64
    %v1749 = vpop.permute.xlu0 %1748
    %1751 = vrot.lane.b32.xlu0 %v1588, 96
    %v1752 = vpop.permute.xlu0 %1751
    %1754 = vrot.lane.b32.xlu0 %v1585, 32
    %v1755 = vpop.permute.xlu0 %1754
    %1757 = vrot.lane.b32.xlu0 %v1521, 64
    %v1758 = vpop.permute.xlu0 %1757
    %1760 = vrot.lane.b32.xlu0 %v1589, 96
    %v1761 = vpop.permute.xlu0 %1760
    %1763 = vrot.lane.b32.xlu0 %v1698, 32
    %v1764 = vpop.permute.xlu0 %1763
    %1766 = vrot.lane.b32.xlu0 %v1654, 64
    %v1767 = vpop.permute.xlu0 %1766
    %1769 = vrot.lane.b32.xlu0 %v1722, 96
    %v1770 = vpop.permute.xlu0 %1769
    %1772 = vrot.lane.b32.xlu0 %v1705, 32
    %v1773 = vpop.permute.xlu0 %1772
    %1775 = vrot.lane.b32.xlu0 %v1655, 64
    %v1776 = vpop.permute.xlu0 %1775
    %1778 = vrot.lane.b32.xlu0 %v1723, 96
    %v1779 = vpop.permute.xlu0 %1778
    %1781 = vrot.lane.b32.xlu0 %v1714, 32
    %v1782 = vpop.permute.xlu0 %1781
    %1784 = vrot.lane.b32.xlu0 %v1656, 64
    %v1785 = vpop.permute.xlu0 %1784
    %1787 = vrot.lane.b32.xlu0 %v1724, 96
    %v1788 = vpop.permute.xlu0 %1787
    %1790 = vrot.lane.b32.xlu0 %v1721, 32
    %v1791 = vpop.permute.xlu0 %1790
    %1793 = vrot.lane.b32.xlu0 %v1657, 64
    %v1794 = vpop.permute.xlu0 %1793
    %1796 = vrot.lane.b32.xlu0 %v1725, 96
    %v1797 = vpop.permute.xlu0 %1796
    %v1800 = vsel %vm848, %v1494, %v1728
    %v1802 = vsel %vm167, %v1800, %v1731
    %vm1803 = vcmask 785408
    %v1805 = vsel %vm1803, %v1802, %v1734
    %v1809 = vsel %vm848, %v1501, %v1737
    %v1811 = vsel %vm167, %v1809, %v1740
    %v1813 = vsel %vm1803, %v1811, %v1743
    %v1817 = vsel %vm848, %v1510, %v1746
    %v1819 = vsel %vm167, %v1817, %v1749
    %v1821 = vsel %vm1803, %v1819, %v1752
    %v1825 = vsel %vm848, %v1517, %v1755
    %v1827 = vsel %vm167, %v1825, %v1758
    %v1829 = vsel %vm1803, %v1827, %v1761
    %v1833 = vsel %vm848, %v1630, %v1764
    %v1835 = vsel %vm167, %v1833, %v1767
    %v1837 = vsel %vm1803, %v1835, %v1770
    %v1841 = vsel %vm848, %v1637, %v1773
    %v1843 = vsel %vm167, %v1841, %v1776
    %v1845 = vsel %vm1803, %v1843, %v1779
    %v1849 = vsel %vm848, %v1646, %v1782
    %v1851 = vsel %vm167, %v1849, %v1785
    %v1853 = vsel %vm1803, %v1851, %v1788
    %v1857 = vsel %vm848, %v1653, %v1791
    %v1859 = vsel %vm167, %v1857, %v1794
    %v1861 = vsel %vm1803, %v1859, %v1797
    %v1863 = vld [vmem:[%s4] sm:$0xf]
    %v1864 = vld [vmem:[%s4 + $0x4] sm:$0xf]
    %v1865 = vld [vmem:[%s4 + $0x8] sm:$0xf]
    %v1866 = vld [vmem:[%s4 + $0xc] sm:$0xf]
    %v1867 = vld [vmem:[%s4 + $0x10] sm:$0xf]
    %v1868 = vld [vmem:[%s4 + $0x14] sm:$0xf]
    %v1869 = vld [vmem:[%s4 + $0x18] sm:$0xf]
    %v1870 = vld [vmem:[%s4 + $0x1c] sm:$0xf]
    %v1871 = vld [vmem:[%s4 + $0x20] sm:$0xf]
    %v1872 = vld [vmem:[%s4 + $0x24] sm:$0xf]
    %v1873 = vld [vmem:[%s4 + $0x28] sm:$0xf]
    %v1874 = vld [vmem:[%s4 + $0x2c] sm:$0xf]
    %v1875 = vld [vmem:[%s4 + $0x30] sm:$0xf]
    %v1876 = vld [vmem:[%s4 + $0x34] sm:$0xf]
    %v1877 = vld [vmem:[%s4 + $0x38] sm:$0xf]
    %v1878 = vld [vmem:[%s4 + $0x3c] sm:$0xf]
    %v1879 = vld [vmem:[%s4 + $0x40] sm:$0xf]
    %v1880 = vld [vmem:[%s4 + $0x44] sm:$0xf]
    %v1881 = vld [vmem:[%s4 + $0x48] sm:$0xf]
    %v1882 = vld [vmem:[%s4 + $0x4c] sm:$0xf]
    %v1883 = vld [vmem:[%s4 + $0x50] sm:$0xf]
    %v1884 = vld [vmem:[%s4 + $0x54] sm:$0xf]
    %v1885 = vld [vmem:[%s4 + $0x58] sm:$0xf]
    %v1886 = vld [vmem:[%s4 + $0x5c] sm:$0xf]
    %v1887 = vld [vmem:[%s4 + $0x60] sm:$0xf]
    %v1888 = vld [vmem:[%s4 + $0x64] sm:$0xf]
    %v1889 = vld [vmem:[%s4 + $0x68] sm:$0xf]
    %v1890 = vld [vmem:[%s4 + $0x6c] sm:$0xf]
    %v1891 = vld [vmem:[%s4 + $0x70] sm:$0xf]
    %v1892 = vld [vmem:[%s4 + $0x74] sm:$0xf]
    %v1893 = vld [vmem:[%s4 + $0x78] sm:$0xf]
    %v1894 = vld [vmem:[%s4 + $0x7c] sm:$0xf]
    %v1895 = vld [vmem:[%s4 + $0x80] sm:$0xf]
    %v1896 = vld [vmem:[%s4 + $0x84] sm:$0xf]
    %v1897 = vld [vmem:[%s4 + $0x88] sm:$0xf]
    %v1898 = vld [vmem:[%s4 + $0x8c] sm:$0xf]
    %v1899 = vld [vmem:[%s4 + $0x90] sm:$0xf]
    %v1900 = vld [vmem:[%s4 + $0x94] sm:$0xf]
    %v1901 = vld [vmem:[%s4 + $0x98] sm:$0xf]
    %v1902 = vld [vmem:[%s4 + $0x9c] sm:$0xf]
    %v1903 = vld [vmem:[%s4 + $0xa0] sm:$0xf]
    %v1904 = vld [vmem:[%s4 + $0xa4] sm:$0xf]
    %v1905 = vld [vmem:[%s4 + $0xa8] sm:$0xf]
    %v1906 = vld [vmem:[%s4 + $0xac] sm:$0xf]
    %v1907 = vld [vmem:[%s4 + $0xb0] sm:$0xf]
    %v1908 = vld [vmem:[%s4 + $0xb4] sm:$0xf]
    %v1909 = vld [vmem:[%s4 + $0xb8] sm:$0xf]
    %v1910 = vld [vmem:[%s4 + $0xbc] sm:$0xf]
    %v1911 = vld [vmem:[%s4 + $0xc0] sm:$0xf]
    %v1912 = vld [vmem:[%s4 + $0xc4] sm:$0xf]
    %v1913 = vld [vmem:[%s4 + $0xc8] sm:$0xf]
    %v1914 = vld [vmem:[%s4 + $0xcc] sm:$0xf]
    %v1915 = vld [vmem:[%s4 + $0xd0] sm:$0xf]
    %v1916 = vld [vmem:[%s4 + $0xd4] sm:$0xf]
    %v1917 = vld [vmem:[%s4 + $0xd8] sm:$0xf]
    %v1918 = vld [vmem:[%s4 + $0xdc] sm:$0xf]
    %v1919 = vld [vmem:[%s4 + $0xe0] sm:$0xf]
    %v1920 = vld [vmem:[%s4 + $0xe4] sm:$0xf]
    %v1921 = vld [vmem:[%s4 + $0xe8] sm:$0xf]
    %v1922 = vld [vmem:[%s4 + $0xec] sm:$0xf]
    %v1923 = vld [vmem:[%s4 + $0xf0] sm:$0xf]
    %v1924 = vld [vmem:[%s4 + $0xf4] sm:$0xf]
    %v1925 = vld [vmem:[%s4 + $0xf8] sm:$0xf]
    %v1926 = vld [vmem:[%s4 + $0xfc] sm:$0xf]
    %v1927 = vld [vmem:[%s4 + $0x100] sm:$0xf]
    %v1928 = vld [vmem:[%s4 + $0x104] sm:$0xf]
    %v1929 = vld [vmem:[%s4 + $0x108] sm:$0xf]
    %v1930 = vld [vmem:[%s4 + $0x10c] sm:$0xf]
    %v1931 = vld [vmem:[%s4 + $0x110] sm:$0xf]
    %v1932 = vld [vmem:[%s4 + $0x114] sm:$0xf]
    %v1933 = vld [vmem:[%s4 + $0x118] sm:$0xf]
    %v1934 = vld [vmem:[%s4 + $0x11c] sm:$0xf]
    %v1935 = vld [vmem:[%s4 + $0x120] sm:$0xf]
    %v1936 = vld [vmem:[%s4 + $0x124] sm:$0xf]
    %v1937 = vld [vmem:[%s4 + $0x128] sm:$0xf]
    %v1938 = vld [vmem:[%s4 + $0x12c] sm:$0xf]
    %v1939 = vld [vmem:[%s4 + $0x130] sm:$0xf]
    %v1940 = vld [vmem:[%s4 + $0x134] sm:$0xf]
    %v1941 = vld [vmem:[%s4 + $0x138] sm:$0xf]
    %v1942 = vld [vmem:[%s4 + $0x13c] sm:$0xf]
    %v1943 = vld [vmem:[%s4 + $0x140] sm:$0xf]
    %v1944 = vld [vmem:[%s4 + $0x144] sm:$0xf]
    %v1945 = vld [vmem:[%s4 + $0x148] sm:$0xf]
    %v1946 = vld [vmem:[%s4 + $0x14c] sm:$0xf]
    %v1947 = vld [vmem:[%s4 + $0x150] sm:$0xf]
    %v1948 = vld [vmem:[%s4 + $0x154] sm:$0xf]
    %v1949 = vld [vmem:[%s4 + $0x158] sm:$0xf]
    %v1950 = vld [vmem:[%s4 + $0x15c] sm:$0xf]
    %v1951 = vld [vmem:[%s4 + $0x160] sm:$0xf]
    %v1952 = vld [vmem:[%s4 + $0x164] sm:$0xf]
    %v1953 = vld [vmem:[%s4 + $0x168] sm:$0xf]
    %v1954 = vld [vmem:[%s4 + $0x16c] sm:$0xf]
    %v1955 = vld [vmem:[%s4 + $0x170] sm:$0xf]
    %v1956 = vld [vmem:[%s4 + $0x174] sm:$0xf]
    %v1957 = vld [vmem:[%s4 + $0x178] sm:$0xf]
    %v1958 = vld [vmem:[%s4 + $0x17c] sm:$0xf]
    %v1959 = vld [vmem:[%s4 + $0x180] sm:$0xf]
    %v1960 = vld [vmem:[%s4 + $0x184] sm:$0xf]
    %v1961 = vld [vmem:[%s4 + $0x188] sm:$0xf]
    %v1962 = vld [vmem:[%s4 + $0x18c] sm:$0xf]
    %v1963 = vld [vmem:[%s4 + $0x190] sm:$0xf]
    %v1964 = vld [vmem:[%s4 + $0x194] sm:$0xf]
    %v1965 = vld [vmem:[%s4 + $0x198] sm:$0xf]
    %v1966 = vld [vmem:[%s4 + $0x19c] sm:$0xf]
    %v1967 = vld [vmem:[%s4 + $0x1a0] sm:$0xf]
    %v1968 = vld [vmem:[%s4 + $0x1a4] sm:$0xf]
    %v1969 = vld [vmem:[%s4 + $0x1a8] sm:$0xf]
    %v1970 = vld [vmem:[%s4 + $0x1ac] sm:$0xf]
    %v1971 = vld [vmem:[%s4 + $0x1b0] sm:$0xf]
    %v1972 = vld [vmem:[%s4 + $0x1b4] sm:$0xf]
    %v1973 = vld [vmem:[%s4 + $0x1b8] sm:$0xf]
    %v1974 = vld [vmem:[%s4 + $0x1bc] sm:$0xf]
    %v1975 = vld [vmem:[%s4 + $0x1c0] sm:$0xf]
    %v1976 = vld [vmem:[%s4 + $0x1c4] sm:$0xf]
    %v1977 = vld [vmem:[%s4 + $0x1c8] sm:$0xf]
    %v1978 = vld [vmem:[%s4 + $0x1cc] sm:$0xf]
    %v1979 = vld [vmem:[%s4 + $0x1d0] sm:$0xf]
    %v1980 = vld [vmem:[%s4 + $0x1d4] sm:$0xf]
    %v1981 = vld [vmem:[%s4 + $0x1d8] sm:$0xf]
    %v1982 = vld [vmem:[%s4 + $0x1dc] sm:$0xf]
    %v1983 = vld [vmem:[%s4 + $0x1e0] sm:$0xf]
    %v1984 = vld [vmem:[%s4 + $0x1e4] sm:$0xf]
    %v1985 = vld [vmem:[%s4 + $0x1e8] sm:$0xf]
    %v1986 = vld [vmem:[%s4 + $0x1ec] sm:$0xf]
    %v1987 = vld [vmem:[%s4 + $0x1f0] sm:$0xf]
    %v1988 = vld [vmem:[%s4 + $0x1f4] sm:$0xf]
    %v1989 = vld [vmem:[%s4 + $0x1f8] sm:$0xf]
    %v1990 = vld [vmem:[%s4 + $0x1fc] sm:$0xf]
    %v2119 = vunpack.c.l.b16 %v1863
    %v2120 = vunpack.c.l.b16 %v1864
    %v2121 = vunpack.c.l.b16 %v1865
    %v2122 = vunpack.c.l.b16 %v1866
    %v2123 = vunpack.c.l.b16 %v1867
    %v2124 = vunpack.c.l.b16 %v1868
    %v2125 = vunpack.c.l.b16 %v1869
    %v2126 = vunpack.c.l.b16 %v1870
    %v2127 = vunpack.c.l.b16 %v1871
    %v2128 = vunpack.c.l.b16 %v1872
    %v2129 = vunpack.c.l.b16 %v1873
    %v2130 = vunpack.c.l.b16 %v1874
    %v2131 = vunpack.c.l.b16 %v1875
    %v2132 = vunpack.c.l.b16 %v1876
    %v2133 = vunpack.c.l.b16 %v1877
    %v2134 = vunpack.c.l.b16 %v1878
    %v2135 = vunpack.c.l.b16 %v1879
    %v2136 = vunpack.c.l.b16 %v1880
    %v2137 = vunpack.c.l.b16 %v1881
    %v2138 = vunpack.c.l.b16 %v1882
    %v2139 = vunpack.c.l.b16 %v1883
    %v2140 = vunpack.c.l.b16 %v1884
    %v2141 = vunpack.c.l.b16 %v1885
    %v2142 = vunpack.c.l.b16 %v1886
    %v2143 = vunpack.c.l.b16 %v1887
    %v2144 = vunpack.c.l.b16 %v1888
    %v2145 = vunpack.c.l.b16 %v1889
    %v2146 = vunpack.c.l.b16 %v1890
    %v2147 = vunpack.c.l.b16 %v1891
    %v2148 = vunpack.c.l.b16 %v1892
    %v2149 = vunpack.c.l.b16 %v1893
    %v2150 = vunpack.c.l.b16 %v1894
    %v2151 = vunpack.c.l.b16 %v1895
    %v2152 = vunpack.c.l.b16 %v1896
    %v2153 = vunpack.c.l.b16 %v1897
    %v2154 = vunpack.c.l.b16 %v1898
    %v2155 = vunpack.c.l.b16 %v1899
    %v2156 = vunpack.c.l.b16 %v1900
    %v2157 = vunpack.c.l.b16 %v1901
    %v2158 = vunpack.c.l.b16 %v1902
    %v2159 = vunpack.c.l.b16 %v1903
    %v2160 = vunpack.c.l.b16 %v1904
    %v2161 = vunpack.c.l.b16 %v1905
    %v2162 = vunpack.c.l.b16 %v1906
    %v2163 = vunpack.c.l.b16 %v1907
    %v2164 = vunpack.c.l.b16 %v1908
    %v2165 = vunpack.c.l.b16 %v1909
    %v2166 = vunpack.c.l.b16 %v1910
    %v2167 = vunpack.c.l.b16 %v1911
    %v2168 = vunpack.c.l.b16 %v1912
    %v2169 = vunpack.c.l.b16 %v1913
    %v2170 = vunpack.c.l.b16 %v1914
    %v2171 = vunpack.c.l.b16 %v1915
    %v2172 = vunpack.c.l.b16 %v1916
    %v2173 = vunpack.c.l.b16 %v1917
    %v2174 = vunpack.c.l.b16 %v1918
    %v2175 = vunpack.c.l.b16 %v1919
    %v2176 = vunpack.c.l.b16 %v1920
    %v2177 = vunpack.c.l.b16 %v1921
    %v2178 = vunpack.c.l.b16 %v1922
    %v2179 = vunpack.c.l.b16 %v1923
    %v2180 = vunpack.c.l.b16 %v1924
    %v2181 = vunpack.c.l.b16 %v1925
    %v2182 = vunpack.c.l.b16 %v1926
    %v2183 = vunpack.c.l.b16 %v1927
    %v2184 = vunpack.c.l.b16 %v1928
    %v2185 = vunpack.c.l.b16 %v1929
    %v2186 = vunpack.c.l.b16 %v1930
    %v2187 = vunpack.c.l.b16 %v1931
    %v2188 = vunpack.c.l.b16 %v1932
    %v2189 = vunpack.c.l.b16 %v1933
    %v2190 = vunpack.c.l.b16 %v1934
    %v2191 = vunpack.c.l.b16 %v1935
    %v2192 = vunpack.c.l.b16 %v1936
    %v2193 = vunpack.c.l.b16 %v1937
    %v2194 = vunpack.c.l.b16 %v1938
    %v2195 = vunpack.c.l.b16 %v1939
    %v2196 = vunpack.c.l.b16 %v1940
    %v2197 = vunpack.c.l.b16 %v1941
    %v2198 = vunpack.c.l.b16 %v1942
    %v2199 = vunpack.c.l.b16 %v1943
    %v2200 = vunpack.c.l.b16 %v1944
    %v2201 = vunpack.c.l.b16 %v1945
    %v2202 = vunpack.c.l.b16 %v1946
    %v2203 = vunpack.c.l.b16 %v1947
    %v2204 = vunpack.c.l.b16 %v1948
    %v2205 = vunpack.c.l.b16 %v1949
    %v2206 = vunpack.c.l.b16 %v1950
    %v2207 = vunpack.c.l.b16 %v1951
    %v2208 = vunpack.c.l.b16 %v1952
    %v2209 = vunpack.c.l.b16 %v1953
    %v2210 = vunpack.c.l.b16 %v1954
    %v2211 = vunpack.c.l.b16 %v1955
    %v2212 = vunpack.c.l.b16 %v1956
    %v2213 = vunpack.c.l.b16 %v1957
    %v2214 = vunpack.c.l.b16 %v1958
    %v2215 = vunpack.c.l.b16 %v1959
    %v2216 = vunpack.c.l.b16 %v1960
    %v2217 = vunpack.c.l.b16 %v1961
    %v2218 = vunpack.c.l.b16 %v1962
    %v2219 = vunpack.c.l.b16 %v1963
    %v2220 = vunpack.c.l.b16 %v1964
    %v2221 = vunpack.c.l.b16 %v1965
    %v2222 = vunpack.c.l.b16 %v1966
    %v2223 = vunpack.c.l.b16 %v1967
    %v2224 = vunpack.c.l.b16 %v1968
    %v2225 = vunpack.c.l.b16 %v1969
    %v2226 = vunpack.c.l.b16 %v1970
    %v2227 = vunpack.c.l.b16 %v1971
    %v2228 = vunpack.c.l.b16 %v1972
    %v2229 = vunpack.c.l.b16 %v1973
    %v2230 = vunpack.c.l.b16 %v1974
    %v2231 = vunpack.c.l.b16 %v1975
    %v2232 = vunpack.c.l.b16 %v1976
    %v2233 = vunpack.c.l.b16 %v1977
    %v2234 = vunpack.c.l.b16 %v1978
    %v2235 = vunpack.c.l.b16 %v1979
    %v2236 = vunpack.c.l.b16 %v1980
    %v2237 = vunpack.c.l.b16 %v1981
    %v2238 = vunpack.c.l.b16 %v1982
    %v2239 = vunpack.c.l.b16 %v1983
    %v2240 = vunpack.c.l.b16 %v1984
    %v2241 = vunpack.c.l.b16 %v1985
    %v2242 = vunpack.c.l.b16 %v1986
    %v2243 = vunpack.c.l.b16 %v1987
    %v2244 = vunpack.c.l.b16 %v1988
    %v2245 = vunpack.c.l.b16 %v1989
    %v2246 = vunpack.c.l.b16 %v1990
    %v2247 = vpack.c.b16 %v2120, %v2119
    %v2248 = vpack.c.b16 %v2122, %v2121
    %v2249 = vpack.c.b16 %v2124, %v2123
    %v2250 = vpack.c.b16 %v2126, %v2125
    %v2251 = vpack.c.b16 %v2128, %v2127
    %v2252 = vpack.c.b16 %v2130, %v2129
    %v2253 = vpack.c.b16 %v2132, %v2131
    %v2254 = vpack.c.b16 %v2134, %v2133
    %v2255 = vpack.c.b16 %v2136, %v2135
    %v2256 = vpack.c.b16 %v2138, %v2137
    %v2257 = vpack.c.b16 %v2140, %v2139
    %v2258 = vpack.c.b16 %v2142, %v2141
    %v2259 = vpack.c.b16 %v2144, %v2143
    %v2260 = vpack.c.b16 %v2146, %v2145
    %v2261 = vpack.c.b16 %v2148, %v2147
    %v2262 = vpack.c.b16 %v2150, %v2149
    %v2263 = vpack.c.b16 %v2152, %v2151
    %v2264 = vpack.c.b16 %v2154, %v2153
    %v2265 = vpack.c.b16 %v2156, %v2155
    %v2266 = vpack.c.b16 %v2158, %v2157
    %v2267 = vpack.c.b16 %v2160, %v2159
    %v2268 = vpack.c.b16 %v2162, %v2161
    %v2269 = vpack.c.b16 %v2164, %v2163
    %v2270 = vpack.c.b16 %v2166, %v2165
    %v2271 = vpack.c.b16 %v2168, %v2167
    %v2272 = vpack.c.b16 %v2170, %v2169
    %v2273 = vpack.c.b16 %v2172, %v2171
    %v2274 = vpack.c.b16 %v2174, %v2173
    %v2275 = vpack.c.b16 %v2176, %v2175
    %v2276 = vpack.c.b16 %v2178, %v2177
    %v2277 = vpack.c.b16 %v2180, %v2179
    %v2278 = vpack.c.b16 %v2182, %v2181
    %v2279 = vpack.c.b16 %v2184, %v2183
    %v2280 = vpack.c.b16 %v2186, %v2185
    %v2281 = vpack.c.b16 %v2188, %v2187
    %v2282 = vpack.c.b16 %v2190, %v2189
    %v2283 = vpack.c.b16 %v2192, %v2191
    %v2284 = vpack.c.b16 %v2194, %v2193
    %v2285 = vpack.c.b16 %v2196, %v2195
    %v2286 = vpack.c.b16 %v2198, %v2197
    %v2287 = vpack.c.b16 %v2200, %v2199
    %v2288 = vpack.c.b16 %v2202, %v2201
    %v2289 = vpack.c.b16 %v2204, %v2203
    %v2290 = vpack.c.b16 %v2206, %v2205
    %v2291 = vpack.c.b16 %v2208, %v2207
    %v2292 = vpack.c.b16 %v2210, %v2209
    %v2293 = vpack.c.b16 %v2212, %v2211
    %v2294 = vpack.c.b16 %v2214, %v2213
    %v2295 = vpack.c.b16 %v2216, %v2215
    %v2296 = vpack.c.b16 %v2218, %v2217
    %v2297 = vpack.c.b16 %v2220, %v2219
    %v2298 = vpack.c.b16 %v2222, %v2221
    %v2299 = vpack.c.b16 %v2224, %v2223
    %v2300 = vpack.c.b16 %v2226, %v2225
    %v2301 = vpack.c.b16 %v2228, %v2227
    %v2302 = vpack.c.b16 %v2230, %v2229
    %v2303 = vpack.c.b16 %v2232, %v2231
    %v2304 = vpack.c.b16 %v2234, %v2233
    %v2305 = vpack.c.b16 %v2236, %v2235
    %v2306 = vpack.c.b16 %v2238, %v2237
    %v2307 = vpack.c.b16 %v2240, %v2239
    %v2308 = vpack.c.b16 %v2242, %v2241
    %v2309 = vpack.c.b16 %v2244, %v2243
    %v2310 = vpack.c.b16 %v2246, %v2245
    %2375 = vmatprep.subr.bf16.mxu0 0
    %2376 = vmatpush1.bf16.msra.mxu0 %v2247
    %2377 = vmatprep.subr.bf16.mxu0 0
    %2378 = vmatpush1.bf16.msra.mxu0 %v2248
    %2379 = vmatprep.subr.bf16.mxu0 0
    %2380 = vmatpush1.bf16.msra.mxu0 %v2249
    %2381 = vmatprep.subr.bf16.mxu0 0
    %2382 = vmatpush1.bf16.msra.mxu0 %v2250
    %2383 = vmatprep.subr.bf16.mxu0 0
    %2384 = vmatpush1.bf16.msra.mxu0 %v2251
    %2385 = vmatprep.subr.bf16.mxu0 0
    %2386 = vmatpush1.bf16.msra.mxu0 %v2252
    %2387 = vmatprep.subr.bf16.mxu0 0
    %2388 = vmatpush1.bf16.msra.mxu0 %v2253
    %2389 = vmatprep.subr.bf16.mxu0 0
    %2390 = vmatpush1.bf16.msra.mxu0 %v2254
    %2391 = vmatprep.subr.bf16.mxu0 0
    %2392 = vmatpush1.bf16.msra.mxu0 %v2255
    %2393 = vmatprep.subr.bf16.mxu0 0
    %2394 = vmatpush1.bf16.msra.mxu0 %v2256
    %2395 = vmatprep.subr.bf16.mxu0 0
    %2396 = vmatpush1.bf16.msra.mxu0 %v2257
    %2397 = vmatprep.subr.bf16.mxu0 0
    %2398 = vmatpush1.bf16.msra.mxu0 %v2258
    %2399 = vmatprep.subr.bf16.mxu0 0
    %2400 = vmatpush1.bf16.msra.mxu0 %v2259
    %2401 = vmatprep.subr.bf16.mxu0 0
    %2402 = vmatpush1.bf16.msra.mxu0 %v2260
    %2403 = vmatprep.subr.bf16.mxu0 0
    %2404 = vmatpush1.bf16.msra.mxu0 %v2261
    %2405 = vmatprep.subr.bf16.mxu0 0
    %2406 = vmatpush1.bf16.msra.mxu0 %v2262
    %2407 = vmatprep.mubr.bf16.mxu0 %v1813
    %2408 = vmatmul.mubr.bf16.gmra.mrb[0].mxu0 %v1805
    %v2409 = vpop.f32.mrb[0].mxu0
    %v2410 = vadd.f32 0.0, %v2409
    %v2411 = vpop.f32.mrb[0].mxu0
    %v2412 = vpop.f32.mrb[0].mxu0
    %v2413 = vpop.f32.mrb[0].mxu0
    %2414 = vdwg.mxu0
    %2415 = vmatprep.subr.bf16.mxu0 0
    %2416 = vmatpush1.bf16.msra.mxu0 %v2263
    %2417 = vmatprep.subr.bf16.mxu0 0
    %2418 = vmatpush1.bf16.msra.mxu0 %v2264
    %2419 = vmatprep.subr.bf16.mxu0 0
    %2420 = vmatpush1.bf16.msra.mxu0 %v2265
    %2421 = vmatprep.subr.bf16.mxu0 0
    %2422 = vmatpush1.bf16.msra.mxu0 %v2266
    %2423 = vmatprep.subr.bf16.mxu0 0
    %2424 = vmatpush1.bf16.msra.mxu0 %v2267
    %2425 = vmatprep.subr.bf16.mxu0 0
    %2426 = vmatpush1.bf16.msra.mxu0 %v2268
    %2427 = vmatprep.subr.bf16.mxu0 0
    %2428 = vmatpush1.bf16.msra.mxu0 %v2269
    %2429 = vmatprep.subr.bf16.mxu0 0
    %2430 = vmatpush1.bf16.msra.mxu0 %v2270
    %2431 = vmatprep.subr.bf16.mxu0 0
    %2432 = vmatpush1.bf16.msra.mxu0 %v2271
    %2433 = vmatprep.subr.bf16.mxu0 0
    %2434 = vmatpush1.bf16.msra.mxu0 %v2272
    %2435 = vmatprep.subr.bf16.mxu0 0
    %2436 = vmatpush1.bf16.msra.mxu0 %v2273
    %2437 = vmatprep.subr.bf16.mxu0 0
    %2438 = vmatpush1.bf16.msra.mxu0 %v2274
    %2439 = vmatprep.subr.bf16.mxu0 0
    %2440 = vmatpush1.bf16.msra.mxu0 %v2275
    %2441 = vmatprep.subr.bf16.mxu0 0
    %2442 = vmatpush1.bf16.msra.mxu0 %v2276
    %2443 = vmatprep.subr.bf16.mxu0 0
    %2444 = vmatpush1.bf16.msra.mxu0 %v2277
    %2445 = vmatprep.subr.bf16.mxu0 0
    %2446 = vmatpush1.bf16.msra.mxu0 %v2278
    %2447 = vmatprep.mubr.bf16.mxu0 %v1829
    %2448 = vmatmul.mubr.bf16.gmra.mrb[0].mxu0 %v1821
    %v2449 = vpop.f32.mrb[0].mxu0
    %v2450 = vadd.f32 %v2410, %v2449
    %v2451 = vpop.f32.mrb[0].mxu0
    %v2452 = vpop.f32.mrb[0].mxu0
    %v2453 = vpop.f32.mrb[0].mxu0
    %2454 = vdwg.mxu0
    %2455 = vmatprep.subr.bf16.mxu0 0
    %2456 = vmatpush1.bf16.msra.mxu0 %v2279
    %2457 = vmatprep.subr.bf16.mxu0 0
    %2458 = vmatpush1.bf16.msra.mxu0 %v2280
    %2459 = vmatprep.subr.bf16.mxu0 0
    %2460 = vmatpush1.bf16.msra.mxu0 %v2281
    %2461 = vmatprep.subr.bf16.mxu0 0
    %2462 = vmatpush1.bf16.msra.mxu0 %v2282
    %2463 = vmatprep.subr.bf16.mxu0 0
    %2464 = vmatpush1.bf16.msra.mxu0 %v2283
    %2465 = vmatprep.subr.bf16.mxu0 0
    %2466 = vmatpush1.bf16.msra.mxu0 %v2284
    %2467 = vmatprep.subr.bf16.mxu0 0
    %2468 = vmatpush1.bf16.msra.mxu0 %v2285
    %2469 = vmatprep.subr.bf16.mxu0 0
    %2470 = vmatpush1.bf16.msra.mxu0 %v2286
    %2471 = vmatprep.subr.bf16.mxu0 0
    %2472 = vmatpush1.bf16.msra.mxu0 %v2287
    %2473 = vmatprep.subr.bf16.mxu0 0
    %2474 = vmatpush1.bf16.msra.mxu0 %v2288
    %2475 = vmatprep.subr.bf16.mxu0 0
    %2476 = vmatpush1.bf16.msra.mxu0 %v2289
    %2477 = vmatprep.subr.bf16.mxu0 0
    %2478 = vmatpush1.bf16.msra.mxu0 %v2290
    %2479 = vmatprep.subr.bf16.mxu0 0
    %2480 = vmatpush1.bf16.msra.mxu0 %v2291
    %2481 = vmatprep.subr.bf16.mxu0 0
    %2482 = vmatpush1.bf16.msra.mxu0 %v2292
    %2483 = vmatprep.subr.bf16.mxu0 0
    %2484 = vmatpush1.bf16.msra.mxu0 %v2293
    %2485 = vmatprep.subr.bf16.mxu0 0
    %2486 = vmatpush1.bf16.msra.mxu0 %v2294
    %2487 = vmatprep.mubr.bf16.mxu0 %v1845
    %2488 = vmatmul.mubr.bf16.gmra.mrb[0].mxu0 %v1837
    %v2489 = vpop.f32.mrb[0].mxu0
    %v2490 = vadd.f32 %v2450, %v2489
    %v2491 = vpop.f32.mrb[0].mxu0
    %v2492 = vpop.f32.mrb[0].mxu0
    %v2493 = vpop.f32.mrb[0].mxu0
    %2494 = vdwg.mxu0
    %2495 = vmatprep.subr.bf16.mxu0 0
    %2496 = vmatpush1.bf16.msra.mxu0 %v2295
    %2497 = vmatprep.subr.bf16.mxu0 0
    %2498 = vmatpush1.bf16.msra.mxu0 %v2296
    %2499 = vmatprep.subr.bf16.mxu0 0
    %2500 = vmatpush1.bf16.msra.mxu0 %v2297
    %2501 = vmatprep.subr.bf16.mxu0 0
    %2502 = vmatpush1.bf16.msra.mxu0 %v2298
    %2503 = vmatprep.subr.bf16.mxu0 0
    %2504 = vmatpush1.bf16.msra.mxu0 %v2299
    %2505 = vmatprep.subr.bf16.mxu0 0
    %2506 = vmatpush1.bf16.msra.mxu0 %v2300
    %2507 = vmatprep.subr.bf16.mxu0 0
    %2508 = vmatpush1.bf16.msra.mxu0 %v2301
    %2509 = vmatprep.subr.bf16.mxu0 0
    %2510 = vmatpush1.bf16.msra.mxu0 %v2302
    %2511 = vmatprep.subr.bf16.mxu0 0
    %2512 = vmatpush1.bf16.msra.mxu0 %v2303
    %2513 = vmatprep.subr.bf16.mxu0 0
    %2514 = vmatpush1.bf16.msra.mxu0 %v2304
    %2515 = vmatprep.subr.bf16.mxu0 0
    %2516 = vmatpush1.bf16.msra.mxu0 %v2305
    %2517 = vmatprep.subr.bf16.mxu0 0
    %2518 = vmatpush1.bf16.msra.mxu0 %v2306
    %2519 = vmatprep.subr.bf16.mxu0 0
    %2520 = vmatpush1.bf16.msra.mxu0 %v2307
    %2521 = vmatprep.subr.bf16.mxu0 0
    %2522 = vmatpush1.bf16.msra.mxu0 %v2308
    %2523 = vmatprep.subr.bf16.mxu0 0
    %2524 = vmatpush1.bf16.msra.mxu0 %v2309
    %2525 = vmatprep.subr.bf16.mxu0 0
    %2526 = vmatpush1.bf16.msra.mxu0 %v2310
    %2527 = vmatprep.mubr.bf16.mxu0 %v1861
    %2528 = vmatmul.mubr.bf16.gmra.mrb[0].mxu0 %v1853
    %v2529 = vpop.f32.mrb[0].mxu0
    %v2530 = vadd.f32 %v2490, %v2529
    %v2531 = vpop.f32.mrb[0].mxu0
    %v2532 = vpop.f32.mrb[0].mxu0
    %v2533 = vpop.f32.mrb[0].mxu0
    %2534 = vdwg.mxu0
    %v2535 = vld [vmem:[#allocation2] sm:$0xff]
    %v2536 = vadd.f32 %v2535, %v2530
    %2537 = vst.msk [vmem:[#allocation2] sm:$0xff] %vm167, %v2536
    // Predicated region
    $region38: #{tpu_custom_call.1} parent=1 // pred_check
      %p2538 = pneg %p31
    $region39: #{tpu_custom_call.1} parent=1 // pred_check_branch
      %2540 = sbr.rel (%p2538) target = $region41
    $region40: #{tpu_custom_call.1} parent=1 // pred_region
      %v2541 = vld [vmem:[#allocation2] sm:$0xff]
      %v2542 = vld [vmem:[%s5] sm:$0x1]
      %v2544 = vlaneseq
      %v2545 = vshrl.u32 %v2544, 7
      %v2546 = vsub.s32 0, %v2545
      %v2547 = vrot.slane %v2542, %v2546
      %v2549 = vadd.f32 %v2541, %v2547
      %v2550 = vld [vmem:[%s6] sm:$0x1]
      %v2551 = vld [vmem:[%s7] sm:$0x1]
      %v2552 = vsel %vm167, %v2549, 0.0
      %2553 = vadd.xlane.f32.xlu0 %v2552
      %v2554 = vpop.xlane.xlu0 %2553
      %v2555 = vrcp.pop 64.0
      %v2556 = vmul.f32 %v2554, %v2555
      %v2557 = vsub.f32 %v2549, %v2556
      %v2558 = vmul.f32 %v2557, %v2557
      %v2559 = vsel %vm167, %v2558, 0.0
      %2560 = vadd.xlane.f32.xlu0 %v2559
      %v2561 = vpop.xlane.xlu0 %2560
      %v2562 = vmul.f32 %v2561, %v2555
      %v2563 = vadd.f32 %v2562, 1e-05
      %v2564 = vrsqrt.pop %v2563
      %v2565 = vmul.f32 %v2557, %v2564
      %v2567 = vlaneseq
      %v2568 = vshrl.u32 %v2567, 7
      %v2569 = vsub.s32 0, %v2568
      %v2570 = vrot.slane %v2550, %v2569
      %v2572 = vmul.f32 %v2565, %v2570
      %v2574 = vlaneseq
      %v2575 = vshrl.u32 %v2574, 7
      %v2576 = vsub.s32 0, %v2575
      %v2577 = vrot.slane %v2551, %v2576
      %v2579 = vadd.f32 %v2572, %v2577
      %v2580 = vmax.f32 %v2579, 0.0
      %2581 = vst.msk [vmem:[#allocation3] sm:$0xff] %vm167, %v2580
    $region41: #{tpu_custom_call.1} parent=1 // pred_fallthru
      _
    // Predicated region
    $region42: #{tpu_custom_call.1} parent=1 // pred_check
      _
    $region43: #{tpu_custom_call.1} parent=1 // pred_check_branch
      %2583 = sbr.rel (0) target = $region45
    $region44: #{tpu_custom_call.1} parent=1 // pred_region
      %s2585 = ssub.s32 128, 128
      %2586 = vsyncadd [#allocation4], %s2585
      %s2588 = sshll.u32 [#allocation3], 4
      %s2589 = int_to_ptr.vmem [resolvable:$true] %s2588
      %2591 = dma.vmem_to_hbm [thread:$0]  %s2589, 128, %s8, [#allocation4]
    $region45: #{tpu_custom_call.1} parent=1 // pred_fallthru
      _
    // Predicated region
    $region46: #{tpu_custom_call.1} parent=1 // pred_check
      _
    $region47: #{tpu_custom_call.1} parent=1 // pred_check_branch
      %2593 = sbr.rel (0) target = $region49
    $region48: #{tpu_custom_call.1} parent=1 // pred_region
      %2594 = dma.done [#allocation4], 128
    $region49: #{tpu_custom_call.1} parent=1 // pred_fallthru
      _
    %2595 = vsyncpa [#allocation4], 1

// kernel: tpu_custom_call.1
$region0: #{tpu_custom_call.1}
  #allocation0 [shape = 'u32[]', space=smem, size = 0x4, offset = 0x4, fixed_abs, tag = 'smem constant byte address 0x4 - core index']
  #allocation1 [shape = 'u32[144,128]{1,0:T(1,128)}', space=vmem, size = 0x12000, scoped, tag = 'internal scratch']
  #allocation2 [shape = 'f32[8,64]{1,0:T(8,128)}', space=vmem, size = 0x1000, scoped, tag = 'scratch operand']
  %s0 = inlined_call_operand.vmem [shape: bf16[8,32,64], index: 0, kind: input, shape index: {}]
  %s1 = inlined_call_operand.vmem [shape: bf16[8,64,32], index: 1, kind: input, shape index: {}]
  %s2 = inlined_call_operand.vmem [shape: f32[1,32], index: 2, kind: input, shape index: {}]
  %s3 = inlined_call_operand.vmem [shape: f32[1,32], index: 3, kind: input, shape index: {}]
  %s4 = inlined_call_operand.vmem [shape: bf16[1024,64], index: 4, kind: input, shape index: {}]
  %s5 = inlined_call_operand.vmem [shape: f32[1,64], index: 5, kind: input, shape index: {}]
  %s6 = inlined_call_operand.vmem [shape: f32[1,64], index: 6, kind: input, shape index: {}]
  %s7 = inlined_call_operand.vmem [shape: f32[1,64], index: 7, kind: input, shape index: {}]
  %s8 = inlined_call_operand.hbm [shape: f32[8,64], index: 8, kind: output, shape index: {}]
  %s9 = sld [smem:[#allocation0]]
  $region50: #{tpu_custom_call.1} parent=0
    _
  %s11 = ssub.s32 1, %s9
  %s12 = scalar_select 0, %s11, %s9
  $region1: #{tpu_custom_call.1} parent=0
    #allocation3 [shape = 'u8[4096]{0}', space=vmem, size = 0x1000, scoped, tag = 'output window, operand 0, single buffered']
    #allocation4 [shape = 's32[1]{0}', space=sflag, size = 0x4, scoped, tag = 'scoped memory for tpu_custom_call.1']
    %13 = vsyncpa [#allocation4], 0
    // Predicated region
    $region2: #{tpu_custom_call.1} parent=1 // pred_check
      _
    $region3: #{tpu_custom_call.1} parent=1 // pred_check_branch
      %15 = sbr.rel (0) target = $region5
    $region4: #{tpu_custom_call.1} parent=1 // pred_region
      _
    $region5: #{tpu_custom_call.1} parent=1 // pred_fallthru
      _
    // Predicated region
    $region6: #{tpu_custom_call.1} parent=1 // pred_check
      _
    $region7: #{tpu_custom_call.1} parent=1 // pred_check_branch
      %17 = sbr.rel (0) target = $region9
    $region8: #{tpu_custom_call.1} parent=1 // pred_region
      _
    $region9: #{tpu_custom_call.1} parent=1 // pred_fallthru
      _
    // Predicated region
    $region10: #{tpu_custom_call.1} parent=1 // pred_check
      _
    $region11: #{tpu_custom_call.1} parent=1 // pred_check_branch
      %19 = sbr.rel (0) target = $region13
    $region12: #{tpu_custom_call.1} parent=1 // pred_region
      _
    $region13: #{tpu_custom_call.1} parent=1 // pred_fallthru
      _
    // Predicated region
    $region14: #{tpu_custom_call.1} parent=1 // pred_check
      _
    $region15: #{tpu_custom_call.1} parent=1 // pred_check_branch
      %21 = sbr.rel (0) target = $region17
    $region16: #{tpu_custom_call.1} parent=1 // pred_region
      _
    $region17: #{tpu_custom_call.1} parent=1 // pred_fallthru
      _
    // Predicated region
    $region18: #{tpu_custom_call.1} parent=1 // pred_check
      _
    $region19: #{tpu_custom_call.1} parent=1 // pred_check_branch
      %23 = sbr.rel (0) target = $region21
    $region20: #{tpu_custom_call.1} parent=1 // pred_region
      _
    $region21: #{tpu_custom_call.1} parent=1 // pred_fallthru
      _
    // Predicated region
    $region22: #{tpu_custom_call.1} parent=1 // pred_check
      _
    $region23: #{tpu_custom_call.1} parent=1 // pred_check_branch
      %25 = sbr.rel (0) target = $region25
    $region24: #{tpu_custom_call.1} parent=1 // pred_region
      _
    $region25: #{tpu_custom_call.1} parent=1 // pred_fallthru
      _
    // Predicated region
    $region26: #{tpu_custom_call.1} parent=1 // pred_check
      _
    $region27: #{tpu_custom_call.1} parent=1 // pred_check_branch
      %27 = sbr.rel (0) target = $region29
    $region28: #{tpu_custom_call.1} parent=1 // pred_region
      _
    $region29: #{tpu_custom_call.1} parent=1 // pred_fallthru
      _
    // Predicated region
    $region30: #{tpu_custom_call.1} parent=1 // pred_check
      _
    $region31: #{tpu_custom_call.1} parent=1 // pred_check_branch
      %29 = sbr.rel (0) target = $region33
    $region32: #{tpu_custom_call.1} parent=1 // pred_region
      _
    $region33: #{tpu_custom_call.1} parent=1 // pred_fallthru
      _
    %p31 = scmp.eq.s32.totalorder 0, 0
    // Predicated region
    $region34: #{tpu_custom_call.1} parent=1 // pred_check
      %p32 = pneg %p31
    $region35: #{tpu_custom_call.1} parent=1 // pred_check_branch
      %34 = sbr.rel (%p32) target = $region37
    $region36: #{tpu_custom_call.1} parent=1 // pred_region
      %vm35 = vcmask 523264
      %36 = vst.msk [vmem:[#allocation2] sm:$0xff] %vm35, 0.0
    $region37: #{tpu_custom_call.1} parent=1 // pred_fallthru
      _
    %v37 = vld [vmem:[%s0] sm:$0xf]
    %v38 = vld [vmem:[%s0 + $0x4] sm:$0xf]
    %v39 = vld [vmem:[%s0 + $0x8] sm:$0xf]
    %v40 = vld [vmem:[%s0 + $0xc] sm:$0xf]
    %v41 = vld [vmem:[%s0 + $0x10] sm:$0xf]
    %v42 = vld [vmem:[%s0 + $0x14] sm:$0xf]
    %v43 = vld [vmem:[%s0 + $0x18] sm:$0xf]
    %v44 = vld [vmem:[%s0 + $0x1c] sm:$0xf]
    %v45 = vld [vmem:[%s0 + $0x20] sm:$0xf]
    %v46 = vld [vmem:[%s0 + $0x24] sm:$0xf]
    %v47 = vld [vmem:[%s0 + $0x28] sm:$0xf]
    %v48 = vld [vmem:[%s0 + $0x2c] sm:$0xf]
    %v49 = vld [vmem:[%s0 + $0x30] sm:$0xf]
    %v50 = vld [vmem:[%s0 + $0x34] sm:$0xf]
    %v51 = vld [vmem:[%s0 + $0x38] sm:$0xf]
    %v52 = vld [vmem:[%s0 + $0x3c] sm:$0xf]
    %v53 = vld [vmem:[%s0 + $0x40] sm:$0xf]
    %v54 = vld [vmem:[%s0 + $0x44] sm:$0xf]
    %v55 = vld [vmem:[%s0 + $0x48] sm:$0xf]
    %v56 = vld [vmem:[%s0 + $0x4c] sm:$0xf]
    %v57 = vld [vmem:[%s0 + $0x50] sm:$0xf]
    %v58 = vld [vmem:[%s0 + $0x54] sm:$0xf]
    %v59 = vld [vmem:[%s0 + $0x58] sm:$0xf]
    %v60 = vld [vmem:[%s0 + $0x5c] sm:$0xf]
    %v61 = vld [vmem:[%s0 + $0x60] sm:$0xf]
    %v62 = vld [vmem:[%s0 + $0x64] sm:$0xf]
    %v63 = vld [vmem:[%s0 + $0x68] sm:$0xf]
    %v64 = vld [vmem:[%s0 + $0x6c] sm:$0xf]
    %v65 = vld [vmem:[%s0 + $0x70] sm:$0xf]
    %v66 = vld [vmem:[%s0 + $0x74] sm:$0xf]
    %v67 = vld [vmem:[%s0 + $0x78] sm:$0xf]
    %v68 = vld [vmem:[%s0 + $0x7c] sm:$0xf]
    %v69 = vld [vmem:[%s1] sm:$0xf]
    %v70 = vld [vmem:[%s1 + $0x4] sm:$0xf]
    %v71 = vld [vmem:[%s1 + $0x8] sm:$0xf]
    %v72 = vld [vmem:[%s1 + $0xc] sm:$0xf]
    %v73 = vld [vmem:[%s1 + $0x10] sm:$0xf]
    %v74 = vld [vmem:[%s1 + $0x14] sm:$0xf]
    %v75 = vld [vmem:[%s1 + $0x18] sm:$0xf]
    %v76 = vld [vmem:[%s1 + $0x1c] sm:$0xf]
    %v77 = vld [vmem:[%s1 + $0x20] sm:$0xf]
    %v78 = vld [vmem:[%s1 + $0x24] sm:$0xf]
    %v79 = vld [vmem:[%s1 + $0x28] sm:$0xf]
    %v80 = vld [vmem:[%s1 + $0x2c] sm:$0xf]
    %v81 = vld [vmem:[%s1 + $0x30] sm:$0xf]
    %v82 = vld [vmem:[%s1 + $0x34] sm:$0xf]
    %v83 = vld [vmem:[%s1 + $0x38] sm:$0xf]
    %v84 = vld [vmem:[%s1 + $0x3c] sm:$0xf]
    %v85 = vld [vmem:[%s1 + $0x40] sm:$0xf]
    %v86 = vld [vmem:[%s1 + $0x44] sm:$0xf]
    %v87 = vld [vmem:[%s1 + $0x48] sm:$0xf]
    %v88 = vld [vmem:[%s1 + $0x4c] sm:$0xf]
    %v89 = vld [vmem:[%s1 + $0x50] sm:$0xf]
    %v90 = vld [vmem:[%s1 + $0x54] sm:$0xf]
    %v91 = vld [vmem:[%s1 + $0x58] sm:$0xf]
    %v92 = vld [vmem:[%s1 + $0x5c] sm:$0xf]
    %v93 = vld [vmem:[%s1 + $0x60] sm:$0xf]
    %v94 = vld [vmem:[%s1 + $0x64] sm:$0xf]
    %v95 = vld [vmem:[%s1 + $0x68] sm:$0xf]
    %v96 = vld [vmem:[%s1 + $0x6c] sm:$0xf]
    %v97 = vld [vmem:[%s1 + $0x70] sm:$0xf]
    %v98 = vld [vmem:[%s1 + $0x74] sm:$0xf]
    %v99 = vld [vmem:[%s1 + $0x78] sm:$0xf]
    %v100 = vld [vmem:[%s1 + $0x7c] sm:$0xf]
    %v101 = vld [vmem:[%s1 + $0x80] sm:$0xf]
    %v102 = vld [vmem:[%s1 + $0x84] sm:$0xf]
    %v103 = vld [vmem:[%s1 + $0x88] sm:$0xf]
    %v104 = vld [vmem:[%s1 + $0x8c] sm:$0xf]
    %v105 = vld [vmem:[%s1 + $0x90] sm:$0xf]
    %v106 = vld [vmem:[%s1 + $0x94] sm:$0xf]
    %v107 = vld [vmem:[%s1 + $0x98] sm:$0xf]
    %v108 = vld [vmem:[%s1 + $0x9c] sm:$0xf]
    %v109 = vld [vmem:[%s1 + $0xa0] sm:$0xf]
    %v110 = vld [vmem:[%s1 + $0xa4] sm:$0xf]
    %v111 = vld [vmem:[%s1 + $0xa8] sm:$0xf]
    %v112 = vld [vmem:[%s1 + $0xac] sm:$0xf]
    %v113 = vld [vmem:[%s1 + $0xb0] sm:$0xf]
    %v114 = vld [vmem:[%s1 + $0xb4] sm:$0xf]
    %v115 = vld [vmem:[%s1 + $0xb8] sm:$0xf]
    %v116 = vld [vmem:[%s1 + $0xbc] sm:$0xf]
    %v117 = vld [vmem:[%s1 + $0xc0] sm:$0xf]
    %v118 = vld [vmem:[%s1 + $0xc4] sm:$0xf]
    %v119 = vld [vmem:[%s1 + $0xc8] sm:$0xf]
    %v120 = vld [vmem:[%s1 + $0xcc] sm:$0xf]
    %v121 = vld [vmem:[%s1 + $0xd0] sm:$0xf]
    %v122 = vld [vmem:[%s1 + $0xd4] sm:$0xf]
    %v123 = vld [vmem:[%s1 + $0xd8] sm:$0xf]
    %v124 = vld [vmem:[%s1 + $0xdc] sm:$0xf]
    %v125 = vld [vmem:[%s1 + $0xe0] sm:$0xf]
    %v126 = vld [vmem:[%s1 + $0xe4] sm:$0xf]
    %v127 = vld [vmem:[%s1 + $0xe8] sm:$0xf]
    %v128 = vld [vmem:[%s1 + $0xec] sm:$0xf]
    %v129 = vld [vmem:[%s1 + $0xf0] sm:$0xf]
    %v130 = vld [vmem:[%s1 + $0xf4] sm:$0xf]
    %v131 = vld [vmem:[%s1 + $0xf8] sm:$0xf]
    %v132 = vld [vmem:[%s1 + $0xfc] sm:$0xf]
    %v137 = vunpack.c.l.b16 %v37
    %v138 = vunpack.c.l.b16 %v38
    %v139 = vunpack.c.l.b16 %v39
    %v140 = vunpack.c.l.b16 %v40
    %v141 = vpack.c.b16 %v138, %v137
    %v142 = vpack.c.b16 %v140, %v139
    %v151 = vunpack.c.l.b16 %v69
    %v152 = vunpack.c.l.b16 %v70
    %v153 = vunpack.c.l.b16 %v71
    %v154 = vunpack.c.l.b16 %v72
    %v155 = vunpack.c.l.b16 %v73
    %v156 = vunpack.c.l.b16 %v74
    %v157 = vunpack.c.l.b16 %v75
    %v158 = vunpack.c.l.b16 %v76
    %v159 = vpack.c.b16 %v152, %v151
    %v160 = vpack.c.b16 %v154, %v153
    %v161 = vpack.c.b16 %v156, %v155
    %v162 = vpack.c.b16 %v158, %v157
    %vm167 = vcmask 523264
    %v169 = vsel %vm167, %v141, 0
    %v172 = vsel %vm167, %v142, 0
    %174 = vmatprep.subr.bf16.mxu0 0
    %175 = vmatpush1.bf16.msra.mxu0 %v159
    %176 = vmatprep.subr.bf16.mxu0 0
    %177 = vmatpush1.bf16.msra.mxu0 %v160
    %178 = vmatprep.subr.bf16.mxu0 0
    %179 = vmatpush1.bf16.msra.mxu0 %v161
    %180 = vmatprep.subr.bf16.mxu0 0
    %181 = vmatpush1.bf16.msra.mxu0 %v162
    %182 = vmatprep.subr.bf16.mxu0 0
    %183 = vmatpush1.bf16.msra.mxu0 0
    %184 = vmatprep.subr.bf16.mxu0 0
    %185 = vmatpush1.bf16.msra.mxu0 0
    %186 = vmatprep.subr.bf16.mxu0 0
    %187 = vmatpush1.bf16.msra.mxu0 0
    %188 = vmatprep.subr.bf16.mxu0 0
    %189 = vmatpush1.bf16.msra.mxu0 0
    %190 = vmatprep.subr.bf16.mxu0 0
    %191 = vmatpush1.bf16.msra.mxu0 0
    %192 = vmatprep.subr.bf16.mxu0 0
    %193 = vmatpush1.bf16.msra.mxu0 0
    %194 = vmatprep.subr.bf16.mxu0 0
    %195 = vmatpush1.bf16.msra.mxu0 0
    %196 = vmatprep.subr.bf16.mxu0 0
    %197 = vmatpush1.bf16.msra.mxu0 0
    %198 = vmatprep.subr.bf16.mxu0 0
    %199 = vmatpush1.bf16.msra.mxu0 0
    %200 = vmatprep.subr.bf16.mxu0 0
    %201 = vmatpush1.bf16.msra.mxu0 0
    %202 = vmatprep.subr.bf16.mxu0 0
    %203 = vmatpush1.bf16.msra.mxu0 0
    %204 = vmatprep.subr.bf16.mxu0 0
    %205 = vmatpush1.bf16.msra.mxu0 0
    %206 = vmatprep.mubr.bf16.mxu0 0
    %207 = vmatmul.mubr.bf16.gmra.mrb[0].mxu0 %v169
    %v208 = vpop.f32.mrb[0].mxu0
    %v209 = vadd.f32 0.0, %v208
    %v210 = vpop.f32.mrb[0].mxu0
    %v211 = vpop.f32.mrb[0].mxu0
    %v212 = vadd.f32 0.0, %v211
    %v213 = vpop.f32.mrb[0].mxu0
    %214 = vmatprep.mubr.bf16.mxu0 0
    %215 = vmatmul.mubr.bf16.gmra.mrb[0].mxu0 %v172
    %v216 = vpop.f32.mrb[0].mxu0
    %v217 = vadd.f32 0.0, %v216
    %v218 = vpop.f32.mrb[0].mxu0
    %v219 = vpop.f32.mrb[0].mxu0
    %v220 = vadd.f32 0.0, %v219
    %v221 = vpop.f32.mrb[0].mxu0
    %222 = vdwg.mxu0
    %v227 = vunpack.c.l.b16 %v41
    %v228 = vunpack.c.l.b16 %v42
    %v229 = vunpack.c.l.b16 %v43
    %v230 = vunpack.c.l.b16 %v44
    %v231 = vpack.c.b16 %v228, %v227
    %v232 = vpack.c.b16 %v230, %v229
    %v241 = vunpack.c.l.b16 %v77
    %v242 = vunpack.c.l.b16 %v78
    %v243 = vunpack.c.l.b16 %v79
    %v244 = vunpack.c.l.b16 %v80
    %v245 = vunpack.c.l.b16 %v81
    %v246 = vunpack.c.l.b16 %v82
    %v247 = vunpack.c.l.b16 %v83
    %v248 = vunpack.c.l.b16 %v84
    %v249 = vpack.c.b16 %v242, %v241
    %v250 = vpack.c.b16 %v244, %v243
    %v251 = vpack.c.b16 %v246, %v245
    %v252 = vpack.c.b16 %v248, %v247
    %v258 = vsel %vm167, %v231, 0
    %v261 = vsel %vm167, %v232, 0
    %263 = vmatprep.subr.bf16.mxu0 0
    %264 = vmatpush1.bf16.msra.mxu0 %v249
    %265 = vmatprep.subr.bf16.mxu0 0
    %266 = vmatpush1.bf16.msra.mxu0 %v250
    %267 = vmatprep.subr.bf16.mxu0 0
    %268 = vmatpush1.bf16.msra.mxu0 %v251
    %269 = vmatprep.subr.bf16.mxu0 0
    %270 = vmatpush1.bf16.msra.mxu0 %v252
    %271 = vmatprep.subr.bf16.mxu0 0
    %272 = vmatpush1.bf16.msra.mxu0 0
    %273 = vmatprep.subr.bf16.mxu0 0
    %274 = vmatpush1.bf16.msra.mxu0 0
    %275 = vmatprep.subr.bf16.mxu0 0
    %276 = vmatpush1.bf16.msra.mxu0 0
    %277 = vmatprep.subr.bf16.mxu0 0
    %278 = vmatpush1.bf16.msra.mxu0 0
    %279 = vmatprep.subr.bf16.mxu0 0
    %280 = vmatpush1.bf16.msra.mxu0 0
    %281 = vmatprep.subr.bf16.mxu0 0
    %282 = vmatpush1.bf16.msra.mxu0 0
    %283 = vmatprep.subr.bf16.mxu0 0
    %284 = vmatpush1.bf16.msra.mxu0 0
    %285 = vmatprep.subr.bf16.mxu0 0
    %286 = vmatpush1.bf16.msra.mxu0 0
    %287 = vmatprep.subr.bf16.mxu0 0
    %288 = vmatpush1.bf16.msra.mxu0 0
    %289 = vmatprep.subr.bf16.mxu0 0
    %290 = vmatpush1.bf16.msra.mxu0 0
    %291 = vmatprep.subr.bf16.mxu0 0
    %292 = vmatpush1.bf16.msra.mxu0 0
    %293 = vmatprep.subr.bf16.mxu0 0
    %294 = vmatpush1.bf16.msra.mxu0 0
    %295 = vmatprep.mubr.bf16.mxu0 0
    %296 = vmatmul.mubr.bf16.gmra.mrb[0].mxu0 %v258
    %v297 = vpop.f32.mrb[0].mxu0
    %v298 = vadd.f32 0.0, %v297
    %v299 = vpop.f32.mrb[0].mxu0
    %v300 = vpop.f32.mrb[0].mxu0
    %v301 = vadd.f32 0.0, %v300
    %v302 = vpop.f32.mrb[0].mxu0
    %303 = vmatprep.mubr.bf16.mxu0 0
    %304 = vmatmul.mubr.bf16.gmra.mrb[0].mxu0 %v261
    %v305 = vpop.f32.mrb[0].mxu0
    %v306 = vadd.f32 0.0, %v305
    %v307 = vpop.f32.mrb[0].mxu0
    %v308 = vpop.f32.mrb[0].mxu0
    %v309 = vadd.f32 0.0, %v308
    %v310 = vpop.f32.mrb[0].mxu0
    %311 = vdwg.mxu0
    %v316 = vunpack.c.l.b16 %v45
    %v317 = vunpack.c.l.b16 %v46
    %v318 = vunpack.c.l.b16 %v47
    %v319 = vunpack.c.l.b16 %v48
    %v320 = vpack.c.b16 %v317, %v316
    %v321 = vpack.c.b16 %v319, %v318
    %v330 = vunpack.c.l.b16 %v85
    %v331 = vunpack.c.l.b16 %v86
    %v332 = vunpack.c.l.b16 %v87
    %v333 = vunpack.c.l.b16 %v88
    %v334 = vunpack.c.l.b16 %v89
    %v335 = vunpack.c.l.b16 %v90
    %v336 = vunpack.c.l.b16 %v91
    %v337 = vunpack.c.l.b16 %v92
    %v338 = vpack.c.b16 %v331, %v330
    %v339 = vpack.c.b16 %v333, %v332
    %v340 = vpack.c.b16 %v335, %v334
    %v341 = vpack.c.b16 %v337, %v336
    %v347 = vsel %vm167, %v320, 0
    %v350 = vsel %vm167, %v321, 0
    %352 = vmatprep.subr.bf16.mxu0 0
    %353 = vmatpush1.bf16.msra.mxu0 %v338
    %354 = vmatprep.subr.bf16.mxu0 0
    %355 = vmatpush1.bf16.msra.mxu0 %v339
    %356 = vmatprep.subr.bf16.mxu0 0
    %357 = vmatpush1.bf16.msra.mxu0 %v340
    %358 = vmatprep.subr.bf16.mxu0 0
    %359 = vmatpush1.bf16.msra.mxu0 %v341
    %360 = vmatprep.subr.bf16.mxu0 0
    %361 = vmatpush1.bf16.msra.mxu0 0
    %362 = vmatprep.subr.bf16.mxu0 0
    %363 = vmatpush1.bf16.msra.mxu0 0
    %364 = vmatprep.subr.bf16.mxu0 0
    %365 = vmatpush1.bf16.msra.mxu0 0
    %366 = vmatprep.subr.bf16.mxu0 0
    %367 = vmatpush1.bf16.msra.mxu0 0
    %368 = vmatprep.subr.bf16.mxu0 0
    %369 = vmatpush1.bf16.msra.mxu0 0
    %370 = vmatprep.subr.bf16.mxu0 0
    %371 = vmatpush1.bf16.msra.mxu0 0
    %372 = vmatprep.subr.bf16.mxu0 0
    %373 = vmatpush1.bf16.msra.mxu0 0
    %374 = vmatprep.subr.bf16.mxu0 0
    %375 = vmatpush1.bf16.msra.mxu0 0
    %376 = vmatprep.subr.bf16.mxu0 0
    %377 = vmatpush1.bf16.msra.mxu0 0
    %378 = vmatprep.subr.bf16.mxu0 0
    %379 = vmatpush1.bf16.msra.mxu0 0
    %380 = vmatprep.subr.bf16.mxu0 0
    %381 = vmatpush1.bf16.msra.mxu0 0
    %382 = vmatprep.subr.bf16.mxu0 0
    %383 = vmatpush1.bf16.msra.mxu0 0
    %384 = vmatprep.mubr.bf16.mxu0 0
    %385 = vmatmul.mubr.bf16.gmra.mrb[0].mxu0 %v347
    %v386 = vpop.f32.mrb[0].mxu0
    %v387 = vadd.f32 0.0, %v386
    %v388 = vpop.f32.mrb[0].mxu0
    %v389 = vpop.f32.mrb[0].mxu0
    %v390 = vadd.f32 0.0, %v389
    %v391 = vpop.f32.mrb[0].mxu0
    %392 = vmatprep.mubr.bf16.mxu0 0
    %393 = vmatmul.mubr.bf16.gmra.mrb[0].mxu0 %v350
    %v394 = vpop.f32.mrb[0].mxu0
    %v395 = vadd.f32 0.0, %v394
    %v396 = vpop.f32.mrb[0].mxu0
    %v397 = vpop.f32.mrb[0].mxu0
    %v398 = vadd.f32 0.0, %v397
    %v399 = vpop.f32.mrb[0].mxu0
    %400 = vdwg.mxu0
    %v405 = vunpack.c.l.b16 %v49
    %v406 = vunpack.c.l.b16 %v50
    %v407 = vunpack.c.l.b16 %v51
    %v408 = vunpack.c.l.b16 %v52
    %v409 = vpack.c.b16 %v406, %v405
    %v410 = vpack.c.b16 %v408, %v407
    %v419 = vunpack.c.l.b16 %v93
    %v420 = vunpack.c.l.b16 %v94
    %v421 = vunpack.c.l.b16 %v95
    %v422 = vunpack.c.l.b16 %v96
    %v423 = vunpack.c.l.b16 %v97
    %v424 = vunpack.c.l.b16 %v98
    %v425 = vunpack.c.l.b16 %v99
    %v426 = vunpack.c.l.b16 %v100
    %v427 = vpack.c.b16 %v420, %v419
    %v428 = vpack.c.b16 %v422, %v421
    %v429 = vpack.c.b16 %v424, %v423
    %v430 = vpack.c.b16 %v426, %v425
    %v436 = vsel %vm167, %v409, 0
    %v439 = vsel %vm167, %v410, 0
    %441 = vmatprep.subr.bf16.mxu0 0
    %442 = vmatpush1.bf16.msra.mxu0 %v427
    %443 = vmatprep.subr.bf16.mxu0 0
    %444 = vmatpush1.bf16.msra.mxu0 %v428
    %445 = vmatprep.subr.bf16.mxu0 0
    %446 = vmatpush1.bf16.msra.mxu0 %v429
    %447 = vmatprep.subr.bf16.mxu0 0
    %448 = vmatpush1.bf16.msra.mxu0 %v430
    %449 = vmatprep.subr.bf16.mxu0 0
    %450 = vmatpush1.bf16.msra.mxu0 0
    %451 = vmatprep.subr.bf16.mxu0 0
    %452 = vmatpush1.bf16.msra.mxu0 0
    %453 = vmatprep.subr.bf16.mxu0 0
    %454 = vmatpush1.bf16.msra.mxu0 0
    %455 = vmatprep.subr.bf16.mxu0 0
    %456 = vmatpush1.bf16.msra.mxu0 0
    %457 = vmatprep.subr.bf16.mxu0 0
    %458 = vmatpush1.bf16.msra.mxu0 0
    %459 = vmatprep.subr.bf16.mxu0 0
    %460 = vmatpush1.bf16.msra.mxu0 0
    %461 = vmatprep.subr.bf16.mxu0 0
    %462 = vmatpush1.bf16.msra.mxu0 0
    %463 = vmatprep.subr.bf16.mxu0 0
    %464 = vmatpush1.bf16.msra.mxu0 0
    %465 = vmatprep.subr.bf16.mxu0 0
    %466 = vmatpush1.bf16.msra.mxu0 0
    %467 = vmatprep.subr.bf16.mxu0 0
    %468 = vmatpush1.bf16.msra.mxu0 0
    %469 = vmatprep.subr.bf16.mxu0 0
    %470 = vmatpush1.bf16.msra.mxu0 0
    %471 = vmatprep.subr.bf16.mxu0 0
    %472 = vmatpush1.bf16.msra.mxu0 0
    %473 = vmatprep.mubr.bf16.mxu0 0
    %474 = vmatmul.mubr.bf16.gmra.mrb[0].mxu0 %v436
    %v475 = vpop.f32.mrb[0].mxu0
    %v476 = vadd.f32 0.0, %v475
    %v477 = vpop.f32.mrb[0].mxu0
    %v478 = vpop.f32.mrb[0].mxu0
    %v479 = vadd.f32 0.0, %v478
    %v480 = vpop.f32.mrb[0].mxu0
    %481 = vmatprep.mubr.bf16.mxu0 0
    %482 = vmatmul.mubr.bf16.gmra.mrb[0].mxu0 %v439
    %v483 = vpop.f32.mrb[0].mxu0
    %v484 = vadd.f32 0.0, %v483
    %v485 = vpop.f32.mrb[0].mxu0
    %v486 = vpop.f32.mrb[0].mxu0
    %v487 = vadd.f32 0.0, %v486
    %v488 = vpop.f32.mrb[0].mxu0
    %489 = vdwg.mxu0
    %v494 = vunpack.c.l.b16 %v53
    %v495 = vunpack.c.l.b16 %v54
    %v496 = vunpack.c.l.b16 %v55
    %v497 = vunpack.c.l.b16 %v56
    %v498 = vpack.c.b16 %v495, %v494
    %v499 = vpack.c.b16 %v497, %v496
    %v508 = vunpack.c.l.b16 %v101
    %v509 = vunpack.c.l.b16 %v102
    %v510 = vunpack.c.l.b16 %v103
    %v511 = vunpack.c.l.b16 %v104
    %v512 = vunpack.c.l.b16 %v105
    %v513 = vunpack.c.l.b16 %v106
    %v514 = vunpack.c.l.b16 %v107
    %v515 = vunpack.c.l.b16 %v108
    %v516 = vpack.c.b16 %v509, %v508
    %v517 = vpack.c.b16 %v511, %v510
    %v518 = vpack.c.b16 %v513, %v512
    %v519 = vpack.c.b16 %v515, %v514
    %v525 = vsel %vm167, %v498, 0
    %v528 = vsel %vm167, %v499, 0
    %530 = vmatprep.subr.bf16.mxu0 0
    %531 = vmatpush1.bf16.msra.mxu0 %v516
    %532 = vmatprep.subr.bf16.mxu0 0
    %533 = vmatpush1.bf16.msra.mxu0 %v517
    %534 = vmatprep.subr.bf16.mxu0 0
    %535 = vmatpush1.bf16.msra.mxu0 %v518
    %536 = vmatprep.subr.bf16.mxu0 0
    %537 = vmatpush1.bf16.msra.mxu0 %v519
    %538 = vmatprep.subr.bf16.mxu0 0
    %539 = vmatpush1.bf16.msra.mxu0 0
    %540 = vmatprep.subr.bf16.mxu0 0
    %541 = vmatpush1.bf16.msra.mxu0 0
    %542 = vmatprep.subr.bf16.mxu0 0
    %543 = vmatpush1.bf16.msra.mxu0 0
    %544 = vmatprep.subr.bf16.mxu0 0
    %545 = vmatpush1.bf16.msra.mxu0 0
    %546 = vmatprep.subr.bf16.mxu0 0
    %547 = vmatpush1.bf16.msra.mxu0 0
    %548 = vmatprep.subr.bf16.mxu0 0
    %549 = vmatpush1.bf16.msra.mxu0 0
    %550 = vmatprep.subr.bf16.mxu0 0
    %551 = vmatpush1.bf16.msra.mxu0 0
    %552 = vmatprep.subr.bf16.mxu0 0
    %553 = vmatpush1.bf16.msra.mxu0 0
    %554 = vmatprep.subr.bf16.mxu0 0
    %555 = vmatpush1.bf16.msra.mxu0 0
    %556 = vmatprep.subr.bf16.mxu0 0
    %557 = vmatpush1.bf16.msra.mxu0 0
    %558 = vmatprep.subr.bf16.mxu0 0
    %559 = vmatpush1.bf16.msra.mxu0 0
    %560 = vmatprep.subr.bf16.mxu0 0
    %561 = vmatpush1.bf16.msra.mxu0 0
    %562 = vmatprep.mubr.bf16.mxu0 0
    %563 = vmatmul.mubr.bf16.gmra.mrb[0].mxu0 %v525
    %v564 = vpop.f32.mrb[0].mxu0
    %v565 = vadd.f32 0.0, %v564
    %v566 = vpop.f32.mrb[0].mxu0
    %v567 = vpop.f32.mrb[0].mxu0
    %v568 = vadd.f32 0.0, %v567
    %v569 = vpop.f32.mrb[0].mxu0
    %570 = vmatprep.mubr.bf16.mxu0 0
    %571 = vmatmul.mubr.bf16.gmra.mrb[0].mxu0 %v528
    %v572 = vpop.f32.mrb[0].mxu0
    %v573 = vadd.f32 0.0, %v572
    %v574 = vpop.f32.mrb[0].mxu0
    %v575 = vpop.f32.mrb[0].mxu0
    %v576 = vadd.f32 0.0, %v575
    %v577 = vpop.f32.mrb[0].mxu0
    %578 = vdwg.mxu0
    %v583 = vunpack.c.l.b16 %v57
    %v584 = vunpack.c.l.b16 %v58
    %v585 = vunpack.c.l.b16 %v59
    %v586 = vunpack.c.l.b16 %v60
    %v587 = vpack.c.b16 %v584, %v583
    %v588 = vpack.c.b16 %v586, %v585
    %v597 = vunpack.c.l.b16 %v109
    %v598 = vunpack.c.l.b16 %v110
    %v599 = vunpack.c.l.b16 %v111
    %v600 = vunpack.c.l.b16 %v112
    %v601 = vunpack.c.l.b16 %v113
    %v602 = vunpack.c.l.b16 %v114
    %v603 = vunpack.c.l.b16 %v115
    %v604 = vunpack.c.l.b16 %v116
    %v605 = vpack.c.b16 %v598, %v597
    %v606 = vpack.c.b16 %v600, %v599
    %v607 = vpack.c.b16 %v602, %v601
    %v608 = vpack.c.b16 %v604, %v603
    %v614 = vsel %vm167, %v587, 0
    %v617 = vsel %vm167, %v588, 0
    %619 = vmatprep.subr.bf16.mxu0 0
    %620 = vmatpush1.bf16.msra.mxu0 %v605
    %621 = vmatprep.subr.bf16.mxu0 0
    %622 = vmatpush1.bf16.msra.mxu0 %v606
    %623 = vmatprep.subr.bf16.mxu0 0
    %624 = vmatpush1.bf16.msra.mxu0 %v607
    %625 = vmatprep.subr.bf16.mxu0 0
    %626 = vmatpush1.bf16.msra.mxu0 %v608
    %627 = vmatprep.subr.bf16.mxu0 0
    %628 = vmatpush1.bf16.msra.mxu0 0
    %629 = vmatprep.subr.bf16.mxu0 0
    %630 = vmatpush1.bf16.msra.mxu0 0
    %631 = vmatprep.subr.bf16.mxu0 0
    %632 = vmatpush1.bf16.msra.mxu0 0
    %633 = vmatprep.subr.bf16.mxu0 0
    %634 = vmatpush1.bf16.msra.mxu0 0
    %635 = vmatprep.subr.bf16.mxu0 0
    %636 = vmatpush1.bf16.msra.mxu0 0
    %637 = vmatprep.subr.bf16.mxu0 0
    %638 = vmatpush1.bf16.msra.mxu0 0
    %639 = vmatprep.subr.bf16.mxu0 0
    %640 = vmatpush1.bf16.msra.mxu0 0
    %641 = vmatprep.subr.bf16.mxu0 0
    %642 = vmatpush1.bf16.msra.mxu0 0
    %643 = vmatprep.subr.bf16.mxu0 0
    %644 = vmatpush1.bf16.msra.mxu0 0
    %645 = vmatprep.subr.bf16.mxu0 0
    %646 = vmatpush1.bf16.msra.mxu0 0
    %647 = vmatprep.subr.bf16.mxu0 0
    %648 = vmatpush1.bf16.msra.mxu0 0
    %649 = vmatprep.subr.bf16.mxu0 0
    %650 = vmatpush1.bf16.msra.mxu0 0
    %651 = vmatprep.mubr.bf16.mxu0 0
    %652 = vmatmul.mubr.bf16.gmra.mrb[0].mxu0 %v614
    %v653 = vpop.f32.mrb[0].mxu0
    %v654 = vadd.f32 0.0, %v653
    %v655 = vpop.f32.mrb[0].mxu0
    %v656 = vpop.f32.mrb[0].mxu0
    %v657 = vadd.f32 0.0, %v656
    %v658 = vpop.f32.mrb[0].mxu0
    %659 = vmatprep.mubr.bf16.mxu0 0
    %660 = vmatmul.mubr.bf16.gmra.mrb[0].mxu0 %v617
    %v661 = vpop.f32.mrb[0].mxu0
    %v662 = vadd.f32 0.0, %v661
    %v663 = vpop.f32.mrb[0].mxu0
    %v664 = vpop.f32.mrb[0].mxu0
    %v665 = vadd.f32 0.0, %v664
    %v666 = vpop.f32.mrb[0].mxu0
    %667 = vdwg.mxu0
    %v672 = vunpack.c.l.b16 %v61
    %v673 = vunpack.c.l.b16 %v62
    %v674 = vunpack.c.l.b16 %v63
    %v675 = vunpack.c.l.b16 %v64
    %v676 = vpack.c.b16 %v673, %v672
    %v677 = vpack.c.b16 %v675, %v674
    %v686 = vunpack.c.l.b16 %v117
    %v687 = vunpack.c.l.b16 %v118
    %v688 = vunpack.c.l.b16 %v119
    %v689 = vunpack.c.l.b16 %v120
    %v690 = vunpack.c.l.b16 %v121
    %v691 = vunpack.c.l.b16 %v122
    %v692 = vunpack.c.l.b16 %v123
    %v693 = vunpack.c.l.b16 %v124
    %v694 = vpack.c.b16 %v687, %v686
    %v695 = vpack.c.b16 %v689, %v688
    %v696 = vpack.c.b16 %v691, %v690
    %v697 = vpack.c.b16 %v693, %v692
    %v703 = vsel %vm167, %v676, 0
    %v706 = vsel %vm167, %v677, 0
    %708 = vmatprep.subr.bf16.mxu0 0
    %709 = vmatpush1.bf16.msra.mxu0 %v694
    %710 = vmatprep.subr.bf16.mxu0 0
    %711 = vmatpush1.bf16.msra.mxu0 %v695
    %712 = vmatprep.subr.bf16.mxu0 0
    %713 = vmatpush1.bf16.msra.mxu0 %v696
    %714 = vmatprep.subr.bf16.mxu0 0
    %715 = vmatpush1.bf16.msra.mxu0 %v697
    %716 = vmatprep.subr.bf16.mxu0 0
    %717 = vmatpush1.bf16.msra.mxu0 0
    %718 = vmatprep.subr.bf16.mxu0 0
    %719 = vmatpush1.bf16.msra.mxu0 0
    %720 = vmatprep.subr.bf16.mxu0 0
    %721 = vmatpush1.bf16.msra.mxu0 0
    %722 = vmatprep.subr.bf16.mxu0 0
    %723 = vmatpush1.bf16.msra.mxu0 0
    %724 = vmatprep.subr.bf16.mxu0 0
    %725 = vmatpush1.bf16.msra.mxu0 0
    %726 = vmatprep.subr.bf16.mxu0 0
    %727 = vmatpush1.bf16.msra.mxu0 0
    %728 = vmatprep.subr.bf16.mxu0 0
    %729 = vmatpush1.bf16.msra.mxu0 0
    %730 = vmatprep.subr.bf16.mxu0 0
    %731 = vmatpush1.bf16.msra.mxu0 0
    %732 = vmatprep.subr.bf16.mxu0 0
    %733 = vmatpush1.bf16.msra.mxu0 0
    %734 = vmatprep.subr.bf16.mxu0 0
    %735 = vmatpush1.bf16.msra.mxu0 0
    %736 = vmatprep.subr.bf16.mxu0 0
    %737 = vmatpush1.bf16.msra.mxu0 0
    %738 = vmatprep.subr.bf16.mxu0 0
    %739 = vmatpush1.bf16.msra.mxu0 0
    %740 = vmatprep.mubr.bf16.mxu0 0
    %741 = vmatmul.mubr.bf16.gmra.mrb[0].mxu0 %v703
    %v742 = vpop.f32.mrb[0].mxu0
    %v743 = vadd.f32 0.0, %v742
    %v744 = vpop.f32.mrb[0].mxu0
    %v745 = vpop.f32.mrb[0].mxu0
    %v746 = vadd.f32 0.0, %v745
    %v747 = vpop.f32.mrb[0].mxu0
    %748 = vmatprep.mubr.bf16.mxu0 0
    %749 = vmatmul.mubr.bf16.gmra.mrb[0].mxu0 %v706
    %v750 = vpop.f32.mrb[0].mxu0
    %v751 = vadd.f32 0.0, %v750
    %v752 = vpop.f32.mrb[0].mxu0
    %v753 = vpop.f32.mrb[0].mxu0
    %v754 = vadd.f32 0.0, %v753
    %v755 = vpop.f32.mrb[0].mxu0
    %756 = vdwg.mxu0
    %v761 = vunpack.c.l.b16 %v65
    %v762 = vunpack.c.l.b16 %v66
    %v763 = vunpack.c.l.b16 %v67
    %v764 = vunpack.c.l.b16 %v68
    %v765 = vpack.c.b16 %v762, %v761
    %v766 = vpack.c.b16 %v764, %v763
    %v775 = vunpack.c.l.b16 %v125
    %v776 = vunpack.c.l.b16 %v126
    %v777 = vunpack.c.l.b16 %v127
    %v778 = vunpack.c.l.b16 %v128
    %v779 = vunpack.c.l.b16 %v129
    %v780 = vunpack.c.l.b16 %v130
    %v781 = vunpack.c.l.b16 %v131
    %v782 = vunpack.c.l.b16 %v132
    %v783 = vpack.c.b16 %v776, %v775
    %v784 = vpack.c.b16 %v778, %v777
    %v785 = vpack.c.b16 %v780, %v779
    %v786 = vpack.c.b16 %v782, %v781
    %v792 = vsel %vm167, %v765, 0
    %v795 = vsel %vm167, %v766, 0
    %797 = vmatprep.subr.bf16.mxu0 0
    %798 = vmatpush1.bf16.msra.mxu0 %v783
    %799 = vmatprep.subr.bf16.mxu0 0
    %800 = vmatpush1.bf16.msra.mxu0 %v784
    %801 = vmatprep.subr.bf16.mxu0 0
    %802 = vmatpush1.bf16.msra.mxu0 %v785
    %803 = vmatprep.subr.bf16.mxu0 0
    %804 = vmatpush1.bf16.msra.mxu0 %v786
    %805 = vmatprep.subr.bf16.mxu0 0
    %806 = vmatpush1.bf16.msra.mxu0 0
    %807 = vmatprep.subr.bf16.mxu0 0
    %808 = vmatpush1.bf16.msra.mxu0 0
    %809 = vmatprep.subr.bf16.mxu0 0
    %810 = vmatpush1.bf16.msra.mxu0 0
    %811 = vmatprep.subr.bf16.mxu0 0
    %812 = vmatpush1.bf16.msra.mxu0 0
    %813 = vmatprep.subr.bf16.mxu0 0
    %814 = vmatpush1.bf16.msra.mxu0 0
    %815 = vmatprep.subr.bf16.mxu0 0
    %816 = vmatpush1.bf16.msra.mxu0 0
    %817 = vmatprep.subr.bf16.mxu0 0
    %818 = vmatpush1.bf16.msra.mxu0 0
    %819 = vmatprep.subr.bf16.mxu0 0
    %820 = vmatpush1.bf16.msra.mxu0 0
    %821 = vmatprep.subr.bf16.mxu0 0
    %822 = vmatpush1.bf16.msra.mxu0 0
    %823 = vmatprep.subr.bf16.mxu0 0
    %824 = vmatpush1.bf16.msra.mxu0 0
    %825 = vmatprep.subr.bf16.mxu0 0
    %826 = vmatpush1.bf16.msra.mxu0 0
    %827 = vmatprep.subr.bf16.mxu0 0
    %828 = vmatpush1.bf16.msra.mxu0 0
    %829 = vmatprep.mubr.bf16.mxu0 0
    %830 = vmatmul.mubr.bf16.gmra.mrb[0].mxu0 %v792
    %v831 = vpop.f32.mrb[0].mxu0
    %v832 = vadd.f32 0.0, %v831
    %v833 = vpop.f32.mrb[0].mxu0
    %v834 = vpop.f32.mrb[0].mxu0
    %v835 = vadd.f32 0.0, %v834
    %v836 = vpop.f32.mrb[0].mxu0
    %837 = vmatprep.mubr.bf16.mxu0 0
    %838 = vmatmul.mubr.bf16.gmra.mrb[0].mxu0 %v795
    %v839 = vpop.f32.mrb[0].mxu0
    %v840 = vadd.f32 0.0, %v839
    %v841 = vpop.f32.mrb[0].mxu0
    %v842 = vpop.f32.mrb[0].mxu0
    %v843 = vadd.f32 0.0, %v842
    %v844 = vpop.f32.mrb[0].mxu0
    %845 = vdwg.mxu0
    %v846 = vld [vmem:[%s2] sm:$0x1]
    %v847 = vld [vmem:[%s3] sm:$0x1]
    %vm848 = vcmask 261120
    %v849 = vsel %vm848, %v209, 0.0
    %850 = vadd.xlane.f32.xlu0 %v849
    %v851 = vpop.xlane.xlu0 %850
    %v852 = vsel %vm848, %v212, 0.0
    %853 = vadd.xlane.f32.xlu0 %v852
    %v854 = vpop.xlane.xlu0 %853
    %v855 = vsel %vm848, %v217, 0.0
    %856 = vadd.xlane.f32.xlu0 %v855
    %v857 = vpop.xlane.xlu0 %856
    %v858 = vsel %vm848, %v220, 0.0
    %859 = vadd.xlane.f32.xlu0 %v858
    %v860 = vpop.xlane.xlu0 %859
    %v861 = vsel %vm848, %v298, 0.0
    %862 = vadd.xlane.f32.xlu0 %v861
    %v863 = vpop.xlane.xlu0 %862
    %v864 = vsel %vm848, %v301, 0.0
    %865 = vadd.xlane.f32.xlu0 %v864
    %v866 = vpop.xlane.xlu0 %865
    %v867 = vsel %vm848, %v306, 0.0
    %868 = vadd.xlane.f32.xlu0 %v867
    %v869 = vpop.xlane.xlu0 %868
    %v870 = vsel %vm848, %v309, 0.0
    %871 = vadd.xlane.f32.xlu0 %v870
    %v872 = vpop.xlane.xlu0 %871
    %v873 = vsel %vm848, %v387, 0.0
    %874 = vadd.xlane.f32.xlu0 %v873
    %v875 = vpop.xlane.xlu0 %874
    %v876 = vsel %vm848, %v390, 0.0
    %877 = vadd.xlane.f32.xlu0 %v876
    %v878 = vpop.xlane.xlu0 %877
    %v879 = vsel %vm848, %v395, 0.0
    %880 = vadd.xlane.f32.xlu0 %v879
    %v881 = vpop.xlane.xlu0 %880
    %v882 = vsel %vm848, %v398, 0.0
    %883 = vadd.xlane.f32.xlu0 %v882
    %v884 = vpop.xlane.xlu0 %883
    %v885 = vsel %vm848, %v476, 0.0
    %886 = vadd.xlane.f32.xlu0 %v885
    %v887 = vpop.xlane.xlu0 %886
    %v888 = vsel %vm848, %v479, 0.0
    %889 = vadd.xlane.f32.xlu0 %v888
    %v890 = vpop.xlane.xlu0 %889
    %v891 = vsel %vm848, %v484, 0.0
    %892 = vadd.xlane.f32.xlu0 %v891
    %v893 = vpop.xlane.xlu0 %892
    %v894 = vsel %vm848, %v487, 0.0
    %895 = vadd.xlane.f32.xlu0 %v894
    %v896 = vpop.xlane.xlu0 %895
    %v897 = vsel %vm848, %v565, 0.0
    %898 = vadd.xlane.f32.xlu0 %v897
    %v899 = vpop.xlane.xlu0 %898
    %v900 = vsel %vm848, %v568, 0.0
    %901 = vadd.xlane.f32.xlu0 %v900
    %v902 = vpop.xlane.xlu0 %901
    %v903 = vsel %vm848, %v573, 0.0
    %904 = vadd.xlane.f32.xlu0 %v903
    %v905 = vpop.xlane.xlu0 %904
    %v906 = vsel %vm848, %v576, 0.0
    %907 = vadd.xlane.f32.xlu0 %v906
    %v908 = vpop.xlane.xlu0 %907
    %v909 = vsel %vm848, %v654, 0.0
    %910 = vadd.xlane.f32.xlu0 %v909
    %v911 = vpop.xlane.xlu0 %910
    %v912 = vsel %vm848, %v657, 0.0
    %913 = vadd.xlane.f32.xlu0 %v912
    %v914 = vpop.xlane.xlu0 %913
    %v915 = vsel %vm848, %v662, 0.0
    %916 = vadd.xlane.f32.xlu0 %v915
    %v917 = vpop.xlane.xlu0 %916
    %v918 = vsel %vm848, %v665, 0.0
    %919 = vadd.xlane.f32.xlu0 %v918
    %v920 = vpop.xlane.xlu0 %919
    %v921 = vsel %vm848, %v743, 0.0
    %922 = vadd.xlane.f32.xlu0 %v921
    %v923 = vpop.xlane.xlu0 %922
    %v924 = vsel %vm848, %v746, 0.0
    %925 = vadd.xlane.f32.xlu0 %v924
    %v926 = vpop.xlane.xlu0 %925
    %v927 = vsel %vm848, %v751, 0.0
    %928 = vadd.xlane.f32.xlu0 %v927
    %v929 = vpop.xlane.xlu0 %928
    %v930 = vsel %vm848, %v754, 0.0
    %931 = vadd.xlane.f32.xlu0 %v930
    %v932 = vpop.xlane.xlu0 %931
    %v933 = vsel %vm848, %v832, 0.0
    %934 = vadd.xlane.f32.xlu0 %v933
    %v935 = vpop.xlane.xlu0 %934
    %v936 = vsel %vm848, %v835, 0.0
    %937 = vadd.xlane.f32.xlu0 %v936
    %v938 = vpop.xlane.xlu0 %937
    %v939 = vsel %vm848, %v840, 0.0
    %940 = vadd.xlane.f32.xlu0 %v939
    %v941 = vpop.xlane.xlu0 %940
    %v942 = vsel %vm848, %v843, 0.0
    %943 = vadd.xlane.f32.xlu0 %v942
    %v944 = vpop.xlane.xlu0 %943
    %v945 = vrcp.pop 32.0
    %v946 = vmul.f32 %v851, %v945
    %v947 = vmul.f32 %v854, %v945
    %v948 = vmul.f32 %v857, %v945
    %v949 = vmul.f32 %v860, %v945
    %v950 = vmul.f32 %v863, %v945
    %v951 = vmul.f32 %v866, %v945
    %v952 = vmul.f32 %v869, %v945
    %v953 = vmul.f32 %v872, %v945
    %v954 = vmul.f32 %v875, %v945
    %v955 = vmul.f32 %v878, %v945
    %v956 = vmul.f32 %v881, %v945
    %v957 = vmul.f32 %v884, %v945
    %v958 = vmul.f32 %v887, %v945
    %v959 = vmul.f32 %v890, %v945
    %v960 = vmul.f32 %v893, %v945
    %v961 = vmul.f32 %v896, %v945
    %v962 = vmul.f32 %v899, %v945
    %v963 = vmul.f32 %v902, %v945
    %v964 = vmul.f32 %v905, %v945
    %v965 = vmul.f32 %v908, %v945
    %v966 = vmul.f32 %v911, %v945
    %v967 = vmul.f32 %v914, %v945
    %v968 = vmul.f32 %v917, %v945
    %v969 = vmul.f32 %v920, %v945
    %v970 = vmul.f32 %v923, %v945
    %v971 = vmul.f32 %v926, %v945
    %v972 = vmul.f32 %v929, %v945
    %v973 = vmul.f32 %v932, %v945
    %v974 = vmul.f32 %v935, %v945
    %v975 = vmul.f32 %v938, %v945
    %v976 = vmul.f32 %v941, %v945
    %v977 = vmul.f32 %v944, %v945
    %v978 = vsub.f32 %v209, %v946
    %v979 = vsub.f32 %v212, %v947
    %v980 = vsub.f32 %v217, %v948
    %v981 = vsub.f32 %v220, %v949
    %v982 = vsub.f32 %v298, %v950
    %v983 = vsub.f32 %v301, %v951
    %v984 = vsub.f32 %v306, %v952
    %v985 = vsub.f32 %v309, %v953
    %v986 = vsub.f32 %v387, %v954
    %v987 = vsub.f32 %v390, %v955
    %v988 = vsub.f32 %v395, %v956
    %v989 = vsub.f32 %v398, %v957
    %v990 = vsub.f32 %v476, %v958
    %v991 = vsub.f32 %v479, %v959
    %v992 = vsub.f32 %v484, %v960
    %v993 = vsub.f32 %v487, %v961
    %v994 = vsub.f32 %v565, %v962
    %v995 = vsub.f32 %v568, %v963
    %v996 = vsub.f32 %v573, %v964
    %v997 = vsub.f32 %v576, %v965
    %v998 = vsub.f32 %v654, %v966
    %v999 = vsub.f32 %v657, %v967
    %v1000 = vsub.f32 %v662, %v968
    %v1001 = vsub.f32 %v665, %v969
    %v1002 = vsub.f32 %v743, %v970
    %v1003 = vsub.f32 %v746, %v971
    %v1004 = vsub.f32 %v751, %v972
    %v1005 = vsub.f32 %v754, %v973
    %v1006 = vsub.f32 %v832, %v974
    %v1007 = vsub.f32 %v835, %v975
    %v1008 = vsub.f32 %v840, %v976
    %v1009 = vsub.f32 %v843, %v977
    %v1010 = vmul.f32 %v978, %v978
    %v1011 = vmul.f32 %v979, %v979
    %v1012 = vmul.f32 %v980, %v980
    %v1013 = vmul.f32 %v981, %v981
    %v1014 = vmul.f32 %v982, %v982
    %v1015 = vmul.f32 %v983, %v983
    %v1016 = vmul.f32 %v984, %v984
    %v1017 = vmul.f32 %v985, %v985
    %v1018 = vmul.f32 %v986, %v986
    %v1019 = vmul.f32 %v987, %v987
    %v1020 = vmul.f32 %v988, %v988
    %v1021 = vmul.f32 %v989, %v989
    %v1022 = vmul.f32 %v990, %v990
    %v1023 = vmul.f32 %v991, %v991
    %v1024 = vmul.f32 %v992, %v992
    %v1025 = vmul.f32 %v993, %v993
    %v1026 = vmul.f32 %v994, %v994
    %v1027 = vmul.f32 %v995, %v995
    %v1028 = vmul.f32 %v996, %v996
    %v1029 = vmul.f32 %v997, %v997
    %v1030 = vmul.f32 %v998, %v998
    %v1031 = vmul.f32 %v999, %v999
    %v1032 = vmul.f32 %v1000, %v1000
    %v1033 = vmul.f32 %v1001, %v1001
    %v1034 = vmul.f32 %v1002, %v1002
    %v1035 = vmul.f32 %v1003, %v1003
    %v1036 = vmul.f32 %v1004, %v1004
    %v1037 = vmul.f32 %v1005, %v1005
    %v1038 = vmul.f32 %v1006, %v1006
    %v1039 = vmul.f32 %v1007, %v1007
    %v1040 = vmul.f32 %v1008, %v1008
    %v1041 = vmul.f32 %v1009, %v1009
    %v1042 = vsel %vm848, %v1010, 0.0
    %1043 = vadd.xlane.f32.xlu0 %v1042
    %v1044 = vpop.xlane.xlu0 %1043
    %v1045 = vsel %vm848, %v1011, 0.0
    %1046 = vadd.xlane.f32.xlu0 %v1045
    %v1047 = vpop.xlane.xlu0 %1046
    %v1048 = vsel %vm848, %v1012, 0.0
    %1049 = vadd.xlane.f32.xlu0 %v1048
    %v1050 = vpop.xlane.xlu0 %1049
    %v1051 = vsel %vm848, %v1013, 0.0
    %1052 = vadd.xlane.f32.xlu0 %v1051
    %v1053 = vpop.xlane.xlu0 %1052
    %v1054 = vsel %vm848, %v1014, 0.0
    %1055 = vadd.xlane.f32.xlu0 %v1054
    %v1056 = vpop.xlane.xlu0 %1055
    %v1057 = vsel %vm848, %v1015, 0.0
    %1058 = vadd.xlane.f32.xlu0 %v1057
    %v1059 = vpop.xlane.xlu0 %1058
    %v1060 = vsel %vm848, %v1016, 0.0
    %1061 = vadd.xlane.f32.xlu0 %v1060
    %v1062 = vpop.xlane.xlu0 %1061
    %v1063 = vsel %vm848, %v1017, 0.0
    %1064 = vadd.xlane.f32.xlu0 %v1063
    %v1065 = vpop.xlane.xlu0 %1064
    %v1066 = vsel %vm848, %v1018, 0.0
    %1067 = vadd.xlane.f32.xlu0 %v1066
    %v1068 = vpop.xlane.xlu0 %1067
    %v1069 = vsel %vm848, %v1019, 0.0
    %1070 = vadd.xlane.f32.xlu0 %v1069
    %v1071 = vpop.xlane.xlu0 %1070
    %v1072 = vsel %vm848, %v1020, 0.0
    %1073 = vadd.xlane.f32.xlu0 %v1072
    %v1074 = vpop.xlane.xlu0 %1073
    %v1075 = vsel %vm848, %v1021, 0.0
    %1076 = vadd.xlane.f32.xlu0 %v1075
    %v1077 = vpop.xlane.xlu0 %1076
    %v1078 = vsel %vm848, %v1022, 0.0
    %1079 = vadd.xlane.f32.xlu0 %v1078
    %v1080 = vpop.xlane.xlu0 %1079
    %v1081 = vsel %vm848, %v1023, 0.0
    %1082 = vadd.xlane.f32.xlu0 %v1081
    %v1083 = vpop.xlane.xlu0 %1082
    %v1084 = vsel %vm848, %v1024, 0.0
    %1085 = vadd.xlane.f32.xlu0 %v1084
    %v1086 = vpop.xlane.xlu0 %1085
    %v1087 = vsel %vm848, %v1025, 0.0
    %1088 = vadd.xlane.f32.xlu0 %v1087
    %v1089 = vpop.xlane.xlu0 %1088
    %v1090 = vsel %vm848, %v1026, 0.0
    %1091 = vadd.xlane.f32.xlu0 %v1090
    %v1092 = vpop.xlane.xlu0 %1091
    %v1093 = vsel %vm848, %v1027, 0.0
    %1094 = vadd.xlane.f32.xlu0 %v1093
    %v1095 = vpop.xlane.xlu0 %1094
    %v1096 = vsel %vm848, %v1028, 0.0
    %1097 = vadd.xlane.f32.xlu0 %v1096
    %v1098 = vpop.xlane.xlu0 %1097
    %v1099 = vsel %vm848, %v1029, 0.0
    %1100 = vadd.xlane.f32.xlu0 %v1099
    %v1101 = vpop.xlane.xlu0 %1100
    %v1102 = vsel %vm848, %v1030, 0.0
    %1103 = vadd.xlane.f32.xlu0 %v1102
    %v1104 = vpop.xlane.xlu0 %1103
    %v1105 = vsel %vm848, %v1031, 0.0
    %1106 = vadd.xlane.f32.xlu0 %v1105
    %v1107 = vpop.xlane.xlu0 %1106
    %v1108 = vsel %vm848, %v1032, 0.0
    %1109 = vadd.xlane.f32.xlu0 %v1108
    %v1110 = vpop.xlane.xlu0 %1109
    %v1111 = vsel %vm848, %v1033, 0.0
    %1112 = vadd.xlane.f32.xlu0 %v1111
    %v1113 = vpop.xlane.xlu0 %1112
    %v1114 = vsel %vm848, %v1034, 0.0
    %1115 = vadd.xlane.f32.xlu0 %v1114
    %v1116 = vpop.xlane.xlu0 %1115
    %v1117 = vsel %vm848, %v1035, 0.0
    %1118 = vadd.xlane.f32.xlu0 %v1117
    %v1119 = vpop.xlane.xlu0 %1118
    %v1120 = vsel %vm848, %v1036, 0.0
    %1121 = vadd.xlane.f32.xlu0 %v1120
    %v1122 = vpop.xlane.xlu0 %1121
    %v1123 = vsel %vm848, %v1037, 0.0
    %1124 = vadd.xlane.f32.xlu0 %v1123
    %v1125 = vpop.xlane.xlu0 %1124
    %v1126 = vsel %vm848, %v1038, 0.0
    %1127 = vadd.xlane.f32.xlu0 %v1126
    %v1128 = vpop.xlane.xlu0 %1127
    %v1129 = vsel %vm848, %v1039, 0.0
    %1130 = vadd.xlane.f32.xlu0 %v1129
    %v1131 = vpop.xlane.xlu0 %1130
    %v1132 = vsel %vm848, %v1040, 0.0
    %1133 = vadd.xlane.f32.xlu0 %v1132
    %v1134 = vpop.xlane.xlu0 %1133
    %v1135 = vsel %vm848, %v1041, 0.0
    %1136 = vadd.xlane.f32.xlu0 %v1135
    %v1137 = vpop.xlane.xlu0 %1136
    %v1138 = vmul.f32 %v1044, %v945
    %v1139 = vmul.f32 %v1047, %v945
    %v1140 = vmul.f32 %v1050, %v945
    %v1141 = vmul.f32 %v1053, %v945
    %v1142 = vmul.f32 %v1056, %v945
    %v1143 = vmul.f32 %v1059, %v945
    %v1144 = vmul.f32 %v1062, %v945
    %v1145 = vmul.f32 %v1065, %v945
    %v1146 = vmul.f32 %v1068, %v945
    %v1147 = vmul.f32 %v1071, %v945
    %v1148 = vmul.f32 %v1074, %v945
    %v1149 = vmul.f32 %v1077, %v945
    %v1150 = vmul.f32 %v1080, %v945
    %v1151 = vmul.f32 %v1083, %v945
    %v1152 = vmul.f32 %v1086, %v945
    %v1153 = vmul.f32 %v1089, %v945
    %v1154 = vmul.f32 %v1092, %v945
    %v1155 = vmul.f32 %v1095, %v945
    %v1156 = vmul.f32 %v1098, %v945
    %v1157 = vmul.f32 %v1101, %v945
    %v1158 = vmul.f32 %v1104, %v945
    %v1159 = vmul.f32 %v1107, %v945
    %v1160 = vmul.f32 %v1110, %v945
    %v1161 = vmul.f32 %v1113, %v945
    %v1162 = vmul.f32 %v1116, %v945
    %v1163 = vmul.f32 %v1119, %v945
    %v1164 = vmul.f32 %v1122, %v945
    %v1165 = vmul.f32 %v1125, %v945
    %v1166 = vmul.f32 %v1128, %v945
    %v1167 = vmul.f32 %v1131, %v945
    %v1168 = vmul.f32 %v1134, %v945
    %v1169 = vmul.f32 %v1137, %v945
    %v1170 = vadd.f32 %v1138, 1e-05
    %v1171 = vadd.f32 %v1139, 1e-05
    %v1172 = vadd.f32 %v1140, 1e-05
    %v1173 = vadd.f32 %v1141, 1e-05
    %v1174 = vadd.f32 %v1142, 1e-05
    %v1175 = vadd.f32 %v1143, 1e-05
    %v1176 = vadd.f32 %v1144, 1e-05
    %v1177 = vadd.f32 %v1145, 1e-05
    %v1178 = vadd.f32 %v1146, 1e-05
    %v1179 = vadd.f32 %v1147, 1e-05
    %v1180 = vadd.f32 %v1148, 1e-05
    %v1181 = vadd.f32 %v1149, 1e-05
    %v1182 = vadd.f32 %v1150, 1e-05
    %v1183 = vadd.f32 %v1151, 1e-05
    %v1184 = vadd.f32 %v1152, 1e-05
    %v1185 = vadd.f32 %v1153, 1e-05
    %v1186 = vadd.f32 %v1154, 1e-05
    %v1187 = vadd.f32 %v1155, 1e-05
    %v1188 = vadd.f32 %v1156, 1e-05
    %v1189 = vadd.f32 %v1157, 1e-05
    %v1190 = vadd.f32 %v1158, 1e-05
    %v1191 = vadd.f32 %v1159, 1e-05
    %v1192 = vadd.f32 %v1160, 1e-05
    %v1193 = vadd.f32 %v1161, 1e-05
    %v1194 = vadd.f32 %v1162, 1e-05
    %v1195 = vadd.f32 %v1163, 1e-05
    %v1196 = vadd.f32 %v1164, 1e-05
    %v1197 = vadd.f32 %v1165, 1e-05
    %v1198 = vadd.f32 %v1166, 1e-05
    %v1199 = vadd.f32 %v1167, 1e-05
    %v1200 = vadd.f32 %v1168, 1e-05
    %v1201 = vadd.f32 %v1169, 1e-05
    %v1202 = vrsqrt.pop %v1170
    %v1203 = vrsqrt.pop %v1171
    %v1204 = vrsqrt.pop %v1172
    %v1205 = vrsqrt.pop %v1173
    %v1206 = vrsqrt.pop %v1174
    %v1207 = vrsqrt.pop %v1175
    %v1208 = vrsqrt.pop %v1176
    %v1209 = vrsqrt.pop %v1177
    %v1210 = vrsqrt.pop %v1178
    %v1211 = vrsqrt.pop %v1179
    %v1212 = vrsqrt.pop %v1180
    %v1213 = vrsqrt.pop %v1181
    %v1214 = vrsqrt.pop %v1182
    %v1215 = vrsqrt.pop %v1183
    %v1216 = vrsqrt.pop %v1184
    %v1217 = vrsqrt.pop %v1185
    %v1218 = vrsqrt.pop %v1186
    %v1219 = vrsqrt.pop %v1187
    %v1220 = vrsqrt.pop %v1188
    %v1221 = vrsqrt.pop %v1189
    %v1222 = vrsqrt.pop %v1190
    %v1223 = vrsqrt.pop %v1191
    %v1224 = vrsqrt.pop %v1192
    %v1225 = vrsqrt.pop %v1193
    %v1226 = vrsqrt.pop %v1194
    %v1227 = vrsqrt.pop %v1195
    %v1228 = vrsqrt.pop %v1196
    %v1229 = vrsqrt.pop %v1197
    %v1230 = vrsqrt.pop %v1198
    %v1231 = vrsqrt.pop %v1199
    %v1232 = vrsqrt.pop %v1200
    %v1233 = vrsqrt.pop %v1201
    %v1234 = vmul.f32 %v978, %v1202
    %v1235 = vmul.f32 %v979, %v1203
    %v1236 = vmul.f32 %v980, %v1204
    %v1237 = vmul.f32 %v981, %v1205
    %v1238 = vmul.f32 %v982, %v1206
    %v1239 = vmul.f32 %v983, %v1207
    %v1240 = vmul.f32 %v984, %v1208
    %v1241 = vmul.f32 %v985, %v1209
    %v1242 = vmul.f32 %v986, %v1210
    %v1243 = vmul.f32 %v987, %v1211
    %v1244 = vmul.f32 %v988, %v1212
    %v1245 = vmul.f32 %v989, %v1213
    %v1246 = vmul.f32 %v990, %v1214
    %v1247 = vmul.f32 %v991, %v1215
    %v1248 = vmul.f32 %v992, %v1216
    %v1249 = vmul.f32 %v993, %v1217
    %v1250 = vmul.f32 %v994, %v1218
    %v1251 = vmul.f32 %v995, %v1219
    %v1252 = vmul.f32 %v996, %v1220
    %v1253 = vmul.f32 %v997, %v1221
    %v1254 = vmul.f32 %v998, %v1222
    %v1255 = vmul.f32 %v999, %v1223
    %v1256 = vmul.f32 %v1000, %v1224
    %v1257 = vmul.f32 %v1001, %v1225
    %v1258 = vmul.f32 %v1002, %v1226
    %v1259 = vmul.f32 %v1003, %v1227
    %v1260 = vmul.f32 %v1004, %v1228
    %v1261 = vmul.f32 %v1005, %v1229
    %v1262 = vmul.f32 %v1006, %v1230
    %v1263 = vmul.f32 %v1007, %v1231
    %v1264 = vmul.f32 %v1008, %v1232
    %v1265 = vmul.f32 %v1009, %v1233
    %v1267 = vlaneseq
    %v1268 = vshrl.u32 %v1267, 7
    %v1269 = vsub.s32 0, %v1268
    %v1270 = vrot.slane %v846, %v1269
    %v1272 = vmul.f32 %v1234, %v1270
    %v1273 = vmul.f32 %v1235, %v1270
    %v1274 = vmul.f32 %v1236, %v1270
    %v1275 = vmul.f32 %v1237, %v1270
    %v1276 = vmul.f32 %v1238, %v1270
    %v1277 = vmul.f32 %v1239, %v1270
    %v1278 = vmul.f32 %v1240, %v1270
    %v1279 = vmul.f32 %v1241, %v1270
    %v1280 = vmul.f32 %v1242, %v1270
    %v1281 = vmul.f32 %v1243, %v1270
    %v1282 = vmul.f32 %v1244, %v1270
    %v1283 = vmul.f32 %v1245, %v1270
    %v1284 = vmul.f32 %v1246, %v1270
    %v1285 = vmul.f32 %v1247, %v1270
    %v1286 = vmul.f32 %v1248, %v1270
    %v1287 = vmul.f32 %v1249, %v1270
    %v1288 = vmul.f32 %v1250, %v1270
    %v1289 = vmul.f32 %v1251, %v1270
    %v1290 = vmul.f32 %v1252, %v1270
    %v1291 = vmul.f32 %v1253, %v1270
    %v1292 = vmul.f32 %v1254, %v1270
    %v1293 = vmul.f32 %v1255, %v1270
    %v1294 = vmul.f32 %v1256, %v1270
    %v1295 = vmul.f32 %v1257, %v1270
    %v1296 = vmul.f32 %v1258, %v1270
    %v1297 = vmul.f32 %v1259, %v1270
    %v1298 = vmul.f32 %v1260, %v1270
    %v1299 = vmul.f32 %v1261, %v1270
    %v1300 = vmul.f32 %v1262, %v1270
    %v1301 = vmul.f32 %v1263, %v1270
    %v1302 = vmul.f32 %v1264, %v1270
    %v1303 = vmul.f32 %v1265, %v1270
    %v1305 = vlaneseq
    %v1306 = vshrl.u32 %v1305, 7
    %v1307 = vsub.s32 0, %v1306
    %v1308 = vrot.slane %v847, %v1307
    %v1310 = vadd.f32 %v1272, %v1308
    %v1311 = vadd.f32 %v1273, %v1308
    %v1312 = vadd.f32 %v1274, %v1308
    %v1313 = vadd.f32 %v1275, %v1308
    %v1314 = vadd.f32 %v1276, %v1308
    %v1315 = vadd.f32 %v1277, %v1308
    %v1316 = vadd.f32 %v1278, %v1308
    %v1317 = vadd.f32 %v1279, %v1308
    %v1318 = vadd.f32 %v1280, %v1308
    %v1319 = vadd.f32 %v1281, %v1308
    %v1320 = vadd.f32 %v1282, %v1308
    %v1321 = vadd.f32 %v1283, %v1308
    %v1322 = vadd.f32 %v1284, %v1308
    %v1323 = vadd.f32 %v1285, %v1308
    %v1324 = vadd.f32 %v1286, %v1308
    %v1325 = vadd.f32 %v1287, %v1308
    %v1326 = vadd.f32 %v1288, %v1308
    %v1327 = vadd.f32 %v1289, %v1308
    %v1328 = vadd.f32 %v1290, %v1308
    %v1329 = vadd.f32 %v1291, %v1308
    %v1330 = vadd.f32 %v1292, %v1308
    %v1331 = vadd.f32 %v1293, %v1308
    %v1332 = vadd.f32 %v1294, %v1308
    %v1333 = vadd.f32 %v1295, %v1308
    %v1334 = vadd.f32 %v1296, %v1308
    %v1335 = vadd.f32 %v1297, %v1308
    %v1336 = vadd.f32 %v1298, %v1308
    %v1337 = vadd.f32 %v1299, %v1308
    %v1338 = vadd.f32 %v1300, %v1308
    %v1339 = vadd.f32 %v1301, %v1308
    %v1340 = vadd.f32 %v1302, %v1308
    %v1341 = vadd.f32 %v1303, %v1308
    %v1342 = vmax.f32 %v1310, 0.0
    %v1343 = vmax.f32 %v1311, 0.0
    %v1344 = vmax.f32 %v1312, 0.0
    %v1345 = vmax.f32 %v1313, 0.0
    %v1346 = vmax.f32 %v1314, 0.0
    %v1347 = vmax.f32 %v1315, 0.0
    %v1348 = vmax.f32 %v1316, 0.0
    %v1349 = vmax.f32 %v1317, 0.0
    %v1350 = vmax.f32 %v1318, 0.0
    %v1351 = vmax.f32 %v1319, 0.0
    %v1352 = vmax.f32 %v1320, 0.0
    %v1353 = vmax.f32 %v1321, 0.0
    %v1354 = vmax.f32 %v1322, 0.0
    %v1355 = vmax.f32 %v1323, 0.0
    %v1356 = vmax.f32 %v1324, 0.0
    %v1357 = vmax.f32 %v1325, 0.0
    %v1358 = vmax.f32 %v1326, 0.0
    %v1359 = vmax.f32 %v1327, 0.0
    %v1360 = vmax.f32 %v1328, 0.0
    %v1361 = vmax.f32 %v1329, 0.0
    %v1362 = vmax.f32 %v1330, 0.0
    %v1363 = vmax.f32 %v1331, 0.0
    %v1364 = vmax.f32 %v1332, 0.0
    %v1365 = vmax.f32 %v1333, 0.0
    %v1366 = vmax.f32 %v1334, 0.0
    %v1367 = vmax.f32 %v1335, 0.0
    %v1368 = vmax.f32 %v1336, 0.0
    %v1369 = vmax.f32 %v1337, 0.0
    %v1370 = vmax.f32 %v1338, 0.0
    %v1371 = vmax.f32 %v1339, 0.0
    %v1372 = vmax.f32 %v1340, 0.0
    %v1373 = vmax.f32 %v1341, 0.0
    %v1374 = vpack.c.bf16 %v1343, %v1342
    %v1375 = vpack.c.bf16 %v1345, %v1344
    %v1376 = vpack.c.bf16 %v1347, %v1346
    %v1377 = vpack.c.bf16 %v1349, %v1348
    %v1378 = vpack.c.bf16 %v1351, %v1350
    %v1379 = vpack.c.bf16 %v1353, %v1352
    %v1380 = vpack.c.bf16 %v1355, %v1354
    %v1381 = vpack.c.bf16 %v1357, %v1356
    %v1382 = vpack.c.bf16 %v1359, %v1358
    %v1383 = vpack.c.bf16 %v1361, %v1360
    %v1384 = vpack.c.bf16 %v1363, %v1362
    %v1385 = vpack.c.bf16 %v1365, %v1364
    %v1386 = vpack.c.bf16 %v1367, %v1366
    %v1387 = vpack.c.bf16 %v1369, %v1368
    %v1388 = vpack.c.bf16 %v1371, %v1370
    %v1389 = vpack.c.bf16 %v1373, %v1372
    %v1390 = vld [vmem:[%s4] sm:$0xf]
    %v1391 = vld [vmem:[%s4 + $0x4] sm:$0xf]
    %v1392 = vld [vmem:[%s4 + $0x8] sm:$0xf]
    %v1393 = vld [vmem:[%s4 + $0xc] sm:$0xf]
    %v1394 = vld [vmem:[%s4 + $0x10] sm:$0xf]
    %v1395 = vld [vmem:[%s4 + $0x14] sm:$0xf]
    %v1396 = vld [vmem:[%s4 + $0x18] sm:$0xf]
    %v1397 = vld [vmem:[%s4 + $0x1c] sm:$0xf]
    %v1406 = vunpack.c.l.b16 %v1374
    %v1407 = vunpack.c.l.b16 %v1376
    %v1408 = vunpack.c.l.b16 %v1378
    %v1409 = vunpack.c.l.b16 %v1380
    %v1410 = vunpack.c.l.b16 %v1382
    %v1411 = vunpack.c.l.b16 %v1384
    %v1412 = vunpack.c.l.b16 %v1386
    %v1413 = vunpack.c.l.b16 %v1388
    %v1414 = vrot.slane %v1406, 1
    %vm1415 = vcmask 1041409
    %v1416 = vsel %vm1415, %v1407, %v1414
    %v1417 = vrot.slane %v1408, 7
    %vm1418 = vcmask 1042434
    %v1419 = vsel %vm1418, %v1417, %v1416
    %v1420 = vrot.slane %v1409, 6
    %vm1421 = vcmask 1043459
    %v1422 = vsel %vm1421, %v1420, %v1419
    %v1423 = vrot.slane %v1410, 5
    %vm1424 = vcmask 1044484
    %v1425 = vsel %vm1424, %v1423, %v1422
    %v1426 = vrot.slane %v1411, 4
    %vm1427 = vcmask 1045509
    %v1428 = vsel %vm1427, %v1426, %v1425
    %v1429 = vrot.slane %v1412, 3
    %vm1430 = vcmask 1046534
    %v1431 = vsel %vm1430, %v1429, %v1428
    %v1432 = vrot.slane %v1413, 2
    %vm1433 = vcmask 1047559
    %v1434 = vsel %vm1433, %v1432, %v1431
    %v1435 = vpack.c.b16 %v1434, %v1434
    %v1440 = vunpack.c.l.b16 %v1394
    %v1441 = vunpack.c.l.b16 %v1395
    %v1442 = vunpack.c.l.b16 %v1396
    %v1443 = vunpack.c.l.b16 %v1397
    %v1444 = vpack.c.b16 %v1441, %v1440
    %v1445 = vpack.c.b16 %v1443, %v1442
    %v1449 = vsel %vm848, %v1435, 0
    %1451 = vmatprep.subr.bf16.mxu0 0
    %1452 = vmatpush1.bf16.msra.mxu0 %v1444
    %1453 = vmatprep.subr.bf16.mxu0 0
    %1454 = vmatpush1.bf16.msra.mxu0 %v1445
    %1455 = vmatprep.subr.bf16.mxu0 0
    %1456 = vmatpush1.bf16.msra.mxu0 0
    %1457 = vmatprep.subr.bf16.mxu0 0
    %1458 = vmatpush1.bf16.msra.mxu0 0
    %1459 = vmatprep.subr.bf16.mxu0 0
    %1460 = vmatpush1.bf16.msra.mxu0 0
    %1461 = vmatprep.subr.bf16.mxu0 0
    %1462 = vmatpush1.bf16.msra.mxu0 0
    %1463 = vmatprep.subr.bf16.mxu0 0
    %1464 = vmatpush1.bf16.msra.mxu0 0
    %1465 = vmatprep.subr.bf16.mxu0 0
    %1466 = vmatpush1.bf16.msra.mxu0 0
    %1467 = vmatprep.subr.bf16.mxu0 0
    %1468 = vmatpush1.bf16.msra.mxu0 0
    %1469 = vmatprep.subr.bf16.mxu0 0
    %1470 = vmatpush1.bf16.msra.mxu0 0
    %1471 = vmatprep.subr.bf16.mxu0 0
    %1472 = vmatpush1.bf16.msra.mxu0 0
    %1473 = vmatprep.subr.bf16.mxu0 0
    %1474 = vmatpush1.bf16.msra.mxu0 0
    %1475 = vmatprep.subr.bf16.mxu0 0
    %1476 = vmatpush1.bf16.msra.mxu0 0
    %1477 = vmatprep.subr.bf16.mxu0 0
    %1478 = vmatpush1.bf16.msra.mxu0 0
    %1479 = vmatprep.subr.bf16.mxu0 0
    %1480 = vmatpush1.bf16.msra.mxu0 0
    %1481 = vmatprep.subr.bf16.mxu0 0
    %1482 = vmatpush1.bf16.msra.mxu0 0
    %1483 = vmatprep.mubr.bf16.mxu0 0
    %1484 = vmatmul.mubr.bf16.gmra.mrb[0].mxu0 %v1449
    %v1485 = vpop.f32.mrb[0].mxu0
    %v1486 = vadd.f32 0.0, %v1485
    %v1487 = vpop.f32.mrb[0].mxu0
    %v1488 = vpop.f32.mrb[0].mxu0
    %v1489 = vpop.f32.mrb[0].mxu0
    %1490 = vdwg.mxu0
    %v1491 = vrot.slane %v1407, 7
    %v1492 = vsel %vm1415, %v1491, %v1406
    %v1493 = vrot.slane %v1408, 6
    %v1494 = vsel %vm1418, %v1493, %v1492
    %v1495 = vrot.slane %v1409, 5
    %v1496 = vsel %vm1421, %v1495, %v1494
    %v1497 = vrot.slane %v1410, 4
    %v1498 = vsel %vm1424, %v1497, %v1496
    %v1499 = vrot.slane %v1411, 3
    %v1500 = vsel %vm1427, %v1499, %v1498
    %v1501 = vrot.slane %v1412, 2
    %v1502 = vsel %vm1430, %v1501, %v1500
    %v1503 = vrot.slane %v1413, 1
    %v1504 = vsel %vm1433, %v1503, %v1502
    %v1505 = vpack.c.b16 %v1504, %v1504
    %v1510 = vunpack.c.l.b16 %v1390
    %v1511 = vunpack.c.l.b16 %v1391
    %v1512 = vunpack.c.l.b16 %v1392
    %v1513 = vunpack.c.l.b16 %v1393
    %v1514 = vpack.c.b16 %v1511, %v1510
    %v1515 = vpack.c.b16 %v1513, %v1512
    %v1519 = vsel %vm848, %v1505, 0
    %1521 = vmatprep.subr.bf16.mxu0 0
    %1522 = vmatpush1.bf16.msra.mxu0 %v1514
    %1523 = vmatprep.subr.bf16.mxu0 0
    %1524 = vmatpush1.bf16.msra.mxu0 %v1515
    %1525 = vmatprep.subr.bf16.mxu0 0
    %1526 = vmatpush1.bf16.msra.mxu0 0
    %1527 = vmatprep.subr.bf16.mxu0 0
    %1528 = vmatpush1.bf16.msra.mxu0 0
    %1529 = vmatprep.subr.bf16.mxu0 0
    %1530 = vmatpush1.bf16.msra.mxu0 0
    %1531 = vmatprep.subr.bf16.mxu0 0
    %1532 = vmatpush1.bf16.msra.mxu0 0
    %1533 = vmatprep.subr.bf16.mxu0 0
    %1534 = vmatpush1.bf16.msra.mxu0 0
    %1535 = vmatprep.subr.bf16.mxu0 0
    %1536 = vmatpush1.bf16.msra.mxu0 0
    %1537 = vmatprep.subr.bf16.mxu0 0
    %1538 = vmatpush1.bf16.msra.mxu0 0
    %1539 = vmatprep.subr.bf16.mxu0 0
    %1540 = vmatpush1.bf16.msra.mxu0 0
    %1541 = vmatprep.subr.bf16.mxu0 0
    %1542 = vmatpush1.bf16.msra.mxu0 0
    %1543 = vmatprep.subr.bf16.mxu0 0
    %1544 = vmatpush1.bf16.msra.mxu0 0
    %1545 = vmatprep.subr.bf16.mxu0 0
    %1546 = vmatpush1.bf16.msra.mxu0 0
    %1547 = vmatprep.subr.bf16.mxu0 0
    %1548 = vmatpush1.bf16.msra.mxu0 0
    %1549 = vmatprep.subr.bf16.mxu0 0
    %1550 = vmatpush1.bf16.msra.mxu0 0
    %1551 = vmatprep.subr.bf16.mxu0 0
    %1552 = vmatpush1.bf16.msra.mxu0 0
    %1553 = vmatprep.mubr.bf16.mxu0 0
    %1554 = vmatmul.mubr.bf16.gmra.mrb[0].mxu0 %v1519
    %v1555 = vpop.f32.mrb[0].mxu0
    %v1556 = vadd.f32 %v1486, %v1555
    %v1557 = vpop.f32.mrb[0].mxu0
    %v1558 = vpop.f32.mrb[0].mxu0
    %v1559 = vpop.f32.mrb[0].mxu0
    %1560 = vdwg.mxu0
    %v1561 = vld [vmem:[%s4 + $0x20] sm:$0xf]
    %v1562 = vld [vmem:[%s4 + $0x24] sm:$0xf]
    %v1563 = vld [vmem:[%s4 + $0x28] sm:$0xf]
    %v1564 = vld [vmem:[%s4 + $0x2c] sm:$0xf]
    %v1565 = vrot.slane %v1406, 2
    %v1566 = vrot.slane %v1407, 1
    %v1567 = vsel %vm1415, %v1566, %v1565
    %v1568 = vsel %vm1418, %v1408, %v1567
    %v1569 = vrot.slane %v1409, 7
    %v1570 = vsel %vm1421, %v1569, %v1568
    %v1571 = vrot.slane %v1410, 6
    %v1572 = vsel %vm1424, %v1571, %v1570
    %v1573 = vrot.slane %v1411, 5
    %v1574 = vsel %vm1427, %v1573, %v1572
    %v1575 = vrot.slane %v1412, 4
    %v1576 = vsel %vm1430, %v1575, %v1574
    %v1577 = vrot.slane %v1413, 3
    %v1578 = vsel %vm1433, %v1577, %v1576
    %v1579 = vpack.c.b16 %v1578, %v1578
    %v1584 = vunpack.c.l.b16 %v1561
    %v1585 = vunpack.c.l.b16 %v1562
    %v1586 = vunpack.c.l.b16 %v1563
    %v1587 = vunpack.c.l.b16 %v1564
    %v1588 = vpack.c.b16 %v1585, %v1584
    %v1589 = vpack.c.b16 %v1587, %v1586
    %v1593 = vsel %vm848, %v1579, 0
    %1595 = vmatprep.subr.bf16.mxu0 0
    %1596 = vmatpush1.bf16.msra.mxu0 %v1588
    %1597 = vmatprep.subr.bf16.mxu0 0
    %1598 = vmatpush1.bf16.msra.mxu0 %v1589
    %1599 = vmatprep.subr.bf16.mxu0 0
    %1600 = vmatpush1.bf16.msra.mxu0 0
    %1601 = vmatprep.subr.bf16.mxu0 0
    %1602 = vmatpush1.bf16.msra.mxu0 0
    %1603 = vmatprep.subr.bf16.mxu0 0
    %1604 = vmatpush1.bf16.msra.mxu0 0
    %1605 = vmatprep.subr.bf16.mxu0 0
    %1606 = vmatpush1.bf16.msra.mxu0 0
    %1607 = vmatprep.subr.bf16.mxu0 0
    %1608 = vmatpush1.bf16.msra.mxu0 0
    %1609 = vmatprep.subr.bf16.mxu0 0
    %1610 = vmatpush1.bf16.msra.mxu0 0
    %1611 = vmatprep.subr.bf16.mxu0 0
    %1612 = vmatpush1.bf16.msra.mxu0 0
    %1613 = vmatprep.subr.bf16.mxu0 0
    %1614 = vmatpush1.bf16.msra.mxu0 0
    %1615 = vmatprep.subr.bf16.mxu0 0
    %1616 = vmatpush1.bf16.msra.mxu0 0
    %1617 = vmatprep.subr.bf16.mxu0 0
    %1618 = vmatpush1.bf16.msra.mxu0 0
    %1619 = vmatprep.subr.bf16.mxu0 0
    %1620 = vmatpush1.bf16.msra.mxu0 0
    %1621 = vmatprep.subr.bf16.mxu0 0
    %1622 = vmatpush1.bf16.msra.mxu0 0
    %1623 = vmatprep.subr.bf16.mxu0 0
    %1624 = vmatpush1.bf16.msra.mxu0 0
    %1625 = vmatprep.subr.bf16.mxu0 0
    %1626 = vmatpush1.bf16.msra.mxu0 0
    %1627 = vmatprep.mubr.bf16.mxu0 0
    %1628 = vmatmul.mubr.bf16.gmra.mrb[0].mxu0 %v1593
    %v1629 = vpop.f32.mrb[0].mxu0
    %v1630 = vadd.f32 0.0, %v1629
    %v1631 = vpop.f32.mrb[0].mxu0
    %v1632 = vpop.f32.mrb[0].mxu0
    %v1633 = vpop.f32.mrb[0].mxu0
    %1634 = vdwg.mxu0
    %v1635 = vadd.f32 %v1556, %v1630
    %v1636 = vld [vmem:[%s4 + $0x30] sm:$0xf]
    %v1637 = vld [vmem:[%s4 + $0x34] sm:$0xf]
    %v1638 = vld [vmem:[%s4 + $0x38] sm:$0xf]
    %v1639 = vld [vmem:[%s4 + $0x3c] sm:$0xf]
    %v1640 = vrot.slane %v1406, 3
    %v1641 = vrot.slane %v1407, 2
    %v1642 = vsel %vm1415, %v1641, %v1640
    %v1643 = vrot.slane %v1408, 1
    %v1644 = vsel %vm1418, %v1643, %v1642
    %v1645 = vsel %vm1421, %v1409, %v1644
    %v1646 = vrot.slane %v1410, 7
    %v1647 = vsel %vm1424, %v1646, %v1645
    %v1648 = vrot.slane %v1411, 6
    %v1649 = vsel %vm1427, %v1648, %v1647
    %v1650 = vrot.slane %v1412, 5
    %v1651 = vsel %vm1430, %v1650, %v1649
    %v1652 = vrot.slane %v1413, 4
    %v1653 = vsel %vm1433, %v1652, %v1651
    %v1654 = vpack.c.b16 %v1653, %v1653
    %v1659 = vunpack.c.l.b16 %v1636
    %v1660 = vunpack.c.l.b16 %v1637
    %v1661 = vunpack.c.l.b16 %v1638
    %v1662 = vunpack.c.l.b16 %v1639
    %v1663 = vpack.c.b16 %v1660, %v1659
    %v1664 = vpack.c.b16 %v1662, %v1661
    %v1668 = vsel %vm848, %v1654, 0
    %1670 = vmatprep.subr.bf16.mxu0 0
    %1671 = vmatpush1.bf16.msra.mxu0 %v1663
    %1672 = vmatprep.subr.bf16.mxu0 0
    %1673 = vmatpush1.bf16.msra.mxu0 %v1664
    %1674 = vmatprep.subr.bf16.mxu0 0
    %1675 = vmatpush1.bf16.msra.mxu0 0
    %1676 = vmatprep.subr.bf16.mxu0 0
    %1677 = vmatpush1.bf16.msra.mxu0 0
    %1678 = vmatprep.subr.bf16.mxu0 0
    %1679 = vmatpush1.bf16.msra.mxu0 0
    %1680 = vmatprep.subr.bf16.mxu0 0
    %1681 = vmatpush1.bf16.msra.mxu0 0
    %1682 = vmatprep.subr.bf16.mxu0 0
    %1683 = vmatpush1.bf16.msra.mxu0 0
    %1684 = vmatprep.subr.bf16.mxu0 0
    %1685 = vmatpush1.bf16.msra.mxu0 0
    %1686 = vmatprep.subr.bf16.mxu0 0
    %1687 = vmatpush1.bf16.msra.mxu0 0
    %1688 = vmatprep.subr.bf16.mxu0 0
    %1689 = vmatpush1.bf16.msra.mxu0 0
    %1690 = vmatprep.subr.bf16.mxu0 0
    %1691 = vmatpush1.bf16.msra.mxu0 0
    %1692 = vmatprep.subr.bf16.mxu0 0
    %1693 = vmatpush1.bf16.msra.mxu0 0
    %1694 = vmatprep.subr.bf16.mxu0 0
    %1695 = vmatpush1.bf16.msra.mxu0 0
    %1696 = vmatprep.subr.bf16.mxu0 0
    %1697 = vmatpush1.bf16.msra.mxu0 0
    %1698 = vmatprep.subr.bf16.mxu0 0
    %1699 = vmatpush1.bf16.msra.mxu0 0
    %1700 = vmatprep.subr.bf16.mxu0 0
    %1701 = vmatpush1.bf16.msra.mxu0 0
    %1702 = vmatprep.mubr.bf16.mxu0 0
    %1703 = vmatmul.mubr.bf16.gmra.mrb[0].mxu0 %v1668
    %v1704 = vpop.f32.mrb[0].mxu0
    %v1705 = vadd.f32 0.0, %v1704
    %v1706 = vpop.f32.mrb[0].mxu0
    %v1707 = vpop.f32.mrb[0].mxu0
    %v1708 = vpop.f32.mrb[0].mxu0
    %1709 = vdwg.mxu0
    %v1710 = vadd.f32 %v1635, %v1705
    %v1711 = vld [vmem:[%s4 + $0x40] sm:$0xf]
    %v1712 = vld [vmem:[%s4 + $0x44] sm:$0xf]
    %v1713 = vld [vmem:[%s4 + $0x48] sm:$0xf]
    %v1714 = vld [vmem:[%s4 + $0x4c] sm:$0xf]
    %v1715 = vrot.slane %v1406, 4
    %v1716 = vrot.slane %v1407, 3
    %v1717 = vsel %vm1415, %v1716, %v1715
    %v1718 = vrot.slane %v1408, 2
    %v1719 = vsel %vm1418, %v1718, %v1717
    %v1720 = vrot.slane %v1409, 1
    %v1721 = vsel %vm1421, %v1720, %v1719
    %v1722 = vsel %vm1424, %v1410, %v1721
    %v1723 = vrot.slane %v1411, 7
    %v1724 = vsel %vm1427, %v1723, %v1722
    %v1725 = vrot.slane %v1412, 6
    %v1726 = vsel %vm1430, %v1725, %v1724
    %v1727 = vrot.slane %v1413, 5
    %v1728 = vsel %vm1433, %v1727, %v1726
    %v1729 = vpack.c.b16 %v1728, %v1728
    %v1734 = vunpack.c.l.b16 %v1711
    %v1735 = vunpack.c.l.b16 %v1712
    %v1736 = vunpack.c.l.b16 %v1713
    %v1737 = vunpack.c.l.b16 %v1714
    %v1738 = vpack.c.b16 %v1735, %v1734
    %v1739 = vpack.c.b16 %v1737, %v1736
    %v1743 = vsel %vm848, %v1729, 0
    %1745 = vmatprep.subr.bf16.mxu0 0
    %1746 = vmatpush1.bf16.msra.mxu0 %v1738
    %1747 = vmatprep.subr.bf16.mxu0 0
    %1748 = vmatpush1.bf16.msra.mxu0 %v1739
    %1749 = vmatprep.subr.bf16.mxu0 0
    %1750 = vmatpush1.bf16.msra.mxu0 0
    %1751 = vmatprep.subr.bf16.mxu0 0
    %1752 = vmatpush1.bf16.msra.mxu0 0
    %1753 = vmatprep.subr.bf16.mxu0 0
    %1754 = vmatpush1.bf16.msra.mxu0 0
    %1755 = vmatprep.subr.bf16.mxu0 0
    %1756 = vmatpush1.bf16.msra.mxu0 0
    %1757 = vmatprep.subr.bf16.mxu0 0
    %1758 = vmatpush1.bf16.msra.mxu0 0
    %1759 = vmatprep.subr.bf16.mxu0 0
    %1760 = vmatpush1.bf16.msra.mxu0 0
    %1761 = vmatprep.subr.bf16.mxu0 0
    %1762 = vmatpush1.bf16.msra.mxu0 0
    %1763 = vmatprep.subr.bf16.mxu0 0
    %1764 = vmatpush1.bf16.msra.mxu0 0
    %1765 = vmatprep.subr.bf16.mxu0 0
    %1766 = vmatpush1.bf16.msra.mxu0 0
    %1767 = vmatprep.subr.bf16.mxu0 0
    %1768 = vmatpush1.bf16.msra.mxu0 0
    %1769 = vmatprep.subr.bf16.mxu0 0
    %1770 = vmatpush1.bf16.msra.mxu0 0
    %1771 = vmatprep.subr.bf16.mxu0 0
    %1772 = vmatpush1.bf16.msra.mxu0 0
    %1773 = vmatprep.subr.bf16.mxu0 0
    %1774 = vmatpush1.bf16.msra.mxu0 0
    %1775 = vmatprep.subr.bf16.mxu0 0
    %1776 = vmatpush1.bf16.msra.mxu0 0
    %1777 = vmatprep.mubr.bf16.mxu0 0
    %1778 = vmatmul.mubr.bf16.gmra.mrb[0].mxu0 %v1743
    %v1779 = vpop.f32.mrb[0].mxu0
    %v1780 = vadd.f32 0.0, %v1779
    %v1781 = vpop.f32.mrb[0].mxu0
    %v1782 = vpop.f32.mrb[0].mxu0
    %v1783 = vpop.f32.mrb[0].mxu0
    %1784 = vdwg.mxu0
    %v1785 = vadd.f32 %v1710, %v1780
    %v1786 = vld [vmem:[%s4 + $0x50] sm:$0xf]
    %v1787 = vld [vmem:[%s4 + $0x54] sm:$0xf]
    %v1788 = vld [vmem:[%s4 + $0x58] sm:$0xf]
    %v1789 = vld [vmem:[%s4 + $0x5c] sm:$0xf]
    %v1790 = vrot.slane %v1406, 5
    %v1791 = vrot.slane %v1407, 4
    %v1792 = vsel %vm1415, %v1791, %v1790
    %v1793 = vrot.slane %v1408, 3
    %v1794 = vsel %vm1418, %v1793, %v1792
    %v1795 = vrot.slane %v1409, 2
    %v1796 = vsel %vm1421, %v1795, %v1794
    %v1797 = vrot.slane %v1410, 1
    %v1798 = vsel %vm1424, %v1797, %v1796
    %v1799 = vsel %vm1427, %v1411, %v1798
    %v1800 = vrot.slane %v1412, 7
    %v1801 = vsel %vm1430, %v1800, %v1799
    %v1802 = vrot.slane %v1413, 6
    %v1803 = vsel %vm1433, %v1802, %v1801
    %v1804 = vpack.c.b16 %v1803, %v1803
    %v1809 = vunpack.c.l.b16 %v1786
    %v1810 = vunpack.c.l.b16 %v1787
    %v1811 = vunpack.c.l.b16 %v1788
    %v1812 = vunpack.c.l.b16 %v1789
    %v1813 = vpack.c.b16 %v1810, %v1809
    %v1814 = vpack.c.b16 %v1812, %v1811
    %v1818 = vsel %vm848, %v1804, 0
    %1820 = vmatprep.subr.bf16.mxu0 0
    %1821 = vmatpush1.bf16.msra.mxu0 %v1813
    %1822 = vmatprep.subr.bf16.mxu0 0
    %1823 = vmatpush1.bf16.msra.mxu0 %v1814
    %1824 = vmatprep.subr.bf16.mxu0 0
    %1825 = vmatpush1.bf16.msra.mxu0 0
    %1826 = vmatprep.subr.bf16.mxu0 0
    %1827 = vmatpush1.bf16.msra.mxu0 0
    %1828 = vmatprep.subr.bf16.mxu0 0
    %1829 = vmatpush1.bf16.msra.mxu0 0
    %1830 = vmatprep.subr.bf16.mxu0 0
    %1831 = vmatpush1.bf16.msra.mxu0 0
    %1832 = vmatprep.subr.bf16.mxu0 0
    %1833 = vmatpush1.bf16.msra.mxu0 0
    %1834 = vmatprep.subr.bf16.mxu0 0
    %1835 = vmatpush1.bf16.msra.mxu0 0
    %1836 = vmatprep.subr.bf16.mxu0 0
    %1837 = vmatpush1.bf16.msra.mxu0 0
    %1838 = vmatprep.subr.bf16.mxu0 0
    %1839 = vmatpush1.bf16.msra.mxu0 0
    %1840 = vmatprep.subr.bf16.mxu0 0
    %1841 = vmatpush1.bf16.msra.mxu0 0
    %1842 = vmatprep.subr.bf16.mxu0 0
    %1843 = vmatpush1.bf16.msra.mxu0 0
    %1844 = vmatprep.subr.bf16.mxu0 0
    %1845 = vmatpush1.bf16.msra.mxu0 0
    %1846 = vmatprep.subr.bf16.mxu0 0
    %1847 = vmatpush1.bf16.msra.mxu0 0
    %1848 = vmatprep.subr.bf16.mxu0 0
    %1849 = vmatpush1.bf16.msra.mxu0 0
    %1850 = vmatprep.subr.bf16.mxu0 0
    %1851 = vmatpush1.bf16.msra.mxu0 0
    %1852 = vmatprep.mubr.bf16.mxu0 0
    %1853 = vmatmul.mubr.bf16.gmra.mrb[0].mxu0 %v1818
    %v1854 = vpop.f32.mrb[0].mxu0
    %v1855 = vadd.f32 0.0, %v1854
    %v1856 = vpop.f32.mrb[0].mxu0
    %v1857 = vpop.f32.mrb[0].mxu0
    %v1858 = vpop.f32.mrb[0].mxu0
    %1859 = vdwg.mxu0
    %v1860 = vadd.f32 %v1785, %v1855
    %v1861 = vld [vmem:[%s4 + $0x60] sm:$0xf]
    %v1862 = vld [vmem:[%s4 + $0x64] sm:$0xf]
    %v1863 = vld [vmem:[%s4 + $0x68] sm:$0xf]
    %v1864 = vld [vmem:[%s4 + $0x6c] sm:$0xf]
    %v1865 = vrot.slane %v1406, 6
    %v1866 = vrot.slane %v1407, 5
    %v1867 = vsel %vm1415, %v1866, %v1865
    %v1868 = vrot.slane %v1408, 4
    %v1869 = vsel %vm1418, %v1868, %v1867
    %v1870 = vrot.slane %v1409, 3
    %v1871 = vsel %vm1421, %v1870, %v1869
    %v1872 = vrot.slane %v1410, 2
    %v1873 = vsel %vm1424, %v1872, %v1871
    %v1874 = vrot.slane %v1411, 1
    %v1875 = vsel %vm1427, %v1874, %v1873
    %v1876 = vsel %vm1430, %v1412, %v1875
    %v1877 = vrot.slane %v1413, 7
    %v1878 = vsel %vm1433, %v1877, %v1876
    %v1879 = vpack.c.b16 %v1878, %v1878
    %v1884 = vunpack.c.l.b16 %v1861
    %v1885 = vunpack.c.l.b16 %v1862
    %v1886 = vunpack.c.l.b16 %v1863
    %v1887 = vunpack.c.l.b16 %v1864
    %v1888 = vpack.c.b16 %v1885, %v1884
    %v1889 = vpack.c.b16 %v1887, %v1886
    %v1893 = vsel %vm848, %v1879, 0
    %1895 = vmatprep.subr.bf16.mxu0 0
    %1896 = vmatpush1.bf16.msra.mxu0 %v1888
    %1897 = vmatprep.subr.bf16.mxu0 0
    %1898 = vmatpush1.bf16.msra.mxu0 %v1889
    %1899 = vmatprep.subr.bf16.mxu0 0
    %1900 = vmatpush1.bf16.msra.mxu0 0
    %1901 = vmatprep.subr.bf16.mxu0 0
    %1902 = vmatpush1.bf16.msra.mxu0 0
    %1903 = vmatprep.subr.bf16.mxu0 0
    %1904 = vmatpush1.bf16.msra.mxu0 0
    %1905 = vmatprep.subr.bf16.mxu0 0
    %1906 = vmatpush1.bf16.msra.mxu0 0
    %1907 = vmatprep.subr.bf16.mxu0 0
    %1908 = vmatpush1.bf16.msra.mxu0 0
    %1909 = vmatprep.subr.bf16.mxu0 0
    %1910 = vmatpush1.bf16.msra.mxu0 0
    %1911 = vmatprep.subr.bf16.mxu0 0
    %1912 = vmatpush1.bf16.msra.mxu0 0
    %1913 = vmatprep.subr.bf16.mxu0 0
    %1914 = vmatpush1.bf16.msra.mxu0 0
    %1915 = vmatprep.subr.bf16.mxu0 0
    %1916 = vmatpush1.bf16.msra.mxu0 0
    %1917 = vmatprep.subr.bf16.mxu0 0
    %1918 = vmatpush1.bf16.msra.mxu0 0
    %1919 = vmatprep.subr.bf16.mxu0 0
    %1920 = vmatpush1.bf16.msra.mxu0 0
    %1921 = vmatprep.subr.bf16.mxu0 0
    %1922 = vmatpush1.bf16.msra.mxu0 0
    %1923 = vmatprep.subr.bf16.mxu0 0
    %1924 = vmatpush1.bf16.msra.mxu0 0
    %1925 = vmatprep.subr.bf16.mxu0 0
    %1926 = vmatpush1.bf16.msra.mxu0 0
    %1927 = vmatprep.mubr.bf16.mxu0 0
    %1928 = vmatmul.mubr.bf16.gmra.mrb[0].mxu0 %v1893
    %v1929 = vpop.f32.mrb[0].mxu0
    %v1930 = vadd.f32 0.0, %v1929
    %v1931 = vpop.f32.mrb[0].mxu0
    %v1932 = vpop.f32.mrb[0].mxu0
    %v1933 = vpop.f32.mrb[0].mxu0
    %1934 = vdwg.mxu0
    %v1935 = vadd.f32 %v1860, %v1930
    %v1936 = vld [vmem:[%s4 + $0x70] sm:$0xf]
    %v1937 = vld [vmem:[%s4 + $0x74] sm:$0xf]
    %v1938 = vld [vmem:[%s4 + $0x78] sm:$0xf]
    %v1939 = vld [vmem:[%s4 + $0x7c] sm:$0xf]
    %v1940 = vrot.slane %v1406, 7
    %v1941 = vrot.slane %v1407, 6
    %v1942 = vsel %vm1415, %v1941, %v1940
    %v1943 = vrot.slane %v1408, 5
    %v1944 = vsel %vm1418, %v1943, %v1942
    %v1945 = vrot.slane %v1409, 4
    %v1946 = vsel %vm1421, %v1945, %v1944
    %v1947 = vrot.slane %v1410, 3
    %v1948 = vsel %vm1424, %v1947, %v1946
    %v1949 = vrot.slane %v1411, 2
    %v1950 = vsel %vm1427, %v1949, %v1948
    %v1951 = vrot.slane %v1412, 1
    %v1952 = vsel %vm1430, %v1951, %v1950
    %v1953 = vsel %vm1433, %v1413, %v1952
    %v1954 = vpack.c.b16 %v1953, %v1953
    %v1959 = vunpack.c.l.b16 %v1936
    %v1960 = vunpack.c.l.b16 %v1937
    %v1961 = vunpack.c.l.b16 %v1938
    %v1962 = vunpack.c.l.b16 %v1939
    %v1963 = vpack.c.b16 %v1960, %v1959
    %v1964 = vpack.c.b16 %v1962, %v1961
    %v1968 = vsel %vm848, %v1954, 0
    %1970 = vmatprep.subr.bf16.mxu0 0
    %1971 = vmatpush1.bf16.msra.mxu0 %v1963
    %1972 = vmatprep.subr.bf16.mxu0 0
    %1973 = vmatpush1.bf16.msra.mxu0 %v1964
    %1974 = vmatprep.subr.bf16.mxu0 0
    %1975 = vmatpush1.bf16.msra.mxu0 0
    %1976 = vmatprep.subr.bf16.mxu0 0
    %1977 = vmatpush1.bf16.msra.mxu0 0
    %1978 = vmatprep.subr.bf16.mxu0 0
    %1979 = vmatpush1.bf16.msra.mxu0 0
    %1980 = vmatprep.subr.bf16.mxu0 0
    %1981 = vmatpush1.bf16.msra.mxu0 0
    %1982 = vmatprep.subr.bf16.mxu0 0
    %1983 = vmatpush1.bf16.msra.mxu0 0
    %1984 = vmatprep.subr.bf16.mxu0 0
    %1985 = vmatpush1.bf16.msra.mxu0 0
    %1986 = vmatprep.subr.bf16.mxu0 0
    %1987 = vmatpush1.bf16.msra.mxu0 0
    %1988 = vmatprep.subr.bf16.mxu0 0
    %1989 = vmatpush1.bf16.msra.mxu0 0
    %1990 = vmatprep.subr.bf16.mxu0 0
    %1991 = vmatpush1.bf16.msra.mxu0 0
    %1992 = vmatprep.subr.bf16.mxu0 0
    %1993 = vmatpush1.bf16.msra.mxu0 0
    %1994 = vmatprep.subr.bf16.mxu0 0
    %1995 = vmatpush1.bf16.msra.mxu0 0
    %1996 = vmatprep.subr.bf16.mxu0 0
    %1997 = vmatpush1.bf16.msra.mxu0 0
    %1998 = vmatprep.subr.bf16.mxu0 0
    %1999 = vmatpush1.bf16.msra.mxu0 0
    %2000 = vmatprep.subr.bf16.mxu0 0
    %2001 = vmatpush1.bf16.msra.mxu0 0
    %2002 = vmatprep.mubr.bf16.mxu0 0
    %2003 = vmatmul.mubr.bf16.gmra.mrb[0].mxu0 %v1968
    %v2004 = vpop.f32.mrb[0].mxu0
    %v2005 = vadd.f32 0.0, %v2004
    %v2006 = vpop.f32.mrb[0].mxu0
    %v2007 = vpop.f32.mrb[0].mxu0
    %v2008 = vpop.f32.mrb[0].mxu0
    %2009 = vdwg.mxu0
    %v2010 = vadd.f32 %v1935, %v2005
    %v2011 = vld [vmem:[%s4 + $0x80] sm:$0xf]
    %v2012 = vld [vmem:[%s4 + $0x84] sm:$0xf]
    %v2013 = vld [vmem:[%s4 + $0x88] sm:$0xf]
    %v2014 = vld [vmem:[%s4 + $0x8c] sm:$0xf]
    %v2015 = vunpack.c.h.b16 %v1374
    %v2016 = vunpack.c.h.b16 %v1376
    %v2017 = vunpack.c.h.b16 %v1378
    %v2018 = vunpack.c.h.b16 %v1380
    %v2019 = vunpack.c.h.b16 %v1382
    %v2020 = vunpack.c.h.b16 %v1384
    %v2021 = vunpack.c.h.b16 %v1386
    %v2022 = vunpack.c.h.b16 %v1388
    %v2023 = vrot.slane %v2016, 7
    %v2024 = vsel %vm1415, %v2023, %v2015
    %v2025 = vrot.slane %v2017, 6
    %v2026 = vsel %vm1418, %v2025, %v2024
    %v2027 = vrot.slane %v2018, 5
    %v2028 = vsel %vm1421, %v2027, %v2026
    %v2029 = vrot.slane %v2019, 4
    %v2030 = vsel %vm1424, %v2029, %v2028
    %v2031 = vrot.slane %v2020, 3
    %v2032 = vsel %vm1427, %v2031, %v2030
    %v2033 = vrot.slane %v2021, 2
    %v2034 = vsel %vm1430, %v2033, %v2032
    %v2035 = vrot.slane %v2022, 1
    %v2036 = vsel %vm1433, %v2035, %v2034
    %v2037 = vpack.c.b16 %v2036, %v2036
    %v2042 = vunpack.c.l.b16 %v2011
    %v2043 = vunpack.c.l.b16 %v2012
    %v2044 = vunpack.c.l.b16 %v2013
    %v2045 = vunpack.c.l.b16 %v2014
    %v2046 = vpack.c.b16 %v2043, %v2042
    %v2047 = vpack.c.b16 %v2045, %v2044
    %v2051 = vsel %vm848, %v2037, 0
    %2053 = vmatprep.subr.bf16.mxu0 0
    %2054 = vmatpush1.bf16.msra.mxu0 %v2046
    %2055 = vmatprep.subr.bf16.mxu0 0
    %2056 = vmatpush1.bf16.msra.mxu0 %v2047
    %2057 = vmatprep.subr.bf16.mxu0 0
    %2058 = vmatpush1.bf16.msra.mxu0 0
    %2059 = vmatprep.subr.bf16.mxu0 0
    %2060 = vmatpush1.bf16.msra.mxu0 0
    %2061 = vmatprep.subr.bf16.mxu0 0
    %2062 = vmatpush1.bf16.msra.mxu0 0
    %2063 = vmatprep.subr.bf16.mxu0 0
    %2064 = vmatpush1.bf16.msra.mxu0 0
    %2065 = vmatprep.subr.bf16.mxu0 0
    %2066 = vmatpush1.bf16.msra.mxu0 0
    %2067 = vmatprep.subr.bf16.mxu0 0
    %2068 = vmatpush1.bf16.msra.mxu0 0
    %2069 = vmatprep.subr.bf16.mxu0 0
    %2070 = vmatpush1.bf16.msra.mxu0 0
    %2071 = vmatprep.subr.bf16.mxu0 0
    %2072 = vmatpush1.bf16.msra.mxu0 0
    %2073 = vmatprep.subr.bf16.mxu0 0
    %2074 = vmatpush1.bf16.msra.mxu0 0
    %2075 = vmatprep.subr.bf16.mxu0 0
    %2076 = vmatpush1.bf16.msra.mxu0 0
    %2077 = vmatprep.subr.bf16.mxu0 0
    %2078 = vmatpush1.bf16.msra.mxu0 0
    %2079 = vmatprep.subr.bf16.mxu0 0
    %2080 = vmatpush1.bf16.msra.mxu0 0
    %2081 = vmatprep.subr.bf16.mxu0 0
    %2082 = vmatpush1.bf16.msra.mxu0 0
    %2083 = vmatprep.subr.bf16.mxu0 0
    %2084 = vmatpush1.bf16.msra.mxu0 0
    %2085 = vmatprep.mubr.bf16.mxu0 0
    %2086 = vmatmul.mubr.bf16.gmra.mrb[0].mxu0 %v2051
    %v2087 = vpop.f32.mrb[0].mxu0
    %v2088 = vadd.f32 0.0, %v2087
    %v2089 = vpop.f32.mrb[0].mxu0
    %v2090 = vpop.f32.mrb[0].mxu0
    %v2091 = vpop.f32.mrb[0].mxu0
    %2092 = vdwg.mxu0
    %v2093 = vadd.f32 %v2010, %v2088
    %v2094 = vld [vmem:[%s4 + $0x90] sm:$0xf]
    %v2095 = vld [vmem:[%s4 + $0x94] sm:$0xf]
    %v2096 = vld [vmem:[%s4 + $0x98] sm:$0xf]
    %v2097 = vld [vmem:[%s4 + $0x9c] sm:$0xf]
    %v2098 = vrot.slane %v2015, 1
    %v2099 = vsel %vm1415, %v2016, %v2098
    %v2100 = vrot.slane %v2017, 7
    %v2101 = vsel %vm1418, %v2100, %v2099
    %v2102 = vrot.slane %v2018, 6
    %v2103 = vsel %vm1421, %v2102, %v2101
    %v2104 = vrot.slane %v2019, 5
    %v2105 = vsel %vm1424, %v2104, %v2103
    %v2106 = vrot.slane %v2020, 4
    %v2107 = vsel %vm1427, %v2106, %v2105
    %v2108 = vrot.slane %v2021, 3
    %v2109 = vsel %vm1430, %v2108, %v2107
    %v2110 = vrot.slane %v2022, 2
    %v2111 = vsel %vm1433, %v2110, %v2109
    %v2112 = vpack.c.b16 %v2111, %v2111
    %v2117 = vunpack.c.l.b16 %v2094
    %v2118 = vunpack.c.l.b16 %v2095
    %v2119 = vunpack.c.l.b16 %v2096
    %v2120 = vunpack.c.l.b16 %v2097
    %v2121 = vpack.c.b16 %v2118, %v2117
    %v2122 = vpack.c.b16 %v2120, %v2119
    %v2126 = vsel %vm848, %v2112, 0
    %2128 = vmatprep.subr.bf16.mxu0 0
    %2129 = vmatpush1.bf16.msra.mxu0 %v2121
    %2130 = vmatprep.subr.bf16.mxu0 0
    %2131 = vmatpush1.bf16.msra.mxu0 %v2122
    %2132 = vmatprep.subr.bf16.mxu0 0
    %2133 = vmatpush1.bf16.msra.mxu0 0
    %2134 = vmatprep.subr.bf16.mxu0 0
    %2135 = vmatpush1.bf16.msra.mxu0 0
    %2136 = vmatprep.subr.bf16.mxu0 0
    %2137 = vmatpush1.bf16.msra.mxu0 0
    %2138 = vmatprep.subr.bf16.mxu0 0
    %2139 = vmatpush1.bf16.msra.mxu0 0
    %2140 = vmatprep.subr.bf16.mxu0 0
    %2141 = vmatpush1.bf16.msra.mxu0 0
    %2142 = vmatprep.subr.bf16.mxu0 0
    %2143 = vmatpush1.bf16.msra.mxu0 0
    %2144 = vmatprep.subr.bf16.mxu0 0
    %2145 = vmatpush1.bf16.msra.mxu0 0
    %2146 = vmatprep.subr.bf16.mxu0 0
    %2147 = vmatpush1.bf16.msra.mxu0 0
    %2148 = vmatprep.subr.bf16.mxu0 0
    %2149 = vmatpush1.bf16.msra.mxu0 0
    %2150 = vmatprep.subr.bf16.mxu0 0
    %2151 = vmatpush1.bf16.msra.mxu0 0
    %2152 = vmatprep.subr.bf16.mxu0 0
    %2153 = vmatpush1.bf16.msra.mxu0 0
    %2154 = vmatprep.subr.bf16.mxu0 0
    %2155 = vmatpush1.bf16.msra.mxu0 0
    %2156 = vmatprep.subr.bf16.mxu0 0
    %2157 = vmatpush1.bf16.msra.mxu0 0
    %2158 = vmatprep.subr.bf16.mxu0 0
    %2159 = vmatpush1.bf16.msra.mxu0 0
    %2160 = vmatprep.mubr.bf16.mxu0 0
    %2161 = vmatmul.mubr.bf16.gmra.mrb[0].mxu0 %v2126
    %v2162 = vpop.f32.mrb[0].mxu0
    %v2163 = vadd.f32 0.0, %v2162
    %v2164 = vpop.f32.mrb[0].mxu0
    %v2165 = vpop.f32.mrb[0].mxu0
    %v2166 = vpop.f32.mrb[0].mxu0
    %2167 = vdwg.mxu0
    %v2168 = vadd.f32 %v2093, %v2163
    %v2169 = vld [vmem:[%s4 + $0xa0] sm:$0xf]
    %v2170 = vld [vmem:[%s4 + $0xa4] sm:$0xf]
    %v2171 = vld [vmem:[%s4 + $0xa8] sm:$0xf]
    %v2172 = vld [vmem:[%s4 + $0xac] sm:$0xf]
    %v2173 = vrot.slane %v2015, 2
    %v2174 = vrot.slane %v2016, 1
    %v2175 = vsel %vm1415, %v2174, %v2173
    %v2176 = vsel %vm1418, %v2017, %v2175
    %v2177 = vrot.slane %v2018, 7
    %v2178 = vsel %vm1421, %v2177, %v2176
    %v2179 = vrot.slane %v2019, 6
    %v2180 = vsel %vm1424, %v2179, %v2178
    %v2181 = vrot.slane %v2020, 5
    %v2182 = vsel %vm1427, %v2181, %v2180
    %v2183 = vrot.slane %v2021, 4
    %v2184 = vsel %vm1430, %v2183, %v2182
    %v2185 = vrot.slane %v2022, 3
    %v2186 = vsel %vm1433, %v2185, %v2184
    %v2187 = vpack.c.b16 %v2186, %v2186
    %v2192 = vunpack.c.l.b16 %v2169
    %v2193 = vunpack.c.l.b16 %v2170
    %v2194 = vunpack.c.l.b16 %v2171
    %v2195 = vunpack.c.l.b16 %v2172
    %v2196 = vpack.c.b16 %v2193, %v2192
    %v2197 = vpack.c.b16 %v2195, %v2194
    %v2201 = vsel %vm848, %v2187, 0
    %2203 = vmatprep.subr.bf16.mxu0 0
    %2204 = vmatpush1.bf16.msra.mxu0 %v2196
    %2205 = vmatprep.subr.bf16.mxu0 0
    %2206 = vmatpush1.bf16.msra.mxu0 %v2197
    %2207 = vmatprep.subr.bf16.mxu0 0
    %2208 = vmatpush1.bf16.msra.mxu0 0
    %2209 = vmatprep.subr.bf16.mxu0 0
    %2210 = vmatpush1.bf16.msra.mxu0 0
    %2211 = vmatprep.subr.bf16.mxu0 0
    %2212 = vmatpush1.bf16.msra.mxu0 0
    %2213 = vmatprep.subr.bf16.mxu0 0
    %2214 = vmatpush1.bf16.msra.mxu0 0
    %2215 = vmatprep.subr.bf16.mxu0 0
    %2216 = vmatpush1.bf16.msra.mxu0 0
    %2217 = vmatprep.subr.bf16.mxu0 0
    %2218 = vmatpush1.bf16.msra.mxu0 0
    %2219 = vmatprep.subr.bf16.mxu0 0
    %2220 = vmatpush1.bf16.msra.mxu0 0
    %2221 = vmatprep.subr.bf16.mxu0 0
    %2222 = vmatpush1.bf16.msra.mxu0 0
    %2223 = vmatprep.subr.bf16.mxu0 0
    %2224 = vmatpush1.bf16.msra.mxu0 0
    %2225 = vmatprep.subr.bf16.mxu0 0
    %2226 = vmatpush1.bf16.msra.mxu0 0
    %2227 = vmatprep.subr.bf16.mxu0 0
    %2228 = vmatpush1.bf16.msra.mxu0 0
    %2229 = vmatprep.subr.bf16.mxu0 0
    %2230 = vmatpush1.bf16.msra.mxu0 0
    %2231 = vmatprep.subr.bf16.mxu0 0
    %2232 = vmatpush1.bf16.msra.mxu0 0
    %2233 = vmatprep.subr.bf16.mxu0 0
    %2234 = vmatpush1.bf16.msra.mxu0 0
    %2235 = vmatprep.mubr.bf16.mxu0 0
    %2236 = vmatmul.mubr.bf16.gmra.mrb[0].mxu0 %v2201
    %v2237 = vpop.f32.mrb[0].mxu0
    %v2238 = vadd.f32 0.0, %v2237
    %v2239 = vpop.f32.mrb[0].mxu0
    %v2240 = vpop.f32.mrb[0].mxu0
    %v2241 = vpop.f32.mrb[0].mxu0
    %2242 = vdwg.mxu0
    %v2243 = vadd.f32 %v2168, %v2238
    %v2244 = vld [vmem:[%s4 + $0xb0] sm:$0xf]
    %v2245 = vld [vmem:[%s4 + $0xb4] sm:$0xf]
    %v2246 = vld [vmem:[%s4 + $0xb8] sm:$0xf]
    %v2247 = vld [vmem:[%s4 + $0xbc] sm:$0xf]
    %v2248 = vrot.slane %v2015, 3
    %v2249 = vrot.slane %v2016, 2
    %v2250 = vsel %vm1415, %v2249, %v2248
    %v2251 = vrot.slane %v2017, 1
    %v2252 = vsel %vm1418, %v2251, %v2250
    %v2253 = vsel %vm1421, %v2018, %v2252
    %v2254 = vrot.slane %v2019, 7
    %v2255 = vsel %vm1424, %v2254, %v2253
    %v2256 = vrot.slane %v2020, 6
    %v2257 = vsel %vm1427, %v2256, %v2255
    %v2258 = vrot.slane %v2021, 5
    %v2259 = vsel %vm1430, %v2258, %v2257
    %v2260 = vrot.slane %v2022, 4
    %v2261 = vsel %vm1433, %v2260, %v2259
    %v2262 = vpack.c.b16 %v2261, %v2261
    %v2267 = vunpack.c.l.b16 %v2244
    %v2268 = vunpack.c.l.b16 %v2245
    %v2269 = vunpack.c.l.b16 %v2246
    %v2270 = vunpack.c.l.b16 %v2247
    %v2271 = vpack.c.b16 %v2268, %v2267
    %v2272 = vpack.c.b16 %v2270, %v2269
    %v2276 = vsel %vm848, %v2262, 0
    %2278 = vmatprep.subr.bf16.mxu0 0
    %2279 = vmatpush1.bf16.msra.mxu0 %v2271
    %2280 = vmatprep.subr.bf16.mxu0 0
    %2281 = vmatpush1.bf16.msra.mxu0 %v2272
    %2282 = vmatprep.subr.bf16.mxu0 0
    %2283 = vmatpush1.bf16.msra.mxu0 0
    %2284 = vmatprep.subr.bf16.mxu0 0
    %2285 = vmatpush1.bf16.msra.mxu0 0
    %2286 = vmatprep.subr.bf16.mxu0 0
    %2287 = vmatpush1.bf16.msra.mxu0 0
    %2288 = vmatprep.subr.bf16.mxu0 0
    %2289 = vmatpush1.bf16.msra.mxu0 0
    %2290 = vmatprep.subr.bf16.mxu0 0
    %2291 = vmatpush1.bf16.msra.mxu0 0
    %2292 = vmatprep.subr.bf16.mxu0 0
    %2293 = vmatpush1.bf16.msra.mxu0 0
    %2294 = vmatprep.subr.bf16.mxu0 0
    %2295 = vmatpush1.bf16.msra.mxu0 0
    %2296 = vmatprep.subr.bf16.mxu0 0
    %2297 = vmatpush1.bf16.msra.mxu0 0
    %2298 = vmatprep.subr.bf16.mxu0 0
    %2299 = vmatpush1.bf16.msra.mxu0 0
    %2300 = vmatprep.subr.bf16.mxu0 0
    %2301 = vmatpush1.bf16.msra.mxu0 0
    %2302 = vmatprep.subr.bf16.mxu0 0
    %2303 = vmatpush1.bf16.msra.mxu0 0
    %2304 = vmatprep.subr.bf16.mxu0 0
    %2305 = vmatpush1.bf16.msra.mxu0 0
    %2306 = vmatprep.subr.bf16.mxu0 0
    %2307 = vmatpush1.bf16.msra.mxu0 0
    %2308 = vmatprep.subr.bf16.mxu0 0
    %2309 = vmatpush1.bf16.msra.mxu0 0
    %2310 = vmatprep.mubr.bf16.mxu0 0
    %2311 = vmatmul.mubr.bf16.gmra.mrb[0].mxu0 %v2276
    %v2312 = vpop.f32.mrb[0].mxu0
    %v2313 = vadd.f32 0.0, %v2312
    %v2314 = vpop.f32.mrb[0].mxu0
    %v2315 = vpop.f32.mrb[0].mxu0
    %v2316 = vpop.f32.mrb[0].mxu0
    %2317 = vdwg.mxu0
    %v2318 = vadd.f32 %v2243, %v2313
    %v2319 = vld [vmem:[%s4 + $0xc0] sm:$0xf]
    %v2320 = vld [vmem:[%s4 + $0xc4] sm:$0xf]
    %v2321 = vld [vmem:[%s4 + $0xc8] sm:$0xf]
    %v2322 = vld [vmem:[%s4 + $0xcc] sm:$0xf]
    %v2323 = vrot.slane %v2015, 4
    %v2324 = vrot.slane %v2016, 3
    %v2325 = vsel %vm1415, %v2324, %v2323
    %v2326 = vrot.slane %v2017, 2
    %v2327 = vsel %vm1418, %v2326, %v2325
    %v2328 = vrot.slane %v2018, 1
    %v2329 = vsel %vm1421, %v2328, %v2327
    %v2330 = vsel %vm1424, %v2019, %v2329
    %v2331 = vrot.slane %v2020, 7
    %v2332 = vsel %vm1427, %v2331, %v2330
    %v2333 = vrot.slane %v2021, 6
    %v2334 = vsel %vm1430, %v2333, %v2332
    %v2335 = vrot.slane %v2022, 5
    %v2336 = vsel %vm1433, %v2335, %v2334
    %v2337 = vpack.c.b16 %v2336, %v2336
    %v2342 = vunpack.c.l.b16 %v2319
    %v2343 = vunpack.c.l.b16 %v2320
    %v2344 = vunpack.c.l.b16 %v2321
    %v2345 = vunpack.c.l.b16 %v2322
    %v2346 = vpack.c.b16 %v2343, %v2342
    %v2347 = vpack.c.b16 %v2345, %v2344
    %v2351 = vsel %vm848, %v2337, 0
    %2353 = vmatprep.subr.bf16.mxu0 0
    %2354 = vmatpush1.bf16.msra.mxu0 %v2346
    %2355 = vmatprep.subr.bf16.mxu0 0
    %2356 = vmatpush1.bf16.msra.mxu0 %v2347
    %2357 = vmatprep.subr.bf16.mxu0 0
    %2358 = vmatpush1.bf16.msra.mxu0 0
    %2359 = vmatprep.subr.bf16.mxu0 0
    %2360 = vmatpush1.bf16.msra.mxu0 0
    %2361 = vmatprep.subr.bf16.mxu0 0
    %2362 = vmatpush1.bf16.msra.mxu0 0
    %2363 = vmatprep.subr.bf16.mxu0 0
    %2364 = vmatpush1.bf16.msra.mxu0 0
    %2365 = vmatprep.subr.bf16.mxu0 0
    %2366 = vmatpush1.bf16.msra.mxu0 0
    %2367 = vmatprep.subr.bf16.mxu0 0
    %2368 = vmatpush1.bf16.msra.mxu0 0
    %2369 = vmatprep.subr.bf16.mxu0 0
    %2370 = vmatpush1.bf16.msra.mxu0 0
    %2371 = vmatprep.subr.bf16.mxu0 0
    %2372 = vmatpush1.bf16.msra.mxu0 0
    %2373 = vmatprep.subr.bf16.mxu0 0
    %2374 = vmatpush1.bf16.msra.mxu0 0
    %2375 = vmatprep.subr.bf16.mxu0 0
    %2376 = vmatpush1.bf16.msra.mxu0 0
    %2377 = vmatprep.subr.bf16.mxu0 0
    %2378 = vmatpush1.bf16.msra.mxu0 0
    %2379 = vmatprep.subr.bf16.mxu0 0
    %2380 = vmatpush1.bf16.msra.mxu0 0
    %2381 = vmatprep.subr.bf16.mxu0 0
    %2382 = vmatpush1.bf16.msra.mxu0 0
    %2383 = vmatprep.subr.bf16.mxu0 0
    %2384 = vmatpush1.bf16.msra.mxu0 0
    %2385 = vmatprep.mubr.bf16.mxu0 0
    %2386 = vmatmul.mubr.bf16.gmra.mrb[0].mxu0 %v2351
    %v2387 = vpop.f32.mrb[0].mxu0
    %v2388 = vadd.f32 0.0, %v2387
    %v2389 = vpop.f32.mrb[0].mxu0
    %v2390 = vpop.f32.mrb[0].mxu0
    %v2391 = vpop.f32.mrb[0].mxu0
    %2392 = vdwg.mxu0
    %v2393 = vadd.f32 %v2318, %v2388
    %v2394 = vld [vmem:[%s4 + $0xd0] sm:$0xf]
    %v2395 = vld [vmem:[%s4 + $0xd4] sm:$0xf]
    %v2396 = vld [vmem:[%s4 + $0xd8] sm:$0xf]
    %v2397 = vld [vmem:[%s4 + $0xdc] sm:$0xf]
    %v2398 = vrot.slane %v2015, 5
    %v2399 = vrot.slane %v2016, 4
    %v2400 = vsel %vm1415, %v2399, %v2398
    %v2401 = vrot.slane %v2017, 3
    %v2402 = vsel %vm1418, %v2401, %v2400
    %v2403 = vrot.slane %v2018, 2
    %v2404 = vsel %vm1421, %v2403, %v2402
    %v2405 = vrot.slane %v2019, 1
    %v2406 = vsel %vm1424, %v2405, %v2404
    %v2407 = vsel %vm1427, %v2020, %v2406
    %v2408 = vrot.slane %v2021, 7
    %v2409 = vsel %vm1430, %v2408, %v2407
    %v2410 = vrot.slane %v2022, 6
    %v2411 = vsel %vm1433, %v2410, %v2409
    %v2412 = vpack.c.b16 %v2411, %v2411
    %v2417 = vunpack.c.l.b16 %v2394
    %v2418 = vunpack.c.l.b16 %v2395
    %v2419 = vunpack.c.l.b16 %v2396
    %v2420 = vunpack.c.l.b16 %v2397
    %v2421 = vpack.c.b16 %v2418, %v2417
    %v2422 = vpack.c.b16 %v2420, %v2419
    %v2426 = vsel %vm848, %v2412, 0
    %2428 = vmatprep.subr.bf16.mxu0 0
    %2429 = vmatpush1.bf16.msra.mxu0 %v2421
    %2430 = vmatprep.subr.bf16.mxu0 0
    %2431 = vmatpush1.bf16.msra.mxu0 %v2422
    %2432 = vmatprep.subr.bf16.mxu0 0
    %2433 = vmatpush1.bf16.msra.mxu0 0
    %2434 = vmatprep.subr.bf16.mxu0 0
    %2435 = vmatpush1.bf16.msra.mxu0 0
    %2436 = vmatprep.subr.bf16.mxu0 0
    %2437 = vmatpush1.bf16.msra.mxu0 0
    %2438 = vmatprep.subr.bf16.mxu0 0
    %2439 = vmatpush1.bf16.msra.mxu0 0
    %2440 = vmatprep.subr.bf16.mxu0 0
    %2441 = vmatpush1.bf16.msra.mxu0 0
    %2442 = vmatprep.subr.bf16.mxu0 0
    %2443 = vmatpush1.bf16.msra.mxu0 0
    %2444 = vmatprep.subr.bf16.mxu0 0
    %2445 = vmatpush1.bf16.msra.mxu0 0
    %2446 = vmatprep.subr.bf16.mxu0 0
    %2447 = vmatpush1.bf16.msra.mxu0 0
    %2448 = vmatprep.subr.bf16.mxu0 0
    %2449 = vmatpush1.bf16.msra.mxu0 0
    %2450 = vmatprep.subr.bf16.mxu0 0
    %2451 = vmatpush1.bf16.msra.mxu0 0
    %2452 = vmatprep.subr.bf16.mxu0 0
    %2453 = vmatpush1.bf16.msra.mxu0 0
    %2454 = vmatprep.subr.bf16.mxu0 0
    %2455 = vmatpush1.bf16.msra.mxu0 0
    %2456 = vmatprep.subr.bf16.mxu0 0
    %2457 = vmatpush1.bf16.msra.mxu0 0
    %2458 = vmatprep.subr.bf16.mxu0 0
    %2459 = vmatpush1.bf16.msra.mxu0 0
    %2460 = vmatprep.mubr.bf16.mxu0 0
    %2461 = vmatmul.mubr.bf16.gmra.mrb[0].mxu0 %v2426
    %v2462 = vpop.f32.mrb[0].mxu0
    %v2463 = vadd.f32 0.0, %v2462
    %v2464 = vpop.f32.mrb[0].mxu0
    %v2465 = vpop.f32.mrb[0].mxu0
    %v2466 = vpop.f32.mrb[0].mxu0
    %2467 = vdwg.mxu0
    %v2468 = vadd.f32 %v2393, %v2463
    %v2469 = vld [vmem:[%s4 + $0xe0] sm:$0xf]
    %v2470 = vld [vmem:[%s4 + $0xe4] sm:$0xf]
    %v2471 = vld [vmem:[%s4 + $0xe8] sm:$0xf]
    %v2472 = vld [vmem:[%s4 + $0xec] sm:$0xf]
    %v2473 = vrot.slane %v2015, 6
    %v2474 = vrot.slane %v2016, 5
    %v2475 = vsel %vm1415, %v2474, %v2473
    %v2476 = vrot.slane %v2017, 4
    %v2477 = vsel %vm1418, %v2476, %v2475
    %v2478 = vrot.slane %v2018, 3
    %v2479 = vsel %vm1421, %v2478, %v2477
    %v2480 = vrot.slane %v2019, 2
    %v2481 = vsel %vm1424, %v2480, %v2479
    %v2482 = vrot.slane %v2020, 1
    %v2483 = vsel %vm1427, %v2482, %v2481
    %v2484 = vsel %vm1430, %v2021, %v2483
    %v2485 = vrot.slane %v2022, 7
    %v2486 = vsel %vm1433, %v2485, %v2484
    %v2487 = vpack.c.b16 %v2486, %v2486
    %v2492 = vunpack.c.l.b16 %v2469
    %v2493 = vunpack.c.l.b16 %v2470
    %v2494 = vunpack.c.l.b16 %v2471
    %v2495 = vunpack.c.l.b16 %v2472
    %v2496 = vpack.c.b16 %v2493, %v2492
    %v2497 = vpack.c.b16 %v2495, %v2494
    %v2501 = vsel %vm848, %v2487, 0
    %2503 = vmatprep.subr.bf16.mxu0 0
    %2504 = vmatpush1.bf16.msra.mxu0 %v2496
    %2505 = vmatprep.subr.bf16.mxu0 0
    %2506 = vmatpush1.bf16.msra.mxu0 %v2497
    %2507 = vmatprep.subr.bf16.mxu0 0
    %2508 = vmatpush1.bf16.msra.mxu0 0
    %2509 = vmatprep.subr.bf16.mxu0 0
    %2510 = vmatpush1.bf16.msra.mxu0 0
    %2511 = vmatprep.subr.bf16.mxu0 0
    %2512 = vmatpush1.bf16.msra.mxu0 0
    %2513 = vmatprep.subr.bf16.mxu0 0
    %2514 = vmatpush1.bf16.msra.mxu0 0
    %2515 = vmatprep.subr.bf16.mxu0 0
    %2516 = vmatpush1.bf16.msra.mxu0 0
    %2517 = vmatprep.subr.bf16.mxu0 0
    %2518 = vmatpush1.bf16.msra.mxu0 0
    %2519 = vmatprep.subr.bf16.mxu0 0
    %2520 = vmatpush1.bf16.msra.mxu0 0
    %2521 = vmatprep.subr.bf16.mxu0 0
    %2522 = vmatpush1.bf16.msra.mxu0 0
    %2523 = vmatprep.subr.bf16.mxu0 0
    %2524 = vmatpush1.bf16.msra.mxu0 0
    %2525 = vmatprep.subr.bf16.mxu0 0
    %2526 = vmatpush1.bf16.msra.mxu0 0
    %2527 = vmatprep.subr.bf16.mxu0 0
    %2528 = vmatpush1.bf16.msra.mxu0 0
    %2529 = vmatprep.subr.bf16.mxu0 0
    %2530 = vmatpush1.bf16.msra.mxu0 0
    %2531 = vmatprep.subr.bf16.mxu0 0
    %2532 = vmatpush1.bf16.msra.mxu0 0
    %2533 = vmatprep.subr.bf16.mxu0 0
    %2534 = vmatpush1.bf16.msra.mxu0 0
    %2535 = vmatprep.mubr.bf16.mxu0 0
    %2536 = vmatmul.mubr.bf16.gmra.mrb[0].mxu0 %v2501
    %v2537 = vpop.f32.mrb[0].mxu0
    %v2538 = vadd.f32 0.0, %v2537
    %v2539 = vpop.f32.mrb[0].mxu0
    %v2540 = vpop.f32.mrb[0].mxu0
    %v2541 = vpop.f32.mrb[0].mxu0
    %2542 = vdwg.mxu0
    %v2543 = vadd.f32 %v2468, %v2538
    %v2544 = vld [vmem:[%s4 + $0xf0] sm:$0xf]
    %v2545 = vld [vmem:[%s4 + $0xf4] sm:$0xf]
    %v2546 = vld [vmem:[%s4 + $0xf8] sm:$0xf]
    %v2547 = vld [vmem:[%s4 + $0xfc] sm:$0xf]
    %v2548 = vrot.slane %v2015, 7
    %v2549 = vrot.slane %v2016, 6
    %v2550 = vsel %vm1415, %v2549, %v2548
    %v2551 = vrot.slane %v2017, 5
    %v2552 = vsel %vm1418, %v2551, %v2550
    %v2553 = vrot.slane %v2018, 4
    %v2554 = vsel %vm1421, %v2553, %v2552
    %v2555 = vrot.slane %v2019, 3
    %v2556 = vsel %vm1424, %v2555, %v2554
    %v2557 = vrot.slane %v2020, 2
    %v2558 = vsel %vm1427, %v2557, %v2556
    %v2559 = vrot.slane %v2021, 1
    %v2560 = vsel %vm1430, %v2559, %v2558
    %v2561 = vsel %vm1433, %v2022, %v2560
    %v2562 = vpack.c.b16 %v2561, %v2561
    %v2567 = vunpack.c.l.b16 %v2544
    %v2568 = vunpack.c.l.b16 %v2545
    %v2569 = vunpack.c.l.b16 %v2546
    %v2570 = vunpack.c.l.b16 %v2547
    %v2571 = vpack.c.b16 %v2568, %v2567
    %v2572 = vpack.c.b16 %v2570, %v2569
    %v2576 = vsel %vm848, %v2562, 0
    %2578 = vmatprep.subr.bf16.mxu0 0
    %2579 = vmatpush1.bf16.msra.mxu0 %v2571
    %2580 = vmatprep.subr.bf16.mxu0 0
    %2581 = vmatpush1.bf16.msra.mxu0 %v2572
    %2582 = vmatprep.subr.bf16.mxu0 0
    %2583 = vmatpush1.bf16.msra.mxu0 0
    %2584 = vmatprep.subr.bf16.mxu0 0
    %2585 = vmatpush1.bf16.msra.mxu0 0
    %2586 = vmatprep.subr.bf16.mxu0 0
    %2587 = vmatpush1.bf16.msra.mxu0 0
    %2588 = vmatprep.subr.bf16.mxu0 0
    %2589 = vmatpush1.bf16.msra.mxu0 0
    %2590 = vmatprep.subr.bf16.mxu0 0
    %2591 = vmatpush1.bf16.msra.mxu0 0
    %2592 = vmatprep.subr.bf16.mxu0 0
    %2593 = vmatpush1.bf16.msra.mxu0 0
    %2594 = vmatprep.subr.bf16.mxu0 0
    %2595 = vmatpush1.bf16.msra.mxu0 0
    %2596 = vmatprep.subr.bf16.mxu0 0
    %2597 = vmatpush1.bf16.msra.mxu0 0
    %2598 = vmatprep.subr.bf16.mxu0 0
    %2599 = vmatpush1.bf16.msra.mxu0 0
    %2600 = vmatprep.subr.bf16.mxu0 0
    %2601 = vmatpush1.bf16.msra.mxu0 0
    %2602 = vmatprep.subr.bf16.mxu0 0
    %2603 = vmatpush1.bf16.msra.mxu0 0
    %2604 = vmatprep.subr.bf16.mxu0 0
    %2605 = vmatpush1.bf16.msra.mxu0 0
    %2606 = vmatprep.subr.bf16.mxu0 0
    %2607 = vmatpush1.bf16.msra.mxu0 0
    %2608 = vmatprep.subr.bf16.mxu0 0
    %2609 = vmatpush1.bf16.msra.mxu0 0
    %2610 = vmatprep.mubr.bf16.mxu0 0
    %2611 = vmatmul.mubr.bf16.gmra.mrb[0].mxu0 %v2576
    %v2612 = vpop.f32.mrb[0].mxu0
    %v2613 = vadd.f32 0.0, %v2612
    %v2614 = vpop.f32.mrb[0].mxu0
    %v2615 = vpop.f32.mrb[0].mxu0
    %v2616 = vpop.f32.mrb[0].mxu0
    %2617 = vdwg.mxu0
    %v2618 = vadd.f32 %v2543, %v2613
    %v2619 = vld [vmem:[%s4 + $0x100] sm:$0xf]
    %v2620 = vld [vmem:[%s4 + $0x104] sm:$0xf]
    %v2621 = vld [vmem:[%s4 + $0x108] sm:$0xf]
    %v2622 = vld [vmem:[%s4 + $0x10c] sm:$0xf]
    %v2631 = vunpack.c.l.b16 %v1375
    %v2632 = vunpack.c.l.b16 %v1377
    %v2633 = vunpack.c.l.b16 %v1379
    %v2634 = vunpack.c.l.b16 %v1381
    %v2635 = vunpack.c.l.b16 %v1383
    %v2636 = vunpack.c.l.b16 %v1385
    %v2637 = vunpack.c.l.b16 %v1387
    %v2638 = vunpack.c.l.b16 %v1389
    %v2639 = vrot.slane %v2632, 7
    %v2640 = vsel %vm1415, %v2639, %v2631
    %v2641 = vrot.slane %v2633, 6
    %v2642 = vsel %vm1418, %v2641, %v2640
    %v2643 = vrot.slane %v2634, 5
    %v2644 = vsel %vm1421, %v2643, %v2642
    %v2645 = vrot.slane %v2635, 4
    %v2646 = vsel %vm1424, %v2645, %v2644
    %v2647 = vrot.slane %v2636, 3
    %v2648 = vsel %vm1427, %v2647, %v2646
    %v2649 = vrot.slane %v2637, 2
    %v2650 = vsel %vm1430, %v2649, %v2648
    %v2651 = vrot.slane %v2638, 1
    %v2652 = vsel %vm1433, %v2651, %v2650
    %v2653 = vpack.c.b16 %v2652, %v2652
    %v2658 = vunpack.c.l.b16 %v2619
    %v2659 = vunpack.c.l.b16 %v2620
    %v2660 = vunpack.c.l.b16 %v2621
    %v2661 = vunpack.c.l.b16 %v2622
    %v2662 = vpack.c.b16 %v2659, %v2658
    %v2663 = vpack.c.b16 %v2661, %v2660
    %v2667 = vsel %vm848, %v2653, 0
    %2669 = vmatprep.subr.bf16.mxu0 0
    %2670 = vmatpush1.bf16.msra.mxu0 %v2662
    %2671 = vmatprep.subr.bf16.mxu0 0
    %2672 = vmatpush1.bf16.msra.mxu0 %v2663
    %2673 = vmatprep.subr.bf16.mxu0 0
    %2674 = vmatpush1.bf16.msra.mxu0 0
    %2675 = vmatprep.subr.bf16.mxu0 0
    %2676 = vmatpush1.bf16.msra.mxu0 0
    %2677 = vmatprep.subr.bf16.mxu0 0
    %2678 = vmatpush1.bf16.msra.mxu0 0
    %2679 = vmatprep.subr.bf16.mxu0 0
    %2680 = vmatpush1.bf16.msra.mxu0 0
    %2681 = vmatprep.subr.bf16.mxu0 0
    %2682 = vmatpush1.bf16.msra.mxu0 0
    %2683 = vmatprep.subr.bf16.mxu0 0
    %2684 = vmatpush1.bf16.msra.mxu0 0
    %2685 = vmatprep.subr.bf16.mxu0 0
    %2686 = vmatpush1.bf16.msra.mxu0 0
    %2687 = vmatprep.subr.bf16.mxu0 0
    %2688 = vmatpush1.bf16.msra.mxu0 0
    %2689 = vmatprep.subr.bf16.mxu0 0
    %2690 = vmatpush1.bf16.msra.mxu0 0
    %2691 = vmatprep.subr.bf16.mxu0 0
    %2692 = vmatpush1.bf16.msra.mxu0 0
    %2693 = vmatprep.subr.bf16.mxu0 0
    %2694 = vmatpush1.bf16.msra.mxu0 0
    %2695 = vmatprep.subr.bf16.mxu0 0
    %2696 = vmatpush1.bf16.msra.mxu0 0
    %2697 = vmatprep.subr.bf16.mxu0 0
    %2698 = vmatpush1.bf16.msra.mxu0 0
    %2699 = vmatprep.subr.bf16.mxu0 0
    %2700 = vmatpush1.bf16.msra.mxu0 0
    %2701 = vmatprep.mubr.bf16.mxu0 0
    %2702 = vmatmul.mubr.bf16.gmra.mrb[0].mxu0 %v2667
    %v2703 = vpop.f32.mrb[0].mxu0
    %v2704 = vadd.f32 0.0, %v2703
    %v2705 = vpop.f32.mrb[0].mxu0
    %v2706 = vpop.f32.mrb[0].mxu0
    %v2707 = vpop.f32.mrb[0].mxu0
    %2708 = vdwg.mxu0
    %v2709 = vadd.f32 %v2618, %v2704
    %v2710 = vld [vmem:[%s4 + $0x110] sm:$0xf]
    %v2711 = vld [vmem:[%s4 + $0x114] sm:$0xf]
    %v2712 = vld [vmem:[%s4 + $0x118] sm:$0xf]
    %v2713 = vld [vmem:[%s4 + $0x11c] sm:$0xf]
    %v2714 = vrot.slane %v2631, 1
    %v2715 = vsel %vm1415, %v2632, %v2714
    %v2716 = vrot.slane %v2633, 7
    %v2717 = vsel %vm1418, %v2716, %v2715
    %v2718 = vrot.slane %v2634, 6
    %v2719 = vsel %vm1421, %v2718, %v2717
    %v2720 = vrot.slane %v2635, 5
    %v2721 = vsel %vm1424, %v2720, %v2719
    %v2722 = vrot.slane %v2636, 4
    %v2723 = vsel %vm1427, %v2722, %v2721
    %v2724 = vrot.slane %v2637, 3
    %v2725 = vsel %vm1430, %v2724, %v2723
    %v2726 = vrot.slane %v2638, 2
    %v2727 = vsel %vm1433, %v2726, %v2725
    %v2728 = vpack.c.b16 %v2727, %v2727
    %v2733 = vunpack.c.l.b16 %v2710
    %v2734 = vunpack.c.l.b16 %v2711
    %v2735 = vunpack.c.l.b16 %v2712
    %v2736 = vunpack.c.l.b16 %v2713
    %v2737 = vpack.c.b16 %v2734, %v2733
    %v2738 = vpack.c.b16 %v2736, %v2735
    %v2742 = vsel %vm848, %v2728, 0
    %2744 = vmatprep.subr.bf16.mxu0 0
    %2745 = vmatpush1.bf16.msra.mxu0 %v2737
    %2746 = vmatprep.subr.bf16.mxu0 0
    %2747 = vmatpush1.bf16.msra.mxu0 %v2738
    %2748 = vmatprep.subr.bf16.mxu0 0
    %2749 = vmatpush1.bf16.msra.mxu0 0
    %2750 = vmatprep.subr.bf16.mxu0 0
    %2751 = vmatpush1.bf16.msra.mxu0 0
    %2752 = vmatprep.subr.bf16.mxu0 0
    %2753 = vmatpush1.bf16.msra.mxu0 0
    %2754 = vmatprep.subr.bf16.mxu0 0
    %2755 = vmatpush1.bf16.msra.mxu0 0
    %2756 = vmatprep.subr.bf16.mxu0 0
    %2757 = vmatpush1.bf16.msra.mxu0 0
    %2758 = vmatprep.subr.bf16.mxu0 0
    %2759 = vmatpush1.bf16.msra.mxu0 0
    %2760 = vmatprep.subr.bf16.mxu0 0
    %2761 = vmatpush1.bf16.msra.mxu0 0
    %2762 = vmatprep.subr.bf16.mxu0 0
    %2763 = vmatpush1.bf16.msra.mxu0 0
    %2764 = vmatprep.subr.bf16.mxu0 0
    %2765 = vmatpush1.bf16.msra.mxu0 0
    %2766 = vmatprep.subr.bf16.mxu0 0
    %2767 = vmatpush1.bf16.msra.mxu0 0
    %2768 = vmatprep.subr.bf16.mxu0 0
    %2769 = vmatpush1.bf16.msra.mxu0 0
    %2770 = vmatprep.subr.bf16.mxu0 0
    %2771 = vmatpush1.bf16.msra.mxu0 0
    %2772 = vmatprep.subr.bf16.mxu0 0
    %2773 = vmatpush1.bf16.msra.mxu0 0
    %2774 = vmatprep.subr.bf16.mxu0 0
    %2775 = vmatpush1.bf16.msra.mxu0 0
    %2776 = vmatprep.mubr.bf16.mxu0 0
    %2777 = vmatmul.mubr.bf16.gmra.mrb[0].mxu0 %v2742
    %v2778 = vpop.f32.mrb[0].mxu0
    %v2779 = vadd.f32 0.0, %v2778
    %v2780 = vpop.f32.mrb[0].mxu0
    %v2781 = vpop.f32.mrb[0].mxu0
    %v2782 = vpop.f32.mrb[0].mxu0
    %2783 = vdwg.mxu0
    %v2784 = vadd.f32 %v2709, %v2779
    %v2785 = vld [vmem:[%s4 + $0x120] sm:$0xf]
    %v2786 = vld [vmem:[%s4 + $0x124] sm:$0xf]
    %v2787 = vld [vmem:[%s4 + $0x128] sm:$0xf]
    %v2788 = vld [vmem:[%s4 + $0x12c] sm:$0xf]
    %v2789 = vrot.slane %v2631, 2
    %v2790 = vrot.slane %v2632, 1
    %v2791 = vsel %vm1415, %v2790, %v2789
    %v2792 = vsel %vm1418, %v2633, %v2791
    %v2793 = vrot.slane %v2634, 7
    %v2794 = vsel %vm1421, %v2793, %v2792
    %v2795 = vrot.slane %v2635, 6
    %v2796 = vsel %vm1424, %v2795, %v2794
    %v2797 = vrot.slane %v2636, 5
    %v2798 = vsel %vm1427, %v2797, %v2796
    %v2799 = vrot.slane %v2637, 4
    %v2800 = vsel %vm1430, %v2799, %v2798
    %v2801 = vrot.slane %v2638, 3
    %v2802 = vsel %vm1433, %v2801, %v2800
    %v2803 = vpack.c.b16 %v2802, %v2802
    %v2808 = vunpack.c.l.b16 %v2785
    %v2809 = vunpack.c.l.b16 %v2786
    %v2810 = vunpack.c.l.b16 %v2787
    %v2811 = vunpack.c.l.b16 %v2788
    %v2812 = vpack.c.b16 %v2809, %v2808
    %v2813 = vpack.c.b16 %v2811, %v2810
    %v2817 = vsel %vm848, %v2803, 0
    %2819 = vmatprep.subr.bf16.mxu0 0
    %2820 = vmatpush1.bf16.msra.mxu0 %v2812
    %2821 = vmatprep.subr.bf16.mxu0 0
    %2822 = vmatpush1.bf16.msra.mxu0 %v2813
    %2823 = vmatprep.subr.bf16.mxu0 0
    %2824 = vmatpush1.bf16.msra.mxu0 0
    %2825 = vmatprep.subr.bf16.mxu0 0
    %2826 = vmatpush1.bf16.msra.mxu0 0
    %2827 = vmatprep.subr.bf16.mxu0 0
    %2828 = vmatpush1.bf16.msra.mxu0 0
    %2829 = vmatprep.subr.bf16.mxu0 0
    %2830 = vmatpush1.bf16.msra.mxu0 0
    %2831 = vmatprep.subr.bf16.mxu0 0
    %2832 = vmatpush1.bf16.msra.mxu0 0
    %2833 = vmatprep.subr.bf16.mxu0 0
    %2834 = vmatpush1.bf16.msra.mxu0 0
    %2835 = vmatprep.subr.bf16.mxu0 0
    %2836 = vmatpush1.bf16.msra.mxu0 0
    %2837 = vmatprep.subr.bf16.mxu0 0
    %2838 = vmatpush1.bf16.msra.mxu0 0
    %2839 = vmatprep.subr.bf16.mxu0 0
    %2840 = vmatpush1.bf16.msra.mxu0 0
    %2841 = vmatprep.subr.bf16.mxu0 0
    %2842 = vmatpush1.bf16.msra.mxu0 0
    %2843 = vmatprep.subr.bf16.mxu0 0
    %2844 = vmatpush1.bf16.msra.mxu0 0
    %2845 = vmatprep.subr.bf16.mxu0 0
    %2846 = vmatpush1.bf16.msra.mxu0 0
    %2847 = vmatprep.subr.bf16.mxu0 0
    %2848 = vmatpush1.bf16.msra.mxu0 0
    %2849 = vmatprep.subr.bf16.mxu0 0
    %2850 = vmatpush1.bf16.msra.mxu0 0
    %2851 = vmatprep.mubr.bf16.mxu0 0
    %2852 = vmatmul.mubr.bf16.gmra.mrb[0].mxu0 %v2817
    %v2853 = vpop.f32.mrb[0].mxu0
    %v2854 = vadd.f32 0.0, %v2853
    %v2855 = vpop.f32.mrb[0].mxu0
    %v2856 = vpop.f32.mrb[0].mxu0
    %v2857 = vpop.f32.mrb[0].mxu0
    %2858 = vdwg.mxu0
    %v2859 = vadd.f32 %v2784, %v2854
    %v2860 = vld [vmem:[%s4 + $0x130] sm:$0xf]
    %v2861 = vld [vmem:[%s4 + $0x134] sm:$0xf]
    %v2862 = vld [vmem:[%s4 + $0x138] sm:$0xf]
    %v2863 = vld [vmem:[%s4 + $0x13c] sm:$0xf]
    %v2864 = vrot.slane %v2631, 3
    %v2865 = vrot.slane %v2632, 2
    %v2866 = vsel %vm1415, %v2865, %v2864
    %v2867 = vrot.slane %v2633, 1
    %v2868 = vsel %vm1418, %v2867, %v2866
    %v2869 = vsel %vm1421, %v2634, %v2868
    %v2870 = vrot.slane %v2635, 7
    %v2871 = vsel %vm1424, %v2870, %v2869
    %v2872 = vrot.slane %v2636, 6
    %v2873 = vsel %vm1427, %v2872, %v2871
    %v2874 = vrot.slane %v2637, 5
    %v2875 = vsel %vm1430, %v2874, %v2873
    %v2876 = vrot.slane %v2638, 4
    %v2877 = vsel %vm1433, %v2876, %v2875
    %v2878 = vpack.c.b16 %v2877, %v2877
    %v2883 = vunpack.c.l.b16 %v2860
    %v2884 = vunpack.c.l.b16 %v2861
    %v2885 = vunpack.c.l.b16 %v2862
    %v2886 = vunpack.c.l.b16 %v2863
    %v2887 = vpack.c.b16 %v2884, %v2883
    %v2888 = vpack.c.b16 %v2886, %v2885
    %v2892 = vsel %vm848, %v2878, 0
    %2894 = vmatprep.subr.bf16.mxu0 0
    %2895 = vmatpush1.bf16.msra.mxu0 %v2887
    %2896 = vmatprep.subr.bf16.mxu0 0
    %2897 = vmatpush1.bf16.msra.mxu0 %v2888
    %2898 = vmatprep.subr.bf16.mxu0 0
    %2899 = vmatpush1.bf16.msra.mxu0 0
    %2900 = vmatprep.subr.bf16.mxu0 0
    %2901 = vmatpush1.bf16.msra.mxu0 0
    %2902 = vmatprep.subr.bf16.mxu0 0
    %2903 = vmatpush1.bf16.msra.mxu0 0
    %2904 = vmatprep.subr.bf16.mxu0 0
    %2905 = vmatpush1.bf16.msra.mxu0 0
    %2906 = vmatprep.subr.bf16.mxu0 0
    %2907 = vmatpush1.bf16.msra.mxu0 0
    %2908 = vmatprep.subr.bf16.mxu0 0
    %2909 = vmatpush1.bf16.msra.mxu0 0
    %2910 = vmatprep.subr.bf16.mxu0 0
    %2911 = vmatpush1.bf16.msra.mxu0 0
    %2912 = vmatprep.subr.bf16.mxu0 0
    %2913 = vmatpush1.bf16.msra.mxu0 0
    %2914 = vmatprep.subr.bf16.mxu0 0
    %2915 = vmatpush1.bf16.msra.mxu0 0
    %2916 = vmatprep.subr.bf16.mxu0 0
    %2917 = vmatpush1.bf16.msra.mxu0 0
    %2918 = vmatprep.subr.bf16.mxu0 0
    %2919 = vmatpush1.bf16.msra.mxu0 0
    %2920 = vmatprep.subr.bf16.mxu0 0
    %2921 = vmatpush1.bf16.msra.mxu0 0
    %2922 = vmatprep.subr.bf16.mxu0 0
    %2923 = vmatpush1.bf16.msra.mxu0 0
    %2924 = vmatprep.subr.bf16.mxu0 0
    %2925 = vmatpush1.bf16.msra.mxu0 0
    %2926 = vmatprep.mubr.bf16.mxu0 0
    %2927 = vmatmul.mubr.bf16.gmra.mrb[0].mxu0 %v2892
    %v2928 = vpop.f32.mrb[0].mxu0
    %v2929 = vadd.f32 0.0, %v2928
    %v2930 = vpop.f32.mrb[0].mxu0
    %v2931 = vpop.f32.mrb[0].mxu0
    %v2932 = vpop.f32.mrb[0].mxu0
    %2933 = vdwg.mxu0
    %v2934 = vadd.f32 %v2859, %v2929
    %v2935 = vld [vmem:[%s4 + $0x140] sm:$0xf]
    %v2936 = vld [vmem:[%s4 + $0x144] sm:$0xf]
    %v2937 = vld [vmem:[%s4 + $0x148] sm:$0xf]
    %v2938 = vld [vmem:[%s4 + $0x14c] sm:$0xf]
    %v2939 = vrot.slane %v2631, 4
    %v2940 = vrot.slane %v2632, 3
    %v2941 = vsel %vm1415, %v2940, %v2939
    %v2942 = vrot.slane %v2633, 2
    %v2943 = vsel %vm1418, %v2942, %v2941
    %v2944 = vrot.slane %v2634, 1
    %v2945 = vsel %vm1421, %v2944, %v2943
    %v2946 = vsel %vm1424, %v2635, %v2945
    %v2947 = vrot.slane %v2636, 7
    %v2948 = vsel %vm1427, %v2947, %v2946
    %v2949 = vrot.slane %v2637, 6
    %v2950 = vsel %vm1430, %v2949, %v2948
    %v2951 = vrot.slane %v2638, 5
    %v2952 = vsel %vm1433, %v2951, %v2950
    %v2953 = vpack.c.b16 %v2952, %v2952
    %v2958 = vunpack.c.l.b16 %v2935
    %v2959 = vunpack.c.l.b16 %v2936
    %v2960 = vunpack.c.l.b16 %v2937
    %v2961 = vunpack.c.l.b16 %v2938
    %v2962 = vpack.c.b16 %v2959, %v2958
    %v2963 = vpack.c.b16 %v2961, %v2960
    %v2967 = vsel %vm848, %v2953, 0
    %2969 = vmatprep.subr.bf16.mxu0 0
    %2970 = vmatpush1.bf16.msra.mxu0 %v2962
    %2971 = vmatprep.subr.bf16.mxu0 0
    %2972 = vmatpush1.bf16.msra.mxu0 %v2963
    %2973 = vmatprep.subr.bf16.mxu0 0
    %2974 = vmatpush1.bf16.msra.mxu0 0
    %2975 = vmatprep.subr.bf16.mxu0 0
    %2976 = vmatpush1.bf16.msra.mxu0 0
    %2977 = vmatprep.subr.bf16.mxu0 0
    %2978 = vmatpush1.bf16.msra.mxu0 0
    %2979 = vmatprep.subr.bf16.mxu0 0
    %2980 = vmatpush1.bf16.msra.mxu0 0
    %2981 = vmatprep.subr.bf16.mxu0 0
    %2982 = vmatpush1.bf16.msra.mxu0 0
    %2983 = vmatprep.subr.bf16.mxu0 0
    %2984 = vmatpush1.bf16.msra.mxu0 0
    %2985 = vmatprep.subr.bf16.mxu0 0
    %2986 = vmatpush1.bf16.msra.mxu0 0
    %2987 = vmatprep.subr.bf16.mxu0 0
    %2988 = vmatpush1.bf16.msra.mxu0 0
    %2989 = vmatprep.subr.bf16.mxu0 0
    %2990 = vmatpush1.bf16.msra.mxu0 0
    %2991 = vmatprep.subr.bf16.mxu0 0
    %2992 = vmatpush1.bf16.msra.mxu0 0
    %2993 = vmatprep.subr.bf16.mxu0 0
    %2994 = vmatpush1.bf16.msra.mxu0 0
    %2995 = vmatprep.subr.bf16.mxu0 0
    %2996 = vmatpush1.bf16.msra.mxu0 0
    %2997 = vmatprep.subr.bf16.mxu0 0
    %2998 = vmatpush1.bf16.msra.mxu0 0
    %2999 = vmatprep.subr.bf16.mxu0 0
    %3000 = vmatpush1.bf16.msra.mxu0 0
    %3001 = vmatprep.mubr.bf16.mxu0 0
    %3002 = vmatmul.mubr.bf16.gmra.mrb[0].mxu0 %v2967
    %v3003 = vpop.f32.mrb[0].mxu0
    %v3004 = vadd.f32 0.0, %v3003
    %v3005 = vpop.f32.mrb[0].mxu0
    %v3006 = vpop.f32.mrb[0].mxu0
    %v3007 = vpop.f32.mrb[0].mxu0
    %3008 = vdwg.mxu0
    %v3009 = vadd.f32 %v2934, %v3004
    %v3010 = vld [vmem:[%s4 + $0x150] sm:$0xf]
    %v3011 = vld [vmem:[%s4 + $0x154] sm:$0xf]
    %v3012 = vld [vmem:[%s4 + $0x158] sm:$0xf]
    %v3013 = vld [vmem:[%s4 + $0x15c] sm:$0xf]
    %v3014 = vrot.slane %v2631, 5
    %v3015 = vrot.slane %v2632, 4
    %v3016 = vsel %vm1415, %v3015, %v3014
    %v3017 = vrot.slane %v2633, 3
    %v3018 = vsel %vm1418, %v3017, %v3016
    %v3019 = vrot.slane %v2634, 2
    %v3020 = vsel %vm1421, %v3019, %v3018
    %v3021 = vrot.slane %v2635, 1
    %v3022 = vsel %vm1424, %v3021, %v3020
    %v3023 = vsel %vm1427, %v2636, %v3022
    %v3024 = vrot.slane %v2637, 7
    %v3025 = vsel %vm1430, %v3024, %v3023
    %v3026 = vrot.slane %v2638, 6
    %v3027 = vsel %vm1433, %v3026, %v3025
    %v3028 = vpack.c.b16 %v3027, %v3027
    %v3033 = vunpack.c.l.b16 %v3010
    %v3034 = vunpack.c.l.b16 %v3011
    %v3035 = vunpack.c.l.b16 %v3012
    %v3036 = vunpack.c.l.b16 %v3013
    %v3037 = vpack.c.b16 %v3034, %v3033
    %v3038 = vpack.c.b16 %v3036, %v3035
    %v3042 = vsel %vm848, %v3028, 0
    %3044 = vmatprep.subr.bf16.mxu0 0
    %3045 = vmatpush1.bf16.msra.mxu0 %v3037
    %3046 = vmatprep.subr.bf16.mxu0 0
    %3047 = vmatpush1.bf16.msra.mxu0 %v3038
    %3048 = vmatprep.subr.bf16.mxu0 0
    %3049 = vmatpush1.bf16.msra.mxu0 0
    %3050 = vmatprep.subr.bf16.mxu0 0
    %3051 = vmatpush1.bf16.msra.mxu0 0
    %3052 = vmatprep.subr.bf16.mxu0 0
    %3053 = vmatpush1.bf16.msra.mxu0 0
    %3054 = vmatprep.subr.bf16.mxu0 0
    %3055 = vmatpush1.bf16.msra.mxu0 0
    %3056 = vmatprep.subr.bf16.mxu0 0
    %3057 = vmatpush1.bf16.msra.mxu0 0
    %3058 = vmatprep.subr.bf16.mxu0 0
    %3059 = vmatpush1.bf16.msra.mxu0 0
    %3060 = vmatprep.subr.bf16.mxu0 0
    %3061 = vmatpush1.bf16.msra.mxu0 0
    %3062 = vmatprep.subr.bf16.mxu0 0
    %3063 = vmatpush1.bf16.msra.mxu0 0
    %3064 = vmatprep.subr.bf16.mxu0 0
    %3065 = vmatpush1.bf16.msra.mxu0 0
    %3066 = vmatprep.subr.bf16.mxu0 0
    %3067 = vmatpush1.bf16.msra.mxu0 0
    %3068 = vmatprep.subr.bf16.mxu0 0
    %3069 = vmatpush1.bf16.msra.mxu0 0
    %3070 = vmatprep.subr.bf16.mxu0 0
    %3071 = vmatpush1.bf16.msra.mxu0 0
    %3072 = vmatprep.subr.bf16.mxu0 0
    %3073 = vmatpush1.bf16.msra.mxu0 0
    %3074 = vmatprep.subr.bf16.mxu0 0
    %3075 = vmatpush1.bf16.msra.mxu0 0
    %3076 = vmatprep.mubr.bf16.mxu0 0
    %3077 = vmatmul.mubr.bf16.gmra.mrb[0].mxu0 %v3042
    %v3078 = vpop.f32.mrb[0].mxu0
    %v3079 = vadd.f32 0.0, %v3078
    %v3080 = vpop.f32.mrb[0].mxu0
    %v3081 = vpop.f32.mrb[0].mxu0
    %v3082 = vpop.f32.mrb[0].mxu0
    %3083 = vdwg.mxu0
    %v3084 = vadd.f32 %v3009, %v3079
    %v3085 = vld [vmem:[%s4 + $0x160] sm:$0xf]
    %v3086 = vld [vmem:[%s4 + $0x164] sm:$0xf]
    %v3087 = vld [vmem:[%s4 + $0x168] sm:$0xf]
    %v3088 = vld [vmem:[%s4 + $0x16c] sm:$0xf]
    %v3089 = vrot.slane %v2631, 6
    %v3090 = vrot.slane %v2632, 5
    %v3091 = vsel %vm1415, %v3090, %v3089
    %v3092 = vrot.slane %v2633, 4
    %v3093 = vsel %vm1418, %v3092, %v3091
    %v3094 = vrot.slane %v2634, 3
    %v3095 = vsel %vm1421, %v3094, %v3093
    %v3096 = vrot.slane %v2635, 2
    %v3097 = vsel %vm1424, %v3096, %v3095
    %v3098 = vrot.slane %v2636, 1
    %v3099 = vsel %vm1427, %v3098, %v3097
    %v3100 = vsel %vm1430, %v2637, %v3099
    %v3101 = vrot.slane %v2638, 7
    %v3102 = vsel %vm1433, %v3101, %v3100
    %v3103 = vpack.c.b16 %v3102, %v3102
    %v3108 = vunpack.c.l.b16 %v3085
    %v3109 = vunpack.c.l.b16 %v3086
    %v3110 = vunpack.c.l.b16 %v3087
    %v3111 = vunpack.c.l.b16 %v3088
    %v3112 = vpack.c.b16 %v3109, %v3108
    %v3113 = vpack.c.b16 %v3111, %v3110
    %v3117 = vsel %vm848, %v3103, 0
    %3119 = vmatprep.subr.bf16.mxu0 0
    %3120 = vmatpush1.bf16.msra.mxu0 %v3112
    %3121 = vmatprep.subr.bf16.mxu0 0
    %3122 = vmatpush1.bf16.msra.mxu0 %v3113
    %3123 = vmatprep.subr.bf16.mxu0 0
    %3124 = vmatpush1.bf16.msra.mxu0 0
    %3125 = vmatprep.subr.bf16.mxu0 0
    %3126 = vmatpush1.bf16.msra.mxu0 0
    %3127 = vmatprep.subr.bf16.mxu0 0
    %3128 = vmatpush1.bf16.msra.mxu0 0
    %3129 = vmatprep.subr.bf16.mxu0 0
    %3130 = vmatpush1.bf16.msra.mxu0 0
    %3131 = vmatprep.subr.bf16.mxu0 0
    %3132 = vmatpush1.bf16.msra.mxu0 0
    %3133 = vmatprep.subr.bf16.mxu0 0
    %3134 = vmatpush1.bf16.msra.mxu0 0
    %3135 = vmatprep.subr.bf16.mxu0 0
    %3136 = vmatpush1.bf16.msra.mxu0 0
    %3137 = vmatprep.subr.bf16.mxu0 0
    %3138 = vmatpush1.bf16.msra.mxu0 0
    %3139 = vmatprep.subr.bf16.mxu0 0
    %3140 = vmatpush1.bf16.msra.mxu0 0
    %3141 = vmatprep.subr.bf16.mxu0 0
    %3142 = vmatpush1.bf16.msra.mxu0 0
    %3143 = vmatprep.subr.bf16.mxu0 0
    %3144 = vmatpush1.bf16.msra.mxu0 0
    %3145 = vmatprep.subr.bf16.mxu0 0
    %3146 = vmatpush1.bf16.msra.mxu0 0
    %3147 = vmatprep.subr.bf16.mxu0 0
    %3148 = vmatpush1.bf16.msra.mxu0 0
    %3149 = vmatprep.subr.bf16.mxu0 0
    %3150 = vmatpush1.bf16.msra.mxu0 0
    %3151 = vmatprep.mubr.bf16.mxu0 0
    %3152 = vmatmul.mubr.bf16.gmra.mrb[0].mxu0 %v3117
    %v3153 = vpop.f32.mrb[0].mxu0
    %v3154 = vadd.f32 0.0, %v3153
    %v3155 = vpop.f32.mrb[0].mxu0
    %v3156 = vpop.f32.mrb[0].mxu0
    %v3157 = vpop.f32.mrb[0].mxu0
    %3158 = vdwg.mxu0
    %v3159 = vadd.f32 %v3084, %v3154
    %v3160 = vld [vmem:[%s4 + $0x170] sm:$0xf]
    %v3161 = vld [vmem:[%s4 + $0x174] sm:$0xf]
    %v3162 = vld [vmem:[%s4 + $0x178] sm:$0xf]
    %v3163 = vld [vmem:[%s4 + $0x17c] sm:$0xf]
    %v3164 = vrot.slane %v2631, 7
    %v3165 = vrot.slane %v2632, 6
    %v3166 = vsel %vm1415, %v3165, %v3164
    %v3167 = vrot.slane %v2633, 5
    %v3168 = vsel %vm1418, %v3167, %v3166
    %v3169 = vrot.slane %v2634, 4
    %v3170 = vsel %vm1421, %v3169, %v3168
    %v3171 = vrot.slane %v2635, 3
    %v3172 = vsel %vm1424, %v3171, %v3170
    %v3173 = vrot.slane %v2636, 2
    %v3174 = vsel %vm1427, %v3173, %v3172
    %v3175 = vrot.slane %v2637, 1
    %v3176 = vsel %vm1430, %v3175, %v3174
    %v3177 = vsel %vm1433, %v2638, %v3176
    %v3178 = vpack.c.b16 %v3177, %v3177
    %v3183 = vunpack.c.l.b16 %v3160
    %v3184 = vunpack.c.l.b16 %v3161
    %v3185 = vunpack.c.l.b16 %v3162
    %v3186 = vunpack.c.l.b16 %v3163
    %v3187 = vpack.c.b16 %v3184, %v3183
    %v3188 = vpack.c.b16 %v3186, %v3185
    %v3192 = vsel %vm848, %v3178, 0
    %3194 = vmatprep.subr.bf16.mxu0 0
    %3195 = vmatpush1.bf16.msra.mxu0 %v3187
    %3196 = vmatprep.subr.bf16.mxu0 0
    %3197 = vmatpush1.bf16.msra.mxu0 %v3188
    %3198 = vmatprep.subr.bf16.mxu0 0
    %3199 = vmatpush1.bf16.msra.mxu0 0
    %3200 = vmatprep.subr.bf16.mxu0 0
    %3201 = vmatpush1.bf16.msra.mxu0 0
    %3202 = vmatprep.subr.bf16.mxu0 0
    %3203 = vmatpush1.bf16.msra.mxu0 0
    %3204 = vmatprep.subr.bf16.mxu0 0
    %3205 = vmatpush1.bf16.msra.mxu0 0
    %3206 = vmatprep.subr.bf16.mxu0 0
    %3207 = vmatpush1.bf16.msra.mxu0 0
    %3208 = vmatprep.subr.bf16.mxu0 0
    %3209 = vmatpush1.bf16.msra.mxu0 0
    %3210 = vmatprep.subr.bf16.mxu0 0
    %3211 = vmatpush1.bf16.msra.mxu0 0
    %3212 = vmatprep.subr.bf16.mxu0 0
    %3213 = vmatpush1.bf16.msra.mxu0 0
    %3214 = vmatprep.subr.bf16.mxu0 0
    %3215 = vmatpush1.bf16.msra.mxu0 0
    %3216 = vmatprep.subr.bf16.mxu0 0
    %3217 = vmatpush1.bf16.msra.mxu0 0
    %3218 = vmatprep.subr.bf16.mxu0 0
    %3219 = vmatpush1.bf16.msra.mxu0 0
    %3220 = vmatprep.subr.bf16.mxu0 0
    %3221 = vmatpush1.bf16.msra.mxu0 0
    %3222 = vmatprep.subr.bf16.mxu0 0
    %3223 = vmatpush1.bf16.msra.mxu0 0
    %3224 = vmatprep.subr.bf16.mxu0 0
    %3225 = vmatpush1.bf16.msra.mxu0 0
    %3226 = vmatprep.mubr.bf16.mxu0 0
    %3227 = vmatmul.mubr.bf16.gmra.mrb[0].mxu0 %v3192
    %v3228 = vpop.f32.mrb[0].mxu0
    %v3229 = vadd.f32 0.0, %v3228
    %v3230 = vpop.f32.mrb[0].mxu0
    %v3231 = vpop.f32.mrb[0].mxu0
    %v3232 = vpop.f32.mrb[0].mxu0
    %3233 = vdwg.mxu0
    %v3234 = vadd.f32 %v3159, %v3229
    %v3235 = vld [vmem:[%s4 + $0x180] sm:$0xf]
    %v3236 = vld [vmem:[%s4 + $0x184] sm:$0xf]
    %v3237 = vld [vmem:[%s4 + $0x188] sm:$0xf]
    %v3238 = vld [vmem:[%s4 + $0x18c] sm:$0xf]
    %v3239 = vunpack.c.h.b16 %v1375
    %v3240 = vunpack.c.h.b16 %v1377
    %v3241 = vunpack.c.h.b16 %v1379
    %v3242 = vunpack.c.h.b16 %v1381
    %v3243 = vunpack.c.h.b16 %v1383
    %v3244 = vunpack.c.h.b16 %v1385
    %v3245 = vunpack.c.h.b16 %v1387
    %v3246 = vunpack.c.h.b16 %v1389
    %v3247 = vrot.slane %v3240, 7
    %v3248 = vsel %vm1415, %v3247, %v3239
    %v3249 = vrot.slane %v3241, 6
    %v3250 = vsel %vm1418, %v3249, %v3248
    %v3251 = vrot.slane %v3242, 5
    %v3252 = vsel %vm1421, %v3251, %v3250
    %v3253 = vrot.slane %v3243, 4
    %v3254 = vsel %vm1424, %v3253, %v3252
    %v3255 = vrot.slane %v3244, 3
    %v3256 = vsel %vm1427, %v3255, %v3254
    %v3257 = vrot.slane %v3245, 2
    %v3258 = vsel %vm1430, %v3257, %v3256
    %v3259 = vrot.slane %v3246, 1
    %v3260 = vsel %vm1433, %v3259, %v3258
    %v3261 = vpack.c.b16 %v3260, %v3260
    %v3266 = vunpack.c.l.b16 %v3235
    %v3267 = vunpack.c.l.b16 %v3236
    %v3268 = vunpack.c.l.b16 %v3237
    %v3269 = vunpack.c.l.b16 %v3238
    %v3270 = vpack.c.b16 %v3267, %v3266
    %v3271 = vpack.c.b16 %v3269, %v3268
    %v3275 = vsel %vm848, %v3261, 0
    %3277 = vmatprep.subr.bf16.mxu0 0
    %3278 = vmatpush1.bf16.msra.mxu0 %v3270
    %3279 = vmatprep.subr.bf16.mxu0 0
    %3280 = vmatpush1.bf16.msra.mxu0 %v3271
    %3281 = vmatprep.subr.bf16.mxu0 0
    %3282 = vmatpush1.bf16.msra.mxu0 0
    %3283 = vmatprep.subr.bf16.mxu0 0
    %3284 = vmatpush1.bf16.msra.mxu0 0
    %3285 = vmatprep.subr.bf16.mxu0 0
    %3286 = vmatpush1.bf16.msra.mxu0 0
    %3287 = vmatprep.subr.bf16.mxu0 0
    %3288 = vmatpush1.bf16.msra.mxu0 0
    %3289 = vmatprep.subr.bf16.mxu0 0
    %3290 = vmatpush1.bf16.msra.mxu0 0
    %3291 = vmatprep.subr.bf16.mxu0 0
    %3292 = vmatpush1.bf16.msra.mxu0 0
    %3293 = vmatprep.subr.bf16.mxu0 0
    %3294 = vmatpush1.bf16.msra.mxu0 0
    %3295 = vmatprep.subr.bf16.mxu0 0
    %3296 = vmatpush1.bf16.msra.mxu0 0
    %3297 = vmatprep.subr.bf16.mxu0 0
    %3298 = vmatpush1.bf16.msra.mxu0 0
    %3299 = vmatprep.subr.bf16.mxu0 0
    %3300 = vmatpush1.bf16.msra.mxu0 0
    %3301 = vmatprep.subr.bf16.mxu0 0
    %3302 = vmatpush1.bf16.msra.mxu0 0
    %3303 = vmatprep.subr.bf16.mxu0 0
    %3304 = vmatpush1.bf16.msra.mxu0 0
    %3305 = vmatprep.subr.bf16.mxu0 0
    %3306 = vmatpush1.bf16.msra.mxu0 0
    %3307 = vmatprep.subr.bf16.mxu0 0
    %3308 = vmatpush1.bf16.msra.mxu0 0
    %3309 = vmatprep.mubr.bf16.mxu0 0
    %3310 = vmatmul.mubr.bf16.gmra.mrb[0].mxu0 %v3275
    %v3311 = vpop.f32.mrb[0].mxu0
    %v3312 = vadd.f32 0.0, %v3311
    %v3313 = vpop.f32.mrb[0].mxu0
    %v3314 = vpop.f32.mrb[0].mxu0
    %v3315 = vpop.f32.mrb[0].mxu0
    %3316 = vdwg.mxu0
    %v3317 = vadd.f32 %v3234, %v3312
    %v3318 = vld [vmem:[%s4 + $0x190] sm:$0xf]
    %v3319 = vld [vmem:[%s4 + $0x194] sm:$0xf]
    %v3320 = vld [vmem:[%s4 + $0x198] sm:$0xf]
    %v3321 = vld [vmem:[%s4 + $0x19c] sm:$0xf]
    %v3322 = vrot.slane %v3239, 1
    %v3323 = vsel %vm1415, %v3240, %v3322
    %v3324 = vrot.slane %v3241, 7
    %v3325 = vsel %vm1418, %v3324, %v3323
    %v3326 = vrot.slane %v3242, 6
    %v3327 = vsel %vm1421, %v3326, %v3325
    %v3328 = vrot.slane %v3243, 5
    %v3329 = vsel %vm1424, %v3328, %v3327
    %v3330 = vrot.slane %v3244, 4
    %v3331 = vsel %vm1427, %v3330, %v3329
    %v3332 = vrot.slane %v3245, 3
    %v3333 = vsel %vm1430, %v3332, %v3331
    %v3334 = vrot.slane %v3246, 2
    %v3335 = vsel %vm1433, %v3334, %v3333
    %v3336 = vpack.c.b16 %v3335, %v3335
    %v3341 = vunpack.c.l.b16 %v3318
    %v3342 = vunpack.c.l.b16 %v3319
    %v3343 = vunpack.c.l.b16 %v3320
    %v3344 = vunpack.c.l.b16 %v3321
    %v3345 = vpack.c.b16 %v3342, %v3341
    %v3346 = vpack.c.b16 %v3344, %v3343
    %v3350 = vsel %vm848, %v3336, 0
    %3352 = vmatprep.subr.bf16.mxu0 0
    %3353 = vmatpush1.bf16.msra.mxu0 %v3345
    %3354 = vmatprep.subr.bf16.mxu0 0
    %3355 = vmatpush1.bf16.msra.mxu0 %v3346
    %3356 = vmatprep.subr.bf16.mxu0 0
    %3357 = vmatpush1.bf16.msra.mxu0 0
    %3358 = vmatprep.subr.bf16.mxu0 0
    %3359 = vmatpush1.bf16.msra.mxu0 0
    %3360 = vmatprep.subr.bf16.mxu0 0
    %3361 = vmatpush1.bf16.msra.mxu0 0
    %3362 = vmatprep.subr.bf16.mxu0 0
    %3363 = vmatpush1.bf16.msra.mxu0 0
    %3364 = vmatprep.subr.bf16.mxu0 0
    %3365 = vmatpush1.bf16.msra.mxu0 0
    %3366 = vmatprep.subr.bf16.mxu0 0
    %3367 = vmatpush1.bf16.msra.mxu0 0
    %3368 = vmatprep.subr.bf16.mxu0 0
    %3369 = vmatpush1.bf16.msra.mxu0 0
    %3370 = vmatprep.subr.bf16.mxu0 0
    %3371 = vmatpush1.bf16.msra.mxu0 0
    %3372 = vmatprep.subr.bf16.mxu0 0
    %3373 = vmatpush1.bf16.msra.mxu0 0
    %3374 = vmatprep.subr.bf16.mxu0 0
    %3375 = vmatpush1.bf16.msra.mxu0 0
    %3376 = vmatprep.subr.bf16.mxu0 0
    %3377 = vmatpush1.bf16.msra.mxu0 0
    %3378 = vmatprep.subr.bf16.mxu0 0
    %3379 = vmatpush1.bf16.msra.mxu0 0
    %3380 = vmatprep.subr.bf16.mxu0 0
    %3381 = vmatpush1.bf16.msra.mxu0 0
    %3382 = vmatprep.subr.bf16.mxu0 0
    %3383 = vmatpush1.bf16.msra.mxu0 0
    %3384 = vmatprep.mubr.bf16.mxu0 0
    %3385 = vmatmul.mubr.bf16.gmra.mrb[0].mxu0 %v3350
    %v3386 = vpop.f32.mrb[0].mxu0
    %v3387 = vadd.f32 0.0, %v3386
    %v3388 = vpop.f32.mrb[0].mxu0
    %v3389 = vpop.f32.mrb[0].mxu0
    %v3390 = vpop.f32.mrb[0].mxu0
    %3391 = vdwg.mxu0
    %v3392 = vadd.f32 %v3317, %v3387
    %v3393 = vld [vmem:[%s4 + $0x1a0] sm:$0xf]
    %v3394 = vld [vmem:[%s4 + $0x1a4] sm:$0xf]
    %v3395 = vld [vmem:[%s4 + $0x1a8] sm:$0xf]
    %v3396 = vld [vmem:[%s4 + $0x1ac] sm:$0xf]
    %v3397 = vrot.slane %v3239, 2
    %v3398 = vrot.slane %v3240, 1
    %v3399 = vsel %vm1415, %v3398, %v3397
    %v3400 = vsel %vm1418, %v3241, %v3399
    %v3401 = vrot.slane %v3242, 7
    %v3402 = vsel %vm1421, %v3401, %v3400
    %v3403 = vrot.slane %v3243, 6
    %v3404 = vsel %vm1424, %v3403, %v3402
    %v3405 = vrot.slane %v3244, 5
    %v3406 = vsel %vm1427, %v3405, %v3404
    %v3407 = vrot.slane %v3245, 4
    %v3408 = vsel %vm1430, %v3407, %v3406
    %v3409 = vrot.slane %v3246, 3
    %v3410 = vsel %vm1433, %v3409, %v3408
    %v3411 = vpack.c.b16 %v3410, %v3410
    %v3416 = vunpack.c.l.b16 %v3393
    %v3417 = vunpack.c.l.b16 %v3394
    %v3418 = vunpack.c.l.b16 %v3395
    %v3419 = vunpack.c.l.b16 %v3396
    %v3420 = vpack.c.b16 %v3417, %v3416
    %v3421 = vpack.c.b16 %v3419, %v3418
    %v3425 = vsel %vm848, %v3411, 0
    %3427 = vmatprep.subr.bf16.mxu0 0
    %3428 = vmatpush1.bf16.msra.mxu0 %v3420
    %3429 = vmatprep.subr.bf16.mxu0 0
    %3430 = vmatpush1.bf16.msra.mxu0 %v3421
    %3431 = vmatprep.subr.bf16.mxu0 0
    %3432 = vmatpush1.bf16.msra.mxu0 0
    %3433 = vmatprep.subr.bf16.mxu0 0
    %3434 = vmatpush1.bf16.msra.mxu0 0
    %3435 = vmatprep.subr.bf16.mxu0 0
    %3436 = vmatpush1.bf16.msra.mxu0 0
    %3437 = vmatprep.subr.bf16.mxu0 0
    %3438 = vmatpush1.bf16.msra.mxu0 0
    %3439 = vmatprep.subr.bf16.mxu0 0
    %3440 = vmatpush1.bf16.msra.mxu0 0
    %3441 = vmatprep.subr.bf16.mxu0 0
    %3442 = vmatpush1.bf16.msra.mxu0 0
    %3443 = vmatprep.subr.bf16.mxu0 0
    %3444 = vmatpush1.bf16.msra.mxu0 0
    %3445 = vmatprep.subr.bf16.mxu0 0
    %3446 = vmatpush1.bf16.msra.mxu0 0
    %3447 = vmatprep.subr.bf16.mxu0 0
    %3448 = vmatpush1.bf16.msra.mxu0 0
    %3449 = vmatprep.subr.bf16.mxu0 0
    %3450 = vmatpush1.bf16.msra.mxu0 0
    %3451 = vmatprep.subr.bf16.mxu0 0
    %3452 = vmatpush1.bf16.msra.mxu0 0
    %3453 = vmatprep.subr.bf16.mxu0 0
    %3454 = vmatpush1.bf16.msra.mxu0 0
    %3455 = vmatprep.subr.bf16.mxu0 0
    %3456 = vmatpush1.bf16.msra.mxu0 0
    %3457 = vmatprep.subr.bf16.mxu0 0
    %3458 = vmatpush1.bf16.msra.mxu0 0
    %3459 = vmatprep.mubr.bf16.mxu0 0
    %3460 = vmatmul.mubr.bf16.gmra.mrb[0].mxu0 %v3425
    %v3461 = vpop.f32.mrb[0].mxu0
    %v3462 = vadd.f32 0.0, %v3461
    %v3463 = vpop.f32.mrb[0].mxu0
    %v3464 = vpop.f32.mrb[0].mxu0
    %v3465 = vpop.f32.mrb[0].mxu0
    %3466 = vdwg.mxu0
    %v3467 = vadd.f32 %v3392, %v3462
    %v3468 = vld [vmem:[%s4 + $0x1b0] sm:$0xf]
    %v3469 = vld [vmem:[%s4 + $0x1b4] sm:$0xf]
    %v3470 = vld [vmem:[%s4 + $0x1b8] sm:$0xf]
    %v3471 = vld [vmem:[%s4 + $0x1bc] sm:$0xf]
    %v3472 = vrot.slane %v3239, 3
    %v3473 = vrot.slane %v3240, 2
    %v3474 = vsel %vm1415, %v3473, %v3472
    %v3475 = vrot.slane %v3241, 1
    %v3476 = vsel %vm1418, %v3475, %v3474
    %v3477 = vsel %vm1421, %v3242, %v3476
    %v3478 = vrot.slane %v3243, 7
    %v3479 = vsel %vm1424, %v3478, %v3477
    %v3480 = vrot.slane %v3244, 6
    %v3481 = vsel %vm1427, %v3480, %v3479
    %v3482 = vrot.slane %v3245, 5
    %v3483 = vsel %vm1430, %v3482, %v3481
    %v3484 = vrot.slane %v3246, 4
    %v3485 = vsel %vm1433, %v3484, %v3483
    %v3486 = vpack.c.b16 %v3485, %v3485
    %v3491 = vunpack.c.l.b16 %v3468
    %v3492 = vunpack.c.l.b16 %v3469
    %v3493 = vunpack.c.l.b16 %v3470
    %v3494 = vunpack.c.l.b16 %v3471
    %v3495 = vpack.c.b16 %v3492, %v3491
    %v3496 = vpack.c.b16 %v3494, %v3493
    %v3500 = vsel %vm848, %v3486, 0
    %3502 = vmatprep.subr.bf16.mxu0 0
    %3503 = vmatpush1.bf16.msra.mxu0 %v3495
    %3504 = vmatprep.subr.bf16.mxu0 0
    %3505 = vmatpush1.bf16.msra.mxu0 %v3496
    %3506 = vmatprep.subr.bf16.mxu0 0
    %3507 = vmatpush1.bf16.msra.mxu0 0
    %3508 = vmatprep.subr.bf16.mxu0 0
    %3509 = vmatpush1.bf16.msra.mxu0 0
    %3510 = vmatprep.subr.bf16.mxu0 0
    %3511 = vmatpush1.bf16.msra.mxu0 0
    %3512 = vmatprep.subr.bf16.mxu0 0
    %3513 = vmatpush1.bf16.msra.mxu0 0
    %3514 = vmatprep.subr.bf16.mxu0 0
    %3515 = vmatpush1.bf16.msra.mxu0 0
    %3516 = vmatprep.subr.bf16.mxu0 0
    %3517 = vmatpush1.bf16.msra.mxu0 0
    %3518 = vmatprep.subr.bf16.mxu0 0
    %3519 = vmatpush1.bf16.msra.mxu0 0
    %3520 = vmatprep.subr.bf16.mxu0 0
    %3521 = vmatpush1.bf16.msra.mxu0 0
    %3522 = vmatprep.subr.bf16.mxu0 0
    %3523 = vmatpush1.bf16.msra.mxu0 0
    %3524 = vmatprep.subr.bf16.mxu0 0
    %3525 = vmatpush1.bf16.msra.mxu0 0
    %3526 = vmatprep.subr.bf16.mxu0 0
    %3527 = vmatpush1.bf16.msra.mxu0 0
    %3528 = vmatprep.subr.bf16.mxu0 0
    %3529 = vmatpush1.bf16.msra.mxu0 0
    %3530 = vmatprep.subr.bf16.mxu0 0
    %3531 = vmatpush1.bf16.msra.mxu0 0
    %3532 = vmatprep.subr.bf16.mxu0 0
    %3533 = vmatpush1.bf16.msra.mxu0 0
    %3534 = vmatprep.mubr.bf16.mxu0 0
    %3535 = vmatmul.mubr.bf16.gmra.mrb[0].mxu0 %v3500
    %v3536 = vpop.f32.mrb[0].mxu0
    %v3537 = vadd.f32 0.0, %v3536
    %v3538 = vpop.f32.mrb[0].mxu0
    %v3539 = vpop.f32.mrb[0].mxu0
    %v3540 = vpop.f32.mrb[0].mxu0
    %3541 = vdwg.mxu0
    %v3542 = vadd.f32 %v3467, %v3537
    %v3543 = vld [vmem:[%s4 + $0x1c0] sm:$0xf]
    %v3544 = vld [vmem:[%s4 + $0x1c4] sm:$0xf]
    %v3545 = vld [vmem:[%s4 + $0x1c8] sm:$0xf]
    %v3546 = vld [vmem:[%s4 + $0x1cc] sm:$0xf]
    %v3547 = vrot.slane %v3239, 4
    %v3548 = vrot.slane %v3240, 3
    %v3549 = vsel %vm1415, %v3548, %v3547
    %v3550 = vrot.slane %v3241, 2
    %v3551 = vsel %vm1418, %v3550, %v3549
    %v3552 = vrot.slane %v3242, 1
    %v3553 = vsel %vm1421, %v3552, %v3551
    %v3554 = vsel %vm1424, %v3243, %v3553
    %v3555 = vrot.slane %v3244, 7
    %v3556 = vsel %vm1427, %v3555, %v3554
    %v3557 = vrot.slane %v3245, 6
    %v3558 = vsel %vm1430, %v3557, %v3556
    %v3559 = vrot.slane %v3246, 5
    %v3560 = vsel %vm1433, %v3559, %v3558
    %v3561 = vpack.c.b16 %v3560, %v3560
    %v3566 = vunpack.c.l.b16 %v3543
    %v3567 = vunpack.c.l.b16 %v3544
    %v3568 = vunpack.c.l.b16 %v3545
    %v3569 = vunpack.c.l.b16 %v3546
    %v3570 = vpack.c.b16 %v3567, %v3566
    %v3571 = vpack.c.b16 %v3569, %v3568
    %v3575 = vsel %vm848, %v3561, 0
    %3577 = vmatprep.subr.bf16.mxu0 0
    %3578 = vmatpush1.bf16.msra.mxu0 %v3570
    %3579 = vmatprep.subr.bf16.mxu0 0
    %3580 = vmatpush1.bf16.msra.mxu0 %v3571
    %3581 = vmatprep.subr.bf16.mxu0 0
    %3582 = vmatpush1.bf16.msra.mxu0 0
    %3583 = vmatprep.subr.bf16.mxu0 0
    %3584 = vmatpush1.bf16.msra.mxu0 0
    %3585 = vmatprep.subr.bf16.mxu0 0
    %3586 = vmatpush1.bf16.msra.mxu0 0
    %3587 = vmatprep.subr.bf16.mxu0 0
    %3588 = vmatpush1.bf16.msra.mxu0 0
    %3589 = vmatprep.subr.bf16.mxu0 0
    %3590 = vmatpush1.bf16.msra.mxu0 0
    %3591 = vmatprep.subr.bf16.mxu0 0
    %3592 = vmatpush1.bf16.msra.mxu0 0
    %3593 = vmatprep.subr.bf16.mxu0 0
    %3594 = vmatpush1.bf16.msra.mxu0 0
    %3595 = vmatprep.subr.bf16.mxu0 0
    %3596 = vmatpush1.bf16.msra.mxu0 0
    %3597 = vmatprep.subr.bf16.mxu0 0
    %3598 = vmatpush1.bf16.msra.mxu0 0
    %3599 = vmatprep.subr.bf16.mxu0 0
    %3600 = vmatpush1.bf16.msra.mxu0 0
    %3601 = vmatprep.subr.bf16.mxu0 0
    %3602 = vmatpush1.bf16.msra.mxu0 0
    %3603 = vmatprep.subr.bf16.mxu0 0
    %3604 = vmatpush1.bf16.msra.mxu0 0
    %3605 = vmatprep.subr.bf16.mxu0 0
    %3606 = vmatpush1.bf16.msra.mxu0 0
    %3607 = vmatprep.subr.bf16.mxu0 0
    %3608 = vmatpush1.bf16.msra.mxu0 0
    %3609 = vmatprep.mubr.bf16.mxu0 0
    %3610 = vmatmul.mubr.bf16.gmra.mrb[0].mxu0 %v3575
    %v3611 = vpop.f32.mrb[0].mxu0
    %v3612 = vadd.f32 0.0, %v3611
    %v3613 = vpop.f32.mrb[0].mxu0
    %v3614 = vpop.f32.mrb[0].mxu0
    %v3615 = vpop.f32.mrb[0].mxu0
    %3616 = vdwg.mxu0
    %v3617 = vadd.f32 %v3542, %v3612
    %v3618 = vld [vmem:[%s4 + $0x1d0] sm:$0xf]
    %v3619 = vld [vmem:[%s4 + $0x1d4] sm:$0xf]
    %v3620 = vld [vmem:[%s4 + $0x1d8] sm:$0xf]
    %v3621 = vld [vmem:[%s4 + $0x1dc] sm:$0xf]
    %v3622 = vrot.slane %v3239, 5
    %v3623 = vrot.slane %v3240, 4
    %v3624 = vsel %vm1415, %v3623, %v3622
    %v3625 = vrot.slane %v3241, 3
    %v3626 = vsel %vm1418, %v3625, %v3624
    %v3627 = vrot.slane %v3242, 2
    %v3628 = vsel %vm1421, %v3627, %v3626
    %v3629 = vrot.slane %v3243, 1
    %v3630 = vsel %vm1424, %v3629, %v3628
    %v3631 = vsel %vm1427, %v3244, %v3630
    %v3632 = vrot.slane %v3245, 7
    %v3633 = vsel %vm1430, %v3632, %v3631
    %v3634 = vrot.slane %v3246, 6
    %v3635 = vsel %vm1433, %v3634, %v3633
    %v3636 = vpack.c.b16 %v3635, %v3635
    %v3641 = vunpack.c.l.b16 %v3618
    %v3642 = vunpack.c.l.b16 %v3619
    %v3643 = vunpack.c.l.b16 %v3620
    %v3644 = vunpack.c.l.b16 %v3621
    %v3645 = vpack.c.b16 %v3642, %v3641
    %v3646 = vpack.c.b16 %v3644, %v3643
    %v3650 = vsel %vm848, %v3636, 0
    %3652 = vmatprep.subr.bf16.mxu0 0
    %3653 = vmatpush1.bf16.msra.mxu0 %v3645
    %3654 = vmatprep.subr.bf16.mxu0 0
    %3655 = vmatpush1.bf16.msra.mxu0 %v3646
    %3656 = vmatprep.subr.bf16.mxu0 0
    %3657 = vmatpush1.bf16.msra.mxu0 0
    %3658 = vmatprep.subr.bf16.mxu0 0
    %3659 = vmatpush1.bf16.msra.mxu0 0
    %3660 = vmatprep.subr.bf16.mxu0 0
    %3661 = vmatpush1.bf16.msra.mxu0 0
    %3662 = vmatprep.subr.bf16.mxu0 0
    %3663 = vmatpush1.bf16.msra.mxu0 0
    %3664 = vmatprep.subr.bf16.mxu0 0
    %3665 = vmatpush1.bf16.msra.mxu0 0
    %3666 = vmatprep.subr.bf16.mxu0 0
    %3667 = vmatpush1.bf16.msra.mxu0 0
    %3668 = vmatprep.subr.bf16.mxu0 0
    %3669 = vmatpush1.bf16.msra.mxu0 0
    %3670 = vmatprep.subr.bf16.mxu0 0
    %3671 = vmatpush1.bf16.msra.mxu0 0
    %3672 = vmatprep.subr.bf16.mxu0 0
    %3673 = vmatpush1.bf16.msra.mxu0 0
    %3674 = vmatprep.subr.bf16.mxu0 0
    %3675 = vmatpush1.bf16.msra.mxu0 0
    %3676 = vmatprep.subr.bf16.mxu0 0
    %3677 = vmatpush1.bf16.msra.mxu0 0
    %3678 = vmatprep.subr.bf16.mxu0 0
    %3679 = vmatpush1.bf16.msra.mxu0 0
    %3680 = vmatprep.subr.bf16.mxu0 0
    %3681 = vmatpush1.bf16.msra.mxu0 0
    %3682 = vmatprep.subr.bf16.mxu0 0
    %3683 = vmatpush1.bf16.msra.mxu0 0
    %3684 = vmatprep.mubr.bf16.mxu0 0
    %3685 = vmatmul.mubr.bf16.gmra.mrb[0].mxu0 %v3650
    %v3686 = vpop.f32.mrb[0].mxu0
    %v3687 = vadd.f32 0.0, %v3686
    %v3688 = vpop.f32.mrb[0].mxu0
    %v3689 = vpop.f32.mrb[0].mxu0
    %v3690 = vpop.f32.mrb[0].mxu0
    %3691 = vdwg.mxu0
    %v3692 = vadd.f32 %v3617, %v3687
    %v3693 = vld [vmem:[%s4 + $0x1e0] sm:$0xf]
    %v3694 = vld [vmem:[%s4 + $0x1e4] sm:$0xf]
    %v3695 = vld [vmem:[%s4 + $0x1e8] sm:$0xf]
    %v3696 = vld [vmem:[%s4 + $0x1ec] sm:$0xf]
    %v3697 = vrot.slane %v3239, 6
    %v3698 = vrot.slane %v3240, 5
    %v3699 = vsel %vm1415, %v3698, %v3697
    %v3700 = vrot.slane %v3241, 4
    %v3701 = vsel %vm1418, %v3700, %v3699
    %v3702 = vrot.slane %v3242, 3
    %v3703 = vsel %vm1421, %v3702, %v3701
    %v3704 = vrot.slane %v3243, 2
    %v3705 = vsel %vm1424, %v3704, %v3703
    %v3706 = vrot.slane %v3244, 1
    %v3707 = vsel %vm1427, %v3706, %v3705
    %v3708 = vsel %vm1430, %v3245, %v3707
    %v3709 = vrot.slane %v3246, 7
    %v3710 = vsel %vm1433, %v3709, %v3708
    %v3711 = vpack.c.b16 %v3710, %v3710
    %v3716 = vunpack.c.l.b16 %v3693
    %v3717 = vunpack.c.l.b16 %v3694
    %v3718 = vunpack.c.l.b16 %v3695
    %v3719 = vunpack.c.l.b16 %v3696
    %v3720 = vpack.c.b16 %v3717, %v3716
    %v3721 = vpack.c.b16 %v3719, %v3718
    %v3725 = vsel %vm848, %v3711, 0
    %3727 = vmatprep.subr.bf16.mxu0 0
    %3728 = vmatpush1.bf16.msra.mxu0 %v3720
    %3729 = vmatprep.subr.bf16.mxu0 0
    %3730 = vmatpush1.bf16.msra.mxu0 %v3721
    %3731 = vmatprep.subr.bf16.mxu0 0
    %3732 = vmatpush1.bf16.msra.mxu0 0
    %3733 = vmatprep.subr.bf16.mxu0 0
    %3734 = vmatpush1.bf16.msra.mxu0 0
    %3735 = vmatprep.subr.bf16.mxu0 0
    %3736 = vmatpush1.bf16.msra.mxu0 0
    %3737 = vmatprep.subr.bf16.mxu0 0
    %3738 = vmatpush1.bf16.msra.mxu0 0
    %3739 = vmatprep.subr.bf16.mxu0 0
    %3740 = vmatpush1.bf16.msra.mxu0 0
    %3741 = vmatprep.subr.bf16.mxu0 0
    %3742 = vmatpush1.bf16.msra.mxu0 0
    %3743 = vmatprep.subr.bf16.mxu0 0
    %3744 = vmatpush1.bf16.msra.mxu0 0
    %3745 = vmatprep.subr.bf16.mxu0 0
    %3746 = vmatpush1.bf16.msra.mxu0 0
    %3747 = vmatprep.subr.bf16.mxu0 0
    %3748 = vmatpush1.bf16.msra.mxu0 0
    %3749 = vmatprep.subr.bf16.mxu0 0
    %3750 = vmatpush1.bf16.msra.mxu0 0
    %3751 = vmatprep.subr.bf16.mxu0 0
    %3752 = vmatpush1.bf16.msra.mxu0 0
    %3753 = vmatprep.subr.bf16.mxu0 0
    %3754 = vmatpush1.bf16.msra.mxu0 0
    %3755 = vmatprep.subr.bf16.mxu0 0
    %3756 = vmatpush1.bf16.msra.mxu0 0
    %3757 = vmatprep.subr.bf16.mxu0 0
    %3758 = vmatpush1.bf16.msra.mxu0 0
    %3759 = vmatprep.mubr.bf16.mxu0 0
    %3760 = vmatmul.mubr.bf16.gmra.mrb[0].mxu0 %v3725
    %v3761 = vpop.f32.mrb[0].mxu0
    %v3762 = vadd.f32 0.0, %v3761
    %v3763 = vpop.f32.mrb[0].mxu0
    %v3764 = vpop.f32.mrb[0].mxu0
    %v3765 = vpop.f32.mrb[0].mxu0
    %3766 = vdwg.mxu0
    %v3767 = vadd.f32 %v3692, %v3762
    %v3768 = vld [vmem:[%s4 + $0x1f0] sm:$0xf]
    %v3769 = vld [vmem:[%s4 + $0x1f4] sm:$0xf]
    %v3770 = vld [vmem:[%s4 + $0x1f8] sm:$0xf]
    %v3771 = vld [vmem:[%s4 + $0x1fc] sm:$0xf]
    %v3772 = vrot.slane %v3239, 7
    %v3773 = vrot.slane %v3240, 6
    %v3774 = vsel %vm1415, %v3773, %v3772
    %v3775 = vrot.slane %v3241, 5
    %v3776 = vsel %vm1418, %v3775, %v3774
    %v3777 = vrot.slane %v3242, 4
    %v3778 = vsel %vm1421, %v3777, %v3776
    %v3779 = vrot.slane %v3243, 3
    %v3780 = vsel %vm1424, %v3779, %v3778
    %v3781 = vrot.slane %v3244, 2
    %v3782 = vsel %vm1427, %v3781, %v3780
    %v3783 = vrot.slane %v3245, 1
    %v3784 = vsel %vm1430, %v3783, %v3782
    %v3785 = vsel %vm1433, %v3246, %v3784
    %v3786 = vpack.c.b16 %v3785, %v3785
    %v3791 = vunpack.c.l.b16 %v3768
    %v3792 = vunpack.c.l.b16 %v3769
    %v3793 = vunpack.c.l.b16 %v3770
    %v3794 = vunpack.c.l.b16 %v3771
    %v3795 = vpack.c.b16 %v3792, %v3791
    %v3796 = vpack.c.b16 %v3794, %v3793
    %v3800 = vsel %vm848, %v3786, 0
    %3802 = vmatprep.subr.bf16.mxu0 0
    %3803 = vmatpush1.bf16.msra.mxu0 %v3795
    %3804 = vmatprep.subr.bf16.mxu0 0
    %3805 = vmatpush1.bf16.msra.mxu0 %v3796
    %3806 = vmatprep.subr.bf16.mxu0 0
    %3807 = vmatpush1.bf16.msra.mxu0 0
    %3808 = vmatprep.subr.bf16.mxu0 0
    %3809 = vmatpush1.bf16.msra.mxu0 0
    %3810 = vmatprep.subr.bf16.mxu0 0
    %3811 = vmatpush1.bf16.msra.mxu0 0
    %3812 = vmatprep.subr.bf16.mxu0 0
    %3813 = vmatpush1.bf16.msra.mxu0 0
    %3814 = vmatprep.subr.bf16.mxu0 0
    %3815 = vmatpush1.bf16.msra.mxu0 0
    %3816 = vmatprep.subr.bf16.mxu0 0
    %3817 = vmatpush1.bf16.msra.mxu0 0
    %3818 = vmatprep.subr.bf16.mxu0 0
    %3819 = vmatpush1.bf16.msra.mxu0 0
    %3820 = vmatprep.subr.bf16.mxu0 0
    %3821 = vmatpush1.bf16.msra.mxu0 0
    %3822 = vmatprep.subr.bf16.mxu0 0
    %3823 = vmatpush1.bf16.msra.mxu0 0
    %3824 = vmatprep.subr.bf16.mxu0 0
    %3825 = vmatpush1.bf16.msra.mxu0 0
    %3826 = vmatprep.subr.bf16.mxu0 0
    %3827 = vmatpush1.bf16.msra.mxu0 0
    %3828 = vmatprep.subr.bf16.mxu0 0
    %3829 = vmatpush1.bf16.msra.mxu0 0
    %3830 = vmatprep.subr.bf16.mxu0 0
    %3831 = vmatpush1.bf16.msra.mxu0 0
    %3832 = vmatprep.subr.bf16.mxu0 0
    %3833 = vmatpush1.bf16.msra.mxu0 0
    %3834 = vmatprep.mubr.bf16.mxu0 0
    %3835 = vmatmul.mubr.bf16.gmra.mrb[0].mxu0 %v3800
    %v3836 = vpop.f32.mrb[0].mxu0
    %v3837 = vadd.f32 0.0, %v3836
    %v3838 = vpop.f32.mrb[0].mxu0
    %v3839 = vpop.f32.mrb[0].mxu0
    %v3840 = vpop.f32.mrb[0].mxu0
    %3841 = vdwg.mxu0
    %v3842 = vadd.f32 %v3767, %v3837
    %v3843 = vld [vmem:[#allocation2] sm:$0xff]
    %v3844 = vadd.f32 %v3843, %v3842
    %3845 = vst.msk [vmem:[#allocation2] sm:$0xff] %vm167, %v3844
    // Predicated region
    $region38: #{tpu_custom_call.1} parent=1 // pred_check
      %p3846 = pneg %p31
    $region39: #{tpu_custom_call.1} parent=1 // pred_check_branch
      %3848 = sbr.rel (%p3846) target = $region41
    $region40: #{tpu_custom_call.1} parent=1 // pred_region
      %v3849 = vld [vmem:[#allocation2] sm:$0xff]
      %v3850 = vld [vmem:[%s5] sm:$0x1]
      %v3852 = vlaneseq
      %v3853 = vshrl.u32 %v3852, 7
      %v3854 = vsub.s32 0, %v3853
      %v3855 = vrot.slane %v3850, %v3854
      %v3857 = vadd.f32 %v3849, %v3855
      %v3858 = vld [vmem:[%s6] sm:$0x1]
      %v3859 = vld [vmem:[%s7] sm:$0x1]
      %v3860 = vsel %vm167, %v3857, 0.0
      %3861 = vadd.xlane.f32.xlu0 %v3860
      %v3862 = vpop.xlane.xlu0 %3861
      %v3863 = vrcp.pop 64.0
      %v3864 = vmul.f32 %v3862, %v3863
      %v3865 = vsub.f32 %v3857, %v3864
      %v3866 = vmul.f32 %v3865, %v3865
      %v3867 = vsel %vm167, %v3866, 0.0
      %3868 = vadd.xlane.f32.xlu0 %v3867
      %v3869 = vpop.xlane.xlu0 %3868
      %v3870 = vmul.f32 %v3869, %v3863
      %v3871 = vadd.f32 %v3870, 1e-05
      %v3872 = vrsqrt.pop %v3871
      %v3873 = vmul.f32 %v3865, %v3872
      %v3875 = vlaneseq
      %v3876 = vshrl.u32 %v3875, 7
      %v3877 = vsub.s32 0, %v3876
      %v3878 = vrot.slane %v3858, %v3877
      %v3880 = vmul.f32 %v3873, %v3878
      %v3882 = vlaneseq
      %v3883 = vshrl.u32 %v3882, 7
      %v3884 = vsub.s32 0, %v3883
      %v3885 = vrot.slane %v3859, %v3884
      %v3887 = vadd.f32 %v3880, %v3885
      %v3888 = vmax.f32 %v3887, 0.0
      %3889 = vst.msk [vmem:[#allocation3] sm:$0xff] %vm167, %v3888
    $region41: #{tpu_custom_call.1} parent=1 // pred_fallthru
      _
    // Predicated region
    $region42: #{tpu_custom_call.1} parent=1 // pred_check
      _
    $region43: #{tpu_custom_call.1} parent=1 // pred_check_branch
      %3891 = sbr.rel (0) target = $region45
    $region44: #{tpu_custom_call.1} parent=1 // pred_region
      %s3893 = ssub.s32 128, 128
      %3894 = vsyncadd [#allocation4], %s3893
      %s3896 = sshll.u32 [#allocation3], 4
      %s3897 = int_to_ptr.vmem [resolvable:$true] %s3896
      %3899 = dma.vmem_to_hbm [thread:$0]  %s3897, 128, %s8, [#allocation4]
    $region45: #{tpu_custom_call.1} parent=1 // pred_fallthru
      _
    // Predicated region
    $region46: #{tpu_custom_call.1} parent=1 // pred_check
      _
    $region47: #{tpu_custom_call.1} parent=1 // pred_check_branch
      %3901 = sbr.rel (0) target = $region49
    $region48: #{tpu_custom_call.1} parent=1 // pred_region
      %3902 = dma.done [#allocation4], 128
    $region49: #{tpu_custom_call.1} parent=1 // pred_fallthru
      _
    %3903 = vsyncpa [#allocation4], 1

</llo_original>
